<compile_context>
chip_gen: v7x
topology: tpu7x:2x2x1
jax: 0.10.0
libtpu: 0.0.40
codegen_flags: <defaults>
</compile_context>

<pallas_src>
import numpy as np
import jax
import jax.numpy as jnp
from jax.experimental import pallas as pl
from jax.experimental.pallas import tpu as pltpu

_VMEM_LIMIT = 48 * 1024 * 1024


# ------------------------------ tiling helper ------------------------------

def _choose_tile(n):
    """Pick a point-tile size and padded point count (multiple of the tile).
    Prefer large tiles (amortize ~0.35us per grid step) unless padding waste is big."""
    for t in (2048, 1024, 512, 256, 128):
        n_pad = -(-n // t) * t
        if n_pad - n <= max(n // 8, 127):
            return t, n_pad
    return 128, -(-n // 128) * 128


# ------------------------------ Pallas kernels ------------------------------

def fused_trunk_max(x, layers, tn):
    """Fused pointwise-conv stack + running max over points.

    x: (B, N_pad, Cin) bf16.  layers: list of (w, b, relu) where w is f32 (Ci,Co)
    shared or (B,Ci,Co) per-batch and b is f32 (1,Co).  Weights are cast to bf16 here;
    matmuls accumulate in f32.  Returns (B, Cout_last) f32 global max-pooled feature.
    """
    B, n_pad, cin = x.shape
    per_batch = [w.ndim == 3 for (w, _, _) in layers]
    relus = [r for (_, _, r) in layers]
    cout = layers[-1][0].shape[-1]
    n_layers = len(layers)

    def kernel(*refs):
        x_ref = refs[0]
        wb = refs[1:1 + 2 * n_layers]
        g_ref = refs[-2]
        acc_ref = refs[-1]
        j = pl.program_id(1)

        @pl.when(j == 0)
        def _():
            acc_ref[...] = jnp.full_like(acc_ref, -jnp.inf)

        h = x_ref[0]                                  # bf16 (tn, Cin)
        for li in range(n_layers):
            w_ref, b_ref = wb[2 * li], wb[2 * li + 1]
            w = w_ref[0] if per_batch[li] else w_ref[...]
            h = jnp.dot(h, w, preferred_element_type=jnp.float32) + b_ref[...]
            if relus[li]:
                h = jnp.maximum(h, 0.0)
            if li + 1 < n_layers:
                h = h.astype(jnp.bfloat16)            # bf16 operands for the next MXU pass
        acc_ref[...] = jnp.maximum(acc_ref[...], jnp.max(h, axis=0, keepdims=True))

        @pl.when(j == pl.num_programs(1) - 1)
        def _():
            g_ref[0] = acc_ref[...]

    in_specs = [pl.BlockSpec((1, tn, cin), lambda b, j: (b, j, 0))]
    args = [x]
    flops = 0
    wbytes = 0
    for (w, bb, _), pb in zip(layers, per_batch):
        ci, co = w.shape[-2], w.shape[-1]
        flops += 2 * B * n_pad * ci * co
        if pb:
            in_specs.append(pl.BlockSpec((1, ci, co), lambda b, j: (b, 0, 0)))
            wbytes += B * ci * co * 2
        else:
            in_specs.append(pl.BlockSpec((ci, co), lambda b, j: (0, 0)))
            wbytes += ci * co * 2
        in_specs.append(pl.BlockSpec((1, co), lambda b, j: (0, 0)))
        wbytes += co * 4
        args.extend([w.astype(jnp.bfloat16), bb])

    bytes_accessed = B * n_pad * cin * 2 + wbytes + B * cout * 4

    g = pl.pallas_call(
        kernel,
        out_shape=jax.ShapeDtypeStruct((B, 1, cout), jnp.float32),
        grid=(B, n_pad // tn),
        in_specs=in_specs,
        out_specs=pl.BlockSpec((1, 1, cout), lambda b, j: (b, 0, 0)),
        scratch_shapes=[pltpu.VMEM((1, cout), jnp.float32)],
        compiler_params=pltpu.CompilerParams(
            dimension_semantics=("parallel", "arbitrary"),
            vmem_limit_bytes=_VMEM_LIMIT),
        cost_estimate=pl.CostEstimate(flops=int(flops), transcendentals=0,
                                      bytes_accessed=int(bytes_accessed)),
    )(*args)
    return g[:, 0, :]


def _head_kernel(x_ref, w1_ref, b1_ref, wp1_ref, gb_ref, w2_ref, b2_ref,
                 w3_ref, b3_ref, w4_ref, b4_ref, o_ref):
    """Head conv1-4 fused.  The per-point feature h is recomputed from x (no HBM round
    trip); conv1 = pointfeat-part matmul (per-batch folded weight) + per-batch
    global-feature bias; conv4 padded to 8 output channels."""
    h = jnp.maximum(
        jnp.dot(x_ref[0], w1_ref[0], preferred_element_type=jnp.float32) + b1_ref[...],
        0.0)
    y = jnp.maximum(
        jnp.dot(h.astype(jnp.bfloat16), wp1_ref[0],
                preferred_element_type=jnp.float32) + gb_ref[0], 0.0)
    y = jnp.maximum(
        jnp.dot(y.astype(jnp.bfloat16), w2_ref[...],
                preferred_element_type=jnp.float32) + b2_ref[...], 0.0)
    y = jnp.maximum(
        jnp.dot(y.astype(jnp.bfloat16), w3_ref[...],
                preferred_element_type=jnp.float32) + b3_ref[...], 0.0)
    y = jax.nn.sigmoid(
        jnp.dot(y.astype(jnp.bfloat16), w4_ref[...],
                preferred_element_type=jnp.float32) + b4_ref[...])
    o_ref[0] = y


def head(x, w1b, b1, wp1b, gbias, w2, b2, w3, b3, w4p, b4p, tn):
    B, n_pad, D = x.shape
    cp = w4p.shape[1]
    flops = 2 * B * n_pad * (D * 64 + 64 * 512 + 512 * 256 + 256 * 128 + 128 * cp)
    bytes_accessed = (B * n_pad * D * 2 + B * n_pad * cp * 4
                      + B * (D * 64 + 64 * 512 + 512) * 2
                      + (512 * 256 + 256 * 128 + 128 * cp) * 2)
    return pl.pallas_call(
        _head_kernel,
        out_shape=jax.ShapeDtypeStruct((B, n_pad, cp), jnp.float32),
        grid=(B, n_pad // tn),
        in_specs=[
            pl.BlockSpec((1, tn, D), lambda b, j: (b, j, 0)),
            pl.BlockSpec((1, D, 64), lambda b, j: (b, 0, 0)),
            pl.BlockSpec((1, 64), lambda b, j: (0, 0)),
            pl.BlockSpec((1, 64, 512), lambda b, j: (b, 0, 0)),
            pl.BlockSpec((1, 1, 512), lambda b, j: (b, 0, 0)),
            pl.BlockSpec((512, 256), lambda b, j: (0, 0)),
            pl.BlockSpec((1, 256), lambda b, j: (0, 0)),
            pl.BlockSpec((256, 128), lambda b, j: (0, 0)),
            pl.BlockSpec((1, 128), lambda b, j: (0, 0)),
            pl.BlockSpec((128, cp), lambda b, j: (0, 0)),
            pl.BlockSpec((1, cp), lambda b, j: (0, 0)),
        ],
        out_specs=pl.BlockSpec((1, tn, cp), lambda b, j: (b, j, 0)),
        compiler_params=pltpu.CompilerParams(
            dimension_semantics=("parallel", "parallel"),
            vmem_limit_bytes=_VMEM_LIMIT),
        cost_estimate=pl.CostEstimate(flops=int(flops),
                                      transcendentals=int(B * n_pad * cp),
                                      bytes_accessed=int(bytes_accessed)),
    )(x, w1b.astype(jnp.bfloat16), b1, wp1b.astype(jnp.bfloat16), gbias,
      w2.astype(jnp.bfloat16), b2, w3.astype(jnp.bfloat16), b3,
      w4p.astype(jnp.bfloat16), b4p)


# -------------------------------- parameters --------------------------------

def make_linear(key, cin, cout, bn=True):
    """Deterministic weights; eval-mode BatchNorm folded into (w, b)."""
    ks = jax.random.split(key, 6)
    w = jax.random.normal(ks[0], (cin, cout), jnp.float32) * (1.0 / np.sqrt(cin))
    b = jax.random.normal(ks[1], (cout,), jnp.float32) * 0.01
    if bn:
        eps = 1e-5
        gamma = jax.random.uniform(ks[2], (cout,), jnp.float32, 0.8, 1.2)
        beta = jax.random.normal(ks[3], (cout,), jnp.float32) * 0.01
        mean = jax.random.normal(ks[4], (cout,), jnp.float32) * 0.01
        var = jax.random.uniform(ks[5], (cout,), jnp.float32, 0.9, 1.1)
        scale = gamma / jnp.sqrt(var + eps)
        w = w * scale[None, :]
        b = scale * (b - mean) + beta
    return w, b.reshape(1, cout)


def make_params(key, n_in, n_out):
    keys = iter(jax.random.split(key, 32))

    def L(cin, cout, bn=True):
        return make_linear(next(keys), cin, cout, bn)

    return {
        "stn3d": {
            "conv1": L(n_in, 64), "conv2": L(64, 128), "conv3": L(128, 1024),
            "fc1": L(1024, 512), "fc2": L(512, 256), "fc3": L(256, 9, bn=False),
        },
        "stnkd": {
            "conv1": L(64, 64), "conv2": L(64, 128), "conv3": L(128, 1024),
            "fc1": L(1024, 512), "fc2": L(512, 256), "fc3": L(256, 64 * 64, bn=False),
        },
        "enc": {
            "conv1": L(n_in, 64), "conv2": L(64, 128), "conv3": L(128, 1024),
        },
        "head": {
            "conv1": L(1088, 512), "conv2": L(512, 256), "conv3": L(256, 128),
            "conv4": L(128, n_out, bn=False),
        },
    }


# --------------------------- XLA glue (tiny matmuls) ---------------------------

def _fc_stack(g, p):
    """fc1(relu)->fc2(relu)->fc3 on (B, 1024).  M=B is tiny; plain XLA, f32."""
    h = jnp.maximum(g @ p["fc1"][0] + p["fc1"][1], 0.0)
    h = jnp.maximum(h @ p["fc2"][0] + p["fc2"][1], 0.0)
    return h @ p["fc3"][0] + p["fc3"][1]


# --------------------------------- forward -----------------------------------

def pointnet_reg_forward_pallas(x, params, n_out):
    """x: (B, N, n_in) -> (B, N, n_out)."""
    B, N, D = x.shape
    p3, pk, pe, ph = params["stn3d"], params["stnkd"], params["enc"], params["head"]

    # Pad points to a multiple of the tile.  Padded points replicate the last real
    # point, so max-pools are unchanged; padded head rows are sliced off at the end.
    tn, n_pad = _choose_tile(N)
    if n_pad != N:
        x = jnp.pad(x, ((0, 0), (0, n_pad - N), (0, 0)), mode="edge")
    x_bf = x.astype(jnp.bfloat16)

    # ---- STN3d: fused conv1-3 + max (Pallas, bf16); FC stack in XLA f32 ----
    g3 = fused_trunk_max(
        x_bf, [(p3["conv1"][0], p3["conv1"][1], True),
               (p3["conv2"][0], p3["conv2"][1], True),
               (p3["conv3"][0], p3["conv3"][1], True)], tn)             # (B,1024)
    t9 = _fc_stack(g3, p3)                                              # (B,9)
    trans = t9.reshape(B, 3, 3) + jnp.eye(3, dtype=jnp.float32)[None]

    # Block-diagonal input transform (xyz transformed, extra features pass-through),
    # folded in f32 into the encoder conv1 weight: (x @ T) @ W == x @ (T @ W).
    t_full = jnp.zeros((B, D, D), jnp.float32)
    t_full = t_full.at[:, :3, :3].set(trans)
    if D > 3:
        t_full = t_full.at[:, 3:, 3:].set(jnp.eye(D - 3, dtype=jnp.float32)[None])
    w1_eff = jnp.einsum("bij,jk->bik", t_full, pe["conv1"][0])          # (B,D,64)
    b1 = pe["conv1"][1]

    # ---- STNkd: fused (enc conv1 + stnkd conv1-3) + max; FCs in XLA ----
    fg = fused_trunk_max(
        x_bf, [(w1_eff, b1, True),
               (pk["conv1"][0], pk["conv1"][1], True),
               (pk["conv2"][0], pk["conv2"][1], True),
               (pk["conv3"][0], pk["conv3"][1], True)], tn)             # (B,1024)
    tf = _fc_stack(fg, pk)                                              # (B,4096)
    trans_feat = tf.reshape(B, 64, 64) + jnp.eye(64, dtype=jnp.float32)[None]

    # Fold the feature transform (f32) into enc conv2 and the head conv1 pointfeat part.
    w2_eff = jnp.einsum("bij,jk->bik", trans_feat, pe["conv2"][0])      # (B,64,128)
    wh1, bh1 = ph["conv1"]                                              # (1088,512)
    wp1_eff = jnp.einsum("bij,jk->bik", trans_feat, wh1[1024:, :])      # (B,64,512)

    # ---- Encoder tail: conv1/conv2/conv3(no relu) + max fused; global feature only ----
    g = fused_trunk_max(
        x_bf, [(w1_eff, b1, True),
               (w2_eff, pe["conv2"][1], True),
               (pe["conv3"][0], pe["conv3"][1], False)], tn)            # (B,1024)

    # Global-feature contribution of head conv1 as a per-batch bias (no (B,N,1088) concat).
    gbias = (g @ wh1[:1024, :] + bh1).reshape(B, 1, 512)

    # Pad the final layer to 8 output channels (sliced after the kernel).
    w4, b4 = ph["conv4"]
    cp = max(8, ((n_out + 7) // 8) * 8)
    w4p = jnp.zeros((128, cp), jnp.float32).at[:, :n_out].set(w4)
    b4p = jnp.zeros((1, cp), jnp.float32).at[:, :n_out].set(b4)

    out = head(x_bf, w1_eff, b1, wp1_eff, gbias, ph["conv2"][0], ph["conv2"][1],
               ph["conv3"][0], ph["conv3"][1], w4p, b4p, tn)
    return out[:, :N, :n_out]


# ------------------------- pure-JAX reference (original structure) -------------------------

def _pw_ref(x, w, b, act=None):
    y = jnp.einsum("bnc,cd->bnd", x, w) + b
    if act == "relu":
        y = jnp.maximum(y, 0.0)
    elif act == "sigmoid":
        y = jax.nn.sigmoid(y)
    return y


def pointnet_reg_forward_ref(x, params):
    B, N, D = x.shape
    p3, pk, pe, ph = params["stn3d"], params["stnkd"], params["enc"], params["head"]

    # STN3d
    h = _pw_ref(x, *p3["conv1"], act="relu")
    h = _pw_ref(h, *p3["conv2"], act="relu")
    h = _pw_ref(h, *p3["conv3"], act="relu")
    g = jnp.max(h, axis=1)
    trans = _fc_stack(g, p3).reshape(B, 3, 3) + jnp.eye(3, dtype=jnp.float32)[None]

    xyz = jnp.einsum("bnk,bkm->bnm", x[:, :, :3], trans)
    xr = jnp.concatenate([xyz, x[:, :, 3:]], axis=2) if D > 3 else xyz

    h = _pw_ref(xr, *pe["conv1"], act="relu")
    f = _pw_ref(h, *pk["conv1"], act="relu")
    f = _pw_ref(f, *pk["conv2"], act="relu")
    f = _pw_ref(f, *pk["conv3"], act="relu")
    fg = jnp.max(f, axis=1)
    trans_feat = _fc_stack(fg, pk).reshape(B, 64, 64) + jnp.eye(64, dtype=jnp.float32)[None]
    h = jnp.einsum("bnk,bkm->bnm", h, trans_feat)

    pointfeat = h
    h = _pw_ref(h, *pe["conv2"], act="relu")
    h = _pw_ref(h, *pe["conv3"], act=None)
    g = jnp.max(h, axis=1)
    gb = jnp.broadcast_to(g[:, None, :], (B, N, 1024))
    h = jnp.concatenate([gb, pointfeat], axis=2)

    h = _pw_ref(h, *ph["conv1"], act="relu")
    h = _pw_ref(h, *ph["conv2"], act="relu")
    h = _pw_ref(h, *ph["conv3"], act="relu")
    h = _pw_ref(h, *ph["conv4"], act="sigmoid")
    return h


# ----------------------------------- main -----------------------------------

if __name__ == "__main__":
    B, N, n_in, n_out = 2, 64, 6, 3
    key = jax.random.PRNGKey(0)
    kx, kp = jax.random.split(key)
    x = jax.random.normal(kx, (B, N, n_in), jnp.float32)
    params = make_params(kp, n_in, n_out)

    fwd = jax.jit(pointnet_reg_forward_pallas, static_argnums=(2,))
    out = jax.block_until_ready(fwd(x, params, n_out))
    ref = jax.block_until_ready(pointnet_reg_forward_ref(x, params))

    assert out.shape == (B, N, n_out), out.shape
    assert bool(jnp.all(jnp.isfinite(out)))
    # bf16 MXU operands vs. the all-f32 reference: allow a few percent post-sigmoid.
    maxdiff = float(jnp.max(jnp.abs(out - ref)))
    assert maxdiff < 5e-2, f"mismatch vs reference: {maxdiff}"
    print("KERNEL_OK")
</pallas_src>

<mosaic_0001>
module attributes {stable_mosaic.version = 11 : i64} {
  func.func @kernel(%arg0: i32, %arg1: i32, %arg2: memref<1x128x6xbf16, #tpu.memory_space<vmem>>, %arg3: memref<6x64xbf16, #tpu.memory_space<vmem>>, %arg4: memref<1x64xf32, #tpu.memory_space<vmem>>, %arg5: memref<64x128xbf16, #tpu.memory_space<vmem>>, %arg6: memref<1x128xf32, #tpu.memory_space<vmem>>, %arg7: memref<128x1024xbf16, #tpu.memory_space<vmem>>, %arg8: memref<1x1024xf32, #tpu.memory_space<vmem>>, %arg9: memref<1x1x1024xf32, #tpu.memory_space<vmem>>, %arg10: memref<1x1024xf32, #tpu.memory_space<vmem>>) attributes {dimension_semantics = [#tpu.dimension_semantics<parallel>, #tpu.dimension_semantics<arbitrary>], iteration_bounds = array<i64: 2, 1>, scalar_prefetch = 0 : i64, scratch_operands = 1 : i64, tpu.core_type = #tpu.core_type<tc>, window_params = [{transform_indices = @transform_0, window_bounds = array<i64: 1, 128, 6>}, {pipeline_mode = #tpu.pipeline_mode<synchronous>, transform_indices = @transform_1, window_bounds = array<i64: 6, 64>}, {pipeline_mode = #tpu.pipeline_mode<synchronous>, transform_indices = @transform_2, window_bounds = array<i64: 1, 64>}, {pipeline_mode = #tpu.pipeline_mode<synchronous>, transform_indices = @transform_3, window_bounds = array<i64: 64, 128>}, {pipeline_mode = #tpu.pipeline_mode<synchronous>, transform_indices = @transform_4, window_bounds = array<i64: 1, 128>}, {pipeline_mode = #tpu.pipeline_mode<synchronous>, transform_indices = @transform_5, window_bounds = array<i64: 128, 1024>}, {pipeline_mode = #tpu.pipeline_mode<synchronous>, transform_indices = @transform_6, window_bounds = array<i64: 1, 1024>}, {transform_indices = @transform_7, window_bounds = array<i64: 1, 1, 1024>}]} {
    %c0_i32 = arith.constant 0 : i32
    %0 = arith.cmpi eq, %arg1, %c0_i32 : i32
    %1 = arith.extui %0 : i1 to i32
    %c0_i32_0 = arith.constant 0 : i32
    %2 = arith.cmpi ne, %1, %c0_i32_0 : i32
    scf.if %2 {
      %cst_27 = arith.constant 0xFF800000 : f32
      %36 = vector.broadcast %cst_27 : f32 to vector<1x1024xf32>
      %c0_28 = arith.constant 0 : index
      %c0_29 = arith.constant 0 : index
      %37 = vector.load %arg10[%c0_28, %c0_29] : memref<1x1024xf32, #tpu.memory_space<vmem>>, vector<1x1024xf32>
      tpu.vector_store %arg10[%c0_28, %c0_29], %36 {strides = array<i32>} : memref<1x1024xf32, #tpu.memory_space<vmem>>, vector<1x1024xf32>,
    } else {
    }
    %c0 = arith.constant 0 : index
    %c0_1 = arith.constant 0 : index
    %c0_2 = arith.constant 0 : index
    %3 = vector.load %arg2[%c0, %c0_1, %c0_2] : memref<1x128x6xbf16, #tpu.memory_space<vmem>>, vector<1x128x6xbf16>
    %4 = vector.shape_cast %3 : vector<1x128x6xbf16> to vector<128x6xbf16>
    %c0_3 = arith.constant 0 : index
    %c0_4 = arith.constant 0 : index
    %5 = vector.load %arg3[%c0_3, %c0_4] : memref<6x64xbf16, #tpu.memory_space<vmem>>, vector<6x64xbf16>
    %cst = arith.constant dense<0.000000e+00> : vector<128x64xf32>
    %6 = tpu.matmul %4, %5, %cst {dimension_numbers = #tpu.dot_dimension_numbers<[1], [0], [0], [1], [0, 0, 1, 1], [], []>} : vector<128x6xbf16>, vector<6x64xbf16>, vector<128x64xf32> -> vector<128x64xf32>
    %c0_5 = arith.constant 0 : index
    %c0_6 = arith.constant 0 : index
    %7 = vector.load %arg4[%c0_5, %c0_6] : memref<1x64xf32, #tpu.memory_space<vmem>>, vector<1x64xf32>
    %8 = vector.broadcast %7 : vector<1x64xf32> to vector<128x64xf32>
    %9 = arith.addf %6, %8 : vector<128x64xf32>
    %cst_7 = arith.constant 0.000000e+00 : f32
    %10 = vector.broadcast %cst_7 : f32 to vector<128x64xf32>
    %11 = arith.maximumf %9, %10 : vector<128x64xf32>
    %12 = arith.truncf %11 : vector<128x64xf32> to vector<128x64xbf16>
    %c0_8 = arith.constant 0 : index
    %c0_9 = arith.constant 0 : index
    %13 = vector.load %arg5[%c0_8, %c0_9] : memref<64x128xbf16, #tpu.memory_space<vmem>>, vector<64x128xbf16>
    %cst_10 = arith.constant dense<0.000000e+00> : vector<128x128xf32>
    %14 = tpu.matmul %12, %13, %cst_10 {dimension_numbers = #tpu.dot_dimension_numbers<[1], [0], [0], [1], [0, 0, 1, 1], [], []>} : vector<128x64xbf16>, vector<64x128xbf16>, vector<128x128xf32> -> vector<128x128xf32>
    %c0_11 = arith.constant 0 : index
    %c0_12 = arith.constant 0 : index
    %15 = vector.load %arg6[%c0_11, %c0_12] : memref<1x128xf32, #tpu.memory_space<vmem>>, vector<1x128xf32>
    %16 = vector.broadcast %15 : vector<1x128xf32> to vector<128x128xf32>
    %17 = arith.addf %14, %16 : vector<128x128xf32>
    %cst_13 = arith.constant 0.000000e+00 : f32
    %18 = vector.broadcast %cst_13 : f32 to vector<128x128xf32>
    %19 = arith.maximumf %17, %18 : vector<128x128xf32>
    %20 = arith.truncf %19 : vector<128x128xf32> to vector<128x128xbf16>
    %c0_14 = arith.constant 0 : index
    %c0_15 = arith.constant 0 : index
    %21 = vector.load %arg7[%c0_14, %c0_15] : memref<128x1024xbf16, #tpu.memory_space<vmem>>, vector<128x1024xbf16>
    %cst_16 = arith.constant dense<0.000000e+00> : vector<128x1024xf32>
    %22 = tpu.matmul %20, %21, %cst_16 {dimension_numbers = #tpu.dot_dimension_numbers<[1], [0], [0], [1], [0, 0, 1, 1], [], []>} : vector<128x128xbf16>, vector<128x1024xbf16>, vector<128x1024xf32> -> vector<128x1024xf32>
    %c0_17 = arith.constant 0 : index
    %c0_18 = arith.constant 0 : index
    %23 = vector.load %arg8[%c0_17, %c0_18] : memref<1x1024xf32, #tpu.memory_space<vmem>>, vector<1x1024xf32>
    %24 = vector.broadcast %23 : vector<1x1024xf32> to vector<128x1024xf32>
    %25 = arith.addf %22, %24 : vector<128x1024xf32>
    %cst_19 = arith.constant 0.000000e+00 : f32
    %26 = vector.broadcast %cst_19 : f32 to vector<128x1024xf32>
    %27 = arith.maximumf %25, %26 : vector<128x1024xf32>
    %c0_20 = arith.constant 0 : index
    %c0_21 = arith.constant 0 : index
    %28 = vector.load %arg10[%c0_20, %c0_21] : memref<1x1024xf32, #tpu.memory_space<vmem>>, vector<1x1024xf32>
    %cst_22 = arith.constant dense<0xFF800000> : vector<1024xf32>
    %29 = vector.multi_reduction <maximumf>, %27, %cst_22 [0] : vector<128x1024xf32> to vector<1024xf32>
    %30 = vector.shape_cast %29 : vector<1024xf32> to vector<1x1024xf32>
    %31 = arith.maximumf %28, %30 : vector<1x1024xf32>
    %c0_23 = arith.constant 0 : index
    %c0_24 = arith.constant 0 : index
    %32 = vector.load %arg10[%c0_23, %c0_24] : memref<1x1024xf32, #tpu.memory_space<vmem>>, vector<1x1024xf32>
    tpu.vector_store %arg10[%c0_23, %c0_24], %31 {strides = array<i32>} : memref<1x1024xf32, #tpu.memory_space<vmem>>, vector<1x1024xf32>,
    %c0_i32_25 = arith.constant 0 : i32
    %33 = arith.cmpi eq, %arg1, %c0_i32_25 : i32
    %34 = arith.extui %33 : i1 to i32
    %c0_i32_26 = arith.constant 0 : i32
    %35 = arith.cmpi ne, %34, %c0_i32_26 : i32
    scf.if %35 {
      %c0_27 = arith.constant 0 : index
      %c0_28 = arith.constant 0 : index
      %36 = vector.load %arg10[%c0_27, %c0_28] : memref<1x1024xf32, #tpu.memory_space<vmem>>, vector<1x1024xf32>
      %c0_29 = arith.constant 0 : index
      %c0_30 = arith.constant 0 : index
      %c0_31 = arith.constant 0 : index
      %37 = vector.load %arg9[%c0_29, %c0_30, %c0_31] : memref<1x1x1024xf32, #tpu.memory_space<vmem>>, vector<1x1x1024xf32>
      %38 = vector.shape_cast %37 : vector<1x1x1024xf32> to vector<1x1024xf32>
      %39 = vector.shape_cast %36 : vector<1x1024xf32> to vector<1x1x1024xf32>
      tpu.vector_store %arg9[%c0_29, %c0_30, %c0_31], %39 {strides = array<i32>} : memref<1x1x1024xf32, #tpu.memory_space<vmem>>, vector<1x1x1024xf32>,
    } else {
    }
    return
  }
  func.func @transform_0(%arg0: i32, %arg1: i32) -> (i32, i32, i32) {
    %c0_i32 = arith.constant 0 : i32
    %c0_i32_0 = arith.constant 0 : i32
    return %arg0, %arg1, %c0_i32 : i32, i32, i32
  }
  func.func @transform_1(%arg0: i32, %arg1: i32) -> (i32, i32) {
    %c0_i32 = arith.constant 0 : i32
    %c0_i32_0 = arith.constant 0 : i32
    %c0_i32_1 = arith.constant 0 : i32
    return %c0_i32, %c0_i32_0 : i32, i32
  }
  func.func @transform_2(%arg0: i32, %arg1: i32) -> (i32, i32) {
    %c0_i32 = arith.constant 0 : i32
    %c0_i32_0 = arith.constant 0 : i32
    %c0_i32_1 = arith.constant 0 : i32
    return %c0_i32, %c0_i32_0 : i32, i32
  }
  func.func @transform_3(%arg0: i32, %arg1: i32) -> (i32, i32) {
    %c0_i32 = arith.constant 0 : i32
    %c0_i32_0 = arith.constant 0 : i32
    %c0_i32_1 = arith.constant 0 : i32
    return %c0_i32, %c0_i32_0 : i32, i32
  }
  func.func @transform_4(%arg0: i32, %arg1: i32) -> (i32, i32) {
    %c0_i32 = arith.constant 0 : i32
    %c0_i32_0 = arith.constant 0 : i32
    %c0_i32_1 = arith.constant 0 : i32
    return %c0_i32, %c0_i32_0 : i32, i32
  }
  func.func @transform_5(%arg0: i32, %arg1: i32) -> (i32, i32) {
    %c0_i32 = arith.constant 0 : i32
    %c0_i32_0 = arith.constant 0 : i32
    %c0_i32_1 = arith.constant 0 : i32
    return %c0_i32, %c0_i32_0 : i32, i32
  }
  func.func @transform_6(%arg0: i32, %arg1: i32) -> (i32, i32) {
    %c0_i32 = arith.constant 0 : i32
    %c0_i32_0 = arith.constant 0 : i32
    %c0_i32_1 = arith.constant 0 : i32
    return %c0_i32, %c0_i32_0 : i32, i32
  }
  func.func @transform_7(%arg0: i32, %arg1: i32) -> (i32, i32, i32) {
    %c0_i32 = arith.constant 0 : i32
    %c0_i32_0 = arith.constant 0 : i32
    %c0_i32_1 = arith.constant 0 : i32
    return %arg0, %c0_i32, %c0_i32_0 : i32, i32, i32
  }
}

module attributes {stable_mosaic.version = 11 : i64} {
  func.func @kernel(%arg0: i32, %arg1: i32, %arg2: memref<1x128x6xbf16, #tpu.memory_space<vmem>>, %arg3: memref<1x6x64xbf16, #tpu.memory_space<vmem>>, %arg4: memref<1x64xf32, #tpu.memory_space<vmem>>, %arg5: memref<64x64xbf16, #tpu.memory_space<vmem>>, %arg6: memref<1x64xf32, #tpu.memory_space<vmem>>, %arg7: memref<64x128xbf16, #tpu.memory_space<vmem>>, %arg8: memref<1x128xf32, #tpu.memory_space<vmem>>, %arg9: memref<128x1024xbf16, #tpu.memory_space<vmem>>, %arg10: memref<1x1024xf32, #tpu.memory_space<vmem>>, %arg11: memref<1x1x1024xf32, #tpu.memory_space<vmem>>, %arg12: memref<1x1024xf32, #tpu.memory_space<vmem>>) attributes {dimension_semantics = [#tpu.dimension_semantics<parallel>, #tpu.dimension_semantics<arbitrary>], iteration_bounds = array<i64: 2, 1>, scalar_prefetch = 0 : i64, scratch_operands = 1 : i64, tpu.core_type = #tpu.core_type<tc>, window_params = [{transform_indices = @transform_0, window_bounds = array<i64: 1, 128, 6>}, {transform_indices = @transform_1, window_bounds = array<i64: 1, 6, 64>}, {pipeline_mode = #tpu.pipeline_mode<synchronous>, transform_indices = @transform_2, window_bounds = array<i64: 1, 64>}, {pipeline_mode = #tpu.pipeline_mode<synchronous>, transform_indices = @transform_3, window_bounds = array<i64: 64, 64>}, {pipeline_mode = #tpu.pipeline_mode<synchronous>, transform_indices = @transform_4, window_bounds = array<i64: 1, 64>}, {pipeline_mode = #tpu.pipeline_mode<synchronous>, transform_indices = @transform_5, window_bounds = array<i64: 64, 128>}, {pipeline_mode = #tpu.pipeline_mode<synchronous>, transform_indices = @transform_6, window_bounds = array<i64: 1, 128>}, {pipeline_mode = #tpu.pipeline_mode<synchronous>, transform_indices = @transform_7, window_bounds = array<i64: 128, 1024>}, {pipeline_mode = #tpu.pipeline_mode<synchronous>, transform_indices = @transform_8, window_bounds = array<i64: 1, 1024>}, {transform_indices = @transform_9, window_bounds = array<i64: 1, 1, 1024>}]} {
    %c0_i32 = arith.constant 0 : i32
    %0 = arith.cmpi eq, %arg1, %c0_i32 : i32
    %1 = arith.extui %0 : i1 to i32
    %c0_i32_0 = arith.constant 0 : i32
    %2 = arith.cmpi ne, %1, %c0_i32_0 : i32
    scf.if %2 {
      %cst_34 = arith.constant 0xFF800000 : f32
      %45 = vector.broadcast %cst_34 : f32 to vector<1x1024xf32>
      %c0_35 = arith.constant 0 : index
      %c0_36 = arith.constant 0 : index
      %46 = vector.load %arg12[%c0_35, %c0_36] : memref<1x1024xf32, #tpu.memory_space<vmem>>, vector<1x1024xf32>
      tpu.vector_store %arg12[%c0_35, %c0_36], %45 {strides = array<i32>} : memref<1x1024xf32, #tpu.memory_space<vmem>>, vector<1x1024xf32>,
    } else {
    }
    %c0 = arith.constant 0 : index
    %c0_1 = arith.constant 0 : index
    %c0_2 = arith.constant 0 : index
    %3 = vector.load %arg2[%c0, %c0_1, %c0_2] : memref<1x128x6xbf16, #tpu.memory_space<vmem>>, vector<1x128x6xbf16>
    %4 = vector.shape_cast %3 : vector<1x128x6xbf16> to vector<128x6xbf16>
    %c0_3 = arith.constant 0 : index
    %c0_4 = arith.constant 0 : index
    %c0_5 = arith.constant 0 : index
    %5 = vector.load %arg3[%c0_3, %c0_4, %c0_5] : memref<1x6x64xbf16, #tpu.memory_space<vmem>>, vector<1x6x64xbf16>
    %6 = vector.shape_cast %5 : vector<1x6x64xbf16> to vector<6x64xbf16>
    %cst = arith.constant dense<0.000000e+00> : vector<128x64xf32>
    %7 = tpu.matmul %4, %6, %cst {dimension_numbers = #tpu.dot_dimension_numbers<[1], [0], [0], [1], [0, 0, 1, 1], [], []>} : vector<128x6xbf16>, vector<6x64xbf16>, vector<128x64xf32> -> vector<128x64xf32>
    %c0_6 = arith.constant 0 : index
    %c0_7 = arith.constant 0 : index
    %8 = vector.load %arg4[%c0_6, %c0_7] : memref<1x64xf32, #tpu.memory_space<vmem>>, vector<1x64xf32>
    %9 = vector.broadcast %8 : vector<1x64xf32> to vector<128x64xf32>
    %10 = arith.addf %7, %9 : vector<128x64xf32>
    %cst_8 = arith.constant 0.000000e+00 : f32
    %11 = vector.broadcast %cst_8 : f32 to vector<128x64xf32>
    %12 = arith.maximumf %10, %11 : vector<128x64xf32>
    %13 = arith.truncf %12 : vector<128x64xf32> to vector<128x64xbf16>
    %c0_9 = arith.constant 0 : index
    %c0_10 = arith.constant 0 : index
    %14 = vector.load %arg5[%c0_9, %c0_10] : memref<64x64xbf16, #tpu.memory_space<vmem>>, vector<64x64xbf16>
    %cst_11 = arith.constant dense<0.000000e+00> : vector<128x64xf32>
    %15 = tpu.matmul %13, %14, %cst_11 {dimension_numbers = #tpu.dot_dimension_numbers<[1], [0], [0], [1], [0, 0, 1, 1], [], []>} : vector<128x64xbf16>, vector<64x64xbf16>, vector<128x64xf32> -> vector<128x64xf32>
    %c0_12 = arith.constant 0 : index
    %c0_13 = arith.constant 0 : index
    %16 = vector.load %arg6[%c0_12, %c0_13] : memref<1x64xf32, #tpu.memory_space<vmem>>, vector<1x64xf32>
    %17 = vector.broadcast %16 : vector<1x64xf32> to vector<128x64xf32>
    %18 = arith.addf %15, %17 : vector<128x64xf32>
    %cst_14 = arith.constant 0.000000e+00 : f32
    %19 = vector.broadcast %cst_14 : f32 to vector<128x64xf32>
    %20 = arith.maximumf %18, %19 : vector<128x64xf32>
    %21 = arith.truncf %20 : vector<128x64xf32> to vector<128x64xbf16>
    %c0_15 = arith.constant 0 : index
    %c0_16 = arith.constant 0 : index
    %22 = vector.load %arg7[%c0_15, %c0_16] : memref<64x128xbf16, #tpu.memory_space<vmem>>, vector<64x128xbf16>
    %cst_17 = arith.constant dense<0.000000e+00> : vector<128x128xf32>
    %23 = tpu.matmul %21, %22, %cst_17 {dimension_numbers = #tpu.dot_dimension_numbers<[1], [0], [0], [1], [0, 0, 1, 1], [], []>} : vector<128x64xbf16>, vector<64x128xbf16>, vector<128x128xf32> -> vector<128x128xf32>
    %c0_18 = arith.constant 0 : index
    %c0_19 = arith.constant 0 : index
    %24 = vector.load %arg8[%c0_18, %c0_19] : memref<1x128xf32, #tpu.memory_space<vmem>>, vector<1x128xf32>
    %25 = vector.broadcast %24 : vector<1x128xf32> to vector<128x128xf32>
    %26 = arith.addf %23, %25 : vector<128x128xf32>
    %cst_20 = arith.constant 0.000000e+00 : f32
    %27 = vector.broadcast %cst_20 : f32 to vector<128x128xf32>
    %28 = arith.maximumf %26, %27 : vector<128x128xf32>
    %29 = arith.truncf %28 : vector<128x128xf32> to vector<128x128xbf16>
    %c0_21 = arith.constant 0 : index
    %c0_22 = arith.constant 0 : index
    %30 = vector.load %arg9[%c0_21, %c0_22] : memref<128x1024xbf16, #tpu.memory_space<vmem>>, vector<128x1024xbf16>
    %cst_23 = arith.constant dense<0.000000e+00> : vector<128x1024xf32>
    %31 = tpu.matmul %29, %30, %cst_23 {dimension_numbers = #tpu.dot_dimension_numbers<[1], [0], [0], [1], [0, 0, 1, 1], [], []>} : vector<128x128xbf16>, vector<128x1024xbf16>, vector<128x1024xf32> -> vector<128x1024xf32>
    %c0_24 = arith.constant 0 : index
    %c0_25 = arith.constant 0 : index
    %32 = vector.load %arg10[%c0_24, %c0_25] : memref<1x1024xf32, #tpu.memory_space<vmem>>, vector<1x1024xf32>
    %33 = vector.broadcast %32 : vector<1x1024xf32> to vector<128x1024xf32>
    %34 = arith.addf %31, %33 : vector<128x1024xf32>
    %cst_26 = arith.constant 0.000000e+00 : f32
    %35 = vector.broadcast %cst_26 : f32 to vector<128x1024xf32>
    %36 = arith.maximumf %34, %35 : vector<128x1024xf32>
    %c0_27 = arith.constant 0 : index
    %c0_28 = arith.constant 0 : index
    %37 = vector.load %arg12[%c0_27, %c0_28] : memref<1x1024xf32, #tpu.memory_space<vmem>>, vector<1x1024xf32>
    %cst_29 = arith.constant dense<0xFF800000> : vector<1024xf32>
    %38 = vector.multi_reduction <maximumf>, %36, %cst_29 [0] : vector<128x1024xf32> to vector<1024xf32>
    %39 = vector.shape_cast %38 : vector<1024xf32> to vector<1x1024xf32>
    %40 = arith.maximumf %37, %39 : vector<1x1024xf32>
    %c0_30 = arith.constant 0 : index
    %c0_31 = arith.constant 0 : index
    %41 = vector.load %arg12[%c0_30, %c0_31] : memref<1x1024xf32, #tpu.memory_space<vmem>>, vector<1x1024xf32>
    tpu.vector_store %arg12[%c0_30, %c0_31], %40 {strides = array<i32>} : memref<1x1024xf32, #tpu.memory_space<vmem>>, vector<1x1024xf32>,
    %c0_i32_32 = arith.constant 0 : i32
    %42 = arith.cmpi eq, %arg1, %c0_i32_32 : i32
    %43 = arith.extui %42 : i1 to i32
    %c0_i32_33 = arith.constant 0 : i32
    %44 = arith.cmpi ne, %43, %c0_i32_33 : i32
    scf.if %44 {
      %c0_34 = arith.constant 0 : index
      %c0_35 = arith.constant 0 : index
      %45 = vector.load %arg12[%c0_34, %c0_35] : memref<1x1024xf32, #tpu.memory_space<vmem>>, vector<1x1024xf32>
      %c0_36 = arith.constant 0 : index
      %c0_37 = arith.constant 0 : index
      %c0_38 = arith.constant 0 : index
      %46 = vector.load %arg11[%c0_36, %c0_37, %c0_38] : memref<1x1x1024xf32, #tpu.memory_space<vmem>>, vector<1x1x1024xf32>
      %47 = vector.shape_cast %46 : vector<1x1x1024xf32> to vector<1x1024xf32>
      %48 = vector.shape_cast %45 : vector<1x1024xf32> to vector<1x1x1024xf32>
      tpu.vector_store %arg11[%c0_36, %c0_37, %c0_38], %48 {strides = array<i32>} : memref<1x1x1024xf32, #tpu.memory_space<vmem>>, vector<1x1x1024xf32>,
    } else {
    }
    return
  }
  func.func @transform_0(%arg0: i32, %arg1: i32) -> (i32, i32, i32) {
    %c0_i32 = arith.constant 0 : i32
    %c0_i32_0 = arith.constant 0 : i32
    return %arg0, %arg1, %c0_i32 : i32, i32, i32
  }
  func.func @transform_1(%arg0: i32, %arg1: i32) -> (i32, i32, i32) {
    %c0_i32 = arith.constant 0 : i32
    %c0_i32_0 = arith.constant 0 : i32
    %c0_i32_1 = arith.constant 0 : i32
    return %arg0, %c0_i32, %c0_i32_0 : i32, i32, i32
  }
  func.func @transform_2(%arg0: i32, %arg1: i32) -> (i32, i32) {
    %c0_i32 = arith.constant 0 : i32
    %c0_i32_0 = arith.constant 0 : i32
    %c0_i32_1 = arith.constant 0 : i32
    return %c0_i32, %c0_i32_0 : i32, i32
  }
  func.func @transform_3(%arg0: i32, %arg1: i32) -> (i32, i32) {
    %c0_i32 = arith.constant 0 : i32
    %c0_i32_0 = arith.constant 0 : i32
    %c0_i32_1 = arith.constant 0 : i32
    return %c0_i32, %c0_i32_0 : i32, i32
  }
  func.func @transform_4(%arg0: i32, %arg1: i32) -> (i32, i32) {
    %c0_i32 = arith.constant 0 : i32
    %c0_i32_0 = arith.constant 0 : i32
    %c0_i32_1 = arith.constant 0 : i32
    return %c0_i32, %c0_i32_0 : i32, i32
  }
  func.func @transform_5(%arg0: i32, %arg1: i32) -> (i32, i32) {
    %c0_i32 = arith.constant 0 : i32
    %c0_i32_0 = arith.constant 0 : i32
    %c0_i32_1 = arith.constant 0 : i32
    return %c0_i32, %c0_i32_0 : i32, i32
  }
  func.func @transform_6(%arg0: i32, %arg1: i32) -> (i32, i32) {
    %c0_i32 = arith.constant 0 : i32
    %c0_i32_0 = arith.constant 0 : i32
    %c0_i32_1 = arith.constant 0 : i32
    return %c0_i32, %c0_i32_0 : i32, i32
  }
  func.func @transform_7(%arg0: i32, %arg1: i32) -> (i32, i32) {
    %c0_i32 = arith.constant 0 : i32
    %c0_i32_0 = arith.constant 0 : i32
    %c0_i32_1 = arith.constant 0 : i32
    return %c0_i32, %c0_i32_0 : i32, i32
  }
  func.func @transform_8(%arg0: i32, %arg1: i32) -> (i32, i32) {
    %c0_i32 = arith.constant 0 : i32
    %c0_i32_0 = arith.constant 0 : i32
    %c0_i32_1 = arith.constant 0 : i32
    return %c0_i32, %c0_i32_0 : i32, i32
  }
  func.func @transform_9(%arg0: i32, %arg1: i32) -> (i32, i32, i32) {
    %c0_i32 = arith.constant 0 : i32
    %c0_i32_0 = arith.constant 0 : i32
    %c0_i32_1 = arith.constant 0 : i32
    return %arg0, %c0_i32, %c0_i32_0 : i32, i32, i32
  }
}

module attributes {stable_mosaic.version = 11 : i64} {
  func.func @kernel(%arg0: i32, %arg1: i32, %arg2: memref<1x128x6xbf16, #tpu.memory_space<vmem>>, %arg3: memref<1x6x64xbf16, #tpu.memory_space<vmem>>, %arg4: memref<1x64xf32, #tpu.memory_space<vmem>>, %arg5: memref<1x64x128xbf16, #tpu.memory_space<vmem>>, %arg6: memref<1x128xf32, #tpu.memory_space<vmem>>, %arg7: memref<128x1024xbf16, #tpu.memory_space<vmem>>, %arg8: memref<1x1024xf32, #tpu.memory_space<vmem>>, %arg9: memref<1x1x1024xf32, #tpu.memory_space<vmem>>, %arg10: memref<1x1024xf32, #tpu.memory_space<vmem>>) attributes {dimension_semantics = [#tpu.dimension_semantics<parallel>, #tpu.dimension_semantics<arbitrary>], iteration_bounds = array<i64: 2, 1>, scalar_prefetch = 0 : i64, scratch_operands = 1 : i64, tpu.core_type = #tpu.core_type<tc>, window_params = [{transform_indices = @transform_0, window_bounds = array<i64: 1, 128, 6>}, {transform_indices = @transform_1, window_bounds = array<i64: 1, 6, 64>}, {pipeline_mode = #tpu.pipeline_mode<synchronous>, transform_indices = @transform_2, window_bounds = array<i64: 1, 64>}, {transform_indices = @transform_3, window_bounds = array<i64: 1, 64, 128>}, {pipeline_mode = #tpu.pipeline_mode<synchronous>, transform_indices = @transform_4, window_bounds = array<i64: 1, 128>}, {pipeline_mode = #tpu.pipeline_mode<synchronous>, transform_indices = @transform_5, window_bounds = array<i64: 128, 1024>}, {pipeline_mode = #tpu.pipeline_mode<synchronous>, transform_indices = @transform_6, window_bounds = array<i64: 1, 1024>}, {transform_indices = @transform_7, window_bounds = array<i64: 1, 1, 1024>}]} {
    %c0_i32 = arith.constant 0 : i32
    %0 = arith.cmpi eq, %arg1, %c0_i32 : i32
    %1 = arith.extui %0 : i1 to i32
    %c0_i32_0 = arith.constant 0 : i32
    %2 = arith.cmpi ne, %1, %c0_i32_0 : i32
    scf.if %2 {
      %cst_28 = arith.constant 0xFF800000 : f32
      %36 = vector.broadcast %cst_28 : f32 to vector<1x1024xf32>
      %c0_29 = arith.constant 0 : index
      %c0_30 = arith.constant 0 : index
      %37 = vector.load %arg10[%c0_29, %c0_30] : memref<1x1024xf32, #tpu.memory_space<vmem>>, vector<1x1024xf32>
      tpu.vector_store %arg10[%c0_29, %c0_30], %36 {strides = array<i32>} : memref<1x1024xf32, #tpu.memory_space<vmem>>, vector<1x1024xf32>,
    } else {
    }
    %c0 = arith.constant 0 : index
    %c0_1 = arith.constant 0 : index
    %c0_2 = arith.constant 0 : index
    %3 = vector.load %arg2[%c0, %c0_1, %c0_2] : memref<1x128x6xbf16, #tpu.memory_space<vmem>>, vector<1x128x6xbf16>
    %4 = vector.shape_cast %3 : vector<1x128x6xbf16> to vector<128x6xbf16>
    %c0_3 = arith.constant 0 : index
    %c0_4 = arith.constant 0 : index
    %c0_5 = arith.constant 0 : index
    %5 = vector.load %arg3[%c0_3, %c0_4, %c0_5] : memref<1x6x64xbf16, #tpu.memory_space<vmem>>, vector<1x6x64xbf16>
    %6 = vector.shape_cast %5 : vector<1x6x64xbf16> to vector<6x64xbf16>
    %cst = arith.constant dense<0.000000e+00> : vector<128x64xf32>
    %7 = tpu.matmul %4, %6, %cst {dimension_numbers = #tpu.dot_dimension_numbers<[1], [0], [0], [1], [0, 0, 1, 1], [], []>} : vector<128x6xbf16>, vector<6x64xbf16>, vector<128x64xf32> -> vector<128x64xf32>
    %c0_6 = arith.constant 0 : index
    %c0_7 = arith.constant 0 : index
    %8 = vector.load %arg4[%c0_6, %c0_7] : memref<1x64xf32, #tpu.memory_space<vmem>>, vector<1x64xf32>
    %9 = vector.broadcast %8 : vector<1x64xf32> to vector<128x64xf32>
    %10 = arith.addf %7, %9 : vector<128x64xf32>
    %cst_8 = arith.constant 0.000000e+00 : f32
    %11 = vector.broadcast %cst_8 : f32 to vector<128x64xf32>
    %12 = arith.maximumf %10, %11 : vector<128x64xf32>
    %13 = arith.truncf %12 : vector<128x64xf32> to vector<128x64xbf16>
    %c0_9 = arith.constant 0 : index
    %c0_10 = arith.constant 0 : index
    %c0_11 = arith.constant 0 : index
    %14 = vector.load %arg5[%c0_9, %c0_10, %c0_11] : memref<1x64x128xbf16, #tpu.memory_space<vmem>>, vector<1x64x128xbf16>
    %15 = vector.shape_cast %14 : vector<1x64x128xbf16> to vector<64x128xbf16>
    %cst_12 = arith.constant dense<0.000000e+00> : vector<128x128xf32>
    %16 = tpu.matmul %13, %15, %cst_12 {dimension_numbers = #tpu.dot_dimension_numbers<[1], [0], [0], [1], [0, 0, 1, 1], [], []>} : vector<128x64xbf16>, vector<64x128xbf16>, vector<128x128xf32> -> vector<128x128xf32>
    %c0_13 = arith.constant 0 : index
    %c0_14 = arith.constant 0 : index
    %17 = vector.load %arg6[%c0_13, %c0_14] : memref<1x128xf32, #tpu.memory_space<vmem>>, vector<1x128xf32>
    %18 = vector.broadcast %17 : vector<1x128xf32> to vector<128x128xf32>
    %19 = arith.addf %16, %18 : vector<128x128xf32>
    %cst_15 = arith.constant 0.000000e+00 : f32
    %20 = vector.broadcast %cst_15 : f32 to vector<128x128xf32>
    %21 = arith.maximumf %19, %20 : vector<128x128xf32>
    %22 = arith.truncf %21 : vector<128x128xf32> to vector<128x128xbf16>
    %c0_16 = arith.constant 0 : index
    %c0_17 = arith.constant 0 : index
    %23 = vector.load %arg7[%c0_16, %c0_17] : memref<128x1024xbf16, #tpu.memory_space<vmem>>, vector<128x1024xbf16>
    %cst_18 = arith.constant dense<0.000000e+00> : vector<128x1024xf32>
    %24 = tpu.matmul %22, %23, %cst_18 {dimension_numbers = #tpu.dot_dimension_numbers<[1], [0], [0], [1], [0, 0, 1, 1], [], []>} : vector<128x128xbf16>, vector<128x1024xbf16>, vector<128x1024xf32> -> vector<128x1024xf32>
    %c0_19 = arith.constant 0 : index
    %c0_20 = arith.constant 0 : index
    %25 = vector.load %arg8[%c0_19, %c0_20] : memref<1x1024xf32, #tpu.memory_space<vmem>>, vector<1x1024xf32>
    %26 = vector.broadcast %25 : vector<1x1024xf32> to vector<128x1024xf32>
    %27 = arith.addf %24, %26 : vector<128x1024xf32>
    %c0_21 = arith.constant 0 : index
    %c0_22 = arith.constant 0 : index
    %28 = vector.load %arg10[%c0_21, %c0_22] : memref<1x1024xf32, #tpu.memory_space<vmem>>, vector<1x1024xf32>
    %cst_23 = arith.constant dense<0xFF800000> : vector<1024xf32>
    %29 = vector.multi_reduction <maximumf>, %27, %cst_23 [0] : vector<128x1024xf32> to vector<1024xf32>
    %30 = vector.shape_cast %29 : vector<1024xf32> to vector<1x1024xf32>
    %31 = arith.maximumf %28, %30 : vector<1x1024xf32>
    %c0_24 = arith.constant 0 : index
    %c0_25 = arith.constant 0 : index
    %32 = vector.load %arg10[%c0_24, %c0_25] : memref<1x1024xf32, #tpu.memory_space<vmem>>, vector<1x1024xf32>
    tpu.vector_store %arg10[%c0_24, %c0_25], %31 {strides = array<i32>} : memref<1x1024xf32, #tpu.memory_space<vmem>>, vector<1x1024xf32>,
    %c0_i32_26 = arith.constant 0 : i32
    %33 = arith.cmpi eq, %arg1, %c0_i32_26 : i32
    %34 = arith.extui %33 : i1 to i32
    %c0_i32_27 = arith.constant 0 : i32
    %35 = arith.cmpi ne, %34, %c0_i32_27 : i32
    scf.if %35 {
      %c0_28 = arith.constant 0 : index
      %c0_29 = arith.constant 0 : index
      %36 = vector.load %arg10[%c0_28, %c0_29] : memref<1x1024xf32, #tpu.memory_space<vmem>>, vector<1x1024xf32>
      %c0_30 = arith.constant 0 : index
      %c0_31 = arith.constant 0 : index
      %c0_32 = arith.constant 0 : index
      %37 = vector.load %arg9[%c0_30, %c0_31, %c0_32] : memref<1x1x1024xf32, #tpu.memory_space<vmem>>, vector<1x1x1024xf32>
      %38 = vector.shape_cast %37 : vector<1x1x1024xf32> to vector<1x1024xf32>
      %39 = vector.shape_cast %36 : vector<1x1024xf32> to vector<1x1x1024xf32>
      tpu.vector_store %arg9[%c0_30, %c0_31, %c0_32], %39 {strides = array<i32>} : memref<1x1x1024xf32, #tpu.memory_space<vmem>>, vector<1x1x1024xf32>,
    } else {
    }
    return
  }
  func.func @transform_0(%arg0: i32, %arg1: i32) -> (i32, i32, i32) {
    %c0_i32 = arith.constant 0 : i32
    %c0_i32_0 = arith.constant 0 : i32
    return %arg0, %arg1, %c0_i32 : i32, i32, i32
  }
  func.func @transform_1(%arg0: i32, %arg1: i32) -> (i32, i32, i32) {
    %c0_i32 = arith.constant 0 : i32
    %c0_i32_0 = arith.constant 0 : i32
    %c0_i32_1 = arith.constant 0 : i32
    return %arg0, %c0_i32, %c0_i32_0 : i32, i32, i32
  }
  func.func @transform_2(%arg0: i32, %arg1: i32) -> (i32, i32) {
    %c0_i32 = arith.constant 0 : i32
    %c0_i32_0 = arith.constant 0 : i32
    %c0_i32_1 = arith.constant 0 : i32
    return %c0_i32, %c0_i32_0 : i32, i32
  }
  func.func @transform_3(%arg0: i32, %arg1: i32) -> (i32, i32, i32) {
    %c0_i32 = arith.constant 0 : i32
    %c0_i32_0 = arith.constant 0 : i32
    %c0_i32_1 = arith.constant 0 : i32
    return %arg0, %c0_i32, %c0_i32_0 : i32, i32, i32
  }
  func.func @transform_4(%arg0: i32, %arg1: i32) -> (i32, i32) {
    %c0_i32 = arith.constant 0 : i32
    %c0_i32_0 = arith.constant 0 : i32
    %c0_i32_1 = arith.constant 0 : i32
    return %c0_i32, %c0_i32_0 : i32, i32
  }
  func.func @transform_5(%arg0: i32, %arg1: i32) -> (i32, i32) {
    %c0_i32 = arith.constant 0 : i32
    %c0_i32_0 = arith.constant 0 : i32
    %c0_i32_1 = arith.constant 0 : i32
    return %c0_i32, %c0_i32_0 : i32, i32
  }
  func.func @transform_6(%arg0: i32, %arg1: i32) -> (i32, i32) {
    %c0_i32 = arith.constant 0 : i32
    %c0_i32_0 = arith.constant 0 : i32
    %c0_i32_1 = arith.constant 0 : i32
    return %c0_i32, %c0_i32_0 : i32, i32
  }
  func.func @transform_7(%arg0: i32, %arg1: i32) -> (i32, i32, i32) {
    %c0_i32 = arith.constant 0 : i32
    %c0_i32_0 = arith.constant 0 : i32
    %c0_i32_1 = arith.constant 0 : i32
    return %arg0, %c0_i32, %c0_i32_0 : i32, i32, i32
  }
}

module attributes {stable_mosaic.version = 11 : i64} {
  func.func @_head_kernel(%arg0: i32, %arg1: i32, %arg2: memref<1x128x6xbf16, #tpu.memory_space<vmem>>, %arg3: memref<1x6x64xbf16, #tpu.memory_space<vmem>>, %arg4: memref<1x64xf32, #tpu.memory_space<vmem>>, %arg5: memref<1x64x512xbf16, #tpu.memory_space<vmem>>, %arg6: memref<1x1x512xf32, #tpu.memory_space<vmem>>, %arg7: memref<512x256xbf16, #tpu.memory_space<vmem>>, %arg8: memref<1x256xf32, #tpu.memory_space<vmem>>, %arg9: memref<256x128xbf16, #tpu.memory_space<vmem>>, %arg10: memref<1x128xf32, #tpu.memory_space<vmem>>, %arg11: memref<128x8xbf16, #tpu.memory_space<vmem>>, %arg12: memref<1x8xf32, #tpu.memory_space<vmem>>, %arg13: memref<1x128x8xf32, #tpu.memory_space<vmem>>) attributes {dimension_semantics = [#tpu.dimension_semantics<parallel>, #tpu.dimension_semantics<parallel>], iteration_bounds = array<i64: 2, 1>, scalar_prefetch = 0 : i64, scratch_operands = 0 : i64, tpu.core_type = #tpu.core_type<tc>, window_params = [{transform_indices = @transform_0, window_bounds = array<i64: 1, 128, 6>}, {transform_indices = @transform_1, window_bounds = array<i64: 1, 6, 64>}, {pipeline_mode = #tpu.pipeline_mode<synchronous>, transform_indices = @transform_2, window_bounds = array<i64: 1, 64>}, {transform_indices = @transform_3, window_bounds = array<i64: 1, 64, 512>}, {transform_indices = @transform_4, window_bounds = array<i64: 1, 1, 512>}, {pipeline_mode = #tpu.pipeline_mode<synchronous>, transform_indices = @transform_5, window_bounds = array<i64: 512, 256>}, {pipeline_mode = #tpu.pipeline_mode<synchronous>, transform_indices = @transform_6, window_bounds = array<i64: 1, 256>}, {pipeline_mode = #tpu.pipeline_mode<synchronous>, transform_indices = @transform_7, window_bounds = array<i64: 256, 128>}, {pipeline_mode = #tpu.pipeline_mode<synchronous>, transform_indices = @transform_8, window_bounds = array<i64: 1, 128>}, {pipeline_mode = #tpu.pipeline_mode<synchronous>, transform_indices = @transform_9, window_bounds = array<i64: 128, 8>}, {pipeline_mode = #tpu.pipeline_mode<synchronous>, transform_indices = @transform_10, window_bounds = array<i64: 1, 8>}, {transform_indices = @transform_11, window_bounds = array<i64: 1, 128, 8>}]} {
    %c0 = arith.constant 0 : index
    %c0_0 = arith.constant 0 : index
    %c0_1 = arith.constant 0 : index
    %0 = vector.load %arg2[%c0, %c0_0, %c0_1] : memref<1x128x6xbf16, #tpu.memory_space<vmem>>, vector<1x128x6xbf16>
    %1 = vector.shape_cast %0 : vector<1x128x6xbf16> to vector<128x6xbf16>
    %c0_2 = arith.constant 0 : index
    %c0_3 = arith.constant 0 : index
    %c0_4 = arith.constant 0 : index
    %2 = vector.load %arg3[%c0_2, %c0_3, %c0_4] : memref<1x6x64xbf16, #tpu.memory_space<vmem>>, vector<1x6x64xbf16>
    %3 = vector.shape_cast %2 : vector<1x6x64xbf16> to vector<6x64xbf16>
    %cst = arith.constant dense<0.000000e+00> : vector<128x64xf32>
    %4 = tpu.matmul %1, %3, %cst {dimension_numbers = #tpu.dot_dimension_numbers<[1], [0], [0], [1], [0, 0, 1, 1], [], []>} : vector<128x6xbf16>, vector<6x64xbf16>, vector<128x64xf32> -> vector<128x64xf32>
    %c0_5 = arith.constant 0 : index
    %c0_6 = arith.constant 0 : index
    %5 = vector.load %arg4[%c0_5, %c0_6] : memref<1x64xf32, #tpu.memory_space<vmem>>, vector<1x64xf32>
    %6 = vector.broadcast %5 : vector<1x64xf32> to vector<128x64xf32>
    %7 = arith.addf %4, %6 : vector<128x64xf32>
    %cst_7 = arith.constant 0.000000e+00 : f32
    %8 = vector.broadcast %cst_7 : f32 to vector<128x64xf32>
    %9 = arith.maximumf %7, %8 : vector<128x64xf32>
    %10 = arith.truncf %9 : vector<128x64xf32> to vector<128x64xbf16>
    %c0_8 = arith.constant 0 : index
    %c0_9 = arith.constant 0 : index
    %c0_10 = arith.constant 0 : index
    %11 = vector.load %arg5[%c0_8, %c0_9, %c0_10] : memref<1x64x512xbf16, #tpu.memory_space<vmem>>, vector<1x64x512xbf16>
    %12 = vector.shape_cast %11 : vector<1x64x512xbf16> to vector<64x512xbf16>
    %cst_11 = arith.constant dense<0.000000e+00> : vector<128x512xf32>
    %13 = tpu.matmul %10, %12, %cst_11 {dimension_numbers = #tpu.dot_dimension_numbers<[1], [0], [0], [1], [0, 0, 1, 1], [], []>} : vector<128x64xbf16>, vector<64x512xbf16>, vector<128x512xf32> -> vector<128x512xf32>
    %c0_12 = arith.constant 0 : index
    %c0_13 = arith.constant 0 : index
    %c0_14 = arith.constant 0 : index
    %14 = vector.load %arg6[%c0_12, %c0_13, %c0_14] : memref<1x1x512xf32, #tpu.memory_space<vmem>>, vector<1x1x512xf32>
    %15 = vector.shape_cast %14 : vector<1x1x512xf32> to vector<1x512xf32>
    %16 = vector.broadcast %15 : vector<1x512xf32> to vector<128x512xf32>
    %17 = arith.addf %13, %16 : vector<128x512xf32>
    %cst_15 = arith.constant 0.000000e+00 : f32
    %18 = vector.broadcast %cst_15 : f32 to vector<128x512xf32>
    %19 = arith.maximumf %17, %18 : vector<128x512xf32>
    %20 = arith.truncf %19 : vector<128x512xf32> to vector<128x512xbf16>
    %c0_16 = arith.constant 0 : index
    %c0_17 = arith.constant 0 : index
    %21 = vector.load %arg7[%c0_16, %c0_17] : memref<512x256xbf16, #tpu.memory_space<vmem>>, vector<512x256xbf16>
    %cst_18 = arith.constant dense<0.000000e+00> : vector<128x256xf32>
    %22 = tpu.matmul %20, %21, %cst_18 {dimension_numbers = #tpu.dot_dimension_numbers<[1], [0], [0], [1], [0, 0, 1, 1], [], []>} : vector<128x512xbf16>, vector<512x256xbf16>, vector<128x256xf32> -> vector<128x256xf32>
    %c0_19 = arith.constant 0 : index
    %c0_20 = arith.constant 0 : index
    %23 = vector.load %arg8[%c0_19, %c0_20] : memref<1x256xf32, #tpu.memory_space<vmem>>, vector<1x256xf32>
    %24 = vector.broadcast %23 : vector<1x256xf32> to vector<128x256xf32>
    %25 = arith.addf %22, %24 : vector<128x256xf32>
    %cst_21 = arith.constant 0.000000e+00 : f32
    %26 = vector.broadcast %cst_21 : f32 to vector<128x256xf32>
    %27 = arith.maximumf %25, %26 : vector<128x256xf32>
    %28 = arith.truncf %27 : vector<128x256xf32> to vector<128x256xbf16>
    %c0_22 = arith.constant 0 : index
    %c0_23 = arith.constant 0 : index
    %29 = vector.load %arg9[%c0_22, %c0_23] : memref<256x128xbf16, #tpu.memory_space<vmem>>, vector<256x128xbf16>
    %cst_24 = arith.constant dense<0.000000e+00> : vector<128x128xf32>
    %30 = tpu.matmul %28, %29, %cst_24 {dimension_numbers = #tpu.dot_dimension_numbers<[1], [0], [0], [1], [0, 0, 1, 1], [], []>} : vector<128x256xbf16>, vector<256x128xbf16>, vector<128x128xf32> -> vector<128x128xf32>
    %c0_25 = arith.constant 0 : index
    %c0_26 = arith.constant 0 : index
    %31 = vector.load %arg10[%c0_25, %c0_26] : memref<1x128xf32, #tpu.memory_space<vmem>>, vector<1x128xf32>
    %32 = vector.broadcast %31 : vector<1x128xf32> to vector<128x128xf32>
    %33 = arith.addf %30, %32 : vector<128x128xf32>
    %cst_27 = arith.constant 0.000000e+00 : f32
    %34 = vector.broadcast %cst_27 : f32 to vector<128x128xf32>
    %35 = arith.maximumf %33, %34 : vector<128x128xf32>
    %36 = arith.truncf %35 : vector<128x128xf32> to vector<128x128xbf16>
    %c0_28 = arith.constant 0 : index
    %c0_29 = arith.constant 0 : index
    %37 = vector.load %arg11[%c0_28, %c0_29] : memref<128x8xbf16, #tpu.memory_space<vmem>>, vector<128x8xbf16>
    %cst_30 = arith.constant dense<0.000000e+00> : vector<128x8xf32>
    %38 = tpu.matmul %36, %37, %cst_30 {dimension_numbers = #tpu.dot_dimension_numbers<[1], [0], [0], [1], [0, 0, 1, 1], [], []>} : vector<128x128xbf16>, vector<128x8xbf16>, vector<128x8xf32> -> vector<128x8xf32>
    %c0_31 = arith.constant 0 : index
    %c0_32 = arith.constant 0 : index
    %39 = vector.load %arg12[%c0_31, %c0_32] : memref<1x8xf32, #tpu.memory_space<vmem>>, vector<1x8xf32>
    %40 = vector.broadcast %39 : vector<1x8xf32> to vector<128x8xf32>
    %41 = arith.addf %38, %40 : vector<128x8xf32>
    %42 = arith.negf %41 : vector<128x8xf32>
    %43 = math.exp %42 : vector<128x8xf32>
    %cst_33 = arith.constant 1.000000e+00 : f32
    %44 = vector.broadcast %cst_33 : f32 to vector<128x8xf32>
    %45 = arith.addf %44, %43 : vector<128x8xf32>
    %46 = arith.divf %44, %45 : vector<128x8xf32>
    %c0_34 = arith.constant 0 : index
    %c0_35 = arith.constant 0 : index
    %c0_36 = arith.constant 0 : index
    %47 = vector.load %arg13[%c0_34, %c0_35, %c0_36] : memref<1x128x8xf32, #tpu.memory_space<vmem>>, vector<1x128x8xf32>
    %48 = vector.shape_cast %47 : vector<1x128x8xf32> to vector<128x8xf32>
    %49 = vector.shape_cast %46 : vector<128x8xf32> to vector<1x128x8xf32>
    tpu.vector_store %arg13[%c0_34, %c0_35, %c0_36], %49 {strides = array<i32>} : memref<1x128x8xf32, #tpu.memory_space<vmem>>, vector<1x128x8xf32>,
    return
  }
  func.func @transform_0(%arg0: i32, %arg1: i32) -> (i32, i32, i32) {
    %c0_i32 = arith.constant 0 : i32
    %c0_i32_0 = arith.constant 0 : i32
    return %arg0, %arg1, %c0_i32 : i32, i32, i32
  }
  func.func @transform_1(%arg0: i32, %arg1: i32) -> (i32, i32, i32) {
    %c0_i32 = arith.constant 0 : i32
    %c0_i32_0 = arith.constant 0 : i32
    %c0_i32_1 = arith.constant 0 : i32
    return %arg0, %c0_i32, %c0_i32_0 : i32, i32, i32
  }
  func.func @transform_2(%arg0: i32, %arg1: i32) -> (i32, i32) {
    %c0_i32 = arith.constant 0 : i32
    %c0_i32_0 = arith.constant 0 : i32
    %c0_i32_1 = arith.constant 0 : i32
    return %c0_i32, %c0_i32_0 : i32, i32
  }
  func.func @transform_3(%arg0: i32, %arg1: i32) -> (i32, i32, i32) {
    %c0_i32 = arith.constant 0 : i32
    %c0_i32_0 = arith.constant 0 : i32
    %c0_i32_1 = arith.constant 0 : i32
    return %arg0, %c0_i32, %c0_i32_0 : i32, i32, i32
  }
  func.func @transform_4(%arg0: i32, %arg1: i32) -> (i32, i32, i32) {
    %c0_i32 = arith.constant 0 : i32
    %c0_i32_0 = arith.constant 0 : i32
    %c0_i32_1 = arith.constant 0 : i32
    return %arg0, %c0_i32, %c0_i32_0 : i32, i32, i32
  }
  func.func @transform_5(%arg0: i32, %arg1: i32) -> (i32, i32) {
    %c0_i32 = arith.constant 0 : i32
    %c0_i32_0 = arith.constant 0 : i32
    %c0_i32_1 = arith.constant 0 : i32
    return %c0_i32, %c0_i32_0 : i32, i32
  }
  func.func @transform_6(%arg0: i32, %arg1: i32) -> (i32, i32) {
    %c0_i32 = arith.constant 0 : i32
    %c0_i32_0 = arith.constant 0 : i32
    %c0_i32_1 = arith.constant 0 : i32
    return %c0_i32, %c0_i32_0 : i32, i32
  }
  func.func @transform_7(%arg0: i32, %arg1: i32) -> (i32, i32) {
    %c0_i32 = arith.constant 0 : i32
    %c0_i32_0 = arith.constant 0 : i32
    %c0_i32_1 = arith.constant 0 : i32
    return %c0_i32, %c0_i32_0 : i32, i32
  }
  func.func @transform_8(%arg0: i32, %arg1: i32) -> (i32, i32) {
    %c0_i32 = arith.constant 0 : i32
    %c0_i32_0 = arith.constant 0 : i32
    %c0_i32_1 = arith.constant 0 : i32
    return %c0_i32, %c0_i32_0 : i32, i32
  }
  func.func @transform_9(%arg0: i32, %arg1: i32) -> (i32, i32) {
    %c0_i32 = arith.constant 0 : i32
    %c0_i32_0 = arith.constant 0 : i32
    %c0_i32_1 = arith.constant 0 : i32
    return %c0_i32, %c0_i32_0 : i32, i32
  }
  func.func @transform_10(%arg0: i32, %arg1: i32) -> (i32, i32) {
    %c0_i32 = arith.constant 0 : i32
    %c0_i32_0 = arith.constant 0 : i32
    %c0_i32_1 = arith.constant 0 : i32
    return %c0_i32, %c0_i32_0 : i32, i32
  }
  func.func @transform_11(%arg0: i32, %arg1: i32) -> (i32, i32, i32) {
    %c0_i32 = arith.constant 0 : i32
    %c0_i32_0 = arith.constant 0 : i32
    return %arg0, %arg1, %c0_i32 : i32, i32, i32
  }
}

</mosaic_0001>

<llo_original>
// kernel: pointnet_reg_forward_pallas.5
$region0: #{pointnet_reg_forward_pallas.5}
  #allocation0 [shape = 'u32[]', space=smem, size = 0x4, offset = 0x4, fixed_abs, tag = 'smem constant byte address 0x4 - core index']
  #allocation1 [shape = 'u32[144,128]{1,0:T(1,128)}', space=vmem, size = 0x12000, scoped, tag = 'internal scratch']
  #allocation2 [shape = 'f32[1,1024]{1,0:T(1,128)}', space=vmem, size = 0x1000, scoped, tag = 'scratch operand']
  %s0 = inlined_call_operand.vmem [shape: bf16[2,128,6], index: 0, kind: input, shape index: {}]
  %s1 = inlined_call_operand.vmem [shape: bf16[2,6,64], index: 1, kind: input, shape index: {}]
  %s2 = inlined_call_operand.vmem [shape: f32[1,64], index: 2, kind: input, shape index: {}]
  %s3 = inlined_call_operand.vmem [shape: bf16[64,64], index: 3, kind: input, shape index: {}]
  %s4 = inlined_call_operand.vmem [shape: f32[1,64], index: 4, kind: input, shape index: {}]
  %s5 = inlined_call_operand.vmem [shape: bf16[64,128], index: 5, kind: input, shape index: {}]
  %s6 = inlined_call_operand.vmem [shape: f32[1,128], index: 6, kind: input, shape index: {}]
  %s7 = inlined_call_operand.vmem [shape: bf16[128,1024], index: 7, kind: input, shape index: {}]
  %s8 = inlined_call_operand.vmem [shape: f32[1,1024], index: 8, kind: input, shape index: {}]
  %s9 = inlined_call_operand.vmem [shape: f32[2,1,1024], index: 9, kind: output, shape index: {}]
  %s10 = sld [smem:[#allocation0]]
  $region77: #{pointnet_reg_forward_pallas.5} parent=0
    _
  %s12 = ssub.s32 1, %s10
  %s13 = scalar_select 0, %s12, %s10
  loop: start=0, step=1, limit=4
  $region2: #{pointnet_reg_forward_pallas.5} parent=0 // loop_pre_header
    _
  $region3: #{pointnet_reg_forward_pallas.5} parent=0 // loop_header
    %s15 = sphi 0, %s19
    %p16 = scmp.ge.s32.totalorder %s15, 4
    %s22 = sphi 0, %s34
    %s23 = sphi 0, %s30
    %s24 = sphi 0, %s22
    %s25 = sphi 0, %s23
    %s26 = sphi 0, %s24
    %s27 = sphi 0, %s25
    %s39 = sphi 0, %s41
    %s42 = sphi 0, %s39
    %s43 = sphi 0, %s42
    %s59 = sphi 0, %s43
    %s65 = sphi 0, %s67
    %s68 = sphi 0, %s65
    %s69 = sphi 0, %s68
    %s85 = sphi 0, %s69
    %s89 = sphi 0, %s89
    %s91 = sphi 0, %s89
    %s92 = sphi 0, %s91
    %s106 = sphi 0, %s92
    %s110 = sphi 0, %s110
    %s112 = sphi 0, %s110
    %s113 = sphi 0, %s112
    %s127 = sphi 0, %s113
    %s131 = sphi 0, %s131
    %s133 = sphi 0, %s131
    %s134 = sphi 0, %s133
    %s148 = sphi 0, %s134
    %s152 = sphi 0, %s152
    %s154 = sphi 0, %s152
    %s155 = sphi 0, %s154
    %s169 = sphi 0, %s155
    %s173 = sphi 0, %s173
    %s175 = sphi 0, %s173
    %s176 = sphi 0, %s175
    %s190 = sphi 0, %s176
    %s194 = sphi 0, %s194
    %s196 = sphi 0, %s194
    %s197 = sphi 0, %s196
    %s211 = sphi 0, %s197
    %s215 = sphi 0, %s215
    %s217 = sphi 0, %s215
    %s218 = sphi 0, %s217
    %s232 = sphi 0, %s218
    %s238 = sphi 0, %s240
    %s241 = sphi 0, %s238
    %s242 = sphi 0, %s241
    %s258 = sphi 0, %s242
  $region4: #{pointnet_reg_forward_pallas.5} parent=0 // loop_header_branch
    %18 = sbr.rel (%p16) target = $region8
  $region5: #{pointnet_reg_forward_pallas.5} parent=0 // loop_body
    %s20 = ssub.s32 %s15, 1
    %s21 = ssub.s32 %s15, 2
    %s28 = sadd.s32 1, %s23
    %p29 = scmp.ge.s32.totalorder %s28, 1
    %s30 = scalar_select %p29, 0, %s28
    %s31 = sadd.s32 1, %s22
    %s32 = scalar_select %p29, %s31, %s22
    %p33 = scmp.ge.s32.totalorder %s32, 2
    %s34 = scalar_select %p33, 0, %s32
    %s35 = ssub.s32 %s22, %s34
    %s36 = ssub.s32 %s23, %s30
    %s37 = sor.u32 %s35, %s36
    %p38 = scmp.eq.s32.totalorder %s37, 0
    %s40 = sadd.s32 %s39, 1
    %s41 = scalar_select %p38, %s39, %s40
    %p44 = pneg %p38
    %p45 = scmp.eq.s32.totalorder %s15, 1
    %p46 = por %p44, %p45
    %p47 = scmp.ne.s32.totalorder %s39, %s42
    %p48 = scmp.eq.s32.totalorder %s15, 0
    %p49 = por %p47, %p48
    %p50 = scmp.ne.s32.totalorder %s39, %s42
    %p51 = scmp.eq.s32.totalorder %s20, 1
    %p52 = por %p50, %p51
    %p53 = scmp.ne.s32.totalorder %s42, %s43
    %p54 = scmp.eq.s32.totalorder %s20, 0
    %p55 = por %p53, %p54
    %p56 = scmp.ne.s32.totalorder %s42, %s43
    %p57 = scmp.eq.s32.totalorder %s21, 1
    %p58 = por %p56, %p57
    %p60 = scmp.ne.s32.totalorder %s43, %s59
    %p61 = scmp.eq.s32.totalorder %s21, 0
    %p62 = por %p60, %p61
    %s63 = ssub.s32 %s22, %s34
    %p64 = scmp.eq.s32.totalorder %s63, 0
    %s66 = sadd.s32 %s65, 1
    %s67 = scalar_select %p64, %s65, %s66
    %p70 = pneg %p64
    %p71 = scmp.eq.s32.totalorder %s15, 1
    %p72 = por %p70, %p71
    %p73 = scmp.ne.s32.totalorder %s65, %s68
    %p74 = scmp.eq.s32.totalorder %s15, 0
    %p75 = por %p73, %p74
    %p76 = scmp.ne.s32.totalorder %s65, %s68
    %p77 = scmp.eq.s32.totalorder %s20, 1
    %p78 = por %p76, %p77
    %p79 = scmp.ne.s32.totalorder %s68, %s69
    %p80 = scmp.eq.s32.totalorder %s20, 0
    %p81 = por %p79, %p80
    %p82 = scmp.ne.s32.totalorder %s68, %s69
    %p83 = scmp.eq.s32.totalorder %s21, 1
    %p84 = por %p82, %p83
    %p86 = scmp.ne.s32.totalorder %s69, %s85
    %p87 = scmp.eq.s32.totalorder %s21, 0
    %p88 = por %p86, %p87
    %s90 = sadd.s32 %s89, 1
    %p93 = scmp.eq.s32.totalorder %s15, 1
    %p94 = scmp.ne.s32.totalorder %s89, %s91
    %p95 = scmp.eq.s32.totalorder %s15, 0
    %p96 = por %p94, %p95
    %p97 = scmp.ne.s32.totalorder %s89, %s91
    %p98 = scmp.eq.s32.totalorder %s20, 1
    %p99 = por %p97, %p98
    %p100 = scmp.ne.s32.totalorder %s91, %s92
    %p101 = scmp.eq.s32.totalorder %s20, 0
    %p102 = por %p100, %p101
    %p103 = scmp.ne.s32.totalorder %s91, %s92
    %p104 = scmp.eq.s32.totalorder %s21, 1
    %p105 = por %p103, %p104
    %p107 = scmp.ne.s32.totalorder %s92, %s106
    %p108 = scmp.eq.s32.totalorder %s21, 0
    %p109 = por %p107, %p108
    %s111 = sadd.s32 %s110, 1
    %p114 = scmp.eq.s32.totalorder %s15, 1
    %p115 = scmp.ne.s32.totalorder %s110, %s112
    %p116 = scmp.eq.s32.totalorder %s15, 0
    %p117 = por %p115, %p116
    %p118 = scmp.ne.s32.totalorder %s110, %s112
    %p119 = scmp.eq.s32.totalorder %s20, 1
    %p120 = por %p118, %p119
    %p121 = scmp.ne.s32.totalorder %s112, %s113
    %p122 = scmp.eq.s32.totalorder %s20, 0
    %p123 = por %p121, %p122
    %p124 = scmp.ne.s32.totalorder %s112, %s113
    %p125 = scmp.eq.s32.totalorder %s21, 1
    %p126 = por %p124, %p125
    %p128 = scmp.ne.s32.totalorder %s113, %s127
    %p129 = scmp.eq.s32.totalorder %s21, 0
    %p130 = por %p128, %p129
    %s132 = sadd.s32 %s131, 1
    %p135 = scmp.eq.s32.totalorder %s15, 1
    %p136 = scmp.ne.s32.totalorder %s131, %s133
    %p137 = scmp.eq.s32.totalorder %s15, 0
    %p138 = por %p136, %p137
    %p139 = scmp.ne.s32.totalorder %s131, %s133
    %p140 = scmp.eq.s32.totalorder %s20, 1
    %p141 = por %p139, %p140
    %p142 = scmp.ne.s32.totalorder %s133, %s134
    %p143 = scmp.eq.s32.totalorder %s20, 0
    %p144 = por %p142, %p143
    %p145 = scmp.ne.s32.totalorder %s133, %s134
    %p146 = scmp.eq.s32.totalorder %s21, 1
    %p147 = por %p145, %p146
    %p149 = scmp.ne.s32.totalorder %s134, %s148
    %p150 = scmp.eq.s32.totalorder %s21, 0
    %p151 = por %p149, %p150
    %s153 = sadd.s32 %s152, 1
    %p156 = scmp.eq.s32.totalorder %s15, 1
    %p157 = scmp.ne.s32.totalorder %s152, %s154
    %p158 = scmp.eq.s32.totalorder %s15, 0
    %p159 = por %p157, %p158
    %p160 = scmp.ne.s32.totalorder %s152, %s154
    %p161 = scmp.eq.s32.totalorder %s20, 1
    %p162 = por %p160, %p161
    %p163 = scmp.ne.s32.totalorder %s154, %s155
    %p164 = scmp.eq.s32.totalorder %s20, 0
    %p165 = por %p163, %p164
    %p166 = scmp.ne.s32.totalorder %s154, %s155
    %p167 = scmp.eq.s32.totalorder %s21, 1
    %p168 = por %p166, %p167
    %p170 = scmp.ne.s32.totalorder %s155, %s169
    %p171 = scmp.eq.s32.totalorder %s21, 0
    %p172 = por %p170, %p171
    %s174 = sadd.s32 %s173, 1
    %p177 = scmp.eq.s32.totalorder %s15, 1
    %p178 = scmp.ne.s32.totalorder %s173, %s175
    %p179 = scmp.eq.s32.totalorder %s15, 0
    %p180 = por %p178, %p179
    %p181 = scmp.ne.s32.totalorder %s173, %s175
    %p182 = scmp.eq.s32.totalorder %s20, 1
    %p183 = por %p181, %p182
    %p184 = scmp.ne.s32.totalorder %s175, %s176
    %p185 = scmp.eq.s32.totalorder %s20, 0
    %p186 = por %p184, %p185
    %p187 = scmp.ne.s32.totalorder %s175, %s176
    %p188 = scmp.eq.s32.totalorder %s21, 1
    %p189 = por %p187, %p188
    %p191 = scmp.ne.s32.totalorder %s176, %s190
    %p192 = scmp.eq.s32.totalorder %s21, 0
    %p193 = por %p191, %p192
    %s195 = sadd.s32 %s194, 1
    %p198 = scmp.eq.s32.totalorder %s15, 1
    %p199 = scmp.ne.s32.totalorder %s194, %s196
    %p200 = scmp.eq.s32.totalorder %s15, 0
    %p201 = por %p199, %p200
    %p202 = scmp.ne.s32.totalorder %s194, %s196
    %p203 = scmp.eq.s32.totalorder %s20, 1
    %p204 = por %p202, %p203
    %p205 = scmp.ne.s32.totalorder %s196, %s197
    %p206 = scmp.eq.s32.totalorder %s20, 0
    %p207 = por %p205, %p206
    %p208 = scmp.ne.s32.totalorder %s196, %s197
    %p209 = scmp.eq.s32.totalorder %s21, 1
    %p210 = por %p208, %p209
    %p212 = scmp.ne.s32.totalorder %s197, %s211
    %p213 = scmp.eq.s32.totalorder %s21, 0
    %p214 = por %p212, %p213
    %s216 = sadd.s32 %s215, 1
    %p219 = scmp.eq.s32.totalorder %s15, 1
    %p220 = scmp.ne.s32.totalorder %s215, %s217
    %p221 = scmp.eq.s32.totalorder %s15, 0
    %p222 = por %p220, %p221
    %p223 = scmp.ne.s32.totalorder %s215, %s217
    %p224 = scmp.eq.s32.totalorder %s20, 1
    %p225 = por %p223, %p224
    %p226 = scmp.ne.s32.totalorder %s217, %s218
    %p227 = scmp.eq.s32.totalorder %s20, 0
    %p228 = por %p226, %p227
    %p229 = scmp.ne.s32.totalorder %s217, %s218
    %p230 = scmp.eq.s32.totalorder %s21, 1
    %p231 = por %p229, %p230
    %p233 = scmp.ne.s32.totalorder %s218, %s232
    %p234 = scmp.eq.s32.totalorder %s21, 0
    %p235 = por %p233, %p234
    %s236 = ssub.s32 %s22, %s34
    %p237 = scmp.eq.s32.totalorder %s236, 0
    %s239 = sadd.s32 %s238, 1
    %s240 = scalar_select %p237, %s238, %s239
    %p243 = pneg %p237
    %p244 = scmp.eq.s32.totalorder %s15, 1
    %p245 = por %p243, %p244
    %p246 = scmp.ne.s32.totalorder %s238, %s241
    %p247 = scmp.eq.s32.totalorder %s15, 0
    %p248 = por %p246, %p247
    %p249 = scmp.ne.s32.totalorder %s238, %s241
    %p250 = scmp.eq.s32.totalorder %s20, 1
    %p251 = por %p249, %p250
    %p252 = scmp.ne.s32.totalorder %s241, %s242
    %p253 = scmp.eq.s32.totalorder %s20, 0
    %p254 = por %p252, %p253
    %p255 = scmp.ne.s32.totalorder %s241, %s242
    %p256 = scmp.eq.s32.totalorder %s21, 1
    %p257 = por %p255, %p256
    %p259 = scmp.ne.s32.totalorder %s242, %s258
    %p260 = scmp.eq.s32.totalorder %s21, 0
    %p261 = por %p259, %p260
    %p262 = scmp.le.s32.totalorder 1, %s15
    %p263 = scmp.lt.s32.totalorder %s15, 3
    %p264 = pnand %p262, %p263
    %p265 = pneg %p264
    // Predicated region
    $region9: #{pointnet_reg_forward_pallas.5} parent=5 // pred_check
      _
    $region10: #{pointnet_reg_forward_pallas.5} parent=5 // pred_check_branch
      %267 = sbr.rel (%p264) target = $region12
    $region11: #{pointnet_reg_forward_pallas.5} parent=5 // pred_region
      %s268 = ssub.s32 %s15, 1
      // Predicated region
      $region13: #{pointnet_reg_forward_pallas.5} parent=11 // pred_check
        %p269 = pneg %p102
      $region14: #{pointnet_reg_forward_pallas.5} parent=11 // pred_check_branch
        %271 = sbr.rel (%p269) target = $region16
      $region15: #{pointnet_reg_forward_pallas.5} parent=11 // pred_region
        _
      $region16: #{pointnet_reg_forward_pallas.5} parent=11 // pred_fallthru
        _
      // Predicated region
      $region17: #{pointnet_reg_forward_pallas.5} parent=11 // pred_check
        %p272 = pneg %p123
      $region18: #{pointnet_reg_forward_pallas.5} parent=11 // pred_check_branch
        %274 = sbr.rel (%p272) target = $region20
      $region19: #{pointnet_reg_forward_pallas.5} parent=11 // pred_region
        _
      $region20: #{pointnet_reg_forward_pallas.5} parent=11 // pred_fallthru
        _
      // Predicated region
      $region21: #{pointnet_reg_forward_pallas.5} parent=11 // pred_check
        %p275 = pneg %p144
      $region22: #{pointnet_reg_forward_pallas.5} parent=11 // pred_check_branch
        %277 = sbr.rel (%p275) target = $region24
      $region23: #{pointnet_reg_forward_pallas.5} parent=11 // pred_region
        _
      $region24: #{pointnet_reg_forward_pallas.5} parent=11 // pred_fallthru
        _
      // Predicated region
      $region25: #{pointnet_reg_forward_pallas.5} parent=11 // pred_check
        %p278 = pneg %p165
      $region26: #{pointnet_reg_forward_pallas.5} parent=11 // pred_check_branch
        %280 = sbr.rel (%p278) target = $region28
      $region27: #{pointnet_reg_forward_pallas.5} parent=11 // pred_region
        _
      $region28: #{pointnet_reg_forward_pallas.5} parent=11 // pred_fallthru
        _
      // Predicated region
      $region29: #{pointnet_reg_forward_pallas.5} parent=11 // pred_check
        %p281 = pneg %p186
      $region30: #{pointnet_reg_forward_pallas.5} parent=11 // pred_check_branch
        %283 = sbr.rel (%p281) target = $region32
      $region31: #{pointnet_reg_forward_pallas.5} parent=11 // pred_region
        _
      $region32: #{pointnet_reg_forward_pallas.5} parent=11 // pred_fallthru
        _
      // Predicated region
      $region33: #{pointnet_reg_forward_pallas.5} parent=11 // pred_check
        %p284 = pneg %p207
      $region34: #{pointnet_reg_forward_pallas.5} parent=11 // pred_check_branch
        %286 = sbr.rel (%p284) target = $region36
      $region35: #{pointnet_reg_forward_pallas.5} parent=11 // pred_region
        _
      $region36: #{pointnet_reg_forward_pallas.5} parent=11 // pred_fallthru
        _
      // Predicated region
      $region37: #{pointnet_reg_forward_pallas.5} parent=11 // pred_check
        %p287 = pneg %p228
      $region38: #{pointnet_reg_forward_pallas.5} parent=11 // pred_check_branch
        %289 = sbr.rel (%p287) target = $region40
      $region39: #{pointnet_reg_forward_pallas.5} parent=11 // pred_region
        _
      $region40: #{pointnet_reg_forward_pallas.5} parent=11 // pred_fallthru
        _
    $region12: #{pointnet_reg_forward_pallas.5} parent=5 // pred_fallthru
      _
    %p290 = scmp.lt.s32.totalorder %s15, 2
    // Predicated region
    $region41: #{pointnet_reg_forward_pallas.5} parent=5 // pred_check
      %p291 = pneg %p290
    $region42: #{pointnet_reg_forward_pallas.5} parent=5 // pred_check_branch
      %293 = sbr.rel (%p291) target = $region44
    $region43: #{pointnet_reg_forward_pallas.5} parent=5 // pred_region
      // Predicated region
      $region45: #{pointnet_reg_forward_pallas.5} parent=43 // pred_check
        %p294 = pneg %p49
      $region46: #{pointnet_reg_forward_pallas.5} parent=43 // pred_check_branch
        %296 = sbr.rel (%p294) target = $region48
      $region47: #{pointnet_reg_forward_pallas.5} parent=43 // pred_region
        %s297 = smul.u32 16, %s23
        %p298 = scmp.lt.s32.totalorder %s22, 1
        %s299 = scalar_select %p298, %s22, 1
        %p300 = scmp.lt.s32.totalorder %s297, 15
        %s301 = scalar_select %p300, %s297, 15
        %s302 = smul.addr %s299, 16
        %s303 = sadd.s32 %s301, %s302
        %s304 = smul.addr %s303, 4
        %s305 = scalar_lea.vmem %s0, %s304
        %s306 = smul.u32 16, %s23
      $region48: #{pointnet_reg_forward_pallas.5} parent=43 // pred_fallthru
        _
      // Predicated region
      $region49: #{pointnet_reg_forward_pallas.5} parent=43 // pred_check
        %p307 = pneg %p75
      $region50: #{pointnet_reg_forward_pallas.5} parent=43 // pred_check_branch
        %309 = sbr.rel (%p307) target = $region52
      $region51: #{pointnet_reg_forward_pallas.5} parent=43 // pred_region
        %p310 = scmp.lt.s32.totalorder %s22, 1
        %s311 = scalar_select %p310, %s22, 1
        %s312 = smul.addr %s311, 4
        %s313 = scalar_lea.vmem %s1, %s312
      $region52: #{pointnet_reg_forward_pallas.5} parent=43 // pred_fallthru
        _
    $region44: #{pointnet_reg_forward_pallas.5} parent=5 // pred_fallthru
      _
    %p314 = scmp.le.s32.totalorder 1, %s15
    %p315 = scmp.lt.s32.totalorder %s15, 3
    %p316 = pnand %p314, %p315
    %p317 = pneg %p316
    // Predicated region
    $region53: #{pointnet_reg_forward_pallas.5} parent=5 // pred_check
      _
    $region54: #{pointnet_reg_forward_pallas.5} parent=5 // pred_check_branch
      %319 = sbr.rel (%p316) target = $region56
    $region55: #{pointnet_reg_forward_pallas.5} parent=5 // pred_region
      %s320 = ssub.s32 %s15, 1
      %s321 = smul.u32 16, %s25
      %p322 = scmp.lt.s32.totalorder %s24, 1
      %s323 = scalar_select %p322, %s24, 1
      %p324 = scmp.lt.s32.totalorder %s321, 15
      %s325 = scalar_select %p324, %s321, 15
      %s326 = smul.addr %s323, 16
      %s327 = sadd.s32 %s325, %s326
      %s328 = smul.addr %s327, 4
      %s329 = scalar_lea.vmem %s0, %s328
      %p330 = pneg %p55
      %p331 = pneg %p52
      %p332 = scmp.lt.s32.totalorder %s24, 1
      %s333 = scalar_select %p332, %s24, 1
      %s334 = smul.addr %s333, 4
      %s335 = scalar_lea.vmem %s1, %s334
      %p336 = pneg %p81
      %p337 = pneg %p78
      %p338 = pneg %p102
      %p339 = pneg %p99
      %p340 = pneg %p123
      %p341 = pneg %p120
      %p342 = pneg %p144
      %p343 = pneg %p141
      %p344 = pneg %p165
      %p345 = pneg %p162
      %p346 = pneg %p186
      %p347 = pneg %p183
      %p348 = pneg %p207
      %p349 = pneg %p204
      %p350 = pneg %p228
      %p351 = pneg %p225
      %p352 = pneg %p254
      %p353 = pneg %p251
      %p354 = scmp.lt.s32.totalorder %s24, 1
      %s355 = scalar_select %p354, %s24, 1
      %s356 = smul.addr %s355, 8
      %s357 = scalar_lea.vmem %s9, %s356
      %s358 = smul.u32 16, %s25
      %p359 = scmp.lt.s32.totalorder %s24, 1
      %s360 = scalar_select %p359, %s24, 1
      %p361 = scmp.lt.s32.totalorder %s358, 15
      %s362 = scalar_select %p361, %s358, 15
      %s363 = smul.addr %s360, 16
      %s364 = sadd.s32 %s362, %s363
      %s365 = smul.addr %s364, 4
      %s366 = scalar_lea.vmem %s0, %s365
      %s367 = smul.u32 16, %s25
      %p368 = scmp.lt.s32.totalorder %s24, 1
      %s369 = scalar_select %p368, %s24, 1
      %s370 = smul.addr %s369, 4
      %s371 = scalar_lea.vmem %s1, %s370
      %p372 = scmp.lt.s32.totalorder %s24, 1
      %s373 = scalar_select %p372, %s24, 1
      %s374 = smul.addr %s373, 8
      %s375 = scalar_lea.vmem %s9, %s374
      %p377 = scmp.eq.s32.totalorder %s25, 0
      // Predicated region
      $region57: #{pointnet_reg_forward_pallas.5} parent=55 // pred_check
        %p378 = pneg %p377
      $region58: #{pointnet_reg_forward_pallas.5} parent=55 // pred_check_branch
        %380 = sbr.rel (%p378) target = $region60
      $region59: #{pointnet_reg_forward_pallas.5} parent=55 // pred_region
        %381 = vst [vmem:[#allocation2] sm:$0xff] -inf
      $region60: #{pointnet_reg_forward_pallas.5} parent=55 // pred_fallthru
        _
      %v382 = vld [vmem:[%s366] sm:$0xf]
      %v383 = vld [vmem:[%s366 + $0x4] sm:$0xf]
      %v384 = vld [vmem:[%s366 + $0x8] sm:$0xf]
      %v385 = vld [vmem:[%s366 + $0xc] sm:$0xf]
      %v386 = vld [vmem:[%s366 + $0x10] sm:$0xf]
      %v387 = vld [vmem:[%s366 + $0x14] sm:$0xf]
      %v388 = vld [vmem:[%s366 + $0x18] sm:$0xf]
      %v389 = vld [vmem:[%s366 + $0x1c] sm:$0xf]
      %v390 = vld [vmem:[%s366 + $0x20] sm:$0xf]
      %v391 = vld [vmem:[%s366 + $0x24] sm:$0xf]
      %v392 = vld [vmem:[%s366 + $0x28] sm:$0xf]
      %v393 = vld [vmem:[%s366 + $0x2c] sm:$0xf]
      %v394 = vld [vmem:[%s366 + $0x30] sm:$0xf]
      %v395 = vld [vmem:[%s366 + $0x34] sm:$0xf]
      %v396 = vld [vmem:[%s366 + $0x38] sm:$0xf]
      %v397 = vld [vmem:[%s366 + $0x3c] sm:$0xf]
      %v398 = vld [vmem:[%s371] sm:$0x7]
      %v399 = vld [vmem:[%s2] sm:$0x1]
      %v401 = vlaneseq
      %v402 = vshrl.u32 %v401, 7
      %v403 = vsub.s32 0, %v402
      %v404 = vrot.slane %v399, %v403
      %v422 = vunpack.c.l.b16 %v382
      %v423 = vunpack.c.l.b16 %v383
      %v424 = vunpack.c.l.b16 %v384
      %v425 = vunpack.c.l.b16 %v385
      %v426 = vunpack.c.l.b16 %v386
      %v427 = vunpack.c.l.b16 %v387
      %v428 = vunpack.c.l.b16 %v388
      %v429 = vunpack.c.l.b16 %v389
      %v430 = vunpack.c.l.b16 %v390
      %v431 = vunpack.c.l.b16 %v391
      %v432 = vunpack.c.l.b16 %v392
      %v433 = vunpack.c.l.b16 %v393
      %v434 = vunpack.c.l.b16 %v394
      %v435 = vunpack.c.l.b16 %v395
      %v436 = vunpack.c.l.b16 %v396
      %v437 = vunpack.c.l.b16 %v397
      %v438 = vpack.c.b16 %v423, %v422
      %v439 = vpack.c.b16 %v425, %v424
      %v440 = vpack.c.b16 %v427, %v426
      %v441 = vpack.c.b16 %v429, %v428
      %v442 = vpack.c.b16 %v431, %v430
      %v443 = vpack.c.b16 %v433, %v432
      %v444 = vpack.c.b16 %v435, %v434
      %v445 = vpack.c.b16 %v437, %v436
      %vm446 = vcmask 48128
      %v448 = vsel %vm446, %v438, 0
      %v451 = vsel %vm446, %v439, 0
      %v454 = vsel %vm446, %v440, 0
      %v457 = vsel %vm446, %v441, 0
      %v460 = vsel %vm446, %v442, 0
      %v463 = vsel %vm446, %v443, 0
      %v466 = vsel %vm446, %v444, 0
      %v469 = vsel %vm446, %v445, 0
      %vm471 = vcmask 1042432
      %v473 = vsel %vm471, %v398, 0
      %475 = vmatprep.subr.bf16.mxu0 0
      %476 = vmatpush1.bf16.msra.mxu0 %v473
      %477 = vmatprep.subr.bf16.mxu0 0
      %478 = vmatpush1.bf16.msra.mxu0 0
      %479 = vmatprep.subr.bf16.mxu0 0
      %480 = vmatpush1.bf16.msra.mxu0 0
      %481 = vmatprep.subr.bf16.mxu0 0
      %482 = vmatpush1.bf16.msra.mxu0 0
      %483 = vmatprep.subr.bf16.mxu0 0
      %484 = vmatpush1.bf16.msra.mxu0 0
      %485 = vmatprep.subr.bf16.mxu0 0
      %486 = vmatpush1.bf16.msra.mxu0 0
      %487 = vmatprep.subr.bf16.mxu0 0
      %488 = vmatpush1.bf16.msra.mxu0 0
      %489 = vmatprep.subr.bf16.mxu0 0
      %490 = vmatpush1.bf16.msra.mxu0 0
      %491 = vmatprep.subr.bf16.mxu0 0
      %492 = vmatpush1.bf16.msra.mxu0 0
      %493 = vmatprep.subr.bf16.mxu0 0
      %494 = vmatpush1.bf16.msra.mxu0 0
      %495 = vmatprep.subr.bf16.mxu0 0
      %496 = vmatpush1.bf16.msra.mxu0 0
      %497 = vmatprep.subr.bf16.mxu0 0
      %498 = vmatpush1.bf16.msra.mxu0 0
      %499 = vmatprep.subr.bf16.mxu0 0
      %500 = vmatpush1.bf16.msra.mxu0 0
      %501 = vmatprep.subr.bf16.mxu0 0
      %502 = vmatpush1.bf16.msra.mxu0 0
      %503 = vmatprep.subr.bf16.mxu0 0
      %504 = vmatpush1.bf16.msra.mxu0 0
      %505 = vmatprep.subr.bf16.mxu0 0
      %506 = vmatpush1.bf16.msra.mxu0 0
      %507 = vmatprep.mubr.bf16.mxu0 0
      %508 = vmatmul.mubr.bf16.gmra.mrb[0].mxu0 %v448
      %v509 = vpop.f32.mrb[0].mxu0
      %v510 = vadd.f32 %v404, %v509
      %v511 = vpop.f32.mrb[0].mxu0
      %v512 = vpop.f32.mrb[0].mxu0
      %v513 = vadd.f32 %v404, %v512
      %v514 = vpop.f32.mrb[0].mxu0
      %515 = vmatprep.mubr.bf16.mxu0 0
      %516 = vmatmul.mubr.bf16.gmra.mrb[0].mxu0 %v451
      %v517 = vpop.f32.mrb[0].mxu0
      %v518 = vadd.f32 %v404, %v517
      %v519 = vpop.f32.mrb[0].mxu0
      %v520 = vpop.f32.mrb[0].mxu0
      %v521 = vadd.f32 %v404, %v520
      %v522 = vpop.f32.mrb[0].mxu0
      %523 = vmatprep.mubr.bf16.mxu0 0
      %524 = vmatmul.mubr.bf16.gmra.mrb[0].mxu0 %v454
      %v525 = vpop.f32.mrb[0].mxu0
      %v526 = vadd.f32 %v404, %v525
      %v527 = vpop.f32.mrb[0].mxu0
      %v528 = vpop.f32.mrb[0].mxu0
      %v529 = vadd.f32 %v404, %v528
      %v530 = vpop.f32.mrb[0].mxu0
      %531 = vmatprep.mubr.bf16.mxu0 0
      %532 = vmatmul.mubr.bf16.gmra.mrb[0].mxu0 %v457
      %v533 = vpop.f32.mrb[0].mxu0
      %v534 = vadd.f32 %v404, %v533
      %v535 = vpop.f32.mrb[0].mxu0
      %v536 = vpop.f32.mrb[0].mxu0
      %v537 = vadd.f32 %v404, %v536
      %v538 = vpop.f32.mrb[0].mxu0
      %539 = vmatprep.mubr.bf16.mxu0 0
      %540 = vmatmul.mubr.bf16.gmra.mrb[0].mxu0 %v460
      %v541 = vpop.f32.mrb[0].mxu0
      %v542 = vadd.f32 %v404, %v541
      %v543 = vpop.f32.mrb[0].mxu0
      %v544 = vpop.f32.mrb[0].mxu0
      %v545 = vadd.f32 %v404, %v544
      %v546 = vpop.f32.mrb[0].mxu0
      %547 = vmatprep.mubr.bf16.mxu0 0
      %548 = vmatmul.mubr.bf16.gmra.mrb[0].mxu0 %v463
      %v549 = vpop.f32.mrb[0].mxu0
      %v550 = vadd.f32 %v404, %v549
      %v551 = vpop.f32.mrb[0].mxu0
      %v552 = vpop.f32.mrb[0].mxu0
      %v553 = vadd.f32 %v404, %v552
      %v554 = vpop.f32.mrb[0].mxu0
      %555 = vmatprep.mubr.bf16.mxu0 0
      %556 = vmatmul.mubr.bf16.gmra.mrb[0].mxu0 %v466
      %v557 = vpop.f32.mrb[0].mxu0
      %v558 = vadd.f32 %v404, %v557
      %v559 = vpop.f32.mrb[0].mxu0
      %v560 = vpop.f32.mrb[0].mxu0
      %v561 = vadd.f32 %v404, %v560
      %v562 = vpop.f32.mrb[0].mxu0
      %563 = vmatprep.mubr.bf16.mxu0 0
      %564 = vmatmul.mubr.bf16.gmra.mrb[0].mxu0 %v469
      %v565 = vpop.f32.mrb[0].mxu0
      %v566 = vadd.f32 %v404, %v565
      %v567 = vpop.f32.mrb[0].mxu0
      %v568 = vpop.f32.mrb[0].mxu0
      %v569 = vadd.f32 %v404, %v568
      %v570 = vpop.f32.mrb[0].mxu0
      %571 = vdwg.mxu0
      %v572 = vmax.f32 %v510, 0.0
      %v573 = vmax.f32 %v513, 0.0
      %v574 = vmax.f32 %v518, 0.0
      %v575 = vmax.f32 %v521, 0.0
      %v576 = vmax.f32 %v526, 0.0
      %v577 = vmax.f32 %v529, 0.0
      %v578 = vmax.f32 %v534, 0.0
      %v579 = vmax.f32 %v537, 0.0
      %v580 = vmax.f32 %v542, 0.0
      %v581 = vmax.f32 %v545, 0.0
      %v582 = vmax.f32 %v550, 0.0
      %v583 = vmax.f32 %v553, 0.0
      %v584 = vmax.f32 %v558, 0.0
      %v585 = vmax.f32 %v561, 0.0
      %v586 = vmax.f32 %v566, 0.0
      %v587 = vmax.f32 %v569, 0.0
      %v588 = vpack.c.bf16 %v573, %v572
      %v589 = vpack.c.bf16 %v575, %v574
      %v590 = vpack.c.bf16 %v577, %v576
      %v591 = vpack.c.bf16 %v579, %v578
      %v592 = vpack.c.bf16 %v581, %v580
      %v593 = vpack.c.bf16 %v583, %v582
      %v594 = vpack.c.bf16 %v585, %v584
      %v595 = vpack.c.bf16 %v587, %v586
      %v596 = vld [vmem:[%s3] sm:$0xf]
      %v597 = vld [vmem:[%s3 + $0x4] sm:$0xf]
      %v598 = vld [vmem:[%s3 + $0x8] sm:$0xf]
      %v599 = vld [vmem:[%s3 + $0xc] sm:$0xf]
      %v600 = vld [vmem:[%s3 + $0x10] sm:$0xf]
      %v601 = vld [vmem:[%s3 + $0x14] sm:$0xf]
      %v602 = vld [vmem:[%s3 + $0x18] sm:$0xf]
      %v603 = vld [vmem:[%s3 + $0x1c] sm:$0xf]
      %v604 = vld [vmem:[%s4] sm:$0x1]
      %v606 = vlaneseq
      %v607 = vshrl.u32 %v606, 7
      %v608 = vsub.s32 0, %v607
      %v609 = vrot.slane %v604, %v608
      %v619 = vunpack.c.l.b16 %v596
      %v620 = vunpack.c.l.b16 %v597
      %v621 = vunpack.c.l.b16 %v598
      %v622 = vunpack.c.l.b16 %v599
      %v623 = vunpack.c.l.b16 %v600
      %v624 = vunpack.c.l.b16 %v601
      %v625 = vunpack.c.l.b16 %v602
      %v626 = vunpack.c.l.b16 %v603
      %v627 = vpack.c.b16 %v620, %v619
      %v628 = vpack.c.b16 %v622, %v621
      %v629 = vpack.c.b16 %v624, %v623
      %v630 = vpack.c.b16 %v626, %v625
      %vm635 = vcmask 523264
      %v637 = vsel %vm635, %v588, 0
      %v640 = vsel %vm635, %v589, 0
      %v643 = vsel %vm635, %v590, 0
      %v646 = vsel %vm635, %v591, 0
      %v649 = vsel %vm635, %v592, 0
      %v652 = vsel %vm635, %v593, 0
      %v655 = vsel %vm635, %v594, 0
      %v658 = vsel %vm635, %v595, 0
      %660 = vmatprep.subr.bf16.mxu0 0
      %661 = vmatpush1.bf16.msra.mxu0 %v627
      %662 = vmatprep.subr.bf16.mxu0 0
      %663 = vmatpush1.bf16.msra.mxu0 %v628
      %664 = vmatprep.subr.bf16.mxu0 0
      %665 = vmatpush1.bf16.msra.mxu0 %v629
      %666 = vmatprep.subr.bf16.mxu0 0
      %667 = vmatpush1.bf16.msra.mxu0 %v630
      %668 = vmatprep.subr.bf16.mxu0 0
      %669 = vmatpush1.bf16.msra.mxu0 0
      %670 = vmatprep.subr.bf16.mxu0 0
      %671 = vmatpush1.bf16.msra.mxu0 0
      %672 = vmatprep.subr.bf16.mxu0 0
      %673 = vmatpush1.bf16.msra.mxu0 0
      %674 = vmatprep.subr.bf16.mxu0 0
      %675 = vmatpush1.bf16.msra.mxu0 0
      %676 = vmatprep.subr.bf16.mxu0 0
      %677 = vmatpush1.bf16.msra.mxu0 0
      %678 = vmatprep.subr.bf16.mxu0 0
      %679 = vmatpush1.bf16.msra.mxu0 0
      %680 = vmatprep.subr.bf16.mxu0 0
      %681 = vmatpush1.bf16.msra.mxu0 0
      %682 = vmatprep.subr.bf16.mxu0 0
      %683 = vmatpush1.bf16.msra.mxu0 0
      %684 = vmatprep.subr.bf16.mxu0 0
      %685 = vmatpush1.bf16.msra.mxu0 0
      %686 = vmatprep.subr.bf16.mxu0 0
      %687 = vmatpush1.bf16.msra.mxu0 0
      %688 = vmatprep.subr.bf16.mxu0 0
      %689 = vmatpush1.bf16.msra.mxu0 0
      %690 = vmatprep.subr.bf16.mxu0 0
      %691 = vmatpush1.bf16.msra.mxu0 0
      %692 = vmatprep.mubr.bf16.mxu0 0
      %693 = vmatmul.mubr.bf16.gmra.mrb[0].mxu0 %v637
      %v694 = vpop.f32.mrb[0].mxu0
      %v695 = vadd.f32 %v609, %v694
      %v696 = vpop.f32.mrb[0].mxu0
      %v697 = vpop.f32.mrb[0].mxu0
      %v698 = vadd.f32 %v609, %v697
      %v699 = vpop.f32.mrb[0].mxu0
      %700 = vmatprep.mubr.bf16.mxu0 0
      %701 = vmatmul.mubr.bf16.gmra.mrb[0].mxu0 %v640
      %v702 = vpop.f32.mrb[0].mxu0
      %v703 = vadd.f32 %v609, %v702
      %v704 = vpop.f32.mrb[0].mxu0
      %v705 = vpop.f32.mrb[0].mxu0
      %v706 = vadd.f32 %v609, %v705
      %v707 = vpop.f32.mrb[0].mxu0
      %708 = vmatprep.mubr.bf16.mxu0 0
      %709 = vmatmul.mubr.bf16.gmra.mrb[0].mxu0 %v643
      %v710 = vpop.f32.mrb[0].mxu0
      %v711 = vadd.f32 %v609, %v710
      %v712 = vpop.f32.mrb[0].mxu0
      %v713 = vpop.f32.mrb[0].mxu0
      %v714 = vadd.f32 %v609, %v713
      %v715 = vpop.f32.mrb[0].mxu0
      %716 = vmatprep.mubr.bf16.mxu0 0
      %717 = vmatmul.mubr.bf16.gmra.mrb[0].mxu0 %v646
      %v718 = vpop.f32.mrb[0].mxu0
      %v719 = vadd.f32 %v609, %v718
      %v720 = vpop.f32.mrb[0].mxu0
      %v721 = vpop.f32.mrb[0].mxu0
      %v722 = vadd.f32 %v609, %v721
      %v723 = vpop.f32.mrb[0].mxu0
      %724 = vmatprep.mubr.bf16.mxu0 0
      %725 = vmatmul.mubr.bf16.gmra.mrb[0].mxu0 %v649
      %v726 = vpop.f32.mrb[0].mxu0
      %v727 = vadd.f32 %v609, %v726
      %v728 = vpop.f32.mrb[0].mxu0
      %v729 = vpop.f32.mrb[0].mxu0
      %v730 = vadd.f32 %v609, %v729
      %v731 = vpop.f32.mrb[0].mxu0
      %732 = vmatprep.mubr.bf16.mxu0 0
      %733 = vmatmul.mubr.bf16.gmra.mrb[0].mxu0 %v652
      %v734 = vpop.f32.mrb[0].mxu0
      %v735 = vadd.f32 %v609, %v734
      %v736 = vpop.f32.mrb[0].mxu0
      %v737 = vpop.f32.mrb[0].mxu0
      %v738 = vadd.f32 %v609, %v737
      %v739 = vpop.f32.mrb[0].mxu0
      %740 = vmatprep.mubr.bf16.mxu0 0
      %741 = vmatmul.mubr.bf16.gmra.mrb[0].mxu0 %v655
      %v742 = vpop.f32.mrb[0].mxu0
      %v743 = vadd.f32 %v609, %v742
      %v744 = vpop.f32.mrb[0].mxu0
      %v745 = vpop.f32.mrb[0].mxu0
      %v746 = vadd.f32 %v609, %v745
      %v747 = vpop.f32.mrb[0].mxu0
      %748 = vmatprep.mubr.bf16.mxu0 0
      %749 = vmatmul.mubr.bf16.gmra.mrb[0].mxu0 %v658
      %v750 = vpop.f32.mrb[0].mxu0
      %v751 = vadd.f32 %v609, %v750
      %v752 = vpop.f32.mrb[0].mxu0
      %v753 = vpop.f32.mrb[0].mxu0
      %v754 = vadd.f32 %v609, %v753
      %v755 = vpop.f32.mrb[0].mxu0
      %756 = vdwg.mxu0
      %v757 = vmax.f32 %v695, 0.0
      %v758 = vmax.f32 %v698, 0.0
      %v759 = vmax.f32 %v703, 0.0
      %v760 = vmax.f32 %v706, 0.0
      %v761 = vmax.f32 %v711, 0.0
      %v762 = vmax.f32 %v714, 0.0
      %v763 = vmax.f32 %v719, 0.0
      %v764 = vmax.f32 %v722, 0.0
      %v765 = vmax.f32 %v727, 0.0
      %v766 = vmax.f32 %v730, 0.0
      %v767 = vmax.f32 %v735, 0.0
      %v768 = vmax.f32 %v738, 0.0
      %v769 = vmax.f32 %v743, 0.0
      %v770 = vmax.f32 %v746, 0.0
      %v771 = vmax.f32 %v751, 0.0
      %v772 = vmax.f32 %v754, 0.0
      %v773 = vpack.c.bf16 %v758, %v757
      %v774 = vpack.c.bf16 %v760, %v759
      %v775 = vpack.c.bf16 %v762, %v761
      %v776 = vpack.c.bf16 %v764, %v763
      %v777 = vpack.c.bf16 %v766, %v765
      %v778 = vpack.c.bf16 %v768, %v767
      %v779 = vpack.c.bf16 %v770, %v769
      %v780 = vpack.c.bf16 %v772, %v771
      %v781 = vld [vmem:[%s5] sm:$0xf]
      %v782 = vld [vmem:[%s5 + $0x4] sm:$0xf]
      %v783 = vld [vmem:[%s5 + $0x8] sm:$0xf]
      %v784 = vld [vmem:[%s5 + $0xc] sm:$0xf]
      %v785 = vld [vmem:[%s5 + $0x10] sm:$0xf]
      %v786 = vld [vmem:[%s5 + $0x14] sm:$0xf]
      %v787 = vld [vmem:[%s5 + $0x18] sm:$0xf]
      %v788 = vld [vmem:[%s5 + $0x1c] sm:$0xf]
      %v789 = vld [vmem:[%s6] sm:$0x1]
      %v791 = vlaneseq
      %v792 = vshrl.u32 %v791, 7
      %v793 = vsub.s32 0, %v792
      %v794 = vrot.slane %v789, %v793
      %v804 = vunpack.c.l.b16 %v781
      %v805 = vunpack.c.l.b16 %v782
      %v806 = vunpack.c.l.b16 %v783
      %v807 = vunpack.c.l.b16 %v784
      %v808 = vunpack.c.l.b16 %v785
      %v809 = vunpack.c.l.b16 %v786
      %v810 = vunpack.c.l.b16 %v787
      %v811 = vunpack.c.l.b16 %v788
      %v812 = vpack.c.b16 %v805, %v804
      %v813 = vpack.c.b16 %v807, %v806
      %v814 = vpack.c.b16 %v809, %v808
      %v815 = vpack.c.b16 %v811, %v810
      %v821 = vsel %vm635, %v773, 0
      %v824 = vsel %vm635, %v774, 0
      %v827 = vsel %vm635, %v775, 0
      %v830 = vsel %vm635, %v776, 0
      %v833 = vsel %vm635, %v777, 0
      %v836 = vsel %vm635, %v778, 0
      %v839 = vsel %vm635, %v779, 0
      %v842 = vsel %vm635, %v780, 0
      %844 = vmatprep.subr.bf16.mxu0 0
      %845 = vmatpush1.bf16.msra.mxu0 %v812
      %846 = vmatprep.subr.bf16.mxu0 0
      %847 = vmatpush1.bf16.msra.mxu0 %v813
      %848 = vmatprep.subr.bf16.mxu0 0
      %849 = vmatpush1.bf16.msra.mxu0 %v814
      %850 = vmatprep.subr.bf16.mxu0 0
      %851 = vmatpush1.bf16.msra.mxu0 %v815
      %852 = vmatprep.subr.bf16.mxu0 0
      %853 = vmatpush1.bf16.msra.mxu0 0
      %854 = vmatprep.subr.bf16.mxu0 0
      %855 = vmatpush1.bf16.msra.mxu0 0
      %856 = vmatprep.subr.bf16.mxu0 0
      %857 = vmatpush1.bf16.msra.mxu0 0
      %858 = vmatprep.subr.bf16.mxu0 0
      %859 = vmatpush1.bf16.msra.mxu0 0
      %860 = vmatprep.subr.bf16.mxu0 0
      %861 = vmatpush1.bf16.msra.mxu0 0
      %862 = vmatprep.subr.bf16.mxu0 0
      %863 = vmatpush1.bf16.msra.mxu0 0
      %864 = vmatprep.subr.bf16.mxu0 0
      %865 = vmatpush1.bf16.msra.mxu0 0
      %866 = vmatprep.subr.bf16.mxu0 0
      %867 = vmatpush1.bf16.msra.mxu0 0
      %868 = vmatprep.subr.bf16.mxu0 0
      %869 = vmatpush1.bf16.msra.mxu0 0
      %870 = vmatprep.subr.bf16.mxu0 0
      %871 = vmatpush1.bf16.msra.mxu0 0
      %872 = vmatprep.subr.bf16.mxu0 0
      %873 = vmatpush1.bf16.msra.mxu0 0
      %874 = vmatprep.subr.bf16.mxu0 0
      %875 = vmatpush1.bf16.msra.mxu0 0
      %876 = vmatprep.mubr.bf16.mxu0 0
      %877 = vmatmul.mubr.bf16.gmra.mrb[0].mxu0 %v821
      %v878 = vpop.f32.mrb[0].mxu0
      %v879 = vadd.f32 %v794, %v878
      %v880 = vpop.f32.mrb[0].mxu0
      %v881 = vpop.f32.mrb[0].mxu0
      %v882 = vadd.f32 %v794, %v881
      %v883 = vpop.f32.mrb[0].mxu0
      %884 = vmatprep.mubr.bf16.mxu0 0
      %885 = vmatmul.mubr.bf16.gmra.mrb[0].mxu0 %v824
      %v886 = vpop.f32.mrb[0].mxu0
      %v887 = vadd.f32 %v794, %v886
      %v888 = vpop.f32.mrb[0].mxu0
      %v889 = vpop.f32.mrb[0].mxu0
      %v890 = vadd.f32 %v794, %v889
      %v891 = vpop.f32.mrb[0].mxu0
      %892 = vmatprep.mubr.bf16.mxu0 0
      %893 = vmatmul.mubr.bf16.gmra.mrb[0].mxu0 %v827
      %v894 = vpop.f32.mrb[0].mxu0
      %v895 = vadd.f32 %v794, %v894
      %v896 = vpop.f32.mrb[0].mxu0
      %v897 = vpop.f32.mrb[0].mxu0
      %v898 = vadd.f32 %v794, %v897
      %v899 = vpop.f32.mrb[0].mxu0
      %900 = vmatprep.mubr.bf16.mxu0 0
      %901 = vmatmul.mubr.bf16.gmra.mrb[0].mxu0 %v830
      %v902 = vpop.f32.mrb[0].mxu0
      %v903 = vadd.f32 %v794, %v902
      %v904 = vpop.f32.mrb[0].mxu0
      %v905 = vpop.f32.mrb[0].mxu0
      %v906 = vadd.f32 %v794, %v905
      %v907 = vpop.f32.mrb[0].mxu0
      %908 = vmatprep.mubr.bf16.mxu0 0
      %909 = vmatmul.mubr.bf16.gmra.mrb[0].mxu0 %v833
      %v910 = vpop.f32.mrb[0].mxu0
      %v911 = vadd.f32 %v794, %v910
      %v912 = vpop.f32.mrb[0].mxu0
      %v913 = vpop.f32.mrb[0].mxu0
      %v914 = vadd.f32 %v794, %v913
      %v915 = vpop.f32.mrb[0].mxu0
      %916 = vmatprep.mubr.bf16.mxu0 0
      %917 = vmatmul.mubr.bf16.gmra.mrb[0].mxu0 %v836
      %v918 = vpop.f32.mrb[0].mxu0
      %v919 = vadd.f32 %v794, %v918
      %v920 = vpop.f32.mrb[0].mxu0
      %v921 = vpop.f32.mrb[0].mxu0
      %v922 = vadd.f32 %v794, %v921
      %v923 = vpop.f32.mrb[0].mxu0
      %924 = vmatprep.mubr.bf16.mxu0 0
      %925 = vmatmul.mubr.bf16.gmra.mrb[0].mxu0 %v839
      %v926 = vpop.f32.mrb[0].mxu0
      %v927 = vadd.f32 %v794, %v926
      %v928 = vpop.f32.mrb[0].mxu0
      %v929 = vpop.f32.mrb[0].mxu0
      %v930 = vadd.f32 %v794, %v929
      %v931 = vpop.f32.mrb[0].mxu0
      %932 = vmatprep.mubr.bf16.mxu0 0
      %933 = vmatmul.mubr.bf16.gmra.mrb[0].mxu0 %v842
      %v934 = vpop.f32.mrb[0].mxu0
      %v935 = vadd.f32 %v794, %v934
      %v936 = vpop.f32.mrb[0].mxu0
      %v937 = vpop.f32.mrb[0].mxu0
      %v938 = vadd.f32 %v794, %v937
      %v939 = vpop.f32.mrb[0].mxu0
      %940 = vdwg.mxu0
      %v941 = vmax.f32 %v879, 0.0
      %v942 = vmax.f32 %v882, 0.0
      %v943 = vmax.f32 %v887, 0.0
      %v944 = vmax.f32 %v890, 0.0
      %v945 = vmax.f32 %v895, 0.0
      %v946 = vmax.f32 %v898, 0.0
      %v947 = vmax.f32 %v903, 0.0
      %v948 = vmax.f32 %v906, 0.0
      %v949 = vmax.f32 %v911, 0.0
      %v950 = vmax.f32 %v914, 0.0
      %v951 = vmax.f32 %v919, 0.0
      %v952 = vmax.f32 %v922, 0.0
      %v953 = vmax.f32 %v927, 0.0
      %v954 = vmax.f32 %v930, 0.0
      %v955 = vmax.f32 %v935, 0.0
      %v956 = vmax.f32 %v938, 0.0
      %v957 = vpack.c.bf16 %v942, %v941
      %v958 = vpack.c.bf16 %v944, %v943
      %v959 = vpack.c.bf16 %v946, %v945
      %v960 = vpack.c.bf16 %v948, %v947
      %v961 = vpack.c.bf16 %v950, %v949
      %v962 = vpack.c.bf16 %v952, %v951
      %v963 = vpack.c.bf16 %v954, %v953
      %v964 = vpack.c.bf16 %v956, %v955
      %v965 = vld [vmem:[%s7] sm:$0xff]
      %v966 = vld [vmem:[%s7 + $0x8] sm:$0xff]
      %v967 = vld [vmem:[%s7 + $0x10] sm:$0xff]
      %v968 = vld [vmem:[%s7 + $0x18] sm:$0xff]
      %v969 = vld [vmem:[%s7 + $0x20] sm:$0xff]
      %v970 = vld [vmem:[%s7 + $0x28] sm:$0xff]
      %v971 = vld [vmem:[%s7 + $0x30] sm:$0xff]
      %v972 = vld [vmem:[%s7 + $0x38] sm:$0xff]
      %v973 = vld [vmem:[%s7 + $0x40] sm:$0xff]
      %v974 = vld [vmem:[%s7 + $0x48] sm:$0xff]
      %v975 = vld [vmem:[%s7 + $0x50] sm:$0xff]
      %v976 = vld [vmem:[%s7 + $0x58] sm:$0xff]
      %v977 = vld [vmem:[%s7 + $0x60] sm:$0xff]
      %v978 = vld [vmem:[%s7 + $0x68] sm:$0xff]
      %v979 = vld [vmem:[%s7 + $0x70] sm:$0xff]
      %v980 = vld [vmem:[%s7 + $0x78] sm:$0xff]
      %v981 = vld [vmem:[%s7 + $0x80] sm:$0xff]
      %v982 = vld [vmem:[%s7 + $0x88] sm:$0xff]
      %v983 = vld [vmem:[%s7 + $0x90] sm:$0xff]
      %v984 = vld [vmem:[%s7 + $0x98] sm:$0xff]
      %v985 = vld [vmem:[%s7 + $0xa0] sm:$0xff]
      %v986 = vld [vmem:[%s7 + $0xa8] sm:$0xff]
      %v987 = vld [vmem:[%s7 + $0xb0] sm:$0xff]
      %v988 = vld [vmem:[%s7 + $0xb8] sm:$0xff]
      %v989 = vld [vmem:[%s7 + $0xc0] sm:$0xff]
      %v990 = vld [vmem:[%s7 + $0xc8] sm:$0xff]
      %v991 = vld [vmem:[%s7 + $0xd0] sm:$0xff]
      %v992 = vld [vmem:[%s7 + $0xd8] sm:$0xff]
      %v993 = vld [vmem:[%s7 + $0xe0] sm:$0xff]
      %v994 = vld [vmem:[%s7 + $0xe8] sm:$0xff]
      %v995 = vld [vmem:[%s7 + $0xf0] sm:$0xff]
      %v996 = vld [vmem:[%s7 + $0xf8] sm:$0xff]
      %v997 = vld [vmem:[%s7 + $0x100] sm:$0xff]
      %v998 = vld [vmem:[%s7 + $0x108] sm:$0xff]
      %v999 = vld [vmem:[%s7 + $0x110] sm:$0xff]
      %v1000 = vld [vmem:[%s7 + $0x118] sm:$0xff]
      %v1001 = vld [vmem:[%s7 + $0x120] sm:$0xff]
      %v1002 = vld [vmem:[%s7 + $0x128] sm:$0xff]
      %v1003 = vld [vmem:[%s7 + $0x130] sm:$0xff]
      %v1004 = vld [vmem:[%s7 + $0x138] sm:$0xff]
      %v1005 = vld [vmem:[%s7 + $0x140] sm:$0xff]
      %v1006 = vld [vmem:[%s7 + $0x148] sm:$0xff]
      %v1007 = vld [vmem:[%s7 + $0x150] sm:$0xff]
      %v1008 = vld [vmem:[%s7 + $0x158] sm:$0xff]
      %v1009 = vld [vmem:[%s7 + $0x160] sm:$0xff]
      %v1010 = vld [vmem:[%s7 + $0x168] sm:$0xff]
      %v1011 = vld [vmem:[%s7 + $0x170] sm:$0xff]
      %v1012 = vld [vmem:[%s7 + $0x178] sm:$0xff]
      %v1013 = vld [vmem:[%s7 + $0x180] sm:$0xff]
      %v1014 = vld [vmem:[%s7 + $0x188] sm:$0xff]
      %v1015 = vld [vmem:[%s7 + $0x190] sm:$0xff]
      %v1016 = vld [vmem:[%s7 + $0x198] sm:$0xff]
      %v1017 = vld [vmem:[%s7 + $0x1a0] sm:$0xff]
      %v1018 = vld [vmem:[%s7 + $0x1a8] sm:$0xff]
      %v1019 = vld [vmem:[%s7 + $0x1b0] sm:$0xff]
      %v1020 = vld [vmem:[%s7 + $0x1b8] sm:$0xff]
      %v1021 = vld [vmem:[%s7 + $0x1c0] sm:$0xff]
      %v1022 = vld [vmem:[%s7 + $0x1c8] sm:$0xff]
      %v1023 = vld [vmem:[%s7 + $0x1d0] sm:$0xff]
      %v1024 = vld [vmem:[%s7 + $0x1d8] sm:$0xff]
      %v1025 = vld [vmem:[%s7 + $0x1e0] sm:$0xff]
      %v1026 = vld [vmem:[%s7 + $0x1e8] sm:$0xff]
      %v1027 = vld [vmem:[%s7 + $0x1f0] sm:$0xff]
      %v1028 = vld [vmem:[%s7 + $0x1f8] sm:$0xff]
      %v1029 = vld [vmem:[%s8] sm:$0xff]
      %v1031 = vlaneseq
      %v1032 = vshrl.u32 %v1031, 7
      %v1033 = vsub.s32 0, %v1032
      %v1034 = vrot.slane %v1029, %v1033
      %v1035 = vlaneseq
      %v1036 = vshrl.u32 %v1035, 7
      %v1037 = vsub.s32 1, %v1036
      %v1038 = vrot.slane %v1029, %v1037
      %v1039 = vlaneseq
      %v1040 = vshrl.u32 %v1039, 7
      %v1041 = vsub.s32 2, %v1040
      %v1042 = vrot.slane %v1029, %v1041
      %v1043 = vlaneseq
      %v1044 = vshrl.u32 %v1043, 7
      %v1045 = vsub.s32 3, %v1044
      %v1046 = vrot.slane %v1029, %v1045
      %v1047 = vlaneseq
      %v1048 = vshrl.u32 %v1047, 7
      %v1049 = vsub.s32 4, %v1048
      %v1050 = vrot.slane %v1029, %v1049
      %v1051 = vlaneseq
      %v1052 = vshrl.u32 %v1051, 7
      %v1053 = vsub.s32 5, %v1052
      %v1054 = vrot.slane %v1029, %v1053
      %v1055 = vlaneseq
      %v1056 = vshrl.u32 %v1055, 7
      %v1057 = vsub.s32 6, %v1056
      %v1058 = vrot.slane %v1029, %v1057
      %v1059 = vlaneseq
      %v1060 = vshrl.u32 %v1059, 7
      %v1061 = vsub.s32 7, %v1060
      %v1062 = vrot.slane %v1029, %v1061
      %v1135 = vunpack.c.l.b16 %v965
      %v1136 = vunpack.c.h.b16 %v965
      %v1137 = vunpack.c.l.b16 %v966
      %v1138 = vunpack.c.h.b16 %v966
      %v1139 = vunpack.c.l.b16 %v967
      %v1140 = vunpack.c.h.b16 %v967
      %v1141 = vunpack.c.l.b16 %v968
      %v1142 = vunpack.c.h.b16 %v968
      %v1143 = vunpack.c.l.b16 %v969
      %v1144 = vunpack.c.h.b16 %v969
      %v1145 = vunpack.c.l.b16 %v970
      %v1146 = vunpack.c.h.b16 %v970
      %v1147 = vunpack.c.l.b16 %v971
      %v1148 = vunpack.c.h.b16 %v971
      %v1149 = vunpack.c.l.b16 %v972
      %v1150 = vunpack.c.h.b16 %v972
      %v1151 = vunpack.c.l.b16 %v973
      %v1152 = vunpack.c.h.b16 %v973
      %v1153 = vunpack.c.l.b16 %v974
      %v1154 = vunpack.c.h.b16 %v974
      %v1155 = vunpack.c.l.b16 %v975
      %v1156 = vunpack.c.h.b16 %v975
      %v1157 = vunpack.c.l.b16 %v976
      %v1158 = vunpack.c.h.b16 %v976
      %v1159 = vunpack.c.l.b16 %v977
      %v1160 = vunpack.c.h.b16 %v977
      %v1161 = vunpack.c.l.b16 %v978
      %v1162 = vunpack.c.h.b16 %v978
      %v1163 = vunpack.c.l.b16 %v979
      %v1164 = vunpack.c.h.b16 %v979
      %v1165 = vunpack.c.l.b16 %v980
      %v1166 = vunpack.c.h.b16 %v980
      %v1167 = vunpack.c.l.b16 %v981
      %v1168 = vunpack.c.h.b16 %v981
      %v1169 = vunpack.c.l.b16 %v982
      %v1170 = vunpack.c.h.b16 %v982
      %v1171 = vunpack.c.l.b16 %v983
      %v1172 = vunpack.c.h.b16 %v983
      %v1173 = vunpack.c.l.b16 %v984
      %v1174 = vunpack.c.h.b16 %v984
      %v1175 = vunpack.c.l.b16 %v985
      %v1176 = vunpack.c.h.b16 %v985
      %v1177 = vunpack.c.l.b16 %v986
      %v1178 = vunpack.c.h.b16 %v986
      %v1179 = vunpack.c.l.b16 %v987
      %v1180 = vunpack.c.h.b16 %v987
      %v1181 = vunpack.c.l.b16 %v988
      %v1182 = vunpack.c.h.b16 %v988
      %v1183 = vunpack.c.l.b16 %v989
      %v1184 = vunpack.c.h.b16 %v989
      %v1185 = vunpack.c.l.b16 %v990
      %v1186 = vunpack.c.h.b16 %v990
      %v1187 = vunpack.c.l.b16 %v991
      %v1188 = vunpack.c.h.b16 %v991
      %v1189 = vunpack.c.l.b16 %v992
      %v1190 = vunpack.c.h.b16 %v992
      %v1191 = vunpack.c.l.b16 %v993
      %v1192 = vunpack.c.h.b16 %v993
      %v1193 = vunpack.c.l.b16 %v994
      %v1194 = vunpack.c.h.b16 %v994
      %v1195 = vunpack.c.l.b16 %v995
      %v1196 = vunpack.c.h.b16 %v995
      %v1197 = vunpack.c.l.b16 %v996
      %v1198 = vunpack.c.h.b16 %v996
      %v1199 = vunpack.c.l.b16 %v997
      %v1200 = vunpack.c.h.b16 %v997
      %v1201 = vunpack.c.l.b16 %v998
      %v1202 = vunpack.c.h.b16 %v998
      %v1203 = vunpack.c.l.b16 %v999
      %v1204 = vunpack.c.h.b16 %v999
      %v1205 = vunpack.c.l.b16 %v1000
      %v1206 = vunpack.c.h.b16 %v1000
      %v1207 = vunpack.c.l.b16 %v1001
      %v1208 = vunpack.c.h.b16 %v1001
      %v1209 = vunpack.c.l.b16 %v1002
      %v1210 = vunpack.c.h.b16 %v1002
      %v1211 = vunpack.c.l.b16 %v1003
      %v1212 = vunpack.c.h.b16 %v1003
      %v1213 = vunpack.c.l.b16 %v1004
      %v1214 = vunpack.c.h.b16 %v1004
      %v1215 = vunpack.c.l.b16 %v1005
      %v1216 = vunpack.c.h.b16 %v1005
      %v1217 = vunpack.c.l.b16 %v1006
      %v1218 = vunpack.c.h.b16 %v1006
      %v1219 = vunpack.c.l.b16 %v1007
      %v1220 = vunpack.c.h.b16 %v1007
      %v1221 = vunpack.c.l.b16 %v1008
      %v1222 = vunpack.c.h.b16 %v1008
      %v1223 = vunpack.c.l.b16 %v1009
      %v1224 = vunpack.c.h.b16 %v1009
      %v1225 = vunpack.c.l.b16 %v1010
      %v1226 = vunpack.c.h.b16 %v1010
      %v1227 = vunpack.c.l.b16 %v1011
      %v1228 = vunpack.c.h.b16 %v1011
      %v1229 = vunpack.c.l.b16 %v1012
      %v1230 = vunpack.c.h.b16 %v1012
      %v1231 = vunpack.c.l.b16 %v1013
      %v1232 = vunpack.c.h.b16 %v1013
      %v1233 = vunpack.c.l.b16 %v1014
      %v1234 = vunpack.c.h.b16 %v1014
      %v1235 = vunpack.c.l.b16 %v1015
      %v1236 = vunpack.c.h.b16 %v1015
      %v1237 = vunpack.c.l.b16 %v1016
      %v1238 = vunpack.c.h.b16 %v1016
      %v1239 = vunpack.c.l.b16 %v1017
      %v1240 = vunpack.c.h.b16 %v1017
      %v1241 = vunpack.c.l.b16 %v1018
      %v1242 = vunpack.c.h.b16 %v1018
      %v1243 = vunpack.c.l.b16 %v1019
      %v1244 = vunpack.c.h.b16 %v1019
      %v1245 = vunpack.c.l.b16 %v1020
      %v1246 = vunpack.c.h.b16 %v1020
      %v1247 = vunpack.c.l.b16 %v1021
      %v1248 = vunpack.c.h.b16 %v1021
      %v1249 = vunpack.c.l.b16 %v1022
      %v1250 = vunpack.c.h.b16 %v1022
      %v1251 = vunpack.c.l.b16 %v1023
      %v1252 = vunpack.c.h.b16 %v1023
      %v1253 = vunpack.c.l.b16 %v1024
      %v1254 = vunpack.c.h.b16 %v1024
      %v1255 = vunpack.c.l.b16 %v1025
      %v1256 = vunpack.c.h.b16 %v1025
      %v1257 = vunpack.c.l.b16 %v1026
      %v1258 = vunpack.c.h.b16 %v1026
      %v1259 = vunpack.c.l.b16 %v1027
      %v1260 = vunpack.c.h.b16 %v1027
      %v1261 = vunpack.c.l.b16 %v1028
      %v1262 = vunpack.c.h.b16 %v1028
      %v1263 = vpack.c.b16 %v1143, %v1135
      %v1264 = vpack.c.b16 %v1144, %v1136
      %v1265 = vpack.c.b16 %v1145, %v1137
      %v1266 = vpack.c.b16 %v1146, %v1138
      %v1267 = vpack.c.b16 %v1147, %v1139
      %v1268 = vpack.c.b16 %v1148, %v1140
      %v1269 = vpack.c.b16 %v1149, %v1141
      %v1270 = vpack.c.b16 %v1150, %v1142
      %v1271 = vpack.c.b16 %v1159, %v1151
      %v1272 = vpack.c.b16 %v1160, %v1152
      %v1273 = vpack.c.b16 %v1161, %v1153
      %v1274 = vpack.c.b16 %v1162, %v1154
      %v1275 = vpack.c.b16 %v1163, %v1155
      %v1276 = vpack.c.b16 %v1164, %v1156
      %v1277 = vpack.c.b16 %v1165, %v1157
      %v1278 = vpack.c.b16 %v1166, %v1158
      %v1279 = vpack.c.b16 %v1175, %v1167
      %v1280 = vpack.c.b16 %v1176, %v1168
      %v1281 = vpack.c.b16 %v1177, %v1169
      %v1282 = vpack.c.b16 %v1178, %v1170
      %v1283 = vpack.c.b16 %v1179, %v1171
      %v1284 = vpack.c.b16 %v1180, %v1172
      %v1285 = vpack.c.b16 %v1181, %v1173
      %v1286 = vpack.c.b16 %v1182, %v1174
      %v1287 = vpack.c.b16 %v1191, %v1183
      %v1288 = vpack.c.b16 %v1192, %v1184
      %v1289 = vpack.c.b16 %v1193, %v1185
      %v1290 = vpack.c.b16 %v1194, %v1186
      %v1291 = vpack.c.b16 %v1195, %v1187
      %v1292 = vpack.c.b16 %v1196, %v1188
      %v1293 = vpack.c.b16 %v1197, %v1189
      %v1294 = vpack.c.b16 %v1198, %v1190
      %v1295 = vpack.c.b16 %v1207, %v1199
      %v1296 = vpack.c.b16 %v1208, %v1200
      %v1297 = vpack.c.b16 %v1209, %v1201
      %v1298 = vpack.c.b16 %v1210, %v1202
      %v1299 = vpack.c.b16 %v1211, %v1203
      %v1300 = vpack.c.b16 %v1212, %v1204
      %v1301 = vpack.c.b16 %v1213, %v1205
      %v1302 = vpack.c.b16 %v1214, %v1206
      %v1303 = vpack.c.b16 %v1223, %v1215
      %v1304 = vpack.c.b16 %v1224, %v1216
      %v1305 = vpack.c.b16 %v1225, %v1217
      %v1306 = vpack.c.b16 %v1226, %v1218
      %v1307 = vpack.c.b16 %v1227, %v1219
      %v1308 = vpack.c.b16 %v1228, %v1220
      %v1309 = vpack.c.b16 %v1229, %v1221
      %v1310 = vpack.c.b16 %v1230, %v1222
      %v1311 = vpack.c.b16 %v1239, %v1231
      %v1312 = vpack.c.b16 %v1240, %v1232
      %v1313 = vpack.c.b16 %v1241, %v1233
      %v1314 = vpack.c.b16 %v1242, %v1234
      %v1315 = vpack.c.b16 %v1243, %v1235
      %v1316 = vpack.c.b16 %v1244, %v1236
      %v1317 = vpack.c.b16 %v1245, %v1237
      %v1318 = vpack.c.b16 %v1246, %v1238
      %v1319 = vpack.c.b16 %v1255, %v1247
      %v1320 = vpack.c.b16 %v1256, %v1248
      %v1321 = vpack.c.b16 %v1257, %v1249
      %v1322 = vpack.c.b16 %v1258, %v1250
      %v1323 = vpack.c.b16 %v1259, %v1251
      %v1324 = vpack.c.b16 %v1260, %v1252
      %v1325 = vpack.c.b16 %v1261, %v1253
      %v1326 = vpack.c.b16 %v1262, %v1254
      %1391 = vmatprep.subr.bf16.mxu0 %v1264
      %1392 = vmatpush1.bf16.msra.mxu0 %v1263
      %1393 = vmatprep.subr.bf16.mxu0 %v1272
      %1394 = vmatpush1.bf16.msra.mxu0 %v1271
      %1395 = vmatprep.subr.bf16.mxu0 %v1280
      %1396 = vmatpush1.bf16.msra.mxu0 %v1279
      %1397 = vmatprep.subr.bf16.mxu0 %v1288
      %1398 = vmatpush1.bf16.msra.mxu0 %v1287
      %1399 = vmatprep.subr.bf16.mxu0 %v1296
      %1400 = vmatpush1.bf16.msra.mxu0 %v1295
      %1401 = vmatprep.subr.bf16.mxu0 %v1304
      %1402 = vmatpush1.bf16.msra.mxu0 %v1303
      %1403 = vmatprep.subr.bf16.mxu0 %v1312
      %1404 = vmatpush1.bf16.msra.mxu0 %v1311
      %1405 = vmatprep.subr.bf16.mxu0 %v1320
      %1406 = vmatpush1.bf16.msra.mxu0 %v1319
      %1407 = vmatprep.subr.bf16.mxu0 0
      %1408 = vmatpush1.bf16.msra.mxu0 0
      %1409 = vmatprep.subr.bf16.mxu0 0
      %1410 = vmatpush1.bf16.msra.mxu0 0
      %1411 = vmatprep.subr.bf16.mxu0 0
      %1412 = vmatpush1.bf16.msra.mxu0 0
      %1413 = vmatprep.subr.bf16.mxu0 0
      %1414 = vmatpush1.bf16.msra.mxu0 0
      %1415 = vmatprep.subr.bf16.mxu0 0
      %1416 = vmatpush1.bf16.msra.mxu0 0
      %1417 = vmatprep.subr.bf16.mxu0 0
      %1418 = vmatpush1.bf16.msra.mxu0 0
      %1419 = vmatprep.subr.bf16.mxu0 0
      %1420 = vmatpush1.bf16.msra.mxu0 0
      %1421 = vmatprep.subr.bf16.mxu0 0
      %1422 = vmatpush1.bf16.msra.mxu0 0
      %1423 = vmatprep.mubr.bf16.mxu0 0
      %1424 = vmatmul.mubr.bf16.gmra.mrb[0].mxu0 %v957
      %v1425 = vpop.f32.mrb[0].mxu0
      %v1426 = vadd.f32 %v1034, %v1425
      %v1427 = vpop.f32.mrb[0].mxu0
      %v1428 = vadd.f32 %v1038, %v1427
      %v1429 = vpop.f32.mrb[0].mxu0
      %v1430 = vadd.f32 %v1034, %v1429
      %v1431 = vpop.f32.mrb[0].mxu0
      %v1432 = vadd.f32 %v1038, %v1431
      %1433 = vmatprep.mubr.bf16.mxu0 0
      %1434 = vmatmul.mubr.bf16.gmra.mrb[0].mxu0 %v958
      %v1435 = vpop.f32.mrb[0].mxu0
      %v1436 = vadd.f32 %v1034, %v1435
      %v1437 = vpop.f32.mrb[0].mxu0
      %v1438 = vadd.f32 %v1038, %v1437
      %v1439 = vpop.f32.mrb[0].mxu0
      %v1440 = vadd.f32 %v1034, %v1439
      %v1441 = vpop.f32.mrb[0].mxu0
      %v1442 = vadd.f32 %v1038, %v1441
      %1443 = vmatprep.mubr.bf16.mxu0 0
      %1444 = vmatmul.mubr.bf16.gmra.mrb[0].mxu0 %v959
      %v1445 = vpop.f32.mrb[0].mxu0
      %v1446 = vadd.f32 %v1034, %v1445
      %v1447 = vpop.f32.mrb[0].mxu0
      %v1448 = vadd.f32 %v1038, %v1447
      %v1449 = vpop.f32.mrb[0].mxu0
      %v1450 = vadd.f32 %v1034, %v1449
      %v1451 = vpop.f32.mrb[0].mxu0
      %v1452 = vadd.f32 %v1038, %v1451
      %1453 = vmatprep.mubr.bf16.mxu0 0
      %1454 = vmatmul.mubr.bf16.gmra.mrb[0].mxu0 %v960
      %v1455 = vpop.f32.mrb[0].mxu0
      %v1456 = vadd.f32 %v1034, %v1455
      %v1457 = vpop.f32.mrb[0].mxu0
      %v1458 = vadd.f32 %v1038, %v1457
      %v1459 = vpop.f32.mrb[0].mxu0
      %v1460 = vadd.f32 %v1034, %v1459
      %v1461 = vpop.f32.mrb[0].mxu0
      %v1462 = vadd.f32 %v1038, %v1461
      %1463 = vmatprep.mubr.bf16.mxu0 0
      %1464 = vmatmul.mubr.bf16.gmra.mrb[0].mxu0 %v961
      %v1465 = vpop.f32.mrb[0].mxu0
      %v1466 = vadd.f32 %v1034, %v1465
      %v1467 = vpop.f32.mrb[0].mxu0
      %v1468 = vadd.f32 %v1038, %v1467
      %v1469 = vpop.f32.mrb[0].mxu0
      %v1470 = vadd.f32 %v1034, %v1469
      %v1471 = vpop.f32.mrb[0].mxu0
      %v1472 = vadd.f32 %v1038, %v1471
      %1473 = vmatprep.mubr.bf16.mxu0 0
      %1474 = vmatmul.mubr.bf16.gmra.mrb[0].mxu0 %v962
      %v1475 = vpop.f32.mrb[0].mxu0
      %v1476 = vadd.f32 %v1034, %v1475
      %v1477 = vpop.f32.mrb[0].mxu0
      %v1478 = vadd.f32 %v1038, %v1477
      %v1479 = vpop.f32.mrb[0].mxu0
      %v1480 = vadd.f32 %v1034, %v1479
      %v1481 = vpop.f32.mrb[0].mxu0
      %v1482 = vadd.f32 %v1038, %v1481
      %1483 = vmatprep.mubr.bf16.mxu0 0
      %1484 = vmatmul.mubr.bf16.gmra.mrb[0].mxu0 %v963
      %v1485 = vpop.f32.mrb[0].mxu0
      %v1486 = vadd.f32 %v1034, %v1485
      %v1487 = vpop.f32.mrb[0].mxu0
      %v1488 = vadd.f32 %v1038, %v1487
      %v1489 = vpop.f32.mrb[0].mxu0
      %v1490 = vadd.f32 %v1034, %v1489
      %v1491 = vpop.f32.mrb[0].mxu0
      %v1492 = vadd.f32 %v1038, %v1491
      %1493 = vmatprep.mubr.bf16.mxu0 0
      %1494 = vmatmul.mubr.bf16.gmra.mrb[0].mxu0 %v964
      %v1495 = vpop.f32.mrb[0].mxu0
      %v1496 = vadd.f32 %v1034, %v1495
      %v1497 = vpop.f32.mrb[0].mxu0
      %v1498 = vadd.f32 %v1038, %v1497
      %v1499 = vpop.f32.mrb[0].mxu0
      %v1500 = vadd.f32 %v1034, %v1499
      %v1501 = vpop.f32.mrb[0].mxu0
      %v1502 = vadd.f32 %v1038, %v1501
      %1503 = vdwg.mxu0
      %1504 = vmatprep.subr.bf16.mxu0 %v1266
      %1505 = vmatpush1.bf16.msra.mxu0 %v1265
      %1506 = vmatprep.subr.bf16.mxu0 %v1274
      %1507 = vmatpush1.bf16.msra.mxu0 %v1273
      %1508 = vmatprep.subr.bf16.mxu0 %v1282
      %1509 = vmatpush1.bf16.msra.mxu0 %v1281
      %1510 = vmatprep.subr.bf16.mxu0 %v1290
      %1511 = vmatpush1.bf16.msra.mxu0 %v1289
      %1512 = vmatprep.subr.bf16.mxu0 %v1298
      %1513 = vmatpush1.bf16.msra.mxu0 %v1297
      %1514 = vmatprep.subr.bf16.mxu0 %v1306
      %1515 = vmatpush1.bf16.msra.mxu0 %v1305
      %1516 = vmatprep.subr.bf16.mxu0 %v1314
      %1517 = vmatpush1.bf16.msra.mxu0 %v1313
      %1518 = vmatprep.subr.bf16.mxu0 %v1322
      %1519 = vmatpush1.bf16.msra.mxu0 %v1321
      %1520 = vmatprep.subr.bf16.mxu0 0
      %1521 = vmatpush1.bf16.msra.mxu0 0
      %1522 = vmatprep.subr.bf16.mxu0 0
      %1523 = vmatpush1.bf16.msra.mxu0 0
      %1524 = vmatprep.subr.bf16.mxu0 0
      %1525 = vmatpush1.bf16.msra.mxu0 0
      %1526 = vmatprep.subr.bf16.mxu0 0
      %1527 = vmatpush1.bf16.msra.mxu0 0
      %1528 = vmatprep.subr.bf16.mxu0 0
      %1529 = vmatpush1.bf16.msra.mxu0 0
      %1530 = vmatprep.subr.bf16.mxu0 0
      %1531 = vmatpush1.bf16.msra.mxu0 0
      %1532 = vmatprep.subr.bf16.mxu0 0
      %1533 = vmatpush1.bf16.msra.mxu0 0
      %1534 = vmatprep.subr.bf16.mxu0 0
      %1535 = vmatpush1.bf16.msra.mxu0 0
      %1536 = vmatprep.mubr.bf16.mxu0 0
      %1537 = vmatmul.mubr.bf16.gmra.mrb[0].mxu0 %v957
      %v1538 = vpop.f32.mrb[0].mxu0
      %v1539 = vadd.f32 %v1042, %v1538
      %v1540 = vpop.f32.mrb[0].mxu0
      %v1541 = vadd.f32 %v1046, %v1540
      %v1542 = vpop.f32.mrb[0].mxu0
      %v1543 = vadd.f32 %v1042, %v1542
      %v1544 = vpop.f32.mrb[0].mxu0
      %v1545 = vadd.f32 %v1046, %v1544
      %1546 = vmatprep.mubr.bf16.mxu0 0
      %1547 = vmatmul.mubr.bf16.gmra.mrb[0].mxu0 %v958
      %v1548 = vpop.f32.mrb[0].mxu0
      %v1549 = vadd.f32 %v1042, %v1548
      %v1550 = vpop.f32.mrb[0].mxu0
      %v1551 = vadd.f32 %v1046, %v1550
      %v1552 = vpop.f32.mrb[0].mxu0
      %v1553 = vadd.f32 %v1042, %v1552
      %v1554 = vpop.f32.mrb[0].mxu0
      %v1555 = vadd.f32 %v1046, %v1554
      %1556 = vmatprep.mubr.bf16.mxu0 0
      %1557 = vmatmul.mubr.bf16.gmra.mrb[0].mxu0 %v959
      %v1558 = vpop.f32.mrb[0].mxu0
      %v1559 = vadd.f32 %v1042, %v1558
      %v1560 = vpop.f32.mrb[0].mxu0
      %v1561 = vadd.f32 %v1046, %v1560
      %v1562 = vpop.f32.mrb[0].mxu0
      %v1563 = vadd.f32 %v1042, %v1562
      %v1564 = vpop.f32.mrb[0].mxu0
      %v1565 = vadd.f32 %v1046, %v1564
      %1566 = vmatprep.mubr.bf16.mxu0 0
      %1567 = vmatmul.mubr.bf16.gmra.mrb[0].mxu0 %v960
      %v1568 = vpop.f32.mrb[0].mxu0
      %v1569 = vadd.f32 %v1042, %v1568
      %v1570 = vpop.f32.mrb[0].mxu0
      %v1571 = vadd.f32 %v1046, %v1570
      %v1572 = vpop.f32.mrb[0].mxu0
      %v1573 = vadd.f32 %v1042, %v1572
      %v1574 = vpop.f32.mrb[0].mxu0
      %v1575 = vadd.f32 %v1046, %v1574
      %1576 = vmatprep.mubr.bf16.mxu0 0
      %1577 = vmatmul.mubr.bf16.gmra.mrb[0].mxu0 %v961
      %v1578 = vpop.f32.mrb[0].mxu0
      %v1579 = vadd.f32 %v1042, %v1578
      %v1580 = vpop.f32.mrb[0].mxu0
      %v1581 = vadd.f32 %v1046, %v1580
      %v1582 = vpop.f32.mrb[0].mxu0
      %v1583 = vadd.f32 %v1042, %v1582
      %v1584 = vpop.f32.mrb[0].mxu0
      %v1585 = vadd.f32 %v1046, %v1584
      %1586 = vmatprep.mubr.bf16.mxu0 0
      %1587 = vmatmul.mubr.bf16.gmra.mrb[0].mxu0 %v962
      %v1588 = vpop.f32.mrb[0].mxu0
      %v1589 = vadd.f32 %v1042, %v1588
      %v1590 = vpop.f32.mrb[0].mxu0
      %v1591 = vadd.f32 %v1046, %v1590
      %v1592 = vpop.f32.mrb[0].mxu0
      %v1593 = vadd.f32 %v1042, %v1592
      %v1594 = vpop.f32.mrb[0].mxu0
      %v1595 = vadd.f32 %v1046, %v1594
      %1596 = vmatprep.mubr.bf16.mxu0 0
      %1597 = vmatmul.mubr.bf16.gmra.mrb[0].mxu0 %v963
      %v1598 = vpop.f32.mrb[0].mxu0
      %v1599 = vadd.f32 %v1042, %v1598
      %v1600 = vpop.f32.mrb[0].mxu0
      %v1601 = vadd.f32 %v1046, %v1600
      %v1602 = vpop.f32.mrb[0].mxu0
      %v1603 = vadd.f32 %v1042, %v1602
      %v1604 = vpop.f32.mrb[0].mxu0
      %v1605 = vadd.f32 %v1046, %v1604
      %1606 = vmatprep.mubr.bf16.mxu0 0
      %1607 = vmatmul.mubr.bf16.gmra.mrb[0].mxu0 %v964
      %v1608 = vpop.f32.mrb[0].mxu0
      %v1609 = vadd.f32 %v1042, %v1608
      %v1610 = vpop.f32.mrb[0].mxu0
      %v1611 = vadd.f32 %v1046, %v1610
      %v1612 = vpop.f32.mrb[0].mxu0
      %v1613 = vadd.f32 %v1042, %v1612
      %v1614 = vpop.f32.mrb[0].mxu0
      %v1615 = vadd.f32 %v1046, %v1614
      %1616 = vdwg.mxu0
      %1617 = vmatprep.subr.bf16.mxu0 %v1268
      %1618 = vmatpush1.bf16.msra.mxu0 %v1267
      %1619 = vmatprep.subr.bf16.mxu0 %v1276
      %1620 = vmatpush1.bf16.msra.mxu0 %v1275
      %1621 = vmatprep.subr.bf16.mxu0 %v1284
      %1622 = vmatpush1.bf16.msra.mxu0 %v1283
      %1623 = vmatprep.subr.bf16.mxu0 %v1292
      %1624 = vmatpush1.bf16.msra.mxu0 %v1291
      %1625 = vmatprep.subr.bf16.mxu0 %v1300
      %1626 = vmatpush1.bf16.msra.mxu0 %v1299
      %1627 = vmatprep.subr.bf16.mxu0 %v1308
      %1628 = vmatpush1.bf16.msra.mxu0 %v1307
      %1629 = vmatprep.subr.bf16.mxu0 %v1316
      %1630 = vmatpush1.bf16.msra.mxu0 %v1315
      %1631 = vmatprep.subr.bf16.mxu0 %v1324
      %1632 = vmatpush1.bf16.msra.mxu0 %v1323
      %1633 = vmatprep.subr.bf16.mxu0 0
      %1634 = vmatpush1.bf16.msra.mxu0 0
      %1635 = vmatprep.subr.bf16.mxu0 0
      %1636 = vmatpush1.bf16.msra.mxu0 0
      %1637 = vmatprep.subr.bf16.mxu0 0
      %1638 = vmatpush1.bf16.msra.mxu0 0
      %1639 = vmatprep.subr.bf16.mxu0 0
      %1640 = vmatpush1.bf16.msra.mxu0 0
      %1641 = vmatprep.subr.bf16.mxu0 0
      %1642 = vmatpush1.bf16.msra.mxu0 0
      %1643 = vmatprep.subr.bf16.mxu0 0
      %1644 = vmatpush1.bf16.msra.mxu0 0
      %1645 = vmatprep.subr.bf16.mxu0 0
      %1646 = vmatpush1.bf16.msra.mxu0 0
      %1647 = vmatprep.subr.bf16.mxu0 0
      %1648 = vmatpush1.bf16.msra.mxu0 0
      %1649 = vmatprep.mubr.bf16.mxu0 0
      %1650 = vmatmul.mubr.bf16.gmra.mrb[0].mxu0 %v957
      %v1651 = vpop.f32.mrb[0].mxu0
      %v1652 = vadd.f32 %v1050, %v1651
      %v1653 = vpop.f32.mrb[0].mxu0
      %v1654 = vadd.f32 %v1054, %v1653
      %v1655 = vpop.f32.mrb[0].mxu0
      %v1656 = vadd.f32 %v1050, %v1655
      %v1657 = vpop.f32.mrb[0].mxu0
      %v1658 = vadd.f32 %v1054, %v1657
      %1659 = vmatprep.mubr.bf16.mxu0 0
      %1660 = vmatmul.mubr.bf16.gmra.mrb[0].mxu0 %v958
      %v1661 = vpop.f32.mrb[0].mxu0
      %v1662 = vadd.f32 %v1050, %v1661
      %v1663 = vpop.f32.mrb[0].mxu0
      %v1664 = vadd.f32 %v1054, %v1663
      %v1665 = vpop.f32.mrb[0].mxu0
      %v1666 = vadd.f32 %v1050, %v1665
      %v1667 = vpop.f32.mrb[0].mxu0
      %v1668 = vadd.f32 %v1054, %v1667
      %1669 = vmatprep.mubr.bf16.mxu0 0
      %1670 = vmatmul.mubr.bf16.gmra.mrb[0].mxu0 %v959
      %v1671 = vpop.f32.mrb[0].mxu0
      %v1672 = vadd.f32 %v1050, %v1671
      %v1673 = vpop.f32.mrb[0].mxu0
      %v1674 = vadd.f32 %v1054, %v1673
      %v1675 = vpop.f32.mrb[0].mxu0
      %v1676 = vadd.f32 %v1050, %v1675
      %v1677 = vpop.f32.mrb[0].mxu0
      %v1678 = vadd.f32 %v1054, %v1677
      %1679 = vmatprep.mubr.bf16.mxu0 0
      %1680 = vmatmul.mubr.bf16.gmra.mrb[0].mxu0 %v960
      %v1681 = vpop.f32.mrb[0].mxu0
      %v1682 = vadd.f32 %v1050, %v1681
      %v1683 = vpop.f32.mrb[0].mxu0
      %v1684 = vadd.f32 %v1054, %v1683
      %v1685 = vpop.f32.mrb[0].mxu0
      %v1686 = vadd.f32 %v1050, %v1685
      %v1687 = vpop.f32.mrb[0].mxu0
      %v1688 = vadd.f32 %v1054, %v1687
      %1689 = vmatprep.mubr.bf16.mxu0 0
      %1690 = vmatmul.mubr.bf16.gmra.mrb[0].mxu0 %v961
      %v1691 = vpop.f32.mrb[0].mxu0
      %v1692 = vadd.f32 %v1050, %v1691
      %v1693 = vpop.f32.mrb[0].mxu0
      %v1694 = vadd.f32 %v1054, %v1693
      %v1695 = vpop.f32.mrb[0].mxu0
      %v1696 = vadd.f32 %v1050, %v1695
      %v1697 = vpop.f32.mrb[0].mxu0
      %v1698 = vadd.f32 %v1054, %v1697
      %1699 = vmatprep.mubr.bf16.mxu0 0
      %1700 = vmatmul.mubr.bf16.gmra.mrb[0].mxu0 %v962
      %v1701 = vpop.f32.mrb[0].mxu0
      %v1702 = vadd.f32 %v1050, %v1701
      %v1703 = vpop.f32.mrb[0].mxu0
      %v1704 = vadd.f32 %v1054, %v1703
      %v1705 = vpop.f32.mrb[0].mxu0
      %v1706 = vadd.f32 %v1050, %v1705
      %v1707 = vpop.f32.mrb[0].mxu0
      %v1708 = vadd.f32 %v1054, %v1707
      %1709 = vmatprep.mubr.bf16.mxu0 0
      %1710 = vmatmul.mubr.bf16.gmra.mrb[0].mxu0 %v963
      %v1711 = vpop.f32.mrb[0].mxu0
      %v1712 = vadd.f32 %v1050, %v1711
      %v1713 = vpop.f32.mrb[0].mxu0
      %v1714 = vadd.f32 %v1054, %v1713
      %v1715 = vpop.f32.mrb[0].mxu0
      %v1716 = vadd.f32 %v1050, %v1715
      %v1717 = vpop.f32.mrb[0].mxu0
      %v1718 = vadd.f32 %v1054, %v1717
      %1719 = vmatprep.mubr.bf16.mxu0 0
      %1720 = vmatmul.mubr.bf16.gmra.mrb[0].mxu0 %v964
      %v1721 = vpop.f32.mrb[0].mxu0
      %v1722 = vadd.f32 %v1050, %v1721
      %v1723 = vpop.f32.mrb[0].mxu0
      %v1724 = vadd.f32 %v1054, %v1723
      %v1725 = vpop.f32.mrb[0].mxu0
      %v1726 = vadd.f32 %v1050, %v1725
      %v1727 = vpop.f32.mrb[0].mxu0
      %v1728 = vadd.f32 %v1054, %v1727
      %1729 = vdwg.mxu0
      %1730 = vmatprep.subr.bf16.mxu0 %v1270
      %1731 = vmatpush1.bf16.msra.mxu0 %v1269
      %1732 = vmatprep.subr.bf16.mxu0 %v1278
      %1733 = vmatpush1.bf16.msra.mxu0 %v1277
      %1734 = vmatprep.subr.bf16.mxu0 %v1286
      %1735 = vmatpush1.bf16.msra.mxu0 %v1285
      %1736 = vmatprep.subr.bf16.mxu0 %v1294
      %1737 = vmatpush1.bf16.msra.mxu0 %v1293
      %1738 = vmatprep.subr.bf16.mxu0 %v1302
      %1739 = vmatpush1.bf16.msra.mxu0 %v1301
      %1740 = vmatprep.subr.bf16.mxu0 %v1310
      %1741 = vmatpush1.bf16.msra.mxu0 %v1309
      %1742 = vmatprep.subr.bf16.mxu0 %v1318
      %1743 = vmatpush1.bf16.msra.mxu0 %v1317
      %1744 = vmatprep.subr.bf16.mxu0 %v1326
      %1745 = vmatpush1.bf16.msra.mxu0 %v1325
      %1746 = vmatprep.subr.bf16.mxu0 0
      %1747 = vmatpush1.bf16.msra.mxu0 0
      %1748 = vmatprep.subr.bf16.mxu0 0
      %1749 = vmatpush1.bf16.msra.mxu0 0
      %1750 = vmatprep.subr.bf16.mxu0 0
      %1751 = vmatpush1.bf16.msra.mxu0 0
      %1752 = vmatprep.subr.bf16.mxu0 0
      %1753 = vmatpush1.bf16.msra.mxu0 0
      %1754 = vmatprep.subr.bf16.mxu0 0
      %1755 = vmatpush1.bf16.msra.mxu0 0
      %1756 = vmatprep.subr.bf16.mxu0 0
      %1757 = vmatpush1.bf16.msra.mxu0 0
      %1758 = vmatprep.subr.bf16.mxu0 0
      %1759 = vmatpush1.bf16.msra.mxu0 0
      %1760 = vmatprep.subr.bf16.mxu0 0
      %1761 = vmatpush1.bf16.msra.mxu0 0
      %1762 = vmatprep.mubr.bf16.mxu0 0
      %1763 = vmatmul.mubr.bf16.gmra.mrb[0].mxu0 %v957
      %v1764 = vpop.f32.mrb[0].mxu0
      %v1765 = vadd.f32 %v1058, %v1764
      %v1766 = vpop.f32.mrb[0].mxu0
      %v1767 = vadd.f32 %v1062, %v1766
      %v1768 = vpop.f32.mrb[0].mxu0
      %v1769 = vadd.f32 %v1058, %v1768
      %v1770 = vpop.f32.mrb[0].mxu0
      %v1771 = vadd.f32 %v1062, %v1770
      %1772 = vmatprep.mubr.bf16.mxu0 0
      %1773 = vmatmul.mubr.bf16.gmra.mrb[0].mxu0 %v958
      %v1774 = vpop.f32.mrb[0].mxu0
      %v1775 = vadd.f32 %v1058, %v1774
      %v1776 = vpop.f32.mrb[0].mxu0
      %v1777 = vadd.f32 %v1062, %v1776
      %v1778 = vpop.f32.mrb[0].mxu0
      %v1779 = vadd.f32 %v1058, %v1778
      %v1780 = vpop.f32.mrb[0].mxu0
      %v1781 = vadd.f32 %v1062, %v1780
      %1782 = vmatprep.mubr.bf16.mxu0 0
      %1783 = vmatmul.mubr.bf16.gmra.mrb[0].mxu0 %v959
      %v1784 = vpop.f32.mrb[0].mxu0
      %v1785 = vadd.f32 %v1058, %v1784
      %v1786 = vpop.f32.mrb[0].mxu0
      %v1787 = vadd.f32 %v1062, %v1786
      %v1788 = vpop.f32.mrb[0].mxu0
      %v1789 = vadd.f32 %v1058, %v1788
      %v1790 = vpop.f32.mrb[0].mxu0
      %v1791 = vadd.f32 %v1062, %v1790
      %1792 = vmatprep.mubr.bf16.mxu0 0
      %1793 = vmatmul.mubr.bf16.gmra.mrb[0].mxu0 %v960
      %v1794 = vpop.f32.mrb[0].mxu0
      %v1795 = vadd.f32 %v1058, %v1794
      %v1796 = vpop.f32.mrb[0].mxu0
      %v1797 = vadd.f32 %v1062, %v1796
      %v1798 = vpop.f32.mrb[0].mxu0
      %v1799 = vadd.f32 %v1058, %v1798
      %v1800 = vpop.f32.mrb[0].mxu0
      %v1801 = vadd.f32 %v1062, %v1800
      %1802 = vmatprep.mubr.bf16.mxu0 0
      %1803 = vmatmul.mubr.bf16.gmra.mrb[0].mxu0 %v961
      %v1804 = vpop.f32.mrb[0].mxu0
      %v1805 = vadd.f32 %v1058, %v1804
      %v1806 = vpop.f32.mrb[0].mxu0
      %v1807 = vadd.f32 %v1062, %v1806
      %v1808 = vpop.f32.mrb[0].mxu0
      %v1809 = vadd.f32 %v1058, %v1808
      %v1810 = vpop.f32.mrb[0].mxu0
      %v1811 = vadd.f32 %v1062, %v1810
      %1812 = vmatprep.mubr.bf16.mxu0 0
      %1813 = vmatmul.mubr.bf16.gmra.mrb[0].mxu0 %v962
      %v1814 = vpop.f32.mrb[0].mxu0
      %v1815 = vadd.f32 %v1058, %v1814
      %v1816 = vpop.f32.mrb[0].mxu0
      %v1817 = vadd.f32 %v1062, %v1816
      %v1818 = vpop.f32.mrb[0].mxu0
      %v1819 = vadd.f32 %v1058, %v1818
      %v1820 = vpop.f32.mrb[0].mxu0
      %v1821 = vadd.f32 %v1062, %v1820
      %1822 = vmatprep.mubr.bf16.mxu0 0
      %1823 = vmatmul.mubr.bf16.gmra.mrb[0].mxu0 %v963
      %v1824 = vpop.f32.mrb[0].mxu0
      %v1825 = vadd.f32 %v1058, %v1824
      %v1826 = vpop.f32.mrb[0].mxu0
      %v1827 = vadd.f32 %v1062, %v1826
      %v1828 = vpop.f32.mrb[0].mxu0
      %v1829 = vadd.f32 %v1058, %v1828
      %v1830 = vpop.f32.mrb[0].mxu0
      %v1831 = vadd.f32 %v1062, %v1830
      %1832 = vmatprep.mubr.bf16.mxu0 0
      %1833 = vmatmul.mubr.bf16.gmra.mrb[0].mxu0 %v964
      %v1834 = vpop.f32.mrb[0].mxu0
      %v1835 = vadd.f32 %v1058, %v1834
      %v1836 = vpop.f32.mrb[0].mxu0
      %v1837 = vadd.f32 %v1062, %v1836
      %v1838 = vpop.f32.mrb[0].mxu0
      %v1839 = vadd.f32 %v1058, %v1838
      %v1840 = vpop.f32.mrb[0].mxu0
      %v1841 = vadd.f32 %v1062, %v1840
      %1842 = vdwg.mxu0
      %v1843 = vmax.f32 %v1426, 0.0
      %v1844 = vmax.f32 %v1428, 0.0
      %v1845 = vmax.f32 %v1539, 0.0
      %v1846 = vmax.f32 %v1541, 0.0
      %v1847 = vmax.f32 %v1652, 0.0
      %v1848 = vmax.f32 %v1654, 0.0
      %v1849 = vmax.f32 %v1765, 0.0
      %v1850 = vmax.f32 %v1767, 0.0
      %v1851 = vmax.f32 %v1430, 0.0
      %v1852 = vmax.f32 %v1432, 0.0
      %v1853 = vmax.f32 %v1543, 0.0
      %v1854 = vmax.f32 %v1545, 0.0
      %v1855 = vmax.f32 %v1656, 0.0
      %v1856 = vmax.f32 %v1658, 0.0
      %v1857 = vmax.f32 %v1769, 0.0
      %v1858 = vmax.f32 %v1771, 0.0
      %v1859 = vmax.f32 %v1436, 0.0
      %v1860 = vmax.f32 %v1438, 0.0
      %v1861 = vmax.f32 %v1549, 0.0
      %v1862 = vmax.f32 %v1551, 0.0
      %v1863 = vmax.f32 %v1662, 0.0
      %v1864 = vmax.f32 %v1664, 0.0
      %v1865 = vmax.f32 %v1775, 0.0
      %v1866 = vmax.f32 %v1777, 0.0
      %v1867 = vmax.f32 %v1440, 0.0
      %v1868 = vmax.f32 %v1442, 0.0
      %v1869 = vmax.f32 %v1553, 0.0
      %v1870 = vmax.f32 %v1555, 0.0
      %v1871 = vmax.f32 %v1666, 0.0
      %v1872 = vmax.f32 %v1668, 0.0
      %v1873 = vmax.f32 %v1779, 0.0
      %v1874 = vmax.f32 %v1781, 0.0
      %v1875 = vmax.f32 %v1446, 0.0
      %v1876 = vmax.f32 %v1448, 0.0
      %v1877 = vmax.f32 %v1559, 0.0
      %v1878 = vmax.f32 %v1561, 0.0
      %v1879 = vmax.f32 %v1672, 0.0
      %v1880 = vmax.f32 %v1674, 0.0
      %v1881 = vmax.f32 %v1785, 0.0
      %v1882 = vmax.f32 %v1787, 0.0
      %v1883 = vmax.f32 %v1450, 0.0
      %v1884 = vmax.f32 %v1452, 0.0
      %v1885 = vmax.f32 %v1563, 0.0
      %v1886 = vmax.f32 %v1565, 0.0
      %v1887 = vmax.f32 %v1676, 0.0
      %v1888 = vmax.f32 %v1678, 0.0
      %v1889 = vmax.f32 %v1789, 0.0
      %v1890 = vmax.f32 %v1791, 0.0
      %v1891 = vmax.f32 %v1456, 0.0
      %v1892 = vmax.f32 %v1458, 0.0
      %v1893 = vmax.f32 %v1569, 0.0
      %v1894 = vmax.f32 %v1571, 0.0
      %v1895 = vmax.f32 %v1682, 0.0
      %v1896 = vmax.f32 %v1684, 0.0
      %v1897 = vmax.f32 %v1795, 0.0
      %v1898 = vmax.f32 %v1797, 0.0
      %v1899 = vmax.f32 %v1460, 0.0
      %v1900 = vmax.f32 %v1462, 0.0
      %v1901 = vmax.f32 %v1573, 0.0
      %v1902 = vmax.f32 %v1575, 0.0
      %v1903 = vmax.f32 %v1686, 0.0
      %v1904 = vmax.f32 %v1688, 0.0
      %v1905 = vmax.f32 %v1799, 0.0
      %v1906 = vmax.f32 %v1801, 0.0
      %v1907 = vmax.f32 %v1466, 0.0
      %v1908 = vmax.f32 %v1468, 0.0
      %v1909 = vmax.f32 %v1579, 0.0
      %v1910 = vmax.f32 %v1581, 0.0
      %v1911 = vmax.f32 %v1692, 0.0
      %v1912 = vmax.f32 %v1694, 0.0
      %v1913 = vmax.f32 %v1805, 0.0
      %v1914 = vmax.f32 %v1807, 0.0
      %v1915 = vmax.f32 %v1470, 0.0
      %v1916 = vmax.f32 %v1472, 0.0
      %v1917 = vmax.f32 %v1583, 0.0
      %v1918 = vmax.f32 %v1585, 0.0
      %v1919 = vmax.f32 %v1696, 0.0
      %v1920 = vmax.f32 %v1698, 0.0
      %v1921 = vmax.f32 %v1809, 0.0
      %v1922 = vmax.f32 %v1811, 0.0
      %v1923 = vmax.f32 %v1476, 0.0
      %v1924 = vmax.f32 %v1478, 0.0
      %v1925 = vmax.f32 %v1589, 0.0
      %v1926 = vmax.f32 %v1591, 0.0
      %v1927 = vmax.f32 %v1702, 0.0
      %v1928 = vmax.f32 %v1704, 0.0
      %v1929 = vmax.f32 %v1815, 0.0
      %v1930 = vmax.f32 %v1817, 0.0
      %v1931 = vmax.f32 %v1480, 0.0
      %v1932 = vmax.f32 %v1482, 0.0
      %v1933 = vmax.f32 %v1593, 0.0
      %v1934 = vmax.f32 %v1595, 0.0
      %v1935 = vmax.f32 %v1706, 0.0
      %v1936 = vmax.f32 %v1708, 0.0
      %v1937 = vmax.f32 %v1819, 0.0
      %v1938 = vmax.f32 %v1821, 0.0
      %v1939 = vmax.f32 %v1486, 0.0
      %v1940 = vmax.f32 %v1488, 0.0
      %v1941 = vmax.f32 %v1599, 0.0
      %v1942 = vmax.f32 %v1601, 0.0
      %v1943 = vmax.f32 %v1712, 0.0
      %v1944 = vmax.f32 %v1714, 0.0
      %v1945 = vmax.f32 %v1825, 0.0
      %v1946 = vmax.f32 %v1827, 0.0
      %v1947 = vmax.f32 %v1490, 0.0
      %v1948 = vmax.f32 %v1492, 0.0
      %v1949 = vmax.f32 %v1603, 0.0
      %v1950 = vmax.f32 %v1605, 0.0
      %v1951 = vmax.f32 %v1716, 0.0
      %v1952 = vmax.f32 %v1718, 0.0
      %v1953 = vmax.f32 %v1829, 0.0
      %v1954 = vmax.f32 %v1831, 0.0
      %v1955 = vmax.f32 %v1496, 0.0
      %v1956 = vmax.f32 %v1498, 0.0
      %v1957 = vmax.f32 %v1609, 0.0
      %v1958 = vmax.f32 %v1611, 0.0
      %v1959 = vmax.f32 %v1722, 0.0
      %v1960 = vmax.f32 %v1724, 0.0
      %v1961 = vmax.f32 %v1835, 0.0
      %v1962 = vmax.f32 %v1837, 0.0
      %v1963 = vmax.f32 %v1500, 0.0
      %v1964 = vmax.f32 %v1502, 0.0
      %v1965 = vmax.f32 %v1613, 0.0
      %v1966 = vmax.f32 %v1615, 0.0
      %v1967 = vmax.f32 %v1726, 0.0
      %v1968 = vmax.f32 %v1728, 0.0
      %v1969 = vmax.f32 %v1839, 0.0
      %v1970 = vmax.f32 %v1841, 0.0
      %v1971 = vld [vmem:[#allocation2] sm:$0xff]
      %v1972 = vmax.f32 %v1843, %v1851
      %v1973 = vmax.f32 %v1972, %v1859
      %v1974 = vmax.f32 %v1973, %v1867
      %v1975 = vmax.f32 %v1974, %v1875
      %v1976 = vmax.f32 %v1975, %v1883
      %v1977 = vmax.f32 %v1976, %v1891
      %v1978 = vmax.f32 %v1977, %v1899
      %v1979 = vmax.f32 %v1978, %v1907
      %v1980 = vmax.f32 %v1979, %v1915
      %v1981 = vmax.f32 %v1980, %v1923
      %v1982 = vmax.f32 %v1981, %v1931
      %v1983 = vmax.f32 %v1982, %v1939
      %v1984 = vmax.f32 %v1983, %v1947
      %v1985 = vmax.f32 %v1984, %v1955
      %v1986 = vmax.f32 %v1985, %v1963
      %v1987 = vrot.slane %v1986, 4
      %v1988 = vmax.f32 %v1986, %v1987
      %v1989 = vrot.slane %v1988, 2
      %v1990 = vmax.f32 %v1988, %v1989
      %v1991 = vrot.slane %v1990, 1
      %v1992 = vmax.f32 %v1990, %v1991
      %v1993 = vmax.f32 %v1844, %v1852
      %v1994 = vmax.f32 %v1993, %v1860
      %v1995 = vmax.f32 %v1994, %v1868
      %v1996 = vmax.f32 %v1995, %v1876
      %v1997 = vmax.f32 %v1996, %v1884
      %v1998 = vmax.f32 %v1997, %v1892
      %v1999 = vmax.f32 %v1998, %v1900
      %v2000 = vmax.f32 %v1999, %v1908
      %v2001 = vmax.f32 %v2000, %v1916
      %v2002 = vmax.f32 %v2001, %v1924
      %v2003 = vmax.f32 %v2002, %v1932
      %v2004 = vmax.f32 %v2003, %v1940
      %v2005 = vmax.f32 %v2004, %v1948
      %v2006 = vmax.f32 %v2005, %v1956
      %v2007 = vmax.f32 %v2006, %v1964
      %v2008 = vrot.slane %v2007, 4
      %v2009 = vmax.f32 %v2007, %v2008
      %v2010 = vrot.slane %v2009, 2
      %v2011 = vmax.f32 %v2009, %v2010
      %v2012 = vrot.slane %v2011, 1
      %v2013 = vmax.f32 %v2011, %v2012
      %v2014 = vmax.f32 %v1845, %v1853
      %v2015 = vmax.f32 %v2014, %v1861
      %v2016 = vmax.f32 %v2015, %v1869
      %v2017 = vmax.f32 %v2016, %v1877
      %v2018 = vmax.f32 %v2017, %v1885
      %v2019 = vmax.f32 %v2018, %v1893
      %v2020 = vmax.f32 %v2019, %v1901
      %v2021 = vmax.f32 %v2020, %v1909
      %v2022 = vmax.f32 %v2021, %v1917
      %v2023 = vmax.f32 %v2022, %v1925
      %v2024 = vmax.f32 %v2023, %v1933
      %v2025 = vmax.f32 %v2024, %v1941
      %v2026 = vmax.f32 %v2025, %v1949
      %v2027 = vmax.f32 %v2026, %v1957
      %v2028 = vmax.f32 %v2027, %v1965
      %v2029 = vrot.slane %v2028, 4
      %v2030 = vmax.f32 %v2028, %v2029
      %v2031 = vrot.slane %v2030, 2
      %v2032 = vmax.f32 %v2030, %v2031
      %v2033 = vrot.slane %v2032, 1
      %v2034 = vmax.f32 %v2032, %v2033
      %v2035 = vmax.f32 %v1846, %v1854
      %v2036 = vmax.f32 %v2035, %v1862
      %v2037 = vmax.f32 %v2036, %v1870
      %v2038 = vmax.f32 %v2037, %v1878
      %v2039 = vmax.f32 %v2038, %v1886
      %v2040 = vmax.f32 %v2039, %v1894
      %v2041 = vmax.f32 %v2040, %v1902
      %v2042 = vmax.f32 %v2041, %v1910
      %v2043 = vmax.f32 %v2042, %v1918
      %v2044 = vmax.f32 %v2043, %v1926
      %v2045 = vmax.f32 %v2044, %v1934
      %v2046 = vmax.f32 %v2045, %v1942
      %v2047 = vmax.f32 %v2046, %v1950
      %v2048 = vmax.f32 %v2047, %v1958
      %v2049 = vmax.f32 %v2048, %v1966
      %v2050 = vrot.slane %v2049, 4
      %v2051 = vmax.f32 %v2049, %v2050
      %v2052 = vrot.slane %v2051, 2
      %v2053 = vmax.f32 %v2051, %v2052
      %v2054 = vrot.slane %v2053, 1
      %v2055 = vmax.f32 %v2053, %v2054
      %v2056 = vmax.f32 %v1847, %v1855
      %v2057 = vmax.f32 %v2056, %v1863
      %v2058 = vmax.f32 %v2057, %v1871
      %v2059 = vmax.f32 %v2058, %v1879
      %v2060 = vmax.f32 %v2059, %v1887
      %v2061 = vmax.f32 %v2060, %v1895
      %v2062 = vmax.f32 %v2061, %v1903
      %v2063 = vmax.f32 %v2062, %v1911
      %v2064 = vmax.f32 %v2063, %v1919
      %v2065 = vmax.f32 %v2064, %v1927
      %v2066 = vmax.f32 %v2065, %v1935
      %v2067 = vmax.f32 %v2066, %v1943
      %v2068 = vmax.f32 %v2067, %v1951
      %v2069 = vmax.f32 %v2068, %v1959
      %v2070 = vmax.f32 %v2069, %v1967
      %v2071 = vrot.slane %v2070, 4
      %v2072 = vmax.f32 %v2070, %v2071
      %v2073 = vrot.slane %v2072, 2
      %v2074 = vmax.f32 %v2072, %v2073
      %v2075 = vrot.slane %v2074, 1
      %v2076 = vmax.f32 %v2074, %v2075
      %v2077 = vmax.f32 %v1848, %v1856
      %v2078 = vmax.f32 %v2077, %v1864
      %v2079 = vmax.f32 %v2078, %v1872
      %v2080 = vmax.f32 %v2079, %v1880
      %v2081 = vmax.f32 %v2080, %v1888
      %v2082 = vmax.f32 %v2081, %v1896
      %v2083 = vmax.f32 %v2082, %v1904
      %v2084 = vmax.f32 %v2083, %v1912
      %v2085 = vmax.f32 %v2084, %v1920
      %v2086 = vmax.f32 %v2085, %v1928
      %v2087 = vmax.f32 %v2086, %v1936
      %v2088 = vmax.f32 %v2087, %v1944
      %v2089 = vmax.f32 %v2088, %v1952
      %v2090 = vmax.f32 %v2089, %v1960
      %v2091 = vmax.f32 %v2090, %v1968
      %v2092 = vrot.slane %v2091, 4
      %v2093 = vmax.f32 %v2091, %v2092
      %v2094 = vrot.slane %v2093, 2
      %v2095 = vmax.f32 %v2093, %v2094
      %v2096 = vrot.slane %v2095, 1
      %v2097 = vmax.f32 %v2095, %v2096
      %v2098 = vmax.f32 %v1849, %v1857
      %v2099 = vmax.f32 %v2098, %v1865
      %v2100 = vmax.f32 %v2099, %v1873
      %v2101 = vmax.f32 %v2100, %v1881
      %v2102 = vmax.f32 %v2101, %v1889
      %v2103 = vmax.f32 %v2102, %v1897
      %v2104 = vmax.f32 %v2103, %v1905
      %v2105 = vmax.f32 %v2104, %v1913
      %v2106 = vmax.f32 %v2105, %v1921
      %v2107 = vmax.f32 %v2106, %v1929
      %v2108 = vmax.f32 %v2107, %v1937
      %v2109 = vmax.f32 %v2108, %v1945
      %v2110 = vmax.f32 %v2109, %v1953
      %v2111 = vmax.f32 %v2110, %v1961
      %v2112 = vmax.f32 %v2111, %v1969
      %v2113 = vrot.slane %v2112, 4
      %v2114 = vmax.f32 %v2112, %v2113
      %v2115 = vrot.slane %v2114, 2
      %v2116 = vmax.f32 %v2114, %v2115
      %v2117 = vrot.slane %v2116, 1
      %v2118 = vmax.f32 %v2116, %v2117
      %v2119 = vmax.f32 %v1850, %v1858
      %v2120 = vmax.f32 %v2119, %v1866
      %v2121 = vmax.f32 %v2120, %v1874
      %v2122 = vmax.f32 %v2121, %v1882
      %v2123 = vmax.f32 %v2122, %v1890
      %v2124 = vmax.f32 %v2123, %v1898
      %v2125 = vmax.f32 %v2124, %v1906
      %v2126 = vmax.f32 %v2125, %v1914
      %v2127 = vmax.f32 %v2126, %v1922
      %v2128 = vmax.f32 %v2127, %v1930
      %v2129 = vmax.f32 %v2128, %v1938
      %v2130 = vmax.f32 %v2129, %v1946
      %v2131 = vmax.f32 %v2130, %v1954
      %v2132 = vmax.f32 %v2131, %v1962
      %v2133 = vmax.f32 %v2132, %v1970
      %v2134 = vrot.slane %v2133, 4
      %v2135 = vmax.f32 %v2133, %v2134
      %v2136 = vrot.slane %v2135, 2
      %v2137 = vmax.f32 %v2135, %v2136
      %v2138 = vrot.slane %v2137, 1
      %v2139 = vmax.f32 %v2137, %v2138
      %v2148 = vcombine.low %v1992, %v2013
      %v2149 = vcombine.low %v2034, %v2055
      %v2150 = vcombine.low %v2076, %v2097
      %v2151 = vcombine.low %v2118, %v2139
      %v2153 = vunpack.c.l.s4 1966171168
      %v2154 = vunpack.c.0.s8 %v2153
      %v2155 = vlaneseq
      %v2156 = vshrl.u32 %v2155, 7
      %v2157 = vsub.s32 %v2154, %v2156
      %v2158 = vrot.slane %v2148, %v2157
      %v2160 = vunpack.c.l.s4 1966171168
      %v2161 = vunpack.c.0.s8 %v2160
      %v2162 = vlaneseq
      %v2163 = vshrl.u32 %v2162, 7
      %v2164 = vsub.s32 %v2161, %v2163
      %v2165 = vrot.slane %v2149, %v2164
      %v2167 = vunpack.c.l.s4 1966171168
      %v2168 = vunpack.c.0.s8 %v2167
      %v2169 = vlaneseq
      %v2170 = vshrl.u32 %v2169, 7
      %v2171 = vsub.s32 %v2168, %v2170
      %v2172 = vrot.slane %v2150, %v2171
      %v2174 = vunpack.c.l.s4 1966171168
      %v2175 = vunpack.c.0.s8 %v2174
      %v2176 = vlaneseq
      %v2177 = vshrl.u32 %v2176, 7
      %v2178 = vsub.s32 %v2175, %v2177
      %v2179 = vrot.slane %v2151, %v2178
      %v2180 = vcombine.low %v2158, %v2165
      %v2181 = vcombine.low %v2172, %v2179
      %v2183 = vunpack.c.l.s4 1966171168
      %v2184 = vunpack.c.0.s8 %v2183
      %v2185 = vlaneseq
      %v2186 = vshrl.u32 %v2185, 7
      %v2187 = vsub.s32 %v2184, %v2186
      %v2188 = vrot.slane %v2180, %v2187
      %v2190 = vunpack.c.l.s4 1966171168
      %v2191 = vunpack.c.0.s8 %v2190
      %v2192 = vlaneseq
      %v2193 = vshrl.u32 %v2192, 7
      %v2194 = vsub.s32 %v2191, %v2193
      %v2195 = vrot.slane %v2181, %v2194
      %v2196 = vcombine.low %v2188, %v2195
      %v2198 = vmax.f32 %v1971, %v2196
      %2199 = vst [vmem:[#allocation2] sm:$0xff] %v2198
      // Predicated region
      $region61: #{pointnet_reg_forward_pallas.5} parent=55 // pred_check
        %p2200 = pneg %p377
      $region62: #{pointnet_reg_forward_pallas.5} parent=55 // pred_check_branch
        %2202 = sbr.rel (%p2200) target = $region64
      $region63: #{pointnet_reg_forward_pallas.5} parent=55 // pred_region
        %v2203 = vld [vmem:[#allocation2] sm:$0xff]
        %2204 = vst [vmem:[%s375] sm:$0xff] %v2203
      $region64: #{pointnet_reg_forward_pallas.5} parent=55 // pred_fallthru
        _
      %p2205 = scmp.lt.s32.totalorder %s24, 1
      %s2206 = scalar_select %p2205, %s24, 1
      %s2207 = smul.addr %s2206, 8
      %s2208 = scalar_lea.vmem %s9, %s2207
      // Predicated region
      $region65: #{pointnet_reg_forward_pallas.5} parent=55 // pred_check
        %p2209 = pneg %p251
      $region66: #{pointnet_reg_forward_pallas.5} parent=55 // pred_check_branch
        %2211 = sbr.rel (%p2209) target = $region68
      $region67: #{pointnet_reg_forward_pallas.5} parent=55 // pred_region
        _
      $region68: #{pointnet_reg_forward_pallas.5} parent=55 // pred_fallthru
        _
    $region56: #{pointnet_reg_forward_pallas.5} parent=5 // pred_fallthru
      _
    %p2212 = scmp.le.s32.totalorder 2, %s15
    // Predicated region
    $region69: #{pointnet_reg_forward_pallas.5} parent=5 // pred_check
      %p2213 = pneg %p2212
    $region70: #{pointnet_reg_forward_pallas.5} parent=5 // pred_check_branch
      %2215 = sbr.rel (%p2213) target = $region72
    $region71: #{pointnet_reg_forward_pallas.5} parent=5 // pred_region
      %s2216 = ssub.s32 %s15, 2
      // Predicated region
      $region73: #{pointnet_reg_forward_pallas.5} parent=71 // pred_check
        %p2217 = pneg %p257
      $region74: #{pointnet_reg_forward_pallas.5} parent=71 // pred_check_branch
        %2219 = sbr.rel (%p2217) target = $region76
      $region75: #{pointnet_reg_forward_pallas.5} parent=71 // pred_region
        %p2220 = scmp.lt.s32.totalorder %s26, 1
        %s2221 = scalar_select %p2220, %s26, 1
        %s2222 = smul.addr %s2221, 8
        %s2223 = scalar_lea.vmem %s9, %s2222
      $region76: #{pointnet_reg_forward_pallas.5} parent=71 // pred_fallthru
        _
    $region72: #{pointnet_reg_forward_pallas.5} parent=5 // pred_fallthru
      _
  $region6: #{pointnet_reg_forward_pallas.5} parent=0 // loop_footer
    %s19 = sadd.s32 1, %s15
  $region7: #{pointnet_reg_forward_pallas.5} parent=0 // loop_footer_branch
    %14 = sbr.rel target = $region3
  $region8: #{pointnet_reg_forward_pallas.5} parent=0 // loop_exit
    _

// kernel: pointnet_reg_forward_pallas.4
$region0: #{pointnet_reg_forward_pallas.4}
  #allocation0 [shape = 'u32[]', space=smem, size = 0x4, offset = 0x4, fixed_abs, tag = 'smem constant byte address 0x4 - core index']
  #allocation1 [shape = 'u32[144,128]{1,0:T(1,128)}', space=vmem, size = 0x12000, scoped, tag = 'internal scratch']
  #allocation2 [shape = 'f32[1,1024]{1,0:T(1,128)}', space=vmem, size = 0x1000, scoped, tag = 'scratch operand']
  %s0 = inlined_call_operand.vmem [shape: bf16[2,128,6], index: 0, kind: input, shape index: {}]
  %s1 = inlined_call_operand.vmem [shape: bf16[6,64], index: 1, kind: input, shape index: {}]
  %s2 = inlined_call_operand.hbm [shape: f32[1,64], index: 2, kind: input, shape index: {}]
  %s3 = inlined_call_operand.vmem [shape: bf16[64,128], index: 3, kind: input, shape index: {}]
  %s4 = inlined_call_operand.hbm [shape: f32[1,128], index: 4, kind: input, shape index: {}]
  %s5 = inlined_call_operand.vmem [shape: bf16[128,1024], index: 5, kind: input, shape index: {}]
  %s6 = inlined_call_operand.hbm [shape: f32[1,1024], index: 6, kind: input, shape index: {}]
  %s7 = inlined_call_operand.vmem [shape: f32[2,1,1024], index: 7, kind: output, shape index: {}]
  %s8 = sld [smem:[#allocation0]]
  $region81: #{pointnet_reg_forward_pallas.4} parent=0
    _
  %s10 = ssub.s32 1, %s8
  %s11 = scalar_select 0, %s10, %s8
  $region1: #{pointnet_reg_forward_pallas.4} parent=0
    #allocation3 [shape = 'u8[512]{0}', space=vmem, size = 0x400, scoped, tag = 'input window, operand 2, single buffered']
    #allocation4 [shape = 's32[2]{0}', space=sflag, size = 0x8, scoped, tag = 'scoped memory for pointnet_reg_forward_pallas.4']
    #allocation5 [shape = 'u8[512]{0}', space=vmem, size = 0x400, scoped, tag = 'input window, operand 4, single buffered']
    #allocation6 [shape = 's32[1]{0}', space=sflag, size = 0x4, scoped, tag = 'scoped memory for pointnet_reg_forward_pallas.4']
    #allocation7 [shape = 'u8[4096]{0}', space=vmem, size = 0x1000, scoped, tag = 'input window, operand 6, single buffered']
    %12 = vsyncpa [#allocation4], 0
    %13 = vsyncpa [#allocation6], 0
    loop: start=0, step=1, limit=4
    $region2: #{pointnet_reg_forward_pallas.4} parent=1 // loop_pre_header
      _
    $region3: #{pointnet_reg_forward_pallas.4} parent=1 // loop_header
      %s15 = sphi 0, %s19
      %p16 = scmp.ge.s32.totalorder %s15, 4
      %s22 = sphi 0, %s34
      %s23 = sphi 0, %s30
      %s24 = sphi 0, %s22
      %s25 = sphi 0, %s23
      %s26 = sphi 0, %s24
      %s27 = sphi 0, %s25
      %s39 = sphi 0, %s41
      %s42 = sphi 0, %s39
      %s43 = sphi 0, %s42
      %s59 = sphi 0, %s43
      %s63 = sphi 0, %s63
      %s65 = sphi 0, %s63
      %s66 = sphi 0, %s65
      %s80 = sphi 0, %s66
      %s84 = sphi 0, %s84
      %s86 = sphi 0, %s84
      %s87 = sphi 0, %s86
      %s101 = sphi 0, %s87
      %s105 = sphi 0, %s105
      %s107 = sphi 0, %s105
      %s108 = sphi 0, %s107
      %s122 = sphi 0, %s108
      %s126 = sphi 0, %s126
      %s128 = sphi 0, %s126
      %s129 = sphi 0, %s128
      %s143 = sphi 0, %s129
      %s147 = sphi 0, %s147
      %s149 = sphi 0, %s147
      %s150 = sphi 0, %s149
      %s164 = sphi 0, %s150
      %s168 = sphi 0, %s168
      %s170 = sphi 0, %s168
      %s171 = sphi 0, %s170
      %s185 = sphi 0, %s171
      %s191 = sphi 0, %s193
      %s194 = sphi 0, %s191
      %s195 = sphi 0, %s194
      %s211 = sphi 0, %s195
    $region4: #{pointnet_reg_forward_pallas.4} parent=1 // loop_header_branch
      %18 = sbr.rel (%p16) target = $region8
    $region5: #{pointnet_reg_forward_pallas.4} parent=1 // loop_body
      %s20 = ssub.s32 %s15, 1
      %s21 = ssub.s32 %s15, 2
      %s28 = sadd.s32 1, %s23
      %p29 = scmp.ge.s32.totalorder %s28, 1
      %s30 = scalar_select %p29, 0, %s28
      %s31 = sadd.s32 1, %s22
      %s32 = scalar_select %p29, %s31, %s22
      %p33 = scmp.ge.s32.totalorder %s32, 2
      %s34 = scalar_select %p33, 0, %s32
      %s35 = ssub.s32 %s22, %s34
      %s36 = ssub.s32 %s23, %s30
      %s37 = sor.u32 %s35, %s36
      %p38 = scmp.eq.s32.totalorder %s37, 0
      %s40 = sadd.s32 %s39, 1
      %s41 = scalar_select %p38, %s39, %s40
      %p44 = pneg %p38
      %p45 = scmp.eq.s32.totalorder %s15, 1
      %p46 = por %p44, %p45
      %p47 = scmp.ne.s32.totalorder %s39, %s42
      %p48 = scmp.eq.s32.totalorder %s15, 0
      %p49 = por %p47, %p48
      %p50 = scmp.ne.s32.totalorder %s39, %s42
      %p51 = scmp.eq.s32.totalorder %s20, 1
      %p52 = por %p50, %p51
      %p53 = scmp.ne.s32.totalorder %s42, %s43
      %p54 = scmp.eq.s32.totalorder %s20, 0
      %p55 = por %p53, %p54
      %p56 = scmp.ne.s32.totalorder %s42, %s43
      %p57 = scmp.eq.s32.totalorder %s21, 1
      %p58 = por %p56, %p57
      %p60 = scmp.ne.s32.totalorder %s43, %s59
      %p61 = scmp.eq.s32.totalorder %s21, 0
      %p62 = por %p60, %p61
      %s64 = sadd.s32 %s63, 1
      %p67 = scmp.eq.s32.totalorder %s15, 1
      %p68 = scmp.ne.s32.totalorder %s63, %s65
      %p69 = scmp.eq.s32.totalorder %s15, 0
      %p70 = por %p68, %p69
      %p71 = scmp.ne.s32.totalorder %s63, %s65
      %p72 = scmp.eq.s32.totalorder %s20, 1
      %p73 = por %p71, %p72
      %p74 = scmp.ne.s32.totalorder %s65, %s66
      %p75 = scmp.eq.s32.totalorder %s20, 0
      %p76 = por %p74, %p75
      %p77 = scmp.ne.s32.totalorder %s65, %s66
      %p78 = scmp.eq.s32.totalorder %s21, 1
      %p79 = por %p77, %p78
      %p81 = scmp.ne.s32.totalorder %s66, %s80
      %p82 = scmp.eq.s32.totalorder %s21, 0
      %p83 = por %p81, %p82
      %s85 = sadd.s32 %s84, 1
      %p88 = scmp.eq.s32.totalorder %s15, 1
      %p89 = scmp.ne.s32.totalorder %s84, %s86
      %p90 = scmp.eq.s32.totalorder %s15, 0
      %p91 = por %p89, %p90
      %p92 = scmp.ne.s32.totalorder %s84, %s86
      %p93 = scmp.eq.s32.totalorder %s20, 1
      %p94 = por %p92, %p93
      %p95 = scmp.ne.s32.totalorder %s86, %s87
      %p96 = scmp.eq.s32.totalorder %s20, 0
      %p97 = por %p95, %p96
      %p98 = scmp.ne.s32.totalorder %s86, %s87
      %p99 = scmp.eq.s32.totalorder %s21, 1
      %p100 = por %p98, %p99
      %p102 = scmp.ne.s32.totalorder %s87, %s101
      %p103 = scmp.eq.s32.totalorder %s21, 0
      %p104 = por %p102, %p103
      %s106 = sadd.s32 %s105, 1
      %p109 = scmp.eq.s32.totalorder %s15, 1
      %p110 = scmp.ne.s32.totalorder %s105, %s107
      %p111 = scmp.eq.s32.totalorder %s15, 0
      %p112 = por %p110, %p111
      %p113 = scmp.ne.s32.totalorder %s105, %s107
      %p114 = scmp.eq.s32.totalorder %s20, 1
      %p115 = por %p113, %p114
      %p116 = scmp.ne.s32.totalorder %s107, %s108
      %p117 = scmp.eq.s32.totalorder %s20, 0
      %p118 = por %p116, %p117
      %p119 = scmp.ne.s32.totalorder %s107, %s108
      %p120 = scmp.eq.s32.totalorder %s21, 1
      %p121 = por %p119, %p120
      %p123 = scmp.ne.s32.totalorder %s108, %s122
      %p124 = scmp.eq.s32.totalorder %s21, 0
      %p125 = por %p123, %p124
      %s127 = sadd.s32 %s126, 1
      %p130 = scmp.eq.s32.totalorder %s15, 1
      %p131 = scmp.ne.s32.totalorder %s126, %s128
      %p132 = scmp.eq.s32.totalorder %s15, 0
      %p133 = por %p131, %p132
      %p134 = scmp.ne.s32.totalorder %s126, %s128
      %p135 = scmp.eq.s32.totalorder %s20, 1
      %p136 = por %p134, %p135
      %p137 = scmp.ne.s32.totalorder %s128, %s129
      %p138 = scmp.eq.s32.totalorder %s20, 0
      %p139 = por %p137, %p138
      %p140 = scmp.ne.s32.totalorder %s128, %s129
      %p141 = scmp.eq.s32.totalorder %s21, 1
      %p142 = por %p140, %p141
      %p144 = scmp.ne.s32.totalorder %s129, %s143
      %p145 = scmp.eq.s32.totalorder %s21, 0
      %p146 = por %p144, %p145
      %s148 = sadd.s32 %s147, 1
      %p151 = scmp.eq.s32.totalorder %s15, 1
      %p152 = scmp.ne.s32.totalorder %s147, %s149
      %p153 = scmp.eq.s32.totalorder %s15, 0
      %p154 = por %p152, %p153
      %p155 = scmp.ne.s32.totalorder %s147, %s149
      %p156 = scmp.eq.s32.totalorder %s20, 1
      %p157 = por %p155, %p156
      %p158 = scmp.ne.s32.totalorder %s149, %s150
      %p159 = scmp.eq.s32.totalorder %s20, 0
      %p160 = por %p158, %p159
      %p161 = scmp.ne.s32.totalorder %s149, %s150
      %p162 = scmp.eq.s32.totalorder %s21, 1
      %p163 = por %p161, %p162
      %p165 = scmp.ne.s32.totalorder %s150, %s164
      %p166 = scmp.eq.s32.totalorder %s21, 0
      %p167 = por %p165, %p166
      %s169 = sadd.s32 %s168, 1
      %p172 = scmp.eq.s32.totalorder %s15, 1
      %p173 = scmp.ne.s32.totalorder %s168, %s170
      %p174 = scmp.eq.s32.totalorder %s15, 0
      %p175 = por %p173, %p174
      %p176 = scmp.ne.s32.totalorder %s168, %s170
      %p177 = scmp.eq.s32.totalorder %s20, 1
      %p178 = por %p176, %p177
      %p179 = scmp.ne.s32.totalorder %s170, %s171
      %p180 = scmp.eq.s32.totalorder %s20, 0
      %p181 = por %p179, %p180
      %p182 = scmp.ne.s32.totalorder %s170, %s171
      %p183 = scmp.eq.s32.totalorder %s21, 1
      %p184 = por %p182, %p183
      %p186 = scmp.ne.s32.totalorder %s171, %s185
      %p187 = scmp.eq.s32.totalorder %s21, 0
      %p188 = por %p186, %p187
      %s189 = ssub.s32 %s22, %s34
      %p190 = scmp.eq.s32.totalorder %s189, 0
      %s192 = sadd.s32 %s191, 1
      %s193 = scalar_select %p190, %s191, %s192
      %p196 = pneg %p190
      %p197 = scmp.eq.s32.totalorder %s15, 1
      %p198 = por %p196, %p197
      %p199 = scmp.ne.s32.totalorder %s191, %s194
      %p200 = scmp.eq.s32.totalorder %s15, 0
      %p201 = por %p199, %p200
      %p202 = scmp.ne.s32.totalorder %s191, %s194
      %p203 = scmp.eq.s32.totalorder %s20, 1
      %p204 = por %p202, %p203
      %p205 = scmp.ne.s32.totalorder %s194, %s195
      %p206 = scmp.eq.s32.totalorder %s20, 0
      %p207 = por %p205, %p206
      %p208 = scmp.ne.s32.totalorder %s194, %s195
      %p209 = scmp.eq.s32.totalorder %s21, 1
      %p210 = por %p208, %p209
      %p212 = scmp.ne.s32.totalorder %s195, %s211
      %p213 = scmp.eq.s32.totalorder %s21, 0
      %p214 = por %p212, %p213
      %p215 = scmp.le.s32.totalorder 1, %s15
      %p216 = scmp.lt.s32.totalorder %s15, 3
      %p217 = pnand %p215, %p216
      %p218 = pneg %p217
      // Predicated region
      $region9: #{pointnet_reg_forward_pallas.4} parent=5 // pred_check
        _
      $region10: #{pointnet_reg_forward_pallas.4} parent=5 // pred_check_branch
        %220 = sbr.rel (%p217) target = $region12
      $region11: #{pointnet_reg_forward_pallas.4} parent=5 // pred_region
        %s221 = ssub.s32 %s15, 1
        // Predicated region
        $region13: #{pointnet_reg_forward_pallas.4} parent=11 // pred_check
          %p222 = pneg %p76
        $region14: #{pointnet_reg_forward_pallas.4} parent=11 // pred_check_branch
          %224 = sbr.rel (%p222) target = $region16
        $region15: #{pointnet_reg_forward_pallas.4} parent=11 // pred_region
          _
        $region16: #{pointnet_reg_forward_pallas.4} parent=11 // pred_fallthru
          _
        // Predicated region
        $region17: #{pointnet_reg_forward_pallas.4} parent=11 // pred_check
          %p225 = pneg %p97
        $region18: #{pointnet_reg_forward_pallas.4} parent=11 // pred_check_branch
          %227 = sbr.rel (%p225) target = $region20
        $region19: #{pointnet_reg_forward_pallas.4} parent=11 // pred_region
          %s229 = ssub.s32 16, 16
          %230 = vsyncadd [#allocation4], %s229
          %s232 = sshll.u32 [#allocation3], 4
          %s233 = int_to_ptr.vmem [resolvable:$true] %s232
          %235 = dma.hbm_to_vmem [thread:$0]  %s2, 16, %s233, [#allocation4]
        $region20: #{pointnet_reg_forward_pallas.4} parent=11 // pred_fallthru
          _
        // Predicated region
        $region21: #{pointnet_reg_forward_pallas.4} parent=11 // pred_check
          %p236 = pneg %p118
        $region22: #{pointnet_reg_forward_pallas.4} parent=11 // pred_check_branch
          %238 = sbr.rel (%p236) target = $region24
        $region23: #{pointnet_reg_forward_pallas.4} parent=11 // pred_region
          _
        $region24: #{pointnet_reg_forward_pallas.4} parent=11 // pred_fallthru
          _
        // Predicated region
        $region25: #{pointnet_reg_forward_pallas.4} parent=11 // pred_check
          %p239 = pneg %p139
        $region26: #{pointnet_reg_forward_pallas.4} parent=11 // pred_check_branch
          %241 = sbr.rel (%p239) target = $region28
        $region27: #{pointnet_reg_forward_pallas.4} parent=11 // pred_region
          %s243 = ssub.s32 16, 16
          %244 = vsyncadd [#allocation6], %s243
          %s246 = sshll.u32 [#allocation5], 4
          %s247 = int_to_ptr.vmem [resolvable:$true] %s246
          %249 = dma.hbm_to_vmem [thread:$0]  %s4, 16, %s247, [#allocation6]
        $region28: #{pointnet_reg_forward_pallas.4} parent=11 // pred_fallthru
          _
        // Predicated region
        $region29: #{pointnet_reg_forward_pallas.4} parent=11 // pred_check
          %p250 = pneg %p160
        $region30: #{pointnet_reg_forward_pallas.4} parent=11 // pred_check_branch
          %252 = sbr.rel (%p250) target = $region32
        $region31: #{pointnet_reg_forward_pallas.4} parent=11 // pred_region
          _
        $region32: #{pointnet_reg_forward_pallas.4} parent=11 // pred_fallthru
          _
        // Predicated region
        $region33: #{pointnet_reg_forward_pallas.4} parent=11 // pred_check
          %p253 = pneg %p181
        $region34: #{pointnet_reg_forward_pallas.4} parent=11 // pred_check_branch
          %255 = sbr.rel (%p253) target = $region36
        $region35: #{pointnet_reg_forward_pallas.4} parent=11 // pred_region
          %s257 = ssub.s32 128, 128
          %258 = vsyncadd [#allocation6], %s257
          %s260 = sshll.u32 [#allocation7], 4
          %s261 = int_to_ptr.vmem [resolvable:$true] %s260
          %263 = dma.hbm_to_vmem [thread:$0]  %s6, 128, %s261, [#allocation6]
        $region36: #{pointnet_reg_forward_pallas.4} parent=11 // pred_fallthru
          _
      $region12: #{pointnet_reg_forward_pallas.4} parent=5 // pred_fallthru
        _
      %p264 = scmp.lt.s32.totalorder %s15, 2
      // Predicated region
      $region37: #{pointnet_reg_forward_pallas.4} parent=5 // pred_check
        %p265 = pneg %p264
      $region38: #{pointnet_reg_forward_pallas.4} parent=5 // pred_check_branch
        %267 = sbr.rel (%p265) target = $region40
      $region39: #{pointnet_reg_forward_pallas.4} parent=5 // pred_region
        // Predicated region
        $region41: #{pointnet_reg_forward_pallas.4} parent=39 // pred_check
          %p268 = pneg %p49
        $region42: #{pointnet_reg_forward_pallas.4} parent=39 // pred_check_branch
          %270 = sbr.rel (%p268) target = $region44
        $region43: #{pointnet_reg_forward_pallas.4} parent=39 // pred_region
          %s271 = smul.u32 16, %s23
          %p272 = scmp.lt.s32.totalorder %s22, 1
          %s273 = scalar_select %p272, %s22, 1
          %p274 = scmp.lt.s32.totalorder %s271, 15
          %s275 = scalar_select %p274, %s271, 15
          %s276 = smul.addr %s273, 16
          %s277 = sadd.s32 %s275, %s276
          %s278 = smul.addr %s277, 4
          %s279 = scalar_lea.vmem %s0, %s278
          %s280 = smul.u32 16, %s23
        $region44: #{pointnet_reg_forward_pallas.4} parent=39 // pred_fallthru
          _
      $region40: #{pointnet_reg_forward_pallas.4} parent=5 // pred_fallthru
        _
      %p281 = scmp.le.s32.totalorder 1, %s15
      %p282 = scmp.lt.s32.totalorder %s15, 3
      %p283 = pnand %p281, %p282
      %p284 = pneg %p283
      // Predicated region
      $region45: #{pointnet_reg_forward_pallas.4} parent=5 // pred_check
        _
      $region46: #{pointnet_reg_forward_pallas.4} parent=5 // pred_check_branch
        %286 = sbr.rel (%p283) target = $region48
      $region47: #{pointnet_reg_forward_pallas.4} parent=5 // pred_region
        %s287 = ssub.s32 %s15, 1
        // Predicated region
        $region49: #{pointnet_reg_forward_pallas.4} parent=47 // pred_check
          %p288 = pneg %p97
        $region50: #{pointnet_reg_forward_pallas.4} parent=47 // pred_check_branch
          %290 = sbr.rel (%p288) target = $region52
        $region51: #{pointnet_reg_forward_pallas.4} parent=47 // pred_region
          %291 = dma.done [#allocation4], 16
        $region52: #{pointnet_reg_forward_pallas.4} parent=47 // pred_fallthru
          _
        // Predicated region
        $region53: #{pointnet_reg_forward_pallas.4} parent=47 // pred_check
          %p292 = pneg %p139
        $region54: #{pointnet_reg_forward_pallas.4} parent=47 // pred_check_branch
          %294 = sbr.rel (%p292) target = $region56
        $region55: #{pointnet_reg_forward_pallas.4} parent=47 // pred_region
          %295 = dma.done [#allocation6], 16
        $region56: #{pointnet_reg_forward_pallas.4} parent=47 // pred_fallthru
          _
        // Predicated region
        $region57: #{pointnet_reg_forward_pallas.4} parent=47 // pred_check
          %p296 = pneg %p181
        $region58: #{pointnet_reg_forward_pallas.4} parent=47 // pred_check_branch
          %298 = sbr.rel (%p296) target = $region60
        $region59: #{pointnet_reg_forward_pallas.4} parent=47 // pred_region
          %299 = dma.done [#allocation6], 128
        $region60: #{pointnet_reg_forward_pallas.4} parent=47 // pred_fallthru
          _
        %s300 = smul.u32 16, %s25
        %p301 = scmp.lt.s32.totalorder %s24, 1
        %s302 = scalar_select %p301, %s24, 1
        %p303 = scmp.lt.s32.totalorder %s300, 15
        %s304 = scalar_select %p303, %s300, 15
        %s305 = smul.addr %s302, 16
        %s306 = sadd.s32 %s304, %s305
        %s307 = smul.addr %s306, 4
        %s308 = scalar_lea.vmem %s0, %s307
        %p309 = pneg %p55
        %p310 = pneg %p52
        %p311 = pneg %p76
        %p312 = pneg %p73
        %p313 = pneg %p97
        %p314 = pneg %p94
        %p315 = pneg %p118
        %p316 = pneg %p115
        %p317 = pneg %p139
        %p318 = pneg %p136
        %p319 = pneg %p160
        %p320 = pneg %p157
        %p321 = pneg %p181
        %p322 = pneg %p178
        %p323 = pneg %p207
        %p324 = pneg %p204
        %p325 = scmp.lt.s32.totalorder %s24, 1
        %s326 = scalar_select %p325, %s24, 1
        %s327 = smul.addr %s326, 8
        %s328 = scalar_lea.vmem %s7, %s327
        %s329 = smul.u32 16, %s25
        %p330 = scmp.lt.s32.totalorder %s24, 1
        %s331 = scalar_select %p330, %s24, 1
        %p332 = scmp.lt.s32.totalorder %s329, 15
        %s333 = scalar_select %p332, %s329, 15
        %s334 = smul.addr %s331, 16
        %s335 = sadd.s32 %s333, %s334
        %s336 = smul.addr %s335, 4
        %s337 = scalar_lea.vmem %s0, %s336
        %s338 = smul.u32 16, %s25
        %p339 = scmp.lt.s32.totalorder %s24, 1
        %s340 = scalar_select %p339, %s24, 1
        %s341 = smul.addr %s340, 8
        %s342 = scalar_lea.vmem %s7, %s341
        %p344 = scmp.eq.s32.totalorder %s25, 0
        // Predicated region
        $region61: #{pointnet_reg_forward_pallas.4} parent=47 // pred_check
          %p345 = pneg %p344
        $region62: #{pointnet_reg_forward_pallas.4} parent=47 // pred_check_branch
          %347 = sbr.rel (%p345) target = $region64
        $region63: #{pointnet_reg_forward_pallas.4} parent=47 // pred_region
          %348 = vst [vmem:[#allocation2] sm:$0xff] -inf
        $region64: #{pointnet_reg_forward_pallas.4} parent=47 // pred_fallthru
          _
        %v349 = vld [vmem:[%s337] sm:$0xf]
        %v350 = vld [vmem:[%s337 + $0x4] sm:$0xf]
        %v351 = vld [vmem:[%s337 + $0x8] sm:$0xf]
        %v352 = vld [vmem:[%s337 + $0xc] sm:$0xf]
        %v353 = vld [vmem:[%s337 + $0x10] sm:$0xf]
        %v354 = vld [vmem:[%s337 + $0x14] sm:$0xf]
        %v355 = vld [vmem:[%s337 + $0x18] sm:$0xf]
        %v356 = vld [vmem:[%s337 + $0x1c] sm:$0xf]
        %v357 = vld [vmem:[%s337 + $0x20] sm:$0xf]
        %v358 = vld [vmem:[%s337 + $0x24] sm:$0xf]
        %v359 = vld [vmem:[%s337 + $0x28] sm:$0xf]
        %v360 = vld [vmem:[%s337 + $0x2c] sm:$0xf]
        %v361 = vld [vmem:[%s337 + $0x30] sm:$0xf]
        %v362 = vld [vmem:[%s337 + $0x34] sm:$0xf]
        %v363 = vld [vmem:[%s337 + $0x38] sm:$0xf]
        %v364 = vld [vmem:[%s337 + $0x3c] sm:$0xf]
        %v365 = vld [vmem:[%s1] sm:$0x7]
        %v366 = vld [vmem:[#allocation3] sm:$0x1]
        %v368 = vlaneseq
        %v369 = vshrl.u32 %v368, 7
        %v370 = vsub.s32 0, %v369
        %v371 = vrot.slane %v366, %v370
        %v389 = vunpack.c.l.b16 %v349
        %v390 = vunpack.c.l.b16 %v350
        %v391 = vunpack.c.l.b16 %v351
        %v392 = vunpack.c.l.b16 %v352
        %v393 = vunpack.c.l.b16 %v353
        %v394 = vunpack.c.l.b16 %v354
        %v395 = vunpack.c.l.b16 %v355
        %v396 = vunpack.c.l.b16 %v356
        %v397 = vunpack.c.l.b16 %v357
        %v398 = vunpack.c.l.b16 %v358
        %v399 = vunpack.c.l.b16 %v359
        %v400 = vunpack.c.l.b16 %v360
        %v401 = vunpack.c.l.b16 %v361
        %v402 = vunpack.c.l.b16 %v362
        %v403 = vunpack.c.l.b16 %v363
        %v404 = vunpack.c.l.b16 %v364
        %v405 = vpack.c.b16 %v390, %v389
        %v406 = vpack.c.b16 %v392, %v391
        %v407 = vpack.c.b16 %v394, %v393
        %v408 = vpack.c.b16 %v396, %v395
        %v409 = vpack.c.b16 %v398, %v397
        %v410 = vpack.c.b16 %v400, %v399
        %v411 = vpack.c.b16 %v402, %v401
        %v412 = vpack.c.b16 %v404, %v403
        %vm413 = vcmask 48128
        %v415 = vsel %vm413, %v405, 0
        %v418 = vsel %vm413, %v406, 0
        %v421 = vsel %vm413, %v407, 0
        %v424 = vsel %vm413, %v408, 0
        %v427 = vsel %vm413, %v409, 0
        %v430 = vsel %vm413, %v410, 0
        %v433 = vsel %vm413, %v411, 0
        %v436 = vsel %vm413, %v412, 0
        %vm438 = vcmask 1042432
        %v440 = vsel %vm438, %v365, 0
        %442 = vmatprep.subr.bf16.mxu0 0
        %443 = vmatpush1.bf16.msra.mxu0 %v440
        %444 = vmatprep.subr.bf16.mxu0 0
        %445 = vmatpush1.bf16.msra.mxu0 0
        %446 = vmatprep.subr.bf16.mxu0 0
        %447 = vmatpush1.bf16.msra.mxu0 0
        %448 = vmatprep.subr.bf16.mxu0 0
        %449 = vmatpush1.bf16.msra.mxu0 0
        %450 = vmatprep.subr.bf16.mxu0 0
        %451 = vmatpush1.bf16.msra.mxu0 0
        %452 = vmatprep.subr.bf16.mxu0 0
        %453 = vmatpush1.bf16.msra.mxu0 0
        %454 = vmatprep.subr.bf16.mxu0 0
        %455 = vmatpush1.bf16.msra.mxu0 0
        %456 = vmatprep.subr.bf16.mxu0 0
        %457 = vmatpush1.bf16.msra.mxu0 0
        %458 = vmatprep.subr.bf16.mxu0 0
        %459 = vmatpush1.bf16.msra.mxu0 0
        %460 = vmatprep.subr.bf16.mxu0 0
        %461 = vmatpush1.bf16.msra.mxu0 0
        %462 = vmatprep.subr.bf16.mxu0 0
        %463 = vmatpush1.bf16.msra.mxu0 0
        %464 = vmatprep.subr.bf16.mxu0 0
        %465 = vmatpush1.bf16.msra.mxu0 0
        %466 = vmatprep.subr.bf16.mxu0 0
        %467 = vmatpush1.bf16.msra.mxu0 0
        %468 = vmatprep.subr.bf16.mxu0 0
        %469 = vmatpush1.bf16.msra.mxu0 0
        %470 = vmatprep.subr.bf16.mxu0 0
        %471 = vmatpush1.bf16.msra.mxu0 0
        %472 = vmatprep.subr.bf16.mxu0 0
        %473 = vmatpush1.bf16.msra.mxu0 0
        %474 = vmatprep.mubr.bf16.mxu0 0
        %475 = vmatmul.mubr.bf16.gmra.mrb[0].mxu0 %v415
        %v476 = vpop.f32.mrb[0].mxu0
        %v477 = vadd.f32 %v371, %v476
        %v478 = vpop.f32.mrb[0].mxu0
        %v479 = vpop.f32.mrb[0].mxu0
        %v480 = vadd.f32 %v371, %v479
        %v481 = vpop.f32.mrb[0].mxu0
        %482 = vmatprep.mubr.bf16.mxu0 0
        %483 = vmatmul.mubr.bf16.gmra.mrb[0].mxu0 %v418
        %v484 = vpop.f32.mrb[0].mxu0
        %v485 = vadd.f32 %v371, %v484
        %v486 = vpop.f32.mrb[0].mxu0
        %v487 = vpop.f32.mrb[0].mxu0
        %v488 = vadd.f32 %v371, %v487
        %v489 = vpop.f32.mrb[0].mxu0
        %490 = vmatprep.mubr.bf16.mxu0 0
        %491 = vmatmul.mubr.bf16.gmra.mrb[0].mxu0 %v421
        %v492 = vpop.f32.mrb[0].mxu0
        %v493 = vadd.f32 %v371, %v492
        %v494 = vpop.f32.mrb[0].mxu0
        %v495 = vpop.f32.mrb[0].mxu0
        %v496 = vadd.f32 %v371, %v495
        %v497 = vpop.f32.mrb[0].mxu0
        %498 = vmatprep.mubr.bf16.mxu0 0
        %499 = vmatmul.mubr.bf16.gmra.mrb[0].mxu0 %v424
        %v500 = vpop.f32.mrb[0].mxu0
        %v501 = vadd.f32 %v371, %v500
        %v502 = vpop.f32.mrb[0].mxu0
        %v503 = vpop.f32.mrb[0].mxu0
        %v504 = vadd.f32 %v371, %v503
        %v505 = vpop.f32.mrb[0].mxu0
        %506 = vmatprep.mubr.bf16.mxu0 0
        %507 = vmatmul.mubr.bf16.gmra.mrb[0].mxu0 %v427
        %v508 = vpop.f32.mrb[0].mxu0
        %v509 = vadd.f32 %v371, %v508
        %v510 = vpop.f32.mrb[0].mxu0
        %v511 = vpop.f32.mrb[0].mxu0
        %v512 = vadd.f32 %v371, %v511
        %v513 = vpop.f32.mrb[0].mxu0
        %514 = vmatprep.mubr.bf16.mxu0 0
        %515 = vmatmul.mubr.bf16.gmra.mrb[0].mxu0 %v430
        %v516 = vpop.f32.mrb[0].mxu0
        %v517 = vadd.f32 %v371, %v516
        %v518 = vpop.f32.mrb[0].mxu0
        %v519 = vpop.f32.mrb[0].mxu0
        %v520 = vadd.f32 %v371, %v519
        %v521 = vpop.f32.mrb[0].mxu0
        %522 = vmatprep.mubr.bf16.mxu0 0
        %523 = vmatmul.mubr.bf16.gmra.mrb[0].mxu0 %v433
        %v524 = vpop.f32.mrb[0].mxu0
        %v525 = vadd.f32 %v371, %v524
        %v526 = vpop.f32.mrb[0].mxu0
        %v527 = vpop.f32.mrb[0].mxu0
        %v528 = vadd.f32 %v371, %v527
        %v529 = vpop.f32.mrb[0].mxu0
        %530 = vmatprep.mubr.bf16.mxu0 0
        %531 = vmatmul.mubr.bf16.gmra.mrb[0].mxu0 %v436
        %v532 = vpop.f32.mrb[0].mxu0
        %v533 = vadd.f32 %v371, %v532
        %v534 = vpop.f32.mrb[0].mxu0
        %v535 = vpop.f32.mrb[0].mxu0
        %v536 = vadd.f32 %v371, %v535
        %v537 = vpop.f32.mrb[0].mxu0
        %538 = vdwg.mxu0
        %v539 = vmax.f32 %v477, 0.0
        %v540 = vmax.f32 %v480, 0.0
        %v541 = vmax.f32 %v485, 0.0
        %v542 = vmax.f32 %v488, 0.0
        %v543 = vmax.f32 %v493, 0.0
        %v544 = vmax.f32 %v496, 0.0
        %v545 = vmax.f32 %v501, 0.0
        %v546 = vmax.f32 %v504, 0.0
        %v547 = vmax.f32 %v509, 0.0
        %v548 = vmax.f32 %v512, 0.0
        %v549 = vmax.f32 %v517, 0.0
        %v550 = vmax.f32 %v520, 0.0
        %v551 = vmax.f32 %v525, 0.0
        %v552 = vmax.f32 %v528, 0.0
        %v553 = vmax.f32 %v533, 0.0
        %v554 = vmax.f32 %v536, 0.0
        %v555 = vpack.c.bf16 %v540, %v539
        %v556 = vpack.c.bf16 %v542, %v541
        %v557 = vpack.c.bf16 %v544, %v543
        %v558 = vpack.c.bf16 %v546, %v545
        %v559 = vpack.c.bf16 %v548, %v547
        %v560 = vpack.c.bf16 %v550, %v549
        %v561 = vpack.c.bf16 %v552, %v551
        %v562 = vpack.c.bf16 %v554, %v553
        %v563 = vld [vmem:[%s3] sm:$0xf]
        %v564 = vld [vmem:[%s3 + $0x4] sm:$0xf]
        %v565 = vld [vmem:[%s3 + $0x8] sm:$0xf]
        %v566 = vld [vmem:[%s3 + $0xc] sm:$0xf]
        %v567 = vld [vmem:[%s3 + $0x10] sm:$0xf]
        %v568 = vld [vmem:[%s3 + $0x14] sm:$0xf]
        %v569 = vld [vmem:[%s3 + $0x18] sm:$0xf]
        %v570 = vld [vmem:[%s3 + $0x1c] sm:$0xf]
        %v571 = vld [vmem:[#allocation5] sm:$0x1]
        %v573 = vlaneseq
        %v574 = vshrl.u32 %v573, 7
        %v575 = vsub.s32 0, %v574
        %v576 = vrot.slane %v571, %v575
        %v586 = vunpack.c.l.b16 %v563
        %v587 = vunpack.c.l.b16 %v564
        %v588 = vunpack.c.l.b16 %v565
        %v589 = vunpack.c.l.b16 %v566
        %v590 = vunpack.c.l.b16 %v567
        %v591 = vunpack.c.l.b16 %v568
        %v592 = vunpack.c.l.b16 %v569
        %v593 = vunpack.c.l.b16 %v570
        %v594 = vpack.c.b16 %v587, %v586
        %v595 = vpack.c.b16 %v589, %v588
        %v596 = vpack.c.b16 %v591, %v590
        %v597 = vpack.c.b16 %v593, %v592
        %vm602 = vcmask 523264
        %v604 = vsel %vm602, %v555, 0
        %v607 = vsel %vm602, %v556, 0
        %v610 = vsel %vm602, %v557, 0
        %v613 = vsel %vm602, %v558, 0
        %v616 = vsel %vm602, %v559, 0
        %v619 = vsel %vm602, %v560, 0
        %v622 = vsel %vm602, %v561, 0
        %v625 = vsel %vm602, %v562, 0
        %627 = vmatprep.subr.bf16.mxu0 0
        %628 = vmatpush1.bf16.msra.mxu0 %v594
        %629 = vmatprep.subr.bf16.mxu0 0
        %630 = vmatpush1.bf16.msra.mxu0 %v595
        %631 = vmatprep.subr.bf16.mxu0 0
        %632 = vmatpush1.bf16.msra.mxu0 %v596
        %633 = vmatprep.subr.bf16.mxu0 0
        %634 = vmatpush1.bf16.msra.mxu0 %v597
        %635 = vmatprep.subr.bf16.mxu0 0
        %636 = vmatpush1.bf16.msra.mxu0 0
        %637 = vmatprep.subr.bf16.mxu0 0
        %638 = vmatpush1.bf16.msra.mxu0 0
        %639 = vmatprep.subr.bf16.mxu0 0
        %640 = vmatpush1.bf16.msra.mxu0 0
        %641 = vmatprep.subr.bf16.mxu0 0
        %642 = vmatpush1.bf16.msra.mxu0 0
        %643 = vmatprep.subr.bf16.mxu0 0
        %644 = vmatpush1.bf16.msra.mxu0 0
        %645 = vmatprep.subr.bf16.mxu0 0
        %646 = vmatpush1.bf16.msra.mxu0 0
        %647 = vmatprep.subr.bf16.mxu0 0
        %648 = vmatpush1.bf16.msra.mxu0 0
        %649 = vmatprep.subr.bf16.mxu0 0
        %650 = vmatpush1.bf16.msra.mxu0 0
        %651 = vmatprep.subr.bf16.mxu0 0
        %652 = vmatpush1.bf16.msra.mxu0 0
        %653 = vmatprep.subr.bf16.mxu0 0
        %654 = vmatpush1.bf16.msra.mxu0 0
        %655 = vmatprep.subr.bf16.mxu0 0
        %656 = vmatpush1.bf16.msra.mxu0 0
        %657 = vmatprep.subr.bf16.mxu0 0
        %658 = vmatpush1.bf16.msra.mxu0 0
        %659 = vmatprep.mubr.bf16.mxu0 0
        %660 = vmatmul.mubr.bf16.gmra.mrb[0].mxu0 %v604
        %v661 = vpop.f32.mrb[0].mxu0
        %v662 = vadd.f32 %v576, %v661
        %v663 = vpop.f32.mrb[0].mxu0
        %v664 = vpop.f32.mrb[0].mxu0
        %v665 = vadd.f32 %v576, %v664
        %v666 = vpop.f32.mrb[0].mxu0
        %667 = vmatprep.mubr.bf16.mxu0 0
        %668 = vmatmul.mubr.bf16.gmra.mrb[0].mxu0 %v607
        %v669 = vpop.f32.mrb[0].mxu0
        %v670 = vadd.f32 %v576, %v669
        %v671 = vpop.f32.mrb[0].mxu0
        %v672 = vpop.f32.mrb[0].mxu0
        %v673 = vadd.f32 %v576, %v672
        %v674 = vpop.f32.mrb[0].mxu0
        %675 = vmatprep.mubr.bf16.mxu0 0
        %676 = vmatmul.mubr.bf16.gmra.mrb[0].mxu0 %v610
        %v677 = vpop.f32.mrb[0].mxu0
        %v678 = vadd.f32 %v576, %v677
        %v679 = vpop.f32.mrb[0].mxu0
        %v680 = vpop.f32.mrb[0].mxu0
        %v681 = vadd.f32 %v576, %v680
        %v682 = vpop.f32.mrb[0].mxu0
        %683 = vmatprep.mubr.bf16.mxu0 0
        %684 = vmatmul.mubr.bf16.gmra.mrb[0].mxu0 %v613
        %v685 = vpop.f32.mrb[0].mxu0
        %v686 = vadd.f32 %v576, %v685
        %v687 = vpop.f32.mrb[0].mxu0
        %v688 = vpop.f32.mrb[0].mxu0
        %v689 = vadd.f32 %v576, %v688
        %v690 = vpop.f32.mrb[0].mxu0
        %691 = vmatprep.mubr.bf16.mxu0 0
        %692 = vmatmul.mubr.bf16.gmra.mrb[0].mxu0 %v616
        %v693 = vpop.f32.mrb[0].mxu0
        %v694 = vadd.f32 %v576, %v693
        %v695 = vpop.f32.mrb[0].mxu0
        %v696 = vpop.f32.mrb[0].mxu0
        %v697 = vadd.f32 %v576, %v696
        %v698 = vpop.f32.mrb[0].mxu0
        %699 = vmatprep.mubr.bf16.mxu0 0
        %700 = vmatmul.mubr.bf16.gmra.mrb[0].mxu0 %v619
        %v701 = vpop.f32.mrb[0].mxu0
        %v702 = vadd.f32 %v576, %v701
        %v703 = vpop.f32.mrb[0].mxu0
        %v704 = vpop.f32.mrb[0].mxu0
        %v705 = vadd.f32 %v576, %v704
        %v706 = vpop.f32.mrb[0].mxu0
        %707 = vmatprep.mubr.bf16.mxu0 0
        %708 = vmatmul.mubr.bf16.gmra.mrb[0].mxu0 %v622
        %v709 = vpop.f32.mrb[0].mxu0
        %v710 = vadd.f32 %v576, %v709
        %v711 = vpop.f32.mrb[0].mxu0
        %v712 = vpop.f32.mrb[0].mxu0
        %v713 = vadd.f32 %v576, %v712
        %v714 = vpop.f32.mrb[0].mxu0
        %715 = vmatprep.mubr.bf16.mxu0 0
        %716 = vmatmul.mubr.bf16.gmra.mrb[0].mxu0 %v625
        %v717 = vpop.f32.mrb[0].mxu0
        %v718 = vadd.f32 %v576, %v717
        %v719 = vpop.f32.mrb[0].mxu0
        %v720 = vpop.f32.mrb[0].mxu0
        %v721 = vadd.f32 %v576, %v720
        %v722 = vpop.f32.mrb[0].mxu0
        %723 = vdwg.mxu0
        %v724 = vmax.f32 %v662, 0.0
        %v725 = vmax.f32 %v665, 0.0
        %v726 = vmax.f32 %v670, 0.0
        %v727 = vmax.f32 %v673, 0.0
        %v728 = vmax.f32 %v678, 0.0
        %v729 = vmax.f32 %v681, 0.0
        %v730 = vmax.f32 %v686, 0.0
        %v731 = vmax.f32 %v689, 0.0
        %v732 = vmax.f32 %v694, 0.0
        %v733 = vmax.f32 %v697, 0.0
        %v734 = vmax.f32 %v702, 0.0
        %v735 = vmax.f32 %v705, 0.0
        %v736 = vmax.f32 %v710, 0.0
        %v737 = vmax.f32 %v713, 0.0
        %v738 = vmax.f32 %v718, 0.0
        %v739 = vmax.f32 %v721, 0.0
        %v740 = vpack.c.bf16 %v725, %v724
        %v741 = vpack.c.bf16 %v727, %v726
        %v742 = vpack.c.bf16 %v729, %v728
        %v743 = vpack.c.bf16 %v731, %v730
        %v744 = vpack.c.bf16 %v733, %v732
        %v745 = vpack.c.bf16 %v735, %v734
        %v746 = vpack.c.bf16 %v737, %v736
        %v747 = vpack.c.bf16 %v739, %v738
        %v748 = vld [vmem:[%s5] sm:$0xff]
        %v749 = vld [vmem:[%s5 + $0x8] sm:$0xff]
        %v750 = vld [vmem:[%s5 + $0x10] sm:$0xff]
        %v751 = vld [vmem:[%s5 + $0x18] sm:$0xff]
        %v752 = vld [vmem:[%s5 + $0x20] sm:$0xff]
        %v753 = vld [vmem:[%s5 + $0x28] sm:$0xff]
        %v754 = vld [vmem:[%s5 + $0x30] sm:$0xff]
        %v755 = vld [vmem:[%s5 + $0x38] sm:$0xff]
        %v756 = vld [vmem:[%s5 + $0x40] sm:$0xff]
        %v757 = vld [vmem:[%s5 + $0x48] sm:$0xff]
        %v758 = vld [vmem:[%s5 + $0x50] sm:$0xff]
        %v759 = vld [vmem:[%s5 + $0x58] sm:$0xff]
        %v760 = vld [vmem:[%s5 + $0x60] sm:$0xff]
        %v761 = vld [vmem:[%s5 + $0x68] sm:$0xff]
        %v762 = vld [vmem:[%s5 + $0x70] sm:$0xff]
        %v763 = vld [vmem:[%s5 + $0x78] sm:$0xff]
        %v764 = vld [vmem:[%s5 + $0x80] sm:$0xff]
        %v765 = vld [vmem:[%s5 + $0x88] sm:$0xff]
        %v766 = vld [vmem:[%s5 + $0x90] sm:$0xff]
        %v767 = vld [vmem:[%s5 + $0x98] sm:$0xff]
        %v768 = vld [vmem:[%s5 + $0xa0] sm:$0xff]
        %v769 = vld [vmem:[%s5 + $0xa8] sm:$0xff]
        %v770 = vld [vmem:[%s5 + $0xb0] sm:$0xff]
        %v771 = vld [vmem:[%s5 + $0xb8] sm:$0xff]
        %v772 = vld [vmem:[%s5 + $0xc0] sm:$0xff]
        %v773 = vld [vmem:[%s5 + $0xc8] sm:$0xff]
        %v774 = vld [vmem:[%s5 + $0xd0] sm:$0xff]
        %v775 = vld [vmem:[%s5 + $0xd8] sm:$0xff]
        %v776 = vld [vmem:[%s5 + $0xe0] sm:$0xff]
        %v777 = vld [vmem:[%s5 + $0xe8] sm:$0xff]
        %v778 = vld [vmem:[%s5 + $0xf0] sm:$0xff]
        %v779 = vld [vmem:[%s5 + $0xf8] sm:$0xff]
        %v780 = vld [vmem:[%s5 + $0x100] sm:$0xff]
        %v781 = vld [vmem:[%s5 + $0x108] sm:$0xff]
        %v782 = vld [vmem:[%s5 + $0x110] sm:$0xff]
        %v783 = vld [vmem:[%s5 + $0x118] sm:$0xff]
        %v784 = vld [vmem:[%s5 + $0x120] sm:$0xff]
        %v785 = vld [vmem:[%s5 + $0x128] sm:$0xff]
        %v786 = vld [vmem:[%s5 + $0x130] sm:$0xff]
        %v787 = vld [vmem:[%s5 + $0x138] sm:$0xff]
        %v788 = vld [vmem:[%s5 + $0x140] sm:$0xff]
        %v789 = vld [vmem:[%s5 + $0x148] sm:$0xff]
        %v790 = vld [vmem:[%s5 + $0x150] sm:$0xff]
        %v791 = vld [vmem:[%s5 + $0x158] sm:$0xff]
        %v792 = vld [vmem:[%s5 + $0x160] sm:$0xff]
        %v793 = vld [vmem:[%s5 + $0x168] sm:$0xff]
        %v794 = vld [vmem:[%s5 + $0x170] sm:$0xff]
        %v795 = vld [vmem:[%s5 + $0x178] sm:$0xff]
        %v796 = vld [vmem:[%s5 + $0x180] sm:$0xff]
        %v797 = vld [vmem:[%s5 + $0x188] sm:$0xff]
        %v798 = vld [vmem:[%s5 + $0x190] sm:$0xff]
        %v799 = vld [vmem:[%s5 + $0x198] sm:$0xff]
        %v800 = vld [vmem:[%s5 + $0x1a0] sm:$0xff]
        %v801 = vld [vmem:[%s5 + $0x1a8] sm:$0xff]
        %v802 = vld [vmem:[%s5 + $0x1b0] sm:$0xff]
        %v803 = vld [vmem:[%s5 + $0x1b8] sm:$0xff]
        %v804 = vld [vmem:[%s5 + $0x1c0] sm:$0xff]
        %v805 = vld [vmem:[%s5 + $0x1c8] sm:$0xff]
        %v806 = vld [vmem:[%s5 + $0x1d0] sm:$0xff]
        %v807 = vld [vmem:[%s5 + $0x1d8] sm:$0xff]
        %v808 = vld [vmem:[%s5 + $0x1e0] sm:$0xff]
        %v809 = vld [vmem:[%s5 + $0x1e8] sm:$0xff]
        %v810 = vld [vmem:[%s5 + $0x1f0] sm:$0xff]
        %v811 = vld [vmem:[%s5 + $0x1f8] sm:$0xff]
        %v812 = vld [vmem:[#allocation7] sm:$0xff]
        %v814 = vlaneseq
        %v815 = vshrl.u32 %v814, 7
        %v816 = vsub.s32 0, %v815
        %v817 = vrot.slane %v812, %v816
        %v818 = vlaneseq
        %v819 = vshrl.u32 %v818, 7
        %v820 = vsub.s32 1, %v819
        %v821 = vrot.slane %v812, %v820
        %v822 = vlaneseq
        %v823 = vshrl.u32 %v822, 7
        %v824 = vsub.s32 2, %v823
        %v825 = vrot.slane %v812, %v824
        %v826 = vlaneseq
        %v827 = vshrl.u32 %v826, 7
        %v828 = vsub.s32 3, %v827
        %v829 = vrot.slane %v812, %v828
        %v830 = vlaneseq
        %v831 = vshrl.u32 %v830, 7
        %v832 = vsub.s32 4, %v831
        %v833 = vrot.slane %v812, %v832
        %v834 = vlaneseq
        %v835 = vshrl.u32 %v834, 7
        %v836 = vsub.s32 5, %v835
        %v837 = vrot.slane %v812, %v836
        %v838 = vlaneseq
        %v839 = vshrl.u32 %v838, 7
        %v840 = vsub.s32 6, %v839
        %v841 = vrot.slane %v812, %v840
        %v842 = vlaneseq
        %v843 = vshrl.u32 %v842, 7
        %v844 = vsub.s32 7, %v843
        %v845 = vrot.slane %v812, %v844
        %v918 = vunpack.c.l.b16 %v748
        %v919 = vunpack.c.h.b16 %v748
        %v920 = vunpack.c.l.b16 %v749
        %v921 = vunpack.c.h.b16 %v749
        %v922 = vunpack.c.l.b16 %v750
        %v923 = vunpack.c.h.b16 %v750
        %v924 = vunpack.c.l.b16 %v751
        %v925 = vunpack.c.h.b16 %v751
        %v926 = vunpack.c.l.b16 %v752
        %v927 = vunpack.c.h.b16 %v752
        %v928 = vunpack.c.l.b16 %v753
        %v929 = vunpack.c.h.b16 %v753
        %v930 = vunpack.c.l.b16 %v754
        %v931 = vunpack.c.h.b16 %v754
        %v932 = vunpack.c.l.b16 %v755
        %v933 = vunpack.c.h.b16 %v755
        %v934 = vunpack.c.l.b16 %v756
        %v935 = vunpack.c.h.b16 %v756
        %v936 = vunpack.c.l.b16 %v757
        %v937 = vunpack.c.h.b16 %v757
        %v938 = vunpack.c.l.b16 %v758
        %v939 = vunpack.c.h.b16 %v758
        %v940 = vunpack.c.l.b16 %v759
        %v941 = vunpack.c.h.b16 %v759
        %v942 = vunpack.c.l.b16 %v760
        %v943 = vunpack.c.h.b16 %v760
        %v944 = vunpack.c.l.b16 %v761
        %v945 = vunpack.c.h.b16 %v761
        %v946 = vunpack.c.l.b16 %v762
        %v947 = vunpack.c.h.b16 %v762
        %v948 = vunpack.c.l.b16 %v763
        %v949 = vunpack.c.h.b16 %v763
        %v950 = vunpack.c.l.b16 %v764
        %v951 = vunpack.c.h.b16 %v764
        %v952 = vunpack.c.l.b16 %v765
        %v953 = vunpack.c.h.b16 %v765
        %v954 = vunpack.c.l.b16 %v766
        %v955 = vunpack.c.h.b16 %v766
        %v956 = vunpack.c.l.b16 %v767
        %v957 = vunpack.c.h.b16 %v767
        %v958 = vunpack.c.l.b16 %v768
        %v959 = vunpack.c.h.b16 %v768
        %v960 = vunpack.c.l.b16 %v769
        %v961 = vunpack.c.h.b16 %v769
        %v962 = vunpack.c.l.b16 %v770
        %v963 = vunpack.c.h.b16 %v770
        %v964 = vunpack.c.l.b16 %v771
        %v965 = vunpack.c.h.b16 %v771
        %v966 = vunpack.c.l.b16 %v772
        %v967 = vunpack.c.h.b16 %v772
        %v968 = vunpack.c.l.b16 %v773
        %v969 = vunpack.c.h.b16 %v773
        %v970 = vunpack.c.l.b16 %v774
        %v971 = vunpack.c.h.b16 %v774
        %v972 = vunpack.c.l.b16 %v775
        %v973 = vunpack.c.h.b16 %v775
        %v974 = vunpack.c.l.b16 %v776
        %v975 = vunpack.c.h.b16 %v776
        %v976 = vunpack.c.l.b16 %v777
        %v977 = vunpack.c.h.b16 %v777
        %v978 = vunpack.c.l.b16 %v778
        %v979 = vunpack.c.h.b16 %v778
        %v980 = vunpack.c.l.b16 %v779
        %v981 = vunpack.c.h.b16 %v779
        %v982 = vunpack.c.l.b16 %v780
        %v983 = vunpack.c.h.b16 %v780
        %v984 = vunpack.c.l.b16 %v781
        %v985 = vunpack.c.h.b16 %v781
        %v986 = vunpack.c.l.b16 %v782
        %v987 = vunpack.c.h.b16 %v782
        %v988 = vunpack.c.l.b16 %v783
        %v989 = vunpack.c.h.b16 %v783
        %v990 = vunpack.c.l.b16 %v784
        %v991 = vunpack.c.h.b16 %v784
        %v992 = vunpack.c.l.b16 %v785
        %v993 = vunpack.c.h.b16 %v785
        %v994 = vunpack.c.l.b16 %v786
        %v995 = vunpack.c.h.b16 %v786
        %v996 = vunpack.c.l.b16 %v787
        %v997 = vunpack.c.h.b16 %v787
        %v998 = vunpack.c.l.b16 %v788
        %v999 = vunpack.c.h.b16 %v788
        %v1000 = vunpack.c.l.b16 %v789
        %v1001 = vunpack.c.h.b16 %v789
        %v1002 = vunpack.c.l.b16 %v790
        %v1003 = vunpack.c.h.b16 %v790
        %v1004 = vunpack.c.l.b16 %v791
        %v1005 = vunpack.c.h.b16 %v791
        %v1006 = vunpack.c.l.b16 %v792
        %v1007 = vunpack.c.h.b16 %v792
        %v1008 = vunpack.c.l.b16 %v793
        %v1009 = vunpack.c.h.b16 %v793
        %v1010 = vunpack.c.l.b16 %v794
        %v1011 = vunpack.c.h.b16 %v794
        %v1012 = vunpack.c.l.b16 %v795
        %v1013 = vunpack.c.h.b16 %v795
        %v1014 = vunpack.c.l.b16 %v796
        %v1015 = vunpack.c.h.b16 %v796
        %v1016 = vunpack.c.l.b16 %v797
        %v1017 = vunpack.c.h.b16 %v797
        %v1018 = vunpack.c.l.b16 %v798
        %v1019 = vunpack.c.h.b16 %v798
        %v1020 = vunpack.c.l.b16 %v799
        %v1021 = vunpack.c.h.b16 %v799
        %v1022 = vunpack.c.l.b16 %v800
        %v1023 = vunpack.c.h.b16 %v800
        %v1024 = vunpack.c.l.b16 %v801
        %v1025 = vunpack.c.h.b16 %v801
        %v1026 = vunpack.c.l.b16 %v802
        %v1027 = vunpack.c.h.b16 %v802
        %v1028 = vunpack.c.l.b16 %v803
        %v1029 = vunpack.c.h.b16 %v803
        %v1030 = vunpack.c.l.b16 %v804
        %v1031 = vunpack.c.h.b16 %v804
        %v1032 = vunpack.c.l.b16 %v805
        %v1033 = vunpack.c.h.b16 %v805
        %v1034 = vunpack.c.l.b16 %v806
        %v1035 = vunpack.c.h.b16 %v806
        %v1036 = vunpack.c.l.b16 %v807
        %v1037 = vunpack.c.h.b16 %v807
        %v1038 = vunpack.c.l.b16 %v808
        %v1039 = vunpack.c.h.b16 %v808
        %v1040 = vunpack.c.l.b16 %v809
        %v1041 = vunpack.c.h.b16 %v809
        %v1042 = vunpack.c.l.b16 %v810
        %v1043 = vunpack.c.h.b16 %v810
        %v1044 = vunpack.c.l.b16 %v811
        %v1045 = vunpack.c.h.b16 %v811
        %v1046 = vpack.c.b16 %v926, %v918
        %v1047 = vpack.c.b16 %v927, %v919
        %v1048 = vpack.c.b16 %v928, %v920
        %v1049 = vpack.c.b16 %v929, %v921
        %v1050 = vpack.c.b16 %v930, %v922
        %v1051 = vpack.c.b16 %v931, %v923
        %v1052 = vpack.c.b16 %v932, %v924
        %v1053 = vpack.c.b16 %v933, %v925
        %v1054 = vpack.c.b16 %v942, %v934
        %v1055 = vpack.c.b16 %v943, %v935
        %v1056 = vpack.c.b16 %v944, %v936
        %v1057 = vpack.c.b16 %v945, %v937
        %v1058 = vpack.c.b16 %v946, %v938
        %v1059 = vpack.c.b16 %v947, %v939
        %v1060 = vpack.c.b16 %v948, %v940
        %v1061 = vpack.c.b16 %v949, %v941
        %v1062 = vpack.c.b16 %v958, %v950
        %v1063 = vpack.c.b16 %v959, %v951
        %v1064 = vpack.c.b16 %v960, %v952
        %v1065 = vpack.c.b16 %v961, %v953
        %v1066 = vpack.c.b16 %v962, %v954
        %v1067 = vpack.c.b16 %v963, %v955
        %v1068 = vpack.c.b16 %v964, %v956
        %v1069 = vpack.c.b16 %v965, %v957
        %v1070 = vpack.c.b16 %v974, %v966
        %v1071 = vpack.c.b16 %v975, %v967
        %v1072 = vpack.c.b16 %v976, %v968
        %v1073 = vpack.c.b16 %v977, %v969
        %v1074 = vpack.c.b16 %v978, %v970
        %v1075 = vpack.c.b16 %v979, %v971
        %v1076 = vpack.c.b16 %v980, %v972
        %v1077 = vpack.c.b16 %v981, %v973
        %v1078 = vpack.c.b16 %v990, %v982
        %v1079 = vpack.c.b16 %v991, %v983
        %v1080 = vpack.c.b16 %v992, %v984
        %v1081 = vpack.c.b16 %v993, %v985
        %v1082 = vpack.c.b16 %v994, %v986
        %v1083 = vpack.c.b16 %v995, %v987
        %v1084 = vpack.c.b16 %v996, %v988
        %v1085 = vpack.c.b16 %v997, %v989
        %v1086 = vpack.c.b16 %v1006, %v998
        %v1087 = vpack.c.b16 %v1007, %v999
        %v1088 = vpack.c.b16 %v1008, %v1000
        %v1089 = vpack.c.b16 %v1009, %v1001
        %v1090 = vpack.c.b16 %v1010, %v1002
        %v1091 = vpack.c.b16 %v1011, %v1003
        %v1092 = vpack.c.b16 %v1012, %v1004
        %v1093 = vpack.c.b16 %v1013, %v1005
        %v1094 = vpack.c.b16 %v1022, %v1014
        %v1095 = vpack.c.b16 %v1023, %v1015
        %v1096 = vpack.c.b16 %v1024, %v1016
        %v1097 = vpack.c.b16 %v1025, %v1017
        %v1098 = vpack.c.b16 %v1026, %v1018
        %v1099 = vpack.c.b16 %v1027, %v1019
        %v1100 = vpack.c.b16 %v1028, %v1020
        %v1101 = vpack.c.b16 %v1029, %v1021
        %v1102 = vpack.c.b16 %v1038, %v1030
        %v1103 = vpack.c.b16 %v1039, %v1031
        %v1104 = vpack.c.b16 %v1040, %v1032
        %v1105 = vpack.c.b16 %v1041, %v1033
        %v1106 = vpack.c.b16 %v1042, %v1034
        %v1107 = vpack.c.b16 %v1043, %v1035
        %v1108 = vpack.c.b16 %v1044, %v1036
        %v1109 = vpack.c.b16 %v1045, %v1037
        %1174 = vmatprep.subr.bf16.mxu0 %v1047
        %1175 = vmatpush1.bf16.msra.mxu0 %v1046
        %1176 = vmatprep.subr.bf16.mxu0 %v1055
        %1177 = vmatpush1.bf16.msra.mxu0 %v1054
        %1178 = vmatprep.subr.bf16.mxu0 %v1063
        %1179 = vmatpush1.bf16.msra.mxu0 %v1062
        %1180 = vmatprep.subr.bf16.mxu0 %v1071
        %1181 = vmatpush1.bf16.msra.mxu0 %v1070
        %1182 = vmatprep.subr.bf16.mxu0 %v1079
        %1183 = vmatpush1.bf16.msra.mxu0 %v1078
        %1184 = vmatprep.subr.bf16.mxu0 %v1087
        %1185 = vmatpush1.bf16.msra.mxu0 %v1086
        %1186 = vmatprep.subr.bf16.mxu0 %v1095
        %1187 = vmatpush1.bf16.msra.mxu0 %v1094
        %1188 = vmatprep.subr.bf16.mxu0 %v1103
        %1189 = vmatpush1.bf16.msra.mxu0 %v1102
        %1190 = vmatprep.subr.bf16.mxu0 0
        %1191 = vmatpush1.bf16.msra.mxu0 0
        %1192 = vmatprep.subr.bf16.mxu0 0
        %1193 = vmatpush1.bf16.msra.mxu0 0
        %1194 = vmatprep.subr.bf16.mxu0 0
        %1195 = vmatpush1.bf16.msra.mxu0 0
        %1196 = vmatprep.subr.bf16.mxu0 0
        %1197 = vmatpush1.bf16.msra.mxu0 0
        %1198 = vmatprep.subr.bf16.mxu0 0
        %1199 = vmatpush1.bf16.msra.mxu0 0
        %1200 = vmatprep.subr.bf16.mxu0 0
        %1201 = vmatpush1.bf16.msra.mxu0 0
        %1202 = vmatprep.subr.bf16.mxu0 0
        %1203 = vmatpush1.bf16.msra.mxu0 0
        %1204 = vmatprep.subr.bf16.mxu0 0
        %1205 = vmatpush1.bf16.msra.mxu0 0
        %1206 = vmatprep.mubr.bf16.mxu0 0
        %1207 = vmatmul.mubr.bf16.gmra.mrb[0].mxu0 %v740
        %v1208 = vpop.f32.mrb[0].mxu0
        %v1209 = vadd.f32 %v817, %v1208
        %v1210 = vpop.f32.mrb[0].mxu0
        %v1211 = vadd.f32 %v821, %v1210
        %v1212 = vpop.f32.mrb[0].mxu0
        %v1213 = vadd.f32 %v817, %v1212
        %v1214 = vpop.f32.mrb[0].mxu0
        %v1215 = vadd.f32 %v821, %v1214
        %1216 = vmatprep.mubr.bf16.mxu0 0
        %1217 = vmatmul.mubr.bf16.gmra.mrb[0].mxu0 %v741
        %v1218 = vpop.f32.mrb[0].mxu0
        %v1219 = vadd.f32 %v817, %v1218
        %v1220 = vpop.f32.mrb[0].mxu0
        %v1221 = vadd.f32 %v821, %v1220
        %v1222 = vpop.f32.mrb[0].mxu0
        %v1223 = vadd.f32 %v817, %v1222
        %v1224 = vpop.f32.mrb[0].mxu0
        %v1225 = vadd.f32 %v821, %v1224
        %1226 = vmatprep.mubr.bf16.mxu0 0
        %1227 = vmatmul.mubr.bf16.gmra.mrb[0].mxu0 %v742
        %v1228 = vpop.f32.mrb[0].mxu0
        %v1229 = vadd.f32 %v817, %v1228
        %v1230 = vpop.f32.mrb[0].mxu0
        %v1231 = vadd.f32 %v821, %v1230
        %v1232 = vpop.f32.mrb[0].mxu0
        %v1233 = vadd.f32 %v817, %v1232
        %v1234 = vpop.f32.mrb[0].mxu0
        %v1235 = vadd.f32 %v821, %v1234
        %1236 = vmatprep.mubr.bf16.mxu0 0
        %1237 = vmatmul.mubr.bf16.gmra.mrb[0].mxu0 %v743
        %v1238 = vpop.f32.mrb[0].mxu0
        %v1239 = vadd.f32 %v817, %v1238
        %v1240 = vpop.f32.mrb[0].mxu0
        %v1241 = vadd.f32 %v821, %v1240
        %v1242 = vpop.f32.mrb[0].mxu0
        %v1243 = vadd.f32 %v817, %v1242
        %v1244 = vpop.f32.mrb[0].mxu0
        %v1245 = vadd.f32 %v821, %v1244
        %1246 = vmatprep.mubr.bf16.mxu0 0
        %1247 = vmatmul.mubr.bf16.gmra.mrb[0].mxu0 %v744
        %v1248 = vpop.f32.mrb[0].mxu0
        %v1249 = vadd.f32 %v817, %v1248
        %v1250 = vpop.f32.mrb[0].mxu0
        %v1251 = vadd.f32 %v821, %v1250
        %v1252 = vpop.f32.mrb[0].mxu0
        %v1253 = vadd.f32 %v817, %v1252
        %v1254 = vpop.f32.mrb[0].mxu0
        %v1255 = vadd.f32 %v821, %v1254
        %1256 = vmatprep.mubr.bf16.mxu0 0
        %1257 = vmatmul.mubr.bf16.gmra.mrb[0].mxu0 %v745
        %v1258 = vpop.f32.mrb[0].mxu0
        %v1259 = vadd.f32 %v817, %v1258
        %v1260 = vpop.f32.mrb[0].mxu0
        %v1261 = vadd.f32 %v821, %v1260
        %v1262 = vpop.f32.mrb[0].mxu0
        %v1263 = vadd.f32 %v817, %v1262
        %v1264 = vpop.f32.mrb[0].mxu0
        %v1265 = vadd.f32 %v821, %v1264
        %1266 = vmatprep.mubr.bf16.mxu0 0
        %1267 = vmatmul.mubr.bf16.gmra.mrb[0].mxu0 %v746
        %v1268 = vpop.f32.mrb[0].mxu0
        %v1269 = vadd.f32 %v817, %v1268
        %v1270 = vpop.f32.mrb[0].mxu0
        %v1271 = vadd.f32 %v821, %v1270
        %v1272 = vpop.f32.mrb[0].mxu0
        %v1273 = vadd.f32 %v817, %v1272
        %v1274 = vpop.f32.mrb[0].mxu0
        %v1275 = vadd.f32 %v821, %v1274
        %1276 = vmatprep.mubr.bf16.mxu0 0
        %1277 = vmatmul.mubr.bf16.gmra.mrb[0].mxu0 %v747
        %v1278 = vpop.f32.mrb[0].mxu0
        %v1279 = vadd.f32 %v817, %v1278
        %v1280 = vpop.f32.mrb[0].mxu0
        %v1281 = vadd.f32 %v821, %v1280
        %v1282 = vpop.f32.mrb[0].mxu0
        %v1283 = vadd.f32 %v817, %v1282
        %v1284 = vpop.f32.mrb[0].mxu0
        %v1285 = vadd.f32 %v821, %v1284
        %1286 = vdwg.mxu0
        %1287 = vmatprep.subr.bf16.mxu0 %v1049
        %1288 = vmatpush1.bf16.msra.mxu0 %v1048
        %1289 = vmatprep.subr.bf16.mxu0 %v1057
        %1290 = vmatpush1.bf16.msra.mxu0 %v1056
        %1291 = vmatprep.subr.bf16.mxu0 %v1065
        %1292 = vmatpush1.bf16.msra.mxu0 %v1064
        %1293 = vmatprep.subr.bf16.mxu0 %v1073
        %1294 = vmatpush1.bf16.msra.mxu0 %v1072
        %1295 = vmatprep.subr.bf16.mxu0 %v1081
        %1296 = vmatpush1.bf16.msra.mxu0 %v1080
        %1297 = vmatprep.subr.bf16.mxu0 %v1089
        %1298 = vmatpush1.bf16.msra.mxu0 %v1088
        %1299 = vmatprep.subr.bf16.mxu0 %v1097
        %1300 = vmatpush1.bf16.msra.mxu0 %v1096
        %1301 = vmatprep.subr.bf16.mxu0 %v1105
        %1302 = vmatpush1.bf16.msra.mxu0 %v1104
        %1303 = vmatprep.subr.bf16.mxu0 0
        %1304 = vmatpush1.bf16.msra.mxu0 0
        %1305 = vmatprep.subr.bf16.mxu0 0
        %1306 = vmatpush1.bf16.msra.mxu0 0
        %1307 = vmatprep.subr.bf16.mxu0 0
        %1308 = vmatpush1.bf16.msra.mxu0 0
        %1309 = vmatprep.subr.bf16.mxu0 0
        %1310 = vmatpush1.bf16.msra.mxu0 0
        %1311 = vmatprep.subr.bf16.mxu0 0
        %1312 = vmatpush1.bf16.msra.mxu0 0
        %1313 = vmatprep.subr.bf16.mxu0 0
        %1314 = vmatpush1.bf16.msra.mxu0 0
        %1315 = vmatprep.subr.bf16.mxu0 0
        %1316 = vmatpush1.bf16.msra.mxu0 0
        %1317 = vmatprep.subr.bf16.mxu0 0
        %1318 = vmatpush1.bf16.msra.mxu0 0
        %1319 = vmatprep.mubr.bf16.mxu0 0
        %1320 = vmatmul.mubr.bf16.gmra.mrb[0].mxu0 %v740
        %v1321 = vpop.f32.mrb[0].mxu0
        %v1322 = vadd.f32 %v825, %v1321
        %v1323 = vpop.f32.mrb[0].mxu0
        %v1324 = vadd.f32 %v829, %v1323
        %v1325 = vpop.f32.mrb[0].mxu0
        %v1326 = vadd.f32 %v825, %v1325
        %v1327 = vpop.f32.mrb[0].mxu0
        %v1328 = vadd.f32 %v829, %v1327
        %1329 = vmatprep.mubr.bf16.mxu0 0
        %1330 = vmatmul.mubr.bf16.gmra.mrb[0].mxu0 %v741
        %v1331 = vpop.f32.mrb[0].mxu0
        %v1332 = vadd.f32 %v825, %v1331
        %v1333 = vpop.f32.mrb[0].mxu0
        %v1334 = vadd.f32 %v829, %v1333
        %v1335 = vpop.f32.mrb[0].mxu0
        %v1336 = vadd.f32 %v825, %v1335
        %v1337 = vpop.f32.mrb[0].mxu0
        %v1338 = vadd.f32 %v829, %v1337
        %1339 = vmatprep.mubr.bf16.mxu0 0
        %1340 = vmatmul.mubr.bf16.gmra.mrb[0].mxu0 %v742
        %v1341 = vpop.f32.mrb[0].mxu0
        %v1342 = vadd.f32 %v825, %v1341
        %v1343 = vpop.f32.mrb[0].mxu0
        %v1344 = vadd.f32 %v829, %v1343
        %v1345 = vpop.f32.mrb[0].mxu0
        %v1346 = vadd.f32 %v825, %v1345
        %v1347 = vpop.f32.mrb[0].mxu0
        %v1348 = vadd.f32 %v829, %v1347
        %1349 = vmatprep.mubr.bf16.mxu0 0
        %1350 = vmatmul.mubr.bf16.gmra.mrb[0].mxu0 %v743
        %v1351 = vpop.f32.mrb[0].mxu0
        %v1352 = vadd.f32 %v825, %v1351
        %v1353 = vpop.f32.mrb[0].mxu0
        %v1354 = vadd.f32 %v829, %v1353
        %v1355 = vpop.f32.mrb[0].mxu0
        %v1356 = vadd.f32 %v825, %v1355
        %v1357 = vpop.f32.mrb[0].mxu0
        %v1358 = vadd.f32 %v829, %v1357
        %1359 = vmatprep.mubr.bf16.mxu0 0
        %1360 = vmatmul.mubr.bf16.gmra.mrb[0].mxu0 %v744
        %v1361 = vpop.f32.mrb[0].mxu0
        %v1362 = vadd.f32 %v825, %v1361
        %v1363 = vpop.f32.mrb[0].mxu0
        %v1364 = vadd.f32 %v829, %v1363
        %v1365 = vpop.f32.mrb[0].mxu0
        %v1366 = vadd.f32 %v825, %v1365
        %v1367 = vpop.f32.mrb[0].mxu0
        %v1368 = vadd.f32 %v829, %v1367
        %1369 = vmatprep.mubr.bf16.mxu0 0
        %1370 = vmatmul.mubr.bf16.gmra.mrb[0].mxu0 %v745
        %v1371 = vpop.f32.mrb[0].mxu0
        %v1372 = vadd.f32 %v825, %v1371
        %v1373 = vpop.f32.mrb[0].mxu0
        %v1374 = vadd.f32 %v829, %v1373
        %v1375 = vpop.f32.mrb[0].mxu0
        %v1376 = vadd.f32 %v825, %v1375
        %v1377 = vpop.f32.mrb[0].mxu0
        %v1378 = vadd.f32 %v829, %v1377
        %1379 = vmatprep.mubr.bf16.mxu0 0
        %1380 = vmatmul.mubr.bf16.gmra.mrb[0].mxu0 %v746
        %v1381 = vpop.f32.mrb[0].mxu0
        %v1382 = vadd.f32 %v825, %v1381
        %v1383 = vpop.f32.mrb[0].mxu0
        %v1384 = vadd.f32 %v829, %v1383
        %v1385 = vpop.f32.mrb[0].mxu0
        %v1386 = vadd.f32 %v825, %v1385
        %v1387 = vpop.f32.mrb[0].mxu0
        %v1388 = vadd.f32 %v829, %v1387
        %1389 = vmatprep.mubr.bf16.mxu0 0
        %1390 = vmatmul.mubr.bf16.gmra.mrb[0].mxu0 %v747
        %v1391 = vpop.f32.mrb[0].mxu0
        %v1392 = vadd.f32 %v825, %v1391
        %v1393 = vpop.f32.mrb[0].mxu0
        %v1394 = vadd.f32 %v829, %v1393
        %v1395 = vpop.f32.mrb[0].mxu0
        %v1396 = vadd.f32 %v825, %v1395
        %v1397 = vpop.f32.mrb[0].mxu0
        %v1398 = vadd.f32 %v829, %v1397
        %1399 = vdwg.mxu0
        %1400 = vmatprep.subr.bf16.mxu0 %v1051
        %1401 = vmatpush1.bf16.msra.mxu0 %v1050
        %1402 = vmatprep.subr.bf16.mxu0 %v1059
        %1403 = vmatpush1.bf16.msra.mxu0 %v1058
        %1404 = vmatprep.subr.bf16.mxu0 %v1067
        %1405 = vmatpush1.bf16.msra.mxu0 %v1066
        %1406 = vmatprep.subr.bf16.mxu0 %v1075
        %1407 = vmatpush1.bf16.msra.mxu0 %v1074
        %1408 = vmatprep.subr.bf16.mxu0 %v1083
        %1409 = vmatpush1.bf16.msra.mxu0 %v1082
        %1410 = vmatprep.subr.bf16.mxu0 %v1091
        %1411 = vmatpush1.bf16.msra.mxu0 %v1090
        %1412 = vmatprep.subr.bf16.mxu0 %v1099
        %1413 = vmatpush1.bf16.msra.mxu0 %v1098
        %1414 = vmatprep.subr.bf16.mxu0 %v1107
        %1415 = vmatpush1.bf16.msra.mxu0 %v1106
        %1416 = vmatprep.subr.bf16.mxu0 0
        %1417 = vmatpush1.bf16.msra.mxu0 0
        %1418 = vmatprep.subr.bf16.mxu0 0
        %1419 = vmatpush1.bf16.msra.mxu0 0
        %1420 = vmatprep.subr.bf16.mxu0 0
        %1421 = vmatpush1.bf16.msra.mxu0 0
        %1422 = vmatprep.subr.bf16.mxu0 0
        %1423 = vmatpush1.bf16.msra.mxu0 0
        %1424 = vmatprep.subr.bf16.mxu0 0
        %1425 = vmatpush1.bf16.msra.mxu0 0
        %1426 = vmatprep.subr.bf16.mxu0 0
        %1427 = vmatpush1.bf16.msra.mxu0 0
        %1428 = vmatprep.subr.bf16.mxu0 0
        %1429 = vmatpush1.bf16.msra.mxu0 0
        %1430 = vmatprep.subr.bf16.mxu0 0
        %1431 = vmatpush1.bf16.msra.mxu0 0
        %1432 = vmatprep.mubr.bf16.mxu0 0
        %1433 = vmatmul.mubr.bf16.gmra.mrb[0].mxu0 %v740
        %v1434 = vpop.f32.mrb[0].mxu0
        %v1435 = vadd.f32 %v833, %v1434
        %v1436 = vpop.f32.mrb[0].mxu0
        %v1437 = vadd.f32 %v837, %v1436
        %v1438 = vpop.f32.mrb[0].mxu0
        %v1439 = vadd.f32 %v833, %v1438
        %v1440 = vpop.f32.mrb[0].mxu0
        %v1441 = vadd.f32 %v837, %v1440
        %1442 = vmatprep.mubr.bf16.mxu0 0
        %1443 = vmatmul.mubr.bf16.gmra.mrb[0].mxu0 %v741
        %v1444 = vpop.f32.mrb[0].mxu0
        %v1445 = vadd.f32 %v833, %v1444
        %v1446 = vpop.f32.mrb[0].mxu0
        %v1447 = vadd.f32 %v837, %v1446
        %v1448 = vpop.f32.mrb[0].mxu0
        %v1449 = vadd.f32 %v833, %v1448
        %v1450 = vpop.f32.mrb[0].mxu0
        %v1451 = vadd.f32 %v837, %v1450
        %1452 = vmatprep.mubr.bf16.mxu0 0
        %1453 = vmatmul.mubr.bf16.gmra.mrb[0].mxu0 %v742
        %v1454 = vpop.f32.mrb[0].mxu0
        %v1455 = vadd.f32 %v833, %v1454
        %v1456 = vpop.f32.mrb[0].mxu0
        %v1457 = vadd.f32 %v837, %v1456
        %v1458 = vpop.f32.mrb[0].mxu0
        %v1459 = vadd.f32 %v833, %v1458
        %v1460 = vpop.f32.mrb[0].mxu0
        %v1461 = vadd.f32 %v837, %v1460
        %1462 = vmatprep.mubr.bf16.mxu0 0
        %1463 = vmatmul.mubr.bf16.gmra.mrb[0].mxu0 %v743
        %v1464 = vpop.f32.mrb[0].mxu0
        %v1465 = vadd.f32 %v833, %v1464
        %v1466 = vpop.f32.mrb[0].mxu0
        %v1467 = vadd.f32 %v837, %v1466
        %v1468 = vpop.f32.mrb[0].mxu0
        %v1469 = vadd.f32 %v833, %v1468
        %v1470 = vpop.f32.mrb[0].mxu0
        %v1471 = vadd.f32 %v837, %v1470
        %1472 = vmatprep.mubr.bf16.mxu0 0
        %1473 = vmatmul.mubr.bf16.gmra.mrb[0].mxu0 %v744
        %v1474 = vpop.f32.mrb[0].mxu0
        %v1475 = vadd.f32 %v833, %v1474
        %v1476 = vpop.f32.mrb[0].mxu0
        %v1477 = vadd.f32 %v837, %v1476
        %v1478 = vpop.f32.mrb[0].mxu0
        %v1479 = vadd.f32 %v833, %v1478
        %v1480 = vpop.f32.mrb[0].mxu0
        %v1481 = vadd.f32 %v837, %v1480
        %1482 = vmatprep.mubr.bf16.mxu0 0
        %1483 = vmatmul.mubr.bf16.gmra.mrb[0].mxu0 %v745
        %v1484 = vpop.f32.mrb[0].mxu0
        %v1485 = vadd.f32 %v833, %v1484
        %v1486 = vpop.f32.mrb[0].mxu0
        %v1487 = vadd.f32 %v837, %v1486
        %v1488 = vpop.f32.mrb[0].mxu0
        %v1489 = vadd.f32 %v833, %v1488
        %v1490 = vpop.f32.mrb[0].mxu0
        %v1491 = vadd.f32 %v837, %v1490
        %1492 = vmatprep.mubr.bf16.mxu0 0
        %1493 = vmatmul.mubr.bf16.gmra.mrb[0].mxu0 %v746
        %v1494 = vpop.f32.mrb[0].mxu0
        %v1495 = vadd.f32 %v833, %v1494
        %v1496 = vpop.f32.mrb[0].mxu0
        %v1497 = vadd.f32 %v837, %v1496
        %v1498 = vpop.f32.mrb[0].mxu0
        %v1499 = vadd.f32 %v833, %v1498
        %v1500 = vpop.f32.mrb[0].mxu0
        %v1501 = vadd.f32 %v837, %v1500
        %1502 = vmatprep.mubr.bf16.mxu0 0
        %1503 = vmatmul.mubr.bf16.gmra.mrb[0].mxu0 %v747
        %v1504 = vpop.f32.mrb[0].mxu0
        %v1505 = vadd.f32 %v833, %v1504
        %v1506 = vpop.f32.mrb[0].mxu0
        %v1507 = vadd.f32 %v837, %v1506
        %v1508 = vpop.f32.mrb[0].mxu0
        %v1509 = vadd.f32 %v833, %v1508
        %v1510 = vpop.f32.mrb[0].mxu0
        %v1511 = vadd.f32 %v837, %v1510
        %1512 = vdwg.mxu0
        %1513 = vmatprep.subr.bf16.mxu0 %v1053
        %1514 = vmatpush1.bf16.msra.mxu0 %v1052
        %1515 = vmatprep.subr.bf16.mxu0 %v1061
        %1516 = vmatpush1.bf16.msra.mxu0 %v1060
        %1517 = vmatprep.subr.bf16.mxu0 %v1069
        %1518 = vmatpush1.bf16.msra.mxu0 %v1068
        %1519 = vmatprep.subr.bf16.mxu0 %v1077
        %1520 = vmatpush1.bf16.msra.mxu0 %v1076
        %1521 = vmatprep.subr.bf16.mxu0 %v1085
        %1522 = vmatpush1.bf16.msra.mxu0 %v1084
        %1523 = vmatprep.subr.bf16.mxu0 %v1093
        %1524 = vmatpush1.bf16.msra.mxu0 %v1092
        %1525 = vmatprep.subr.bf16.mxu0 %v1101
        %1526 = vmatpush1.bf16.msra.mxu0 %v1100
        %1527 = vmatprep.subr.bf16.mxu0 %v1109
        %1528 = vmatpush1.bf16.msra.mxu0 %v1108
        %1529 = vmatprep.subr.bf16.mxu0 0
        %1530 = vmatpush1.bf16.msra.mxu0 0
        %1531 = vmatprep.subr.bf16.mxu0 0
        %1532 = vmatpush1.bf16.msra.mxu0 0
        %1533 = vmatprep.subr.bf16.mxu0 0
        %1534 = vmatpush1.bf16.msra.mxu0 0
        %1535 = vmatprep.subr.bf16.mxu0 0
        %1536 = vmatpush1.bf16.msra.mxu0 0
        %1537 = vmatprep.subr.bf16.mxu0 0
        %1538 = vmatpush1.bf16.msra.mxu0 0
        %1539 = vmatprep.subr.bf16.mxu0 0
        %1540 = vmatpush1.bf16.msra.mxu0 0
        %1541 = vmatprep.subr.bf16.mxu0 0
        %1542 = vmatpush1.bf16.msra.mxu0 0
        %1543 = vmatprep.subr.bf16.mxu0 0
        %1544 = vmatpush1.bf16.msra.mxu0 0
        %1545 = vmatprep.mubr.bf16.mxu0 0
        %1546 = vmatmul.mubr.bf16.gmra.mrb[0].mxu0 %v740
        %v1547 = vpop.f32.mrb[0].mxu0
        %v1548 = vadd.f32 %v841, %v1547
        %v1549 = vpop.f32.mrb[0].mxu0
        %v1550 = vadd.f32 %v845, %v1549
        %v1551 = vpop.f32.mrb[0].mxu0
        %v1552 = vadd.f32 %v841, %v1551
        %v1553 = vpop.f32.mrb[0].mxu0
        %v1554 = vadd.f32 %v845, %v1553
        %1555 = vmatprep.mubr.bf16.mxu0 0
        %1556 = vmatmul.mubr.bf16.gmra.mrb[0].mxu0 %v741
        %v1557 = vpop.f32.mrb[0].mxu0
        %v1558 = vadd.f32 %v841, %v1557
        %v1559 = vpop.f32.mrb[0].mxu0
        %v1560 = vadd.f32 %v845, %v1559
        %v1561 = vpop.f32.mrb[0].mxu0
        %v1562 = vadd.f32 %v841, %v1561
        %v1563 = vpop.f32.mrb[0].mxu0
        %v1564 = vadd.f32 %v845, %v1563
        %1565 = vmatprep.mubr.bf16.mxu0 0
        %1566 = vmatmul.mubr.bf16.gmra.mrb[0].mxu0 %v742
        %v1567 = vpop.f32.mrb[0].mxu0
        %v1568 = vadd.f32 %v841, %v1567
        %v1569 = vpop.f32.mrb[0].mxu0
        %v1570 = vadd.f32 %v845, %v1569
        %v1571 = vpop.f32.mrb[0].mxu0
        %v1572 = vadd.f32 %v841, %v1571
        %v1573 = vpop.f32.mrb[0].mxu0
        %v1574 = vadd.f32 %v845, %v1573
        %1575 = vmatprep.mubr.bf16.mxu0 0
        %1576 = vmatmul.mubr.bf16.gmra.mrb[0].mxu0 %v743
        %v1577 = vpop.f32.mrb[0].mxu0
        %v1578 = vadd.f32 %v841, %v1577
        %v1579 = vpop.f32.mrb[0].mxu0
        %v1580 = vadd.f32 %v845, %v1579
        %v1581 = vpop.f32.mrb[0].mxu0
        %v1582 = vadd.f32 %v841, %v1581
        %v1583 = vpop.f32.mrb[0].mxu0
        %v1584 = vadd.f32 %v845, %v1583
        %1585 = vmatprep.mubr.bf16.mxu0 0
        %1586 = vmatmul.mubr.bf16.gmra.mrb[0].mxu0 %v744
        %v1587 = vpop.f32.mrb[0].mxu0
        %v1588 = vadd.f32 %v841, %v1587
        %v1589 = vpop.f32.mrb[0].mxu0
        %v1590 = vadd.f32 %v845, %v1589
        %v1591 = vpop.f32.mrb[0].mxu0
        %v1592 = vadd.f32 %v841, %v1591
        %v1593 = vpop.f32.mrb[0].mxu0
        %v1594 = vadd.f32 %v845, %v1593
        %1595 = vmatprep.mubr.bf16.mxu0 0
        %1596 = vmatmul.mubr.bf16.gmra.mrb[0].mxu0 %v745
        %v1597 = vpop.f32.mrb[0].mxu0
        %v1598 = vadd.f32 %v841, %v1597
        %v1599 = vpop.f32.mrb[0].mxu0
        %v1600 = vadd.f32 %v845, %v1599
        %v1601 = vpop.f32.mrb[0].mxu0
        %v1602 = vadd.f32 %v841, %v1601
        %v1603 = vpop.f32.mrb[0].mxu0
        %v1604 = vadd.f32 %v845, %v1603
        %1605 = vmatprep.mubr.bf16.mxu0 0
        %1606 = vmatmul.mubr.bf16.gmra.mrb[0].mxu0 %v746
        %v1607 = vpop.f32.mrb[0].mxu0
        %v1608 = vadd.f32 %v841, %v1607
        %v1609 = vpop.f32.mrb[0].mxu0
        %v1610 = vadd.f32 %v845, %v1609
        %v1611 = vpop.f32.mrb[0].mxu0
        %v1612 = vadd.f32 %v841, %v1611
        %v1613 = vpop.f32.mrb[0].mxu0
        %v1614 = vadd.f32 %v845, %v1613
        %1615 = vmatprep.mubr.bf16.mxu0 0
        %1616 = vmatmul.mubr.bf16.gmra.mrb[0].mxu0 %v747
        %v1617 = vpop.f32.mrb[0].mxu0
        %v1618 = vadd.f32 %v841, %v1617
        %v1619 = vpop.f32.mrb[0].mxu0
        %v1620 = vadd.f32 %v845, %v1619
        %v1621 = vpop.f32.mrb[0].mxu0
        %v1622 = vadd.f32 %v841, %v1621
        %v1623 = vpop.f32.mrb[0].mxu0
        %v1624 = vadd.f32 %v845, %v1623
        %1625 = vdwg.mxu0
        %v1626 = vmax.f32 %v1209, 0.0
        %v1627 = vmax.f32 %v1211, 0.0
        %v1628 = vmax.f32 %v1322, 0.0
        %v1629 = vmax.f32 %v1324, 0.0
        %v1630 = vmax.f32 %v1435, 0.0
        %v1631 = vmax.f32 %v1437, 0.0
        %v1632 = vmax.f32 %v1548, 0.0
        %v1633 = vmax.f32 %v1550, 0.0
        %v1634 = vmax.f32 %v1213, 0.0
        %v1635 = vmax.f32 %v1215, 0.0
        %v1636 = vmax.f32 %v1326, 0.0
        %v1637 = vmax.f32 %v1328, 0.0
        %v1638 = vmax.f32 %v1439, 0.0
        %v1639 = vmax.f32 %v1441, 0.0
        %v1640 = vmax.f32 %v1552, 0.0
        %v1641 = vmax.f32 %v1554, 0.0
        %v1642 = vmax.f32 %v1219, 0.0
        %v1643 = vmax.f32 %v1221, 0.0
        %v1644 = vmax.f32 %v1332, 0.0
        %v1645 = vmax.f32 %v1334, 0.0
        %v1646 = vmax.f32 %v1445, 0.0
        %v1647 = vmax.f32 %v1447, 0.0
        %v1648 = vmax.f32 %v1558, 0.0
        %v1649 = vmax.f32 %v1560, 0.0
        %v1650 = vmax.f32 %v1223, 0.0
        %v1651 = vmax.f32 %v1225, 0.0
        %v1652 = vmax.f32 %v1336, 0.0
        %v1653 = vmax.f32 %v1338, 0.0
        %v1654 = vmax.f32 %v1449, 0.0
        %v1655 = vmax.f32 %v1451, 0.0
        %v1656 = vmax.f32 %v1562, 0.0
        %v1657 = vmax.f32 %v1564, 0.0
        %v1658 = vmax.f32 %v1229, 0.0
        %v1659 = vmax.f32 %v1231, 0.0
        %v1660 = vmax.f32 %v1342, 0.0
        %v1661 = vmax.f32 %v1344, 0.0
        %v1662 = vmax.f32 %v1455, 0.0
        %v1663 = vmax.f32 %v1457, 0.0
        %v1664 = vmax.f32 %v1568, 0.0
        %v1665 = vmax.f32 %v1570, 0.0
        %v1666 = vmax.f32 %v1233, 0.0
        %v1667 = vmax.f32 %v1235, 0.0
        %v1668 = vmax.f32 %v1346, 0.0
        %v1669 = vmax.f32 %v1348, 0.0
        %v1670 = vmax.f32 %v1459, 0.0
        %v1671 = vmax.f32 %v1461, 0.0
        %v1672 = vmax.f32 %v1572, 0.0
        %v1673 = vmax.f32 %v1574, 0.0
        %v1674 = vmax.f32 %v1239, 0.0
        %v1675 = vmax.f32 %v1241, 0.0
        %v1676 = vmax.f32 %v1352, 0.0
        %v1677 = vmax.f32 %v1354, 0.0
        %v1678 = vmax.f32 %v1465, 0.0
        %v1679 = vmax.f32 %v1467, 0.0
        %v1680 = vmax.f32 %v1578, 0.0
        %v1681 = vmax.f32 %v1580, 0.0
        %v1682 = vmax.f32 %v1243, 0.0
        %v1683 = vmax.f32 %v1245, 0.0
        %v1684 = vmax.f32 %v1356, 0.0
        %v1685 = vmax.f32 %v1358, 0.0
        %v1686 = vmax.f32 %v1469, 0.0
        %v1687 = vmax.f32 %v1471, 0.0
        %v1688 = vmax.f32 %v1582, 0.0
        %v1689 = vmax.f32 %v1584, 0.0
        %v1690 = vmax.f32 %v1249, 0.0
        %v1691 = vmax.f32 %v1251, 0.0
        %v1692 = vmax.f32 %v1362, 0.0
        %v1693 = vmax.f32 %v1364, 0.0
        %v1694 = vmax.f32 %v1475, 0.0
        %v1695 = vmax.f32 %v1477, 0.0
        %v1696 = vmax.f32 %v1588, 0.0
        %v1697 = vmax.f32 %v1590, 0.0
        %v1698 = vmax.f32 %v1253, 0.0
        %v1699 = vmax.f32 %v1255, 0.0
        %v1700 = vmax.f32 %v1366, 0.0
        %v1701 = vmax.f32 %v1368, 0.0
        %v1702 = vmax.f32 %v1479, 0.0
        %v1703 = vmax.f32 %v1481, 0.0
        %v1704 = vmax.f32 %v1592, 0.0
        %v1705 = vmax.f32 %v1594, 0.0
        %v1706 = vmax.f32 %v1259, 0.0
        %v1707 = vmax.f32 %v1261, 0.0
        %v1708 = vmax.f32 %v1372, 0.0
        %v1709 = vmax.f32 %v1374, 0.0
        %v1710 = vmax.f32 %v1485, 0.0
        %v1711 = vmax.f32 %v1487, 0.0
        %v1712 = vmax.f32 %v1598, 0.0
        %v1713 = vmax.f32 %v1600, 0.0
        %v1714 = vmax.f32 %v1263, 0.0
        %v1715 = vmax.f32 %v1265, 0.0
        %v1716 = vmax.f32 %v1376, 0.0
        %v1717 = vmax.f32 %v1378, 0.0
        %v1718 = vmax.f32 %v1489, 0.0
        %v1719 = vmax.f32 %v1491, 0.0
        %v1720 = vmax.f32 %v1602, 0.0
        %v1721 = vmax.f32 %v1604, 0.0
        %v1722 = vmax.f32 %v1269, 0.0
        %v1723 = vmax.f32 %v1271, 0.0
        %v1724 = vmax.f32 %v1382, 0.0
        %v1725 = vmax.f32 %v1384, 0.0
        %v1726 = vmax.f32 %v1495, 0.0
        %v1727 = vmax.f32 %v1497, 0.0
        %v1728 = vmax.f32 %v1608, 0.0
        %v1729 = vmax.f32 %v1610, 0.0
        %v1730 = vmax.f32 %v1273, 0.0
        %v1731 = vmax.f32 %v1275, 0.0
        %v1732 = vmax.f32 %v1386, 0.0
        %v1733 = vmax.f32 %v1388, 0.0
        %v1734 = vmax.f32 %v1499, 0.0
        %v1735 = vmax.f32 %v1501, 0.0
        %v1736 = vmax.f32 %v1612, 0.0
        %v1737 = vmax.f32 %v1614, 0.0
        %v1738 = vmax.f32 %v1279, 0.0
        %v1739 = vmax.f32 %v1281, 0.0
        %v1740 = vmax.f32 %v1392, 0.0
        %v1741 = vmax.f32 %v1394, 0.0
        %v1742 = vmax.f32 %v1505, 0.0
        %v1743 = vmax.f32 %v1507, 0.0
        %v1744 = vmax.f32 %v1618, 0.0
        %v1745 = vmax.f32 %v1620, 0.0
        %v1746 = vmax.f32 %v1283, 0.0
        %v1747 = vmax.f32 %v1285, 0.0
        %v1748 = vmax.f32 %v1396, 0.0
        %v1749 = vmax.f32 %v1398, 0.0
        %v1750 = vmax.f32 %v1509, 0.0
        %v1751 = vmax.f32 %v1511, 0.0
        %v1752 = vmax.f32 %v1622, 0.0
        %v1753 = vmax.f32 %v1624, 0.0
        %v1754 = vld [vmem:[#allocation2] sm:$0xff]
        %v1755 = vmax.f32 %v1626, %v1634
        %v1756 = vmax.f32 %v1755, %v1642
        %v1757 = vmax.f32 %v1756, %v1650
        %v1758 = vmax.f32 %v1757, %v1658
        %v1759 = vmax.f32 %v1758, %v1666
        %v1760 = vmax.f32 %v1759, %v1674
        %v1761 = vmax.f32 %v1760, %v1682
        %v1762 = vmax.f32 %v1761, %v1690
        %v1763 = vmax.f32 %v1762, %v1698
        %v1764 = vmax.f32 %v1763, %v1706
        %v1765 = vmax.f32 %v1764, %v1714
        %v1766 = vmax.f32 %v1765, %v1722
        %v1767 = vmax.f32 %v1766, %v1730
        %v1768 = vmax.f32 %v1767, %v1738
        %v1769 = vmax.f32 %v1768, %v1746
        %v1770 = vrot.slane %v1769, 4
        %v1771 = vmax.f32 %v1769, %v1770
        %v1772 = vrot.slane %v1771, 2
        %v1773 = vmax.f32 %v1771, %v1772
        %v1774 = vrot.slane %v1773, 1
        %v1775 = vmax.f32 %v1773, %v1774
        %v1776 = vmax.f32 %v1627, %v1635
        %v1777 = vmax.f32 %v1776, %v1643
        %v1778 = vmax.f32 %v1777, %v1651
        %v1779 = vmax.f32 %v1778, %v1659
        %v1780 = vmax.f32 %v1779, %v1667
        %v1781 = vmax.f32 %v1780, %v1675
        %v1782 = vmax.f32 %v1781, %v1683
        %v1783 = vmax.f32 %v1782, %v1691
        %v1784 = vmax.f32 %v1783, %v1699
        %v1785 = vmax.f32 %v1784, %v1707
        %v1786 = vmax.f32 %v1785, %v1715
        %v1787 = vmax.f32 %v1786, %v1723
        %v1788 = vmax.f32 %v1787, %v1731
        %v1789 = vmax.f32 %v1788, %v1739
        %v1790 = vmax.f32 %v1789, %v1747
        %v1791 = vrot.slane %v1790, 4
        %v1792 = vmax.f32 %v1790, %v1791
        %v1793 = vrot.slane %v1792, 2
        %v1794 = vmax.f32 %v1792, %v1793
        %v1795 = vrot.slane %v1794, 1
        %v1796 = vmax.f32 %v1794, %v1795
        %v1797 = vmax.f32 %v1628, %v1636
        %v1798 = vmax.f32 %v1797, %v1644
        %v1799 = vmax.f32 %v1798, %v1652
        %v1800 = vmax.f32 %v1799, %v1660
        %v1801 = vmax.f32 %v1800, %v1668
        %v1802 = vmax.f32 %v1801, %v1676
        %v1803 = vmax.f32 %v1802, %v1684
        %v1804 = vmax.f32 %v1803, %v1692
        %v1805 = vmax.f32 %v1804, %v1700
        %v1806 = vmax.f32 %v1805, %v1708
        %v1807 = vmax.f32 %v1806, %v1716
        %v1808 = vmax.f32 %v1807, %v1724
        %v1809 = vmax.f32 %v1808, %v1732
        %v1810 = vmax.f32 %v1809, %v1740
        %v1811 = vmax.f32 %v1810, %v1748
        %v1812 = vrot.slane %v1811, 4
        %v1813 = vmax.f32 %v1811, %v1812
        %v1814 = vrot.slane %v1813, 2
        %v1815 = vmax.f32 %v1813, %v1814
        %v1816 = vrot.slane %v1815, 1
        %v1817 = vmax.f32 %v1815, %v1816
        %v1818 = vmax.f32 %v1629, %v1637
        %v1819 = vmax.f32 %v1818, %v1645
        %v1820 = vmax.f32 %v1819, %v1653
        %v1821 = vmax.f32 %v1820, %v1661
        %v1822 = vmax.f32 %v1821, %v1669
        %v1823 = vmax.f32 %v1822, %v1677
        %v1824 = vmax.f32 %v1823, %v1685
        %v1825 = vmax.f32 %v1824, %v1693
        %v1826 = vmax.f32 %v1825, %v1701
        %v1827 = vmax.f32 %v1826, %v1709
        %v1828 = vmax.f32 %v1827, %v1717
        %v1829 = vmax.f32 %v1828, %v1725
        %v1830 = vmax.f32 %v1829, %v1733
        %v1831 = vmax.f32 %v1830, %v1741
        %v1832 = vmax.f32 %v1831, %v1749
        %v1833 = vrot.slane %v1832, 4
        %v1834 = vmax.f32 %v1832, %v1833
        %v1835 = vrot.slane %v1834, 2
        %v1836 = vmax.f32 %v1834, %v1835
        %v1837 = vrot.slane %v1836, 1
        %v1838 = vmax.f32 %v1836, %v1837
        %v1839 = vmax.f32 %v1630, %v1638
        %v1840 = vmax.f32 %v1839, %v1646
        %v1841 = vmax.f32 %v1840, %v1654
        %v1842 = vmax.f32 %v1841, %v1662
        %v1843 = vmax.f32 %v1842, %v1670
        %v1844 = vmax.f32 %v1843, %v1678
        %v1845 = vmax.f32 %v1844, %v1686
        %v1846 = vmax.f32 %v1845, %v1694
        %v1847 = vmax.f32 %v1846, %v1702
        %v1848 = vmax.f32 %v1847, %v1710
        %v1849 = vmax.f32 %v1848, %v1718
        %v1850 = vmax.f32 %v1849, %v1726
        %v1851 = vmax.f32 %v1850, %v1734
        %v1852 = vmax.f32 %v1851, %v1742
        %v1853 = vmax.f32 %v1852, %v1750
        %v1854 = vrot.slane %v1853, 4
        %v1855 = vmax.f32 %v1853, %v1854
        %v1856 = vrot.slane %v1855, 2
        %v1857 = vmax.f32 %v1855, %v1856
        %v1858 = vrot.slane %v1857, 1
        %v1859 = vmax.f32 %v1857, %v1858
        %v1860 = vmax.f32 %v1631, %v1639
        %v1861 = vmax.f32 %v1860, %v1647
        %v1862 = vmax.f32 %v1861, %v1655
        %v1863 = vmax.f32 %v1862, %v1663
        %v1864 = vmax.f32 %v1863, %v1671
        %v1865 = vmax.f32 %v1864, %v1679
        %v1866 = vmax.f32 %v1865, %v1687
        %v1867 = vmax.f32 %v1866, %v1695
        %v1868 = vmax.f32 %v1867, %v1703
        %v1869 = vmax.f32 %v1868, %v1711
        %v1870 = vmax.f32 %v1869, %v1719
        %v1871 = vmax.f32 %v1870, %v1727
        %v1872 = vmax.f32 %v1871, %v1735
        %v1873 = vmax.f32 %v1872, %v1743
        %v1874 = vmax.f32 %v1873, %v1751
        %v1875 = vrot.slane %v1874, 4
        %v1876 = vmax.f32 %v1874, %v1875
        %v1877 = vrot.slane %v1876, 2
        %v1878 = vmax.f32 %v1876, %v1877
        %v1879 = vrot.slane %v1878, 1
        %v1880 = vmax.f32 %v1878, %v1879
        %v1881 = vmax.f32 %v1632, %v1640
        %v1882 = vmax.f32 %v1881, %v1648
        %v1883 = vmax.f32 %v1882, %v1656
        %v1884 = vmax.f32 %v1883, %v1664
        %v1885 = vmax.f32 %v1884, %v1672
        %v1886 = vmax.f32 %v1885, %v1680
        %v1887 = vmax.f32 %v1886, %v1688
        %v1888 = vmax.f32 %v1887, %v1696
        %v1889 = vmax.f32 %v1888, %v1704
        %v1890 = vmax.f32 %v1889, %v1712
        %v1891 = vmax.f32 %v1890, %v1720
        %v1892 = vmax.f32 %v1891, %v1728
        %v1893 = vmax.f32 %v1892, %v1736
        %v1894 = vmax.f32 %v1893, %v1744
        %v1895 = vmax.f32 %v1894, %v1752
        %v1896 = vrot.slane %v1895, 4
        %v1897 = vmax.f32 %v1895, %v1896
        %v1898 = vrot.slane %v1897, 2
        %v1899 = vmax.f32 %v1897, %v1898
        %v1900 = vrot.slane %v1899, 1
        %v1901 = vmax.f32 %v1899, %v1900
        %v1902 = vmax.f32 %v1633, %v1641
        %v1903 = vmax.f32 %v1902, %v1649
        %v1904 = vmax.f32 %v1903, %v1657
        %v1905 = vmax.f32 %v1904, %v1665
        %v1906 = vmax.f32 %v1905, %v1673
        %v1907 = vmax.f32 %v1906, %v1681
        %v1908 = vmax.f32 %v1907, %v1689
        %v1909 = vmax.f32 %v1908, %v1697
        %v1910 = vmax.f32 %v1909, %v1705
        %v1911 = vmax.f32 %v1910, %v1713
        %v1912 = vmax.f32 %v1911, %v1721
        %v1913 = vmax.f32 %v1912, %v1729
        %v1914 = vmax.f32 %v1913, %v1737
        %v1915 = vmax.f32 %v1914, %v1745
        %v1916 = vmax.f32 %v1915, %v1753
        %v1917 = vrot.slane %v1916, 4
        %v1918 = vmax.f32 %v1916, %v1917
        %v1919 = vrot.slane %v1918, 2
        %v1920 = vmax.f32 %v1918, %v1919
        %v1921 = vrot.slane %v1920, 1
        %v1922 = vmax.f32 %v1920, %v1921
        %v1931 = vcombine.low %v1775, %v1796
        %v1932 = vcombine.low %v1817, %v1838
        %v1933 = vcombine.low %v1859, %v1880
        %v1934 = vcombine.low %v1901, %v1922
        %v1936 = vunpack.c.l.s4 1966171168
        %v1937 = vunpack.c.0.s8 %v1936
        %v1938 = vlaneseq
        %v1939 = vshrl.u32 %v1938, 7
        %v1940 = vsub.s32 %v1937, %v1939
        %v1941 = vrot.slane %v1931, %v1940
        %v1943 = vunpack.c.l.s4 1966171168
        %v1944 = vunpack.c.0.s8 %v1943
        %v1945 = vlaneseq
        %v1946 = vshrl.u32 %v1945, 7
        %v1947 = vsub.s32 %v1944, %v1946
        %v1948 = vrot.slane %v1932, %v1947
        %v1950 = vunpack.c.l.s4 1966171168
        %v1951 = vunpack.c.0.s8 %v1950
        %v1952 = vlaneseq
        %v1953 = vshrl.u32 %v1952, 7
        %v1954 = vsub.s32 %v1951, %v1953
        %v1955 = vrot.slane %v1933, %v1954
        %v1957 = vunpack.c.l.s4 1966171168
        %v1958 = vunpack.c.0.s8 %v1957
        %v1959 = vlaneseq
        %v1960 = vshrl.u32 %v1959, 7
        %v1961 = vsub.s32 %v1958, %v1960
        %v1962 = vrot.slane %v1934, %v1961
        %v1963 = vcombine.low %v1941, %v1948
        %v1964 = vcombine.low %v1955, %v1962
        %v1966 = vunpack.c.l.s4 1966171168
        %v1967 = vunpack.c.0.s8 %v1966
        %v1968 = vlaneseq
        %v1969 = vshrl.u32 %v1968, 7
        %v1970 = vsub.s32 %v1967, %v1969
        %v1971 = vrot.slane %v1963, %v1970
        %v1973 = vunpack.c.l.s4 1966171168
        %v1974 = vunpack.c.0.s8 %v1973
        %v1975 = vlaneseq
        %v1976 = vshrl.u32 %v1975, 7
        %v1977 = vsub.s32 %v1974, %v1976
        %v1978 = vrot.slane %v1964, %v1977
        %v1979 = vcombine.low %v1971, %v1978
        %v1981 = vmax.f32 %v1754, %v1979
        %1982 = vst [vmem:[#allocation2] sm:$0xff] %v1981
        // Predicated region
        $region65: #{pointnet_reg_forward_pallas.4} parent=47 // pred_check
          %p1983 = pneg %p344
        $region66: #{pointnet_reg_forward_pallas.4} parent=47 // pred_check_branch
          %1985 = sbr.rel (%p1983) target = $region68
        $region67: #{pointnet_reg_forward_pallas.4} parent=47 // pred_region
          %v1986 = vld [vmem:[#allocation2] sm:$0xff]
          %1987 = vst [vmem:[%s342] sm:$0xff] %v1986
        $region68: #{pointnet_reg_forward_pallas.4} parent=47 // pred_fallthru
          _
        %p1988 = scmp.lt.s32.totalorder %s24, 1
        %s1989 = scalar_select %p1988, %s24, 1
        %s1990 = smul.addr %s1989, 8
        %s1991 = scalar_lea.vmem %s7, %s1990
        // Predicated region
        $region69: #{pointnet_reg_forward_pallas.4} parent=47 // pred_check
          %p1992 = pneg %p204
        $region70: #{pointnet_reg_forward_pallas.4} parent=47 // pred_check_branch
          %1994 = sbr.rel (%p1992) target = $region72
        $region71: #{pointnet_reg_forward_pallas.4} parent=47 // pred_region
          _
        $region72: #{pointnet_reg_forward_pallas.4} parent=47 // pred_fallthru
          _
      $region48: #{pointnet_reg_forward_pallas.4} parent=5 // pred_fallthru
        _
      %p1995 = scmp.le.s32.totalorder 2, %s15
      // Predicated region
      $region73: #{pointnet_reg_forward_pallas.4} parent=5 // pred_check
        %p1996 = pneg %p1995
      $region74: #{pointnet_reg_forward_pallas.4} parent=5 // pred_check_branch
        %1998 = sbr.rel (%p1996) target = $region76
      $region75: #{pointnet_reg_forward_pallas.4} parent=5 // pred_region
        %s1999 = ssub.s32 %s15, 2
        // Predicated region
        $region77: #{pointnet_reg_forward_pallas.4} parent=75 // pred_check
          %p2000 = pneg %p210
        $region78: #{pointnet_reg_forward_pallas.4} parent=75 // pred_check_branch
          %2002 = sbr.rel (%p2000) target = $region80
        $region79: #{pointnet_reg_forward_pallas.4} parent=75 // pred_region
          %p2003 = scmp.lt.s32.totalorder %s26, 1
          %s2004 = scalar_select %p2003, %s26, 1
          %s2005 = smul.addr %s2004, 8
          %s2006 = scalar_lea.vmem %s7, %s2005
        $region80: #{pointnet_reg_forward_pallas.4} parent=75 // pred_fallthru
          _
      $region76: #{pointnet_reg_forward_pallas.4} parent=5 // pred_fallthru
        _
    $region6: #{pointnet_reg_forward_pallas.4} parent=1 // loop_footer
      %s19 = sadd.s32 1, %s15
    $region7: #{pointnet_reg_forward_pallas.4} parent=1 // loop_footer_branch
      %14 = sbr.rel target = $region3
    $region8: #{pointnet_reg_forward_pallas.4} parent=1 // loop_exit
      _
    %2007 = vsyncpa [#allocation4], 1
    %s2008 = scalar_lea.sflag [#allocation4], 1
    %2009 = vsyncpa %s2008, 1
    %2010 = vsyncpa [#allocation6], 1

// kernel: pointnet_reg_forward_pallas.6
$region0: #{pointnet_reg_forward_pallas.6}
  #allocation0 [shape = 'u32[]', space=smem, size = 0x4, offset = 0x4, fixed_abs, tag = 'smem constant byte address 0x4 - core index']
  #allocation1 [shape = 'u32[144,128]{1,0:T(1,128)}', space=vmem, size = 0x12000, scoped, tag = 'internal scratch']
  #allocation2 [shape = 'f32[1,1024]{1,0:T(1,128)}', space=vmem, size = 0x1000, scoped, tag = 'scratch operand']
  %s0 = inlined_call_operand.vmem [shape: bf16[2,128,6], index: 0, kind: input, shape index: {}]
  %s1 = inlined_call_operand.vmem [shape: bf16[2,6,64], index: 1, kind: input, shape index: {}]
  %s2 = inlined_call_operand.vmem [shape: f32[1,64], index: 2, kind: input, shape index: {}]
  %s3 = inlined_call_operand.vmem [shape: bf16[2,64,128], index: 3, kind: input, shape index: {}]
  %s4 = inlined_call_operand.vmem [shape: f32[1,128], index: 4, kind: input, shape index: {}]
  %s5 = inlined_call_operand.vmem [shape: bf16[128,1024], index: 5, kind: input, shape index: {}]
  %s6 = inlined_call_operand.vmem [shape: f32[1,1024], index: 6, kind: input, shape index: {}]
  %s7 = inlined_call_operand.vmem [shape: f32[2,1,1024], index: 7, kind: output, shape index: {}]
  %s8 = sld [smem:[#allocation0]]
  $region69: #{pointnet_reg_forward_pallas.6} parent=0
    _
  %s10 = ssub.s32 1, %s8
  %s11 = scalar_select 0, %s10, %s8
  loop: start=0, step=1, limit=4
  $region2: #{pointnet_reg_forward_pallas.6} parent=0 // loop_pre_header
    _
  $region3: #{pointnet_reg_forward_pallas.6} parent=0 // loop_header
    %s13 = sphi 0, %s17
    %p14 = scmp.ge.s32.totalorder %s13, 4
    %s20 = sphi 0, %s32
    %s21 = sphi 0, %s28
    %s22 = sphi 0, %s20
    %s23 = sphi 0, %s21
    %s24 = sphi 0, %s22
    %s25 = sphi 0, %s23
    %s37 = sphi 0, %s39
    %s40 = sphi 0, %s37
    %s41 = sphi 0, %s40
    %s57 = sphi 0, %s41
    %s63 = sphi 0, %s65
    %s66 = sphi 0, %s63
    %s67 = sphi 0, %s66
    %s83 = sphi 0, %s67
    %s87 = sphi 0, %s87
    %s89 = sphi 0, %s87
    %s90 = sphi 0, %s89
    %s104 = sphi 0, %s90
    %s110 = sphi 0, %s112
    %s113 = sphi 0, %s110
    %s114 = sphi 0, %s113
    %s130 = sphi 0, %s114
    %s134 = sphi 0, %s134
    %s136 = sphi 0, %s134
    %s137 = sphi 0, %s136
    %s151 = sphi 0, %s137
    %s155 = sphi 0, %s155
    %s157 = sphi 0, %s155
    %s158 = sphi 0, %s157
    %s172 = sphi 0, %s158
    %s176 = sphi 0, %s176
    %s178 = sphi 0, %s176
    %s179 = sphi 0, %s178
    %s193 = sphi 0, %s179
    %s199 = sphi 0, %s201
    %s202 = sphi 0, %s199
    %s203 = sphi 0, %s202
    %s219 = sphi 0, %s203
  $region4: #{pointnet_reg_forward_pallas.6} parent=0 // loop_header_branch
    %16 = sbr.rel (%p14) target = $region8
  $region5: #{pointnet_reg_forward_pallas.6} parent=0 // loop_body
    %s18 = ssub.s32 %s13, 1
    %s19 = ssub.s32 %s13, 2
    %s26 = sadd.s32 1, %s21
    %p27 = scmp.ge.s32.totalorder %s26, 1
    %s28 = scalar_select %p27, 0, %s26
    %s29 = sadd.s32 1, %s20
    %s30 = scalar_select %p27, %s29, %s20
    %p31 = scmp.ge.s32.totalorder %s30, 2
    %s32 = scalar_select %p31, 0, %s30
    %s33 = ssub.s32 %s20, %s32
    %s34 = ssub.s32 %s21, %s28
    %s35 = sor.u32 %s33, %s34
    %p36 = scmp.eq.s32.totalorder %s35, 0
    %s38 = sadd.s32 %s37, 1
    %s39 = scalar_select %p36, %s37, %s38
    %p42 = pneg %p36
    %p43 = scmp.eq.s32.totalorder %s13, 1
    %p44 = por %p42, %p43
    %p45 = scmp.ne.s32.totalorder %s37, %s40
    %p46 = scmp.eq.s32.totalorder %s13, 0
    %p47 = por %p45, %p46
    %p48 = scmp.ne.s32.totalorder %s37, %s40
    %p49 = scmp.eq.s32.totalorder %s18, 1
    %p50 = por %p48, %p49
    %p51 = scmp.ne.s32.totalorder %s40, %s41
    %p52 = scmp.eq.s32.totalorder %s18, 0
    %p53 = por %p51, %p52
    %p54 = scmp.ne.s32.totalorder %s40, %s41
    %p55 = scmp.eq.s32.totalorder %s19, 1
    %p56 = por %p54, %p55
    %p58 = scmp.ne.s32.totalorder %s41, %s57
    %p59 = scmp.eq.s32.totalorder %s19, 0
    %p60 = por %p58, %p59
    %s61 = ssub.s32 %s20, %s32
    %p62 = scmp.eq.s32.totalorder %s61, 0
    %s64 = sadd.s32 %s63, 1
    %s65 = scalar_select %p62, %s63, %s64
    %p68 = pneg %p62
    %p69 = scmp.eq.s32.totalorder %s13, 1
    %p70 = por %p68, %p69
    %p71 = scmp.ne.s32.totalorder %s63, %s66
    %p72 = scmp.eq.s32.totalorder %s13, 0
    %p73 = por %p71, %p72
    %p74 = scmp.ne.s32.totalorder %s63, %s66
    %p75 = scmp.eq.s32.totalorder %s18, 1
    %p76 = por %p74, %p75
    %p77 = scmp.ne.s32.totalorder %s66, %s67
    %p78 = scmp.eq.s32.totalorder %s18, 0
    %p79 = por %p77, %p78
    %p80 = scmp.ne.s32.totalorder %s66, %s67
    %p81 = scmp.eq.s32.totalorder %s19, 1
    %p82 = por %p80, %p81
    %p84 = scmp.ne.s32.totalorder %s67, %s83
    %p85 = scmp.eq.s32.totalorder %s19, 0
    %p86 = por %p84, %p85
    %s88 = sadd.s32 %s87, 1
    %p91 = scmp.eq.s32.totalorder %s13, 1
    %p92 = scmp.ne.s32.totalorder %s87, %s89
    %p93 = scmp.eq.s32.totalorder %s13, 0
    %p94 = por %p92, %p93
    %p95 = scmp.ne.s32.totalorder %s87, %s89
    %p96 = scmp.eq.s32.totalorder %s18, 1
    %p97 = por %p95, %p96
    %p98 = scmp.ne.s32.totalorder %s89, %s90
    %p99 = scmp.eq.s32.totalorder %s18, 0
    %p100 = por %p98, %p99
    %p101 = scmp.ne.s32.totalorder %s89, %s90
    %p102 = scmp.eq.s32.totalorder %s19, 1
    %p103 = por %p101, %p102
    %p105 = scmp.ne.s32.totalorder %s90, %s104
    %p106 = scmp.eq.s32.totalorder %s19, 0
    %p107 = por %p105, %p106
    %s108 = ssub.s32 %s20, %s32
    %p109 = scmp.eq.s32.totalorder %s108, 0
    %s111 = sadd.s32 %s110, 1
    %s112 = scalar_select %p109, %s110, %s111
    %p115 = pneg %p109
    %p116 = scmp.eq.s32.totalorder %s13, 1
    %p117 = por %p115, %p116
    %p118 = scmp.ne.s32.totalorder %s110, %s113
    %p119 = scmp.eq.s32.totalorder %s13, 0
    %p120 = por %p118, %p119
    %p121 = scmp.ne.s32.totalorder %s110, %s113
    %p122 = scmp.eq.s32.totalorder %s18, 1
    %p123 = por %p121, %p122
    %p124 = scmp.ne.s32.totalorder %s113, %s114
    %p125 = scmp.eq.s32.totalorder %s18, 0
    %p126 = por %p124, %p125
    %p127 = scmp.ne.s32.totalorder %s113, %s114
    %p128 = scmp.eq.s32.totalorder %s19, 1
    %p129 = por %p127, %p128
    %p131 = scmp.ne.s32.totalorder %s114, %s130
    %p132 = scmp.eq.s32.totalorder %s19, 0
    %p133 = por %p131, %p132
    %s135 = sadd.s32 %s134, 1
    %p138 = scmp.eq.s32.totalorder %s13, 1
    %p139 = scmp.ne.s32.totalorder %s134, %s136
    %p140 = scmp.eq.s32.totalorder %s13, 0
    %p141 = por %p139, %p140
    %p142 = scmp.ne.s32.totalorder %s134, %s136
    %p143 = scmp.eq.s32.totalorder %s18, 1
    %p144 = por %p142, %p143
    %p145 = scmp.ne.s32.totalorder %s136, %s137
    %p146 = scmp.eq.s32.totalorder %s18, 0
    %p147 = por %p145, %p146
    %p148 = scmp.ne.s32.totalorder %s136, %s137
    %p149 = scmp.eq.s32.totalorder %s19, 1
    %p150 = por %p148, %p149
    %p152 = scmp.ne.s32.totalorder %s137, %s151
    %p153 = scmp.eq.s32.totalorder %s19, 0
    %p154 = por %p152, %p153
    %s156 = sadd.s32 %s155, 1
    %p159 = scmp.eq.s32.totalorder %s13, 1
    %p160 = scmp.ne.s32.totalorder %s155, %s157
    %p161 = scmp.eq.s32.totalorder %s13, 0
    %p162 = por %p160, %p161
    %p163 = scmp.ne.s32.totalorder %s155, %s157
    %p164 = scmp.eq.s32.totalorder %s18, 1
    %p165 = por %p163, %p164
    %p166 = scmp.ne.s32.totalorder %s157, %s158
    %p167 = scmp.eq.s32.totalorder %s18, 0
    %p168 = por %p166, %p167
    %p169 = scmp.ne.s32.totalorder %s157, %s158
    %p170 = scmp.eq.s32.totalorder %s19, 1
    %p171 = por %p169, %p170
    %p173 = scmp.ne.s32.totalorder %s158, %s172
    %p174 = scmp.eq.s32.totalorder %s19, 0
    %p175 = por %p173, %p174
    %s177 = sadd.s32 %s176, 1
    %p180 = scmp.eq.s32.totalorder %s13, 1
    %p181 = scmp.ne.s32.totalorder %s176, %s178
    %p182 = scmp.eq.s32.totalorder %s13, 0
    %p183 = por %p181, %p182
    %p184 = scmp.ne.s32.totalorder %s176, %s178
    %p185 = scmp.eq.s32.totalorder %s18, 1
    %p186 = por %p184, %p185
    %p187 = scmp.ne.s32.totalorder %s178, %s179
    %p188 = scmp.eq.s32.totalorder %s18, 0
    %p189 = por %p187, %p188
    %p190 = scmp.ne.s32.totalorder %s178, %s179
    %p191 = scmp.eq.s32.totalorder %s19, 1
    %p192 = por %p190, %p191
    %p194 = scmp.ne.s32.totalorder %s179, %s193
    %p195 = scmp.eq.s32.totalorder %s19, 0
    %p196 = por %p194, %p195
    %s197 = ssub.s32 %s20, %s32
    %p198 = scmp.eq.s32.totalorder %s197, 0
    %s200 = sadd.s32 %s199, 1
    %s201 = scalar_select %p198, %s199, %s200
    %p204 = pneg %p198
    %p205 = scmp.eq.s32.totalorder %s13, 1
    %p206 = por %p204, %p205
    %p207 = scmp.ne.s32.totalorder %s199, %s202
    %p208 = scmp.eq.s32.totalorder %s13, 0
    %p209 = por %p207, %p208
    %p210 = scmp.ne.s32.totalorder %s199, %s202
    %p211 = scmp.eq.s32.totalorder %s18, 1
    %p212 = por %p210, %p211
    %p213 = scmp.ne.s32.totalorder %s202, %s203
    %p214 = scmp.eq.s32.totalorder %s18, 0
    %p215 = por %p213, %p214
    %p216 = scmp.ne.s32.totalorder %s202, %s203
    %p217 = scmp.eq.s32.totalorder %s19, 1
    %p218 = por %p216, %p217
    %p220 = scmp.ne.s32.totalorder %s203, %s219
    %p221 = scmp.eq.s32.totalorder %s19, 0
    %p222 = por %p220, %p221
    %p223 = scmp.le.s32.totalorder 1, %s13
    %p224 = scmp.lt.s32.totalorder %s13, 3
    %p225 = pnand %p223, %p224
    %p226 = pneg %p225
    // Predicated region
    $region9: #{pointnet_reg_forward_pallas.6} parent=5 // pred_check
      _
    $region10: #{pointnet_reg_forward_pallas.6} parent=5 // pred_check_branch
      %228 = sbr.rel (%p225) target = $region12
    $region11: #{pointnet_reg_forward_pallas.6} parent=5 // pred_region
      %s229 = ssub.s32 %s13, 1
      // Predicated region
      $region13: #{pointnet_reg_forward_pallas.6} parent=11 // pred_check
        %p230 = pneg %p100
      $region14: #{pointnet_reg_forward_pallas.6} parent=11 // pred_check_branch
        %232 = sbr.rel (%p230) target = $region16
      $region15: #{pointnet_reg_forward_pallas.6} parent=11 // pred_region
        _
      $region16: #{pointnet_reg_forward_pallas.6} parent=11 // pred_fallthru
        _
      // Predicated region
      $region17: #{pointnet_reg_forward_pallas.6} parent=11 // pred_check
        %p233 = pneg %p147
      $region18: #{pointnet_reg_forward_pallas.6} parent=11 // pred_check_branch
        %235 = sbr.rel (%p233) target = $region20
      $region19: #{pointnet_reg_forward_pallas.6} parent=11 // pred_region
        _
      $region20: #{pointnet_reg_forward_pallas.6} parent=11 // pred_fallthru
        _
      // Predicated region
      $region21: #{pointnet_reg_forward_pallas.6} parent=11 // pred_check
        %p236 = pneg %p168
      $region22: #{pointnet_reg_forward_pallas.6} parent=11 // pred_check_branch
        %238 = sbr.rel (%p236) target = $region24
      $region23: #{pointnet_reg_forward_pallas.6} parent=11 // pred_region
        _
      $region24: #{pointnet_reg_forward_pallas.6} parent=11 // pred_fallthru
        _
      // Predicated region
      $region25: #{pointnet_reg_forward_pallas.6} parent=11 // pred_check
        %p239 = pneg %p189
      $region26: #{pointnet_reg_forward_pallas.6} parent=11 // pred_check_branch
        %241 = sbr.rel (%p239) target = $region28
      $region27: #{pointnet_reg_forward_pallas.6} parent=11 // pred_region
        _
      $region28: #{pointnet_reg_forward_pallas.6} parent=11 // pred_fallthru
        _
    $region12: #{pointnet_reg_forward_pallas.6} parent=5 // pred_fallthru
      _
    %p242 = scmp.lt.s32.totalorder %s13, 2
    // Predicated region
    $region29: #{pointnet_reg_forward_pallas.6} parent=5 // pred_check
      %p243 = pneg %p242
    $region30: #{pointnet_reg_forward_pallas.6} parent=5 // pred_check_branch
      %245 = sbr.rel (%p243) target = $region32
    $region31: #{pointnet_reg_forward_pallas.6} parent=5 // pred_region
      // Predicated region
      $region33: #{pointnet_reg_forward_pallas.6} parent=31 // pred_check
        %p246 = pneg %p47
      $region34: #{pointnet_reg_forward_pallas.6} parent=31 // pred_check_branch
        %248 = sbr.rel (%p246) target = $region36
      $region35: #{pointnet_reg_forward_pallas.6} parent=31 // pred_region
        %s249 = smul.u32 16, %s21
        %p250 = scmp.lt.s32.totalorder %s20, 1
        %s251 = scalar_select %p250, %s20, 1
        %p252 = scmp.lt.s32.totalorder %s249, 15
        %s253 = scalar_select %p252, %s249, 15
        %s254 = smul.addr %s251, 16
        %s255 = sadd.s32 %s253, %s254
        %s256 = smul.addr %s255, 4
        %s257 = scalar_lea.vmem %s0, %s256
        %s258 = smul.u32 16, %s21
      $region36: #{pointnet_reg_forward_pallas.6} parent=31 // pred_fallthru
        _
      // Predicated region
      $region37: #{pointnet_reg_forward_pallas.6} parent=31 // pred_check
        %p259 = pneg %p73
      $region38: #{pointnet_reg_forward_pallas.6} parent=31 // pred_check_branch
        %261 = sbr.rel (%p259) target = $region40
      $region39: #{pointnet_reg_forward_pallas.6} parent=31 // pred_region
        %p262 = scmp.lt.s32.totalorder %s20, 1
        %s263 = scalar_select %p262, %s20, 1
        %s264 = smul.addr %s263, 4
        %s265 = scalar_lea.vmem %s1, %s264
      $region40: #{pointnet_reg_forward_pallas.6} parent=31 // pred_fallthru
        _
      // Predicated region
      $region41: #{pointnet_reg_forward_pallas.6} parent=31 // pred_check
        %p266 = pneg %p120
      $region42: #{pointnet_reg_forward_pallas.6} parent=31 // pred_check_branch
        %268 = sbr.rel (%p266) target = $region44
      $region43: #{pointnet_reg_forward_pallas.6} parent=31 // pred_region
        %p269 = scmp.lt.s32.totalorder %s20, 1
        %s270 = scalar_select %p269, %s20, 1
        %s271 = smul.addr %s270, 8
        %s272 = smul.addr %s271, 4
        %s273 = scalar_lea.vmem %s3, %s272
      $region44: #{pointnet_reg_forward_pallas.6} parent=31 // pred_fallthru
        _
    $region32: #{pointnet_reg_forward_pallas.6} parent=5 // pred_fallthru
      _
    %p274 = scmp.le.s32.totalorder 1, %s13
    %p275 = scmp.lt.s32.totalorder %s13, 3
    %p276 = pnand %p274, %p275
    %p277 = pneg %p276
    // Predicated region
    $region45: #{pointnet_reg_forward_pallas.6} parent=5 // pred_check
      _
    $region46: #{pointnet_reg_forward_pallas.6} parent=5 // pred_check_branch
      %279 = sbr.rel (%p276) target = $region48
    $region47: #{pointnet_reg_forward_pallas.6} parent=5 // pred_region
      %s280 = ssub.s32 %s13, 1
      %s281 = smul.u32 16, %s23
      %p282 = scmp.lt.s32.totalorder %s22, 1
      %s283 = scalar_select %p282, %s22, 1
      %p284 = scmp.lt.s32.totalorder %s281, 15
      %s285 = scalar_select %p284, %s281, 15
      %s286 = smul.addr %s283, 16
      %s287 = sadd.s32 %s285, %s286
      %s288 = smul.addr %s287, 4
      %s289 = scalar_lea.vmem %s0, %s288
      %p290 = pneg %p53
      %p291 = pneg %p50
      %p292 = scmp.lt.s32.totalorder %s22, 1
      %s293 = scalar_select %p292, %s22, 1
      %s294 = smul.addr %s293, 4
      %s295 = scalar_lea.vmem %s1, %s294
      %p296 = pneg %p79
      %p297 = pneg %p76
      %p298 = pneg %p100
      %p299 = pneg %p97
      %p300 = scmp.lt.s32.totalorder %s22, 1
      %s301 = scalar_select %p300, %s22, 1
      %s302 = smul.addr %s301, 8
      %s303 = smul.addr %s302, 4
      %s304 = scalar_lea.vmem %s3, %s303
      %p305 = pneg %p126
      %p306 = pneg %p123
      %p307 = pneg %p147
      %p308 = pneg %p144
      %p309 = pneg %p168
      %p310 = pneg %p165
      %p311 = pneg %p189
      %p312 = pneg %p186
      %p313 = pneg %p215
      %p314 = pneg %p212
      %p315 = scmp.lt.s32.totalorder %s22, 1
      %s316 = scalar_select %p315, %s22, 1
      %s317 = smul.addr %s316, 8
      %s318 = scalar_lea.vmem %s7, %s317
      %s319 = smul.u32 16, %s23
      %p320 = scmp.lt.s32.totalorder %s22, 1
      %s321 = scalar_select %p320, %s22, 1
      %p322 = scmp.lt.s32.totalorder %s319, 15
      %s323 = scalar_select %p322, %s319, 15
      %s324 = smul.addr %s321, 16
      %s325 = sadd.s32 %s323, %s324
      %s326 = smul.addr %s325, 4
      %s327 = scalar_lea.vmem %s0, %s326
      %s328 = smul.u32 16, %s23
      %p329 = scmp.lt.s32.totalorder %s22, 1
      %s330 = scalar_select %p329, %s22, 1
      %s331 = smul.addr %s330, 4
      %s332 = scalar_lea.vmem %s1, %s331
      %p333 = scmp.lt.s32.totalorder %s22, 1
      %s334 = scalar_select %p333, %s22, 1
      %s335 = smul.addr %s334, 8
      %s336 = smul.addr %s335, 4
      %s337 = scalar_lea.vmem %s3, %s336
      %p338 = scmp.lt.s32.totalorder %s22, 1
      %s339 = scalar_select %p338, %s22, 1
      %s340 = smul.addr %s339, 8
      %s341 = scalar_lea.vmem %s7, %s340
      %p343 = scmp.eq.s32.totalorder %s23, 0
      // Predicated region
      $region49: #{pointnet_reg_forward_pallas.6} parent=47 // pred_check
        %p344 = pneg %p343
      $region50: #{pointnet_reg_forward_pallas.6} parent=47 // pred_check_branch
        %346 = sbr.rel (%p344) target = $region52
      $region51: #{pointnet_reg_forward_pallas.6} parent=47 // pred_region
        %347 = vst [vmem:[#allocation2] sm:$0xff] -inf
      $region52: #{pointnet_reg_forward_pallas.6} parent=47 // pred_fallthru
        _
      %v348 = vld [vmem:[%s327] sm:$0xf]
      %v349 = vld [vmem:[%s327 + $0x4] sm:$0xf]
      %v350 = vld [vmem:[%s327 + $0x8] sm:$0xf]
      %v351 = vld [vmem:[%s327 + $0xc] sm:$0xf]
      %v352 = vld [vmem:[%s327 + $0x10] sm:$0xf]
      %v353 = vld [vmem:[%s327 + $0x14] sm:$0xf]
      %v354 = vld [vmem:[%s327 + $0x18] sm:$0xf]
      %v355 = vld [vmem:[%s327 + $0x1c] sm:$0xf]
      %v356 = vld [vmem:[%s327 + $0x20] sm:$0xf]
      %v357 = vld [vmem:[%s327 + $0x24] sm:$0xf]
      %v358 = vld [vmem:[%s327 + $0x28] sm:$0xf]
      %v359 = vld [vmem:[%s327 + $0x2c] sm:$0xf]
      %v360 = vld [vmem:[%s327 + $0x30] sm:$0xf]
      %v361 = vld [vmem:[%s327 + $0x34] sm:$0xf]
      %v362 = vld [vmem:[%s327 + $0x38] sm:$0xf]
      %v363 = vld [vmem:[%s327 + $0x3c] sm:$0xf]
      %v364 = vld [vmem:[%s332] sm:$0x7]
      %v365 = vld [vmem:[%s2] sm:$0x1]
      %v367 = vlaneseq
      %v368 = vshrl.u32 %v367, 7
      %v369 = vsub.s32 0, %v368
      %v370 = vrot.slane %v365, %v369
      %v388 = vunpack.c.l.b16 %v348
      %v389 = vunpack.c.l.b16 %v349
      %v390 = vunpack.c.l.b16 %v350
      %v391 = vunpack.c.l.b16 %v351
      %v392 = vunpack.c.l.b16 %v352
      %v393 = vunpack.c.l.b16 %v353
      %v394 = vunpack.c.l.b16 %v354
      %v395 = vunpack.c.l.b16 %v355
      %v396 = vunpack.c.l.b16 %v356
      %v397 = vunpack.c.l.b16 %v357
      %v398 = vunpack.c.l.b16 %v358
      %v399 = vunpack.c.l.b16 %v359
      %v400 = vunpack.c.l.b16 %v360
      %v401 = vunpack.c.l.b16 %v361
      %v402 = vunpack.c.l.b16 %v362
      %v403 = vunpack.c.l.b16 %v363
      %v404 = vpack.c.b16 %v389, %v388
      %v405 = vpack.c.b16 %v391, %v390
      %v406 = vpack.c.b16 %v393, %v392
      %v407 = vpack.c.b16 %v395, %v394
      %v408 = vpack.c.b16 %v397, %v396
      %v409 = vpack.c.b16 %v399, %v398
      %v410 = vpack.c.b16 %v401, %v400
      %v411 = vpack.c.b16 %v403, %v402
      %vm412 = vcmask 48128
      %v414 = vsel %vm412, %v404, 0
      %v417 = vsel %vm412, %v405, 0
      %v420 = vsel %vm412, %v406, 0
      %v423 = vsel %vm412, %v407, 0
      %v426 = vsel %vm412, %v408, 0
      %v429 = vsel %vm412, %v409, 0
      %v432 = vsel %vm412, %v410, 0
      %v435 = vsel %vm412, %v411, 0
      %vm437 = vcmask 1042432
      %v439 = vsel %vm437, %v364, 0
      %441 = vmatprep.subr.bf16.mxu0 0
      %442 = vmatpush1.bf16.msra.mxu0 %v439
      %443 = vmatprep.subr.bf16.mxu0 0
      %444 = vmatpush1.bf16.msra.mxu0 0
      %445 = vmatprep.subr.bf16.mxu0 0
      %446 = vmatpush1.bf16.msra.mxu0 0
      %447 = vmatprep.subr.bf16.mxu0 0
      %448 = vmatpush1.bf16.msra.mxu0 0
      %449 = vmatprep.subr.bf16.mxu0 0
      %450 = vmatpush1.bf16.msra.mxu0 0
      %451 = vmatprep.subr.bf16.mxu0 0
      %452 = vmatpush1.bf16.msra.mxu0 0
      %453 = vmatprep.subr.bf16.mxu0 0
      %454 = vmatpush1.bf16.msra.mxu0 0
      %455 = vmatprep.subr.bf16.mxu0 0
      %456 = vmatpush1.bf16.msra.mxu0 0
      %457 = vmatprep.subr.bf16.mxu0 0
      %458 = vmatpush1.bf16.msra.mxu0 0
      %459 = vmatprep.subr.bf16.mxu0 0
      %460 = vmatpush1.bf16.msra.mxu0 0
      %461 = vmatprep.subr.bf16.mxu0 0
      %462 = vmatpush1.bf16.msra.mxu0 0
      %463 = vmatprep.subr.bf16.mxu0 0
      %464 = vmatpush1.bf16.msra.mxu0 0
      %465 = vmatprep.subr.bf16.mxu0 0
      %466 = vmatpush1.bf16.msra.mxu0 0
      %467 = vmatprep.subr.bf16.mxu0 0
      %468 = vmatpush1.bf16.msra.mxu0 0
      %469 = vmatprep.subr.bf16.mxu0 0
      %470 = vmatpush1.bf16.msra.mxu0 0
      %471 = vmatprep.subr.bf16.mxu0 0
      %472 = vmatpush1.bf16.msra.mxu0 0
      %473 = vmatprep.mubr.bf16.mxu0 0
      %474 = vmatmul.mubr.bf16.gmra.mrb[0].mxu0 %v414
      %v475 = vpop.f32.mrb[0].mxu0
      %v476 = vadd.f32 %v370, %v475
      %v477 = vpop.f32.mrb[0].mxu0
      %v478 = vpop.f32.mrb[0].mxu0
      %v479 = vadd.f32 %v370, %v478
      %v480 = vpop.f32.mrb[0].mxu0
      %481 = vmatprep.mubr.bf16.mxu0 0
      %482 = vmatmul.mubr.bf16.gmra.mrb[0].mxu0 %v417
      %v483 = vpop.f32.mrb[0].mxu0
      %v484 = vadd.f32 %v370, %v483
      %v485 = vpop.f32.mrb[0].mxu0
      %v486 = vpop.f32.mrb[0].mxu0
      %v487 = vadd.f32 %v370, %v486
      %v488 = vpop.f32.mrb[0].mxu0
      %489 = vmatprep.mubr.bf16.mxu0 0
      %490 = vmatmul.mubr.bf16.gmra.mrb[0].mxu0 %v420
      %v491 = vpop.f32.mrb[0].mxu0
      %v492 = vadd.f32 %v370, %v491
      %v493 = vpop.f32.mrb[0].mxu0
      %v494 = vpop.f32.mrb[0].mxu0
      %v495 = vadd.f32 %v370, %v494
      %v496 = vpop.f32.mrb[0].mxu0
      %497 = vmatprep.mubr.bf16.mxu0 0
      %498 = vmatmul.mubr.bf16.gmra.mrb[0].mxu0 %v423
      %v499 = vpop.f32.mrb[0].mxu0
      %v500 = vadd.f32 %v370, %v499
      %v501 = vpop.f32.mrb[0].mxu0
      %v502 = vpop.f32.mrb[0].mxu0
      %v503 = vadd.f32 %v370, %v502
      %v504 = vpop.f32.mrb[0].mxu0
      %505 = vmatprep.mubr.bf16.mxu0 0
      %506 = vmatmul.mubr.bf16.gmra.mrb[0].mxu0 %v426
      %v507 = vpop.f32.mrb[0].mxu0
      %v508 = vadd.f32 %v370, %v507
      %v509 = vpop.f32.mrb[0].mxu0
      %v510 = vpop.f32.mrb[0].mxu0
      %v511 = vadd.f32 %v370, %v510
      %v512 = vpop.f32.mrb[0].mxu0
      %513 = vmatprep.mubr.bf16.mxu0 0
      %514 = vmatmul.mubr.bf16.gmra.mrb[0].mxu0 %v429
      %v515 = vpop.f32.mrb[0].mxu0
      %v516 = vadd.f32 %v370, %v515
      %v517 = vpop.f32.mrb[0].mxu0
      %v518 = vpop.f32.mrb[0].mxu0
      %v519 = vadd.f32 %v370, %v518
      %v520 = vpop.f32.mrb[0].mxu0
      %521 = vmatprep.mubr.bf16.mxu0 0
      %522 = vmatmul.mubr.bf16.gmra.mrb[0].mxu0 %v432
      %v523 = vpop.f32.mrb[0].mxu0
      %v524 = vadd.f32 %v370, %v523
      %v525 = vpop.f32.mrb[0].mxu0
      %v526 = vpop.f32.mrb[0].mxu0
      %v527 = vadd.f32 %v370, %v526
      %v528 = vpop.f32.mrb[0].mxu0
      %529 = vmatprep.mubr.bf16.mxu0 0
      %530 = vmatmul.mubr.bf16.gmra.mrb[0].mxu0 %v435
      %v531 = vpop.f32.mrb[0].mxu0
      %v532 = vadd.f32 %v370, %v531
      %v533 = vpop.f32.mrb[0].mxu0
      %v534 = vpop.f32.mrb[0].mxu0
      %v535 = vadd.f32 %v370, %v534
      %v536 = vpop.f32.mrb[0].mxu0
      %537 = vdwg.mxu0
      %v538 = vmax.f32 %v476, 0.0
      %v539 = vmax.f32 %v479, 0.0
      %v540 = vmax.f32 %v484, 0.0
      %v541 = vmax.f32 %v487, 0.0
      %v542 = vmax.f32 %v492, 0.0
      %v543 = vmax.f32 %v495, 0.0
      %v544 = vmax.f32 %v500, 0.0
      %v545 = vmax.f32 %v503, 0.0
      %v546 = vmax.f32 %v508, 0.0
      %v547 = vmax.f32 %v511, 0.0
      %v548 = vmax.f32 %v516, 0.0
      %v549 = vmax.f32 %v519, 0.0
      %v550 = vmax.f32 %v524, 0.0
      %v551 = vmax.f32 %v527, 0.0
      %v552 = vmax.f32 %v532, 0.0
      %v553 = vmax.f32 %v535, 0.0
      %v554 = vpack.c.bf16 %v539, %v538
      %v555 = vpack.c.bf16 %v541, %v540
      %v556 = vpack.c.bf16 %v543, %v542
      %v557 = vpack.c.bf16 %v545, %v544
      %v558 = vpack.c.bf16 %v547, %v546
      %v559 = vpack.c.bf16 %v549, %v548
      %v560 = vpack.c.bf16 %v551, %v550
      %v561 = vpack.c.bf16 %v553, %v552
      %v562 = vld [vmem:[%s337] sm:$0xf]
      %v563 = vld [vmem:[%s337 + $0x4] sm:$0xf]
      %v564 = vld [vmem:[%s337 + $0x8] sm:$0xf]
      %v565 = vld [vmem:[%s337 + $0xc] sm:$0xf]
      %v566 = vld [vmem:[%s337 + $0x10] sm:$0xf]
      %v567 = vld [vmem:[%s337 + $0x14] sm:$0xf]
      %v568 = vld [vmem:[%s337 + $0x18] sm:$0xf]
      %v569 = vld [vmem:[%s337 + $0x1c] sm:$0xf]
      %v570 = vld [vmem:[%s4] sm:$0x1]
      %v572 = vlaneseq
      %v573 = vshrl.u32 %v572, 7
      %v574 = vsub.s32 0, %v573
      %v575 = vrot.slane %v570, %v574
      %v585 = vunpack.c.l.b16 %v562
      %v586 = vunpack.c.l.b16 %v563
      %v587 = vunpack.c.l.b16 %v564
      %v588 = vunpack.c.l.b16 %v565
      %v589 = vunpack.c.l.b16 %v566
      %v590 = vunpack.c.l.b16 %v567
      %v591 = vunpack.c.l.b16 %v568
      %v592 = vunpack.c.l.b16 %v569
      %v593 = vpack.c.b16 %v586, %v585
      %v594 = vpack.c.b16 %v588, %v587
      %v595 = vpack.c.b16 %v590, %v589
      %v596 = vpack.c.b16 %v592, %v591
      %vm601 = vcmask 523264
      %v603 = vsel %vm601, %v554, 0
      %v606 = vsel %vm601, %v555, 0
      %v609 = vsel %vm601, %v556, 0
      %v612 = vsel %vm601, %v557, 0
      %v615 = vsel %vm601, %v558, 0
      %v618 = vsel %vm601, %v559, 0
      %v621 = vsel %vm601, %v560, 0
      %v624 = vsel %vm601, %v561, 0
      %626 = vmatprep.subr.bf16.mxu0 0
      %627 = vmatpush1.bf16.msra.mxu0 %v593
      %628 = vmatprep.subr.bf16.mxu0 0
      %629 = vmatpush1.bf16.msra.mxu0 %v594
      %630 = vmatprep.subr.bf16.mxu0 0
      %631 = vmatpush1.bf16.msra.mxu0 %v595
      %632 = vmatprep.subr.bf16.mxu0 0
      %633 = vmatpush1.bf16.msra.mxu0 %v596
      %634 = vmatprep.subr.bf16.mxu0 0
      %635 = vmatpush1.bf16.msra.mxu0 0
      %636 = vmatprep.subr.bf16.mxu0 0
      %637 = vmatpush1.bf16.msra.mxu0 0
      %638 = vmatprep.subr.bf16.mxu0 0
      %639 = vmatpush1.bf16.msra.mxu0 0
      %640 = vmatprep.subr.bf16.mxu0 0
      %641 = vmatpush1.bf16.msra.mxu0 0
      %642 = vmatprep.subr.bf16.mxu0 0
      %643 = vmatpush1.bf16.msra.mxu0 0
      %644 = vmatprep.subr.bf16.mxu0 0
      %645 = vmatpush1.bf16.msra.mxu0 0
      %646 = vmatprep.subr.bf16.mxu0 0
      %647 = vmatpush1.bf16.msra.mxu0 0
      %648 = vmatprep.subr.bf16.mxu0 0
      %649 = vmatpush1.bf16.msra.mxu0 0
      %650 = vmatprep.subr.bf16.mxu0 0
      %651 = vmatpush1.bf16.msra.mxu0 0
      %652 = vmatprep.subr.bf16.mxu0 0
      %653 = vmatpush1.bf16.msra.mxu0 0
      %654 = vmatprep.subr.bf16.mxu0 0
      %655 = vmatpush1.bf16.msra.mxu0 0
      %656 = vmatprep.subr.bf16.mxu0 0
      %657 = vmatpush1.bf16.msra.mxu0 0
      %658 = vmatprep.mubr.bf16.mxu0 0
      %659 = vmatmul.mubr.bf16.gmra.mrb[0].mxu0 %v603
      %v660 = vpop.f32.mrb[0].mxu0
      %v661 = vadd.f32 %v575, %v660
      %v662 = vpop.f32.mrb[0].mxu0
      %v663 = vpop.f32.mrb[0].mxu0
      %v664 = vadd.f32 %v575, %v663
      %v665 = vpop.f32.mrb[0].mxu0
      %666 = vmatprep.mubr.bf16.mxu0 0
      %667 = vmatmul.mubr.bf16.gmra.mrb[0].mxu0 %v606
      %v668 = vpop.f32.mrb[0].mxu0
      %v669 = vadd.f32 %v575, %v668
      %v670 = vpop.f32.mrb[0].mxu0
      %v671 = vpop.f32.mrb[0].mxu0
      %v672 = vadd.f32 %v575, %v671
      %v673 = vpop.f32.mrb[0].mxu0
      %674 = vmatprep.mubr.bf16.mxu0 0
      %675 = vmatmul.mubr.bf16.gmra.mrb[0].mxu0 %v609
      %v676 = vpop.f32.mrb[0].mxu0
      %v677 = vadd.f32 %v575, %v676
      %v678 = vpop.f32.mrb[0].mxu0
      %v679 = vpop.f32.mrb[0].mxu0
      %v680 = vadd.f32 %v575, %v679
      %v681 = vpop.f32.mrb[0].mxu0
      %682 = vmatprep.mubr.bf16.mxu0 0
      %683 = vmatmul.mubr.bf16.gmra.mrb[0].mxu0 %v612
      %v684 = vpop.f32.mrb[0].mxu0
      %v685 = vadd.f32 %v575, %v684
      %v686 = vpop.f32.mrb[0].mxu0
      %v687 = vpop.f32.mrb[0].mxu0
      %v688 = vadd.f32 %v575, %v687
      %v689 = vpop.f32.mrb[0].mxu0
      %690 = vmatprep.mubr.bf16.mxu0 0
      %691 = vmatmul.mubr.bf16.gmra.mrb[0].mxu0 %v615
      %v692 = vpop.f32.mrb[0].mxu0
      %v693 = vadd.f32 %v575, %v692
      %v694 = vpop.f32.mrb[0].mxu0
      %v695 = vpop.f32.mrb[0].mxu0
      %v696 = vadd.f32 %v575, %v695
      %v697 = vpop.f32.mrb[0].mxu0
      %698 = vmatprep.mubr.bf16.mxu0 0
      %699 = vmatmul.mubr.bf16.gmra.mrb[0].mxu0 %v618
      %v700 = vpop.f32.mrb[0].mxu0
      %v701 = vadd.f32 %v575, %v700
      %v702 = vpop.f32.mrb[0].mxu0
      %v703 = vpop.f32.mrb[0].mxu0
      %v704 = vadd.f32 %v575, %v703
      %v705 = vpop.f32.mrb[0].mxu0
      %706 = vmatprep.mubr.bf16.mxu0 0
      %707 = vmatmul.mubr.bf16.gmra.mrb[0].mxu0 %v621
      %v708 = vpop.f32.mrb[0].mxu0
      %v709 = vadd.f32 %v575, %v708
      %v710 = vpop.f32.mrb[0].mxu0
      %v711 = vpop.f32.mrb[0].mxu0
      %v712 = vadd.f32 %v575, %v711
      %v713 = vpop.f32.mrb[0].mxu0
      %714 = vmatprep.mubr.bf16.mxu0 0
      %715 = vmatmul.mubr.bf16.gmra.mrb[0].mxu0 %v624
      %v716 = vpop.f32.mrb[0].mxu0
      %v717 = vadd.f32 %v575, %v716
      %v718 = vpop.f32.mrb[0].mxu0
      %v719 = vpop.f32.mrb[0].mxu0
      %v720 = vadd.f32 %v575, %v719
      %v721 = vpop.f32.mrb[0].mxu0
      %722 = vdwg.mxu0
      %v723 = vmax.f32 %v661, 0.0
      %v724 = vmax.f32 %v664, 0.0
      %v725 = vmax.f32 %v669, 0.0
      %v726 = vmax.f32 %v672, 0.0
      %v727 = vmax.f32 %v677, 0.0
      %v728 = vmax.f32 %v680, 0.0
      %v729 = vmax.f32 %v685, 0.0
      %v730 = vmax.f32 %v688, 0.0
      %v731 = vmax.f32 %v693, 0.0
      %v732 = vmax.f32 %v696, 0.0
      %v733 = vmax.f32 %v701, 0.0
      %v734 = vmax.f32 %v704, 0.0
      %v735 = vmax.f32 %v709, 0.0
      %v736 = vmax.f32 %v712, 0.0
      %v737 = vmax.f32 %v717, 0.0
      %v738 = vmax.f32 %v720, 0.0
      %v739 = vpack.c.bf16 %v724, %v723
      %v740 = vpack.c.bf16 %v726, %v725
      %v741 = vpack.c.bf16 %v728, %v727
      %v742 = vpack.c.bf16 %v730, %v729
      %v743 = vpack.c.bf16 %v732, %v731
      %v744 = vpack.c.bf16 %v734, %v733
      %v745 = vpack.c.bf16 %v736, %v735
      %v746 = vpack.c.bf16 %v738, %v737
      %v747 = vld [vmem:[%s5] sm:$0xff]
      %v748 = vld [vmem:[%s5 + $0x8] sm:$0xff]
      %v749 = vld [vmem:[%s5 + $0x10] sm:$0xff]
      %v750 = vld [vmem:[%s5 + $0x18] sm:$0xff]
      %v751 = vld [vmem:[%s5 + $0x20] sm:$0xff]
      %v752 = vld [vmem:[%s5 + $0x28] sm:$0xff]
      %v753 = vld [vmem:[%s5 + $0x30] sm:$0xff]
      %v754 = vld [vmem:[%s5 + $0x38] sm:$0xff]
      %v755 = vld [vmem:[%s5 + $0x40] sm:$0xff]
      %v756 = vld [vmem:[%s5 + $0x48] sm:$0xff]
      %v757 = vld [vmem:[%s5 + $0x50] sm:$0xff]
      %v758 = vld [vmem:[%s5 + $0x58] sm:$0xff]
      %v759 = vld [vmem:[%s5 + $0x60] sm:$0xff]
      %v760 = vld [vmem:[%s5 + $0x68] sm:$0xff]
      %v761 = vld [vmem:[%s5 + $0x70] sm:$0xff]
      %v762 = vld [vmem:[%s5 + $0x78] sm:$0xff]
      %v763 = vld [vmem:[%s5 + $0x80] sm:$0xff]
      %v764 = vld [vmem:[%s5 + $0x88] sm:$0xff]
      %v765 = vld [vmem:[%s5 + $0x90] sm:$0xff]
      %v766 = vld [vmem:[%s5 + $0x98] sm:$0xff]
      %v767 = vld [vmem:[%s5 + $0xa0] sm:$0xff]
      %v768 = vld [vmem:[%s5 + $0xa8] sm:$0xff]
      %v769 = vld [vmem:[%s5 + $0xb0] sm:$0xff]
      %v770 = vld [vmem:[%s5 + $0xb8] sm:$0xff]
      %v771 = vld [vmem:[%s5 + $0xc0] sm:$0xff]
      %v772 = vld [vmem:[%s5 + $0xc8] sm:$0xff]
      %v773 = vld [vmem:[%s5 + $0xd0] sm:$0xff]
      %v774 = vld [vmem:[%s5 + $0xd8] sm:$0xff]
      %v775 = vld [vmem:[%s5 + $0xe0] sm:$0xff]
      %v776 = vld [vmem:[%s5 + $0xe8] sm:$0xff]
      %v777 = vld [vmem:[%s5 + $0xf0] sm:$0xff]
      %v778 = vld [vmem:[%s5 + $0xf8] sm:$0xff]
      %v779 = vld [vmem:[%s5 + $0x100] sm:$0xff]
      %v780 = vld [vmem:[%s5 + $0x108] sm:$0xff]
      %v781 = vld [vmem:[%s5 + $0x110] sm:$0xff]
      %v782 = vld [vmem:[%s5 + $0x118] sm:$0xff]
      %v783 = vld [vmem:[%s5 + $0x120] sm:$0xff]
      %v784 = vld [vmem:[%s5 + $0x128] sm:$0xff]
      %v785 = vld [vmem:[%s5 + $0x130] sm:$0xff]
      %v786 = vld [vmem:[%s5 + $0x138] sm:$0xff]
      %v787 = vld [vmem:[%s5 + $0x140] sm:$0xff]
      %v788 = vld [vmem:[%s5 + $0x148] sm:$0xff]
      %v789 = vld [vmem:[%s5 + $0x150] sm:$0xff]
      %v790 = vld [vmem:[%s5 + $0x158] sm:$0xff]
      %v791 = vld [vmem:[%s5 + $0x160] sm:$0xff]
      %v792 = vld [vmem:[%s5 + $0x168] sm:$0xff]
      %v793 = vld [vmem:[%s5 + $0x170] sm:$0xff]
      %v794 = vld [vmem:[%s5 + $0x178] sm:$0xff]
      %v795 = vld [vmem:[%s5 + $0x180] sm:$0xff]
      %v796 = vld [vmem:[%s5 + $0x188] sm:$0xff]
      %v797 = vld [vmem:[%s5 + $0x190] sm:$0xff]
      %v798 = vld [vmem:[%s5 + $0x198] sm:$0xff]
      %v799 = vld [vmem:[%s5 + $0x1a0] sm:$0xff]
      %v800 = vld [vmem:[%s5 + $0x1a8] sm:$0xff]
      %v801 = vld [vmem:[%s5 + $0x1b0] sm:$0xff]
      %v802 = vld [vmem:[%s5 + $0x1b8] sm:$0xff]
      %v803 = vld [vmem:[%s5 + $0x1c0] sm:$0xff]
      %v804 = vld [vmem:[%s5 + $0x1c8] sm:$0xff]
      %v805 = vld [vmem:[%s5 + $0x1d0] sm:$0xff]
      %v806 = vld [vmem:[%s5 + $0x1d8] sm:$0xff]
      %v807 = vld [vmem:[%s5 + $0x1e0] sm:$0xff]
      %v808 = vld [vmem:[%s5 + $0x1e8] sm:$0xff]
      %v809 = vld [vmem:[%s5 + $0x1f0] sm:$0xff]
      %v810 = vld [vmem:[%s5 + $0x1f8] sm:$0xff]
      %v811 = vld [vmem:[%s6] sm:$0xff]
      %v813 = vlaneseq
      %v814 = vshrl.u32 %v813, 7
      %v815 = vsub.s32 0, %v814
      %v816 = vrot.slane %v811, %v815
      %v817 = vlaneseq
      %v818 = vshrl.u32 %v817, 7
      %v819 = vsub.s32 1, %v818
      %v820 = vrot.slane %v811, %v819
      %v821 = vlaneseq
      %v822 = vshrl.u32 %v821, 7
      %v823 = vsub.s32 2, %v822
      %v824 = vrot.slane %v811, %v823
      %v825 = vlaneseq
      %v826 = vshrl.u32 %v825, 7
      %v827 = vsub.s32 3, %v826
      %v828 = vrot.slane %v811, %v827
      %v829 = vlaneseq
      %v830 = vshrl.u32 %v829, 7
      %v831 = vsub.s32 4, %v830
      %v832 = vrot.slane %v811, %v831
      %v833 = vlaneseq
      %v834 = vshrl.u32 %v833, 7
      %v835 = vsub.s32 5, %v834
      %v836 = vrot.slane %v811, %v835
      %v837 = vlaneseq
      %v838 = vshrl.u32 %v837, 7
      %v839 = vsub.s32 6, %v838
      %v840 = vrot.slane %v811, %v839
      %v841 = vlaneseq
      %v842 = vshrl.u32 %v841, 7
      %v843 = vsub.s32 7, %v842
      %v844 = vrot.slane %v811, %v843
      %v917 = vunpack.c.l.b16 %v747
      %v918 = vunpack.c.h.b16 %v747
      %v919 = vunpack.c.l.b16 %v748
      %v920 = vunpack.c.h.b16 %v748
      %v921 = vunpack.c.l.b16 %v749
      %v922 = vunpack.c.h.b16 %v749
      %v923 = vunpack.c.l.b16 %v750
      %v924 = vunpack.c.h.b16 %v750
      %v925 = vunpack.c.l.b16 %v751
      %v926 = vunpack.c.h.b16 %v751
      %v927 = vunpack.c.l.b16 %v752
      %v928 = vunpack.c.h.b16 %v752
      %v929 = vunpack.c.l.b16 %v753
      %v930 = vunpack.c.h.b16 %v753
      %v931 = vunpack.c.l.b16 %v754
      %v932 = vunpack.c.h.b16 %v754
      %v933 = vunpack.c.l.b16 %v755
      %v934 = vunpack.c.h.b16 %v755
      %v935 = vunpack.c.l.b16 %v756
      %v936 = vunpack.c.h.b16 %v756
      %v937 = vunpack.c.l.b16 %v757
      %v938 = vunpack.c.h.b16 %v757
      %v939 = vunpack.c.l.b16 %v758
      %v940 = vunpack.c.h.b16 %v758
      %v941 = vunpack.c.l.b16 %v759
      %v942 = vunpack.c.h.b16 %v759
      %v943 = vunpack.c.l.b16 %v760
      %v944 = vunpack.c.h.b16 %v760
      %v945 = vunpack.c.l.b16 %v761
      %v946 = vunpack.c.h.b16 %v761
      %v947 = vunpack.c.l.b16 %v762
      %v948 = vunpack.c.h.b16 %v762
      %v949 = vunpack.c.l.b16 %v763
      %v950 = vunpack.c.h.b16 %v763
      %v951 = vunpack.c.l.b16 %v764
      %v952 = vunpack.c.h.b16 %v764
      %v953 = vunpack.c.l.b16 %v765
      %v954 = vunpack.c.h.b16 %v765
      %v955 = vunpack.c.l.b16 %v766
      %v956 = vunpack.c.h.b16 %v766
      %v957 = vunpack.c.l.b16 %v767
      %v958 = vunpack.c.h.b16 %v767
      %v959 = vunpack.c.l.b16 %v768
      %v960 = vunpack.c.h.b16 %v768
      %v961 = vunpack.c.l.b16 %v769
      %v962 = vunpack.c.h.b16 %v769
      %v963 = vunpack.c.l.b16 %v770
      %v964 = vunpack.c.h.b16 %v770
      %v965 = vunpack.c.l.b16 %v771
      %v966 = vunpack.c.h.b16 %v771
      %v967 = vunpack.c.l.b16 %v772
      %v968 = vunpack.c.h.b16 %v772
      %v969 = vunpack.c.l.b16 %v773
      %v970 = vunpack.c.h.b16 %v773
      %v971 = vunpack.c.l.b16 %v774
      %v972 = vunpack.c.h.b16 %v774
      %v973 = vunpack.c.l.b16 %v775
      %v974 = vunpack.c.h.b16 %v775
      %v975 = vunpack.c.l.b16 %v776
      %v976 = vunpack.c.h.b16 %v776
      %v977 = vunpack.c.l.b16 %v777
      %v978 = vunpack.c.h.b16 %v777
      %v979 = vunpack.c.l.b16 %v778
      %v980 = vunpack.c.h.b16 %v778
      %v981 = vunpack.c.l.b16 %v779
      %v982 = vunpack.c.h.b16 %v779
      %v983 = vunpack.c.l.b16 %v780
      %v984 = vunpack.c.h.b16 %v780
      %v985 = vunpack.c.l.b16 %v781
      %v986 = vunpack.c.h.b16 %v781
      %v987 = vunpack.c.l.b16 %v782
      %v988 = vunpack.c.h.b16 %v782
      %v989 = vunpack.c.l.b16 %v783
      %v990 = vunpack.c.h.b16 %v783
      %v991 = vunpack.c.l.b16 %v784
      %v992 = vunpack.c.h.b16 %v784
      %v993 = vunpack.c.l.b16 %v785
      %v994 = vunpack.c.h.b16 %v785
      %v995 = vunpack.c.l.b16 %v786
      %v996 = vunpack.c.h.b16 %v786
      %v997 = vunpack.c.l.b16 %v787
      %v998 = vunpack.c.h.b16 %v787
      %v999 = vunpack.c.l.b16 %v788
      %v1000 = vunpack.c.h.b16 %v788
      %v1001 = vunpack.c.l.b16 %v789
      %v1002 = vunpack.c.h.b16 %v789
      %v1003 = vunpack.c.l.b16 %v790
      %v1004 = vunpack.c.h.b16 %v790
      %v1005 = vunpack.c.l.b16 %v791
      %v1006 = vunpack.c.h.b16 %v791
      %v1007 = vunpack.c.l.b16 %v792
      %v1008 = vunpack.c.h.b16 %v792
      %v1009 = vunpack.c.l.b16 %v793
      %v1010 = vunpack.c.h.b16 %v793
      %v1011 = vunpack.c.l.b16 %v794
      %v1012 = vunpack.c.h.b16 %v794
      %v1013 = vunpack.c.l.b16 %v795
      %v1014 = vunpack.c.h.b16 %v795
      %v1015 = vunpack.c.l.b16 %v796
      %v1016 = vunpack.c.h.b16 %v796
      %v1017 = vunpack.c.l.b16 %v797
      %v1018 = vunpack.c.h.b16 %v797
      %v1019 = vunpack.c.l.b16 %v798
      %v1020 = vunpack.c.h.b16 %v798
      %v1021 = vunpack.c.l.b16 %v799
      %v1022 = vunpack.c.h.b16 %v799
      %v1023 = vunpack.c.l.b16 %v800
      %v1024 = vunpack.c.h.b16 %v800
      %v1025 = vunpack.c.l.b16 %v801
      %v1026 = vunpack.c.h.b16 %v801
      %v1027 = vunpack.c.l.b16 %v802
      %v1028 = vunpack.c.h.b16 %v802
      %v1029 = vunpack.c.l.b16 %v803
      %v1030 = vunpack.c.h.b16 %v803
      %v1031 = vunpack.c.l.b16 %v804
      %v1032 = vunpack.c.h.b16 %v804
      %v1033 = vunpack.c.l.b16 %v805
      %v1034 = vunpack.c.h.b16 %v805
      %v1035 = vunpack.c.l.b16 %v806
      %v1036 = vunpack.c.h.b16 %v806
      %v1037 = vunpack.c.l.b16 %v807
      %v1038 = vunpack.c.h.b16 %v807
      %v1039 = vunpack.c.l.b16 %v808
      %v1040 = vunpack.c.h.b16 %v808
      %v1041 = vunpack.c.l.b16 %v809
      %v1042 = vunpack.c.h.b16 %v809
      %v1043 = vunpack.c.l.b16 %v810
      %v1044 = vunpack.c.h.b16 %v810
      %v1045 = vpack.c.b16 %v925, %v917
      %v1046 = vpack.c.b16 %v926, %v918
      %v1047 = vpack.c.b16 %v927, %v919
      %v1048 = vpack.c.b16 %v928, %v920
      %v1049 = vpack.c.b16 %v929, %v921
      %v1050 = vpack.c.b16 %v930, %v922
      %v1051 = vpack.c.b16 %v931, %v923
      %v1052 = vpack.c.b16 %v932, %v924
      %v1053 = vpack.c.b16 %v941, %v933
      %v1054 = vpack.c.b16 %v942, %v934
      %v1055 = vpack.c.b16 %v943, %v935
      %v1056 = vpack.c.b16 %v944, %v936
      %v1057 = vpack.c.b16 %v945, %v937
      %v1058 = vpack.c.b16 %v946, %v938
      %v1059 = vpack.c.b16 %v947, %v939
      %v1060 = vpack.c.b16 %v948, %v940
      %v1061 = vpack.c.b16 %v957, %v949
      %v1062 = vpack.c.b16 %v958, %v950
      %v1063 = vpack.c.b16 %v959, %v951
      %v1064 = vpack.c.b16 %v960, %v952
      %v1065 = vpack.c.b16 %v961, %v953
      %v1066 = vpack.c.b16 %v962, %v954
      %v1067 = vpack.c.b16 %v963, %v955
      %v1068 = vpack.c.b16 %v964, %v956
      %v1069 = vpack.c.b16 %v973, %v965
      %v1070 = vpack.c.b16 %v974, %v966
      %v1071 = vpack.c.b16 %v975, %v967
      %v1072 = vpack.c.b16 %v976, %v968
      %v1073 = vpack.c.b16 %v977, %v969
      %v1074 = vpack.c.b16 %v978, %v970
      %v1075 = vpack.c.b16 %v979, %v971
      %v1076 = vpack.c.b16 %v980, %v972
      %v1077 = vpack.c.b16 %v989, %v981
      %v1078 = vpack.c.b16 %v990, %v982
      %v1079 = vpack.c.b16 %v991, %v983
      %v1080 = vpack.c.b16 %v992, %v984
      %v1081 = vpack.c.b16 %v993, %v985
      %v1082 = vpack.c.b16 %v994, %v986
      %v1083 = vpack.c.b16 %v995, %v987
      %v1084 = vpack.c.b16 %v996, %v988
      %v1085 = vpack.c.b16 %v1005, %v997
      %v1086 = vpack.c.b16 %v1006, %v998
      %v1087 = vpack.c.b16 %v1007, %v999
      %v1088 = vpack.c.b16 %v1008, %v1000
      %v1089 = vpack.c.b16 %v1009, %v1001
      %v1090 = vpack.c.b16 %v1010, %v1002
      %v1091 = vpack.c.b16 %v1011, %v1003
      %v1092 = vpack.c.b16 %v1012, %v1004
      %v1093 = vpack.c.b16 %v1021, %v1013
      %v1094 = vpack.c.b16 %v1022, %v1014
      %v1095 = vpack.c.b16 %v1023, %v1015
      %v1096 = vpack.c.b16 %v1024, %v1016
      %v1097 = vpack.c.b16 %v1025, %v1017
      %v1098 = vpack.c.b16 %v1026, %v1018
      %v1099 = vpack.c.b16 %v1027, %v1019
      %v1100 = vpack.c.b16 %v1028, %v1020
      %v1101 = vpack.c.b16 %v1037, %v1029
      %v1102 = vpack.c.b16 %v1038, %v1030
      %v1103 = vpack.c.b16 %v1039, %v1031
      %v1104 = vpack.c.b16 %v1040, %v1032
      %v1105 = vpack.c.b16 %v1041, %v1033
      %v1106 = vpack.c.b16 %v1042, %v1034
      %v1107 = vpack.c.b16 %v1043, %v1035
      %v1108 = vpack.c.b16 %v1044, %v1036
      %1173 = vmatprep.subr.bf16.mxu0 %v1046
      %1174 = vmatpush1.bf16.msra.mxu0 %v1045
      %1175 = vmatprep.subr.bf16.mxu0 %v1054
      %1176 = vmatpush1.bf16.msra.mxu0 %v1053
      %1177 = vmatprep.subr.bf16.mxu0 %v1062
      %1178 = vmatpush1.bf16.msra.mxu0 %v1061
      %1179 = vmatprep.subr.bf16.mxu0 %v1070
      %1180 = vmatpush1.bf16.msra.mxu0 %v1069
      %1181 = vmatprep.subr.bf16.mxu0 %v1078
      %1182 = vmatpush1.bf16.msra.mxu0 %v1077
      %1183 = vmatprep.subr.bf16.mxu0 %v1086
      %1184 = vmatpush1.bf16.msra.mxu0 %v1085
      %1185 = vmatprep.subr.bf16.mxu0 %v1094
      %1186 = vmatpush1.bf16.msra.mxu0 %v1093
      %1187 = vmatprep.subr.bf16.mxu0 %v1102
      %1188 = vmatpush1.bf16.msra.mxu0 %v1101
      %1189 = vmatprep.subr.bf16.mxu0 0
      %1190 = vmatpush1.bf16.msra.mxu0 0
      %1191 = vmatprep.subr.bf16.mxu0 0
      %1192 = vmatpush1.bf16.msra.mxu0 0
      %1193 = vmatprep.subr.bf16.mxu0 0
      %1194 = vmatpush1.bf16.msra.mxu0 0
      %1195 = vmatprep.subr.bf16.mxu0 0
      %1196 = vmatpush1.bf16.msra.mxu0 0
      %1197 = vmatprep.subr.bf16.mxu0 0
      %1198 = vmatpush1.bf16.msra.mxu0 0
      %1199 = vmatprep.subr.bf16.mxu0 0
      %1200 = vmatpush1.bf16.msra.mxu0 0
      %1201 = vmatprep.subr.bf16.mxu0 0
      %1202 = vmatpush1.bf16.msra.mxu0 0
      %1203 = vmatprep.subr.bf16.mxu0 0
      %1204 = vmatpush1.bf16.msra.mxu0 0
      %1205 = vmatprep.mubr.bf16.mxu0 0
      %1206 = vmatmul.mubr.bf16.gmra.mrb[0].mxu0 %v739
      %v1207 = vpop.f32.mrb[0].mxu0
      %v1208 = vadd.f32 %v816, %v1207
      %v1209 = vpop.f32.mrb[0].mxu0
      %v1210 = vadd.f32 %v820, %v1209
      %v1211 = vpop.f32.mrb[0].mxu0
      %v1212 = vadd.f32 %v816, %v1211
      %v1213 = vpop.f32.mrb[0].mxu0
      %v1214 = vadd.f32 %v820, %v1213
      %1215 = vmatprep.mubr.bf16.mxu0 0
      %1216 = vmatmul.mubr.bf16.gmra.mrb[0].mxu0 %v740
      %v1217 = vpop.f32.mrb[0].mxu0
      %v1218 = vadd.f32 %v816, %v1217
      %v1219 = vpop.f32.mrb[0].mxu0
      %v1220 = vadd.f32 %v820, %v1219
      %v1221 = vpop.f32.mrb[0].mxu0
      %v1222 = vadd.f32 %v816, %v1221
      %v1223 = vpop.f32.mrb[0].mxu0
      %v1224 = vadd.f32 %v820, %v1223
      %1225 = vmatprep.mubr.bf16.mxu0 0
      %1226 = vmatmul.mubr.bf16.gmra.mrb[0].mxu0 %v741
      %v1227 = vpop.f32.mrb[0].mxu0
      %v1228 = vadd.f32 %v816, %v1227
      %v1229 = vpop.f32.mrb[0].mxu0
      %v1230 = vadd.f32 %v820, %v1229
      %v1231 = vpop.f32.mrb[0].mxu0
      %v1232 = vadd.f32 %v816, %v1231
      %v1233 = vpop.f32.mrb[0].mxu0
      %v1234 = vadd.f32 %v820, %v1233
      %1235 = vmatprep.mubr.bf16.mxu0 0
      %1236 = vmatmul.mubr.bf16.gmra.mrb[0].mxu0 %v742
      %v1237 = vpop.f32.mrb[0].mxu0
      %v1238 = vadd.f32 %v816, %v1237
      %v1239 = vpop.f32.mrb[0].mxu0
      %v1240 = vadd.f32 %v820, %v1239
      %v1241 = vpop.f32.mrb[0].mxu0
      %v1242 = vadd.f32 %v816, %v1241
      %v1243 = vpop.f32.mrb[0].mxu0
      %v1244 = vadd.f32 %v820, %v1243
      %1245 = vmatprep.mubr.bf16.mxu0 0
      %1246 = vmatmul.mubr.bf16.gmra.mrb[0].mxu0 %v743
      %v1247 = vpop.f32.mrb[0].mxu0
      %v1248 = vadd.f32 %v816, %v1247
      %v1249 = vpop.f32.mrb[0].mxu0
      %v1250 = vadd.f32 %v820, %v1249
      %v1251 = vpop.f32.mrb[0].mxu0
      %v1252 = vadd.f32 %v816, %v1251
      %v1253 = vpop.f32.mrb[0].mxu0
      %v1254 = vadd.f32 %v820, %v1253
      %1255 = vmatprep.mubr.bf16.mxu0 0
      %1256 = vmatmul.mubr.bf16.gmra.mrb[0].mxu0 %v744
      %v1257 = vpop.f32.mrb[0].mxu0
      %v1258 = vadd.f32 %v816, %v1257
      %v1259 = vpop.f32.mrb[0].mxu0
      %v1260 = vadd.f32 %v820, %v1259
      %v1261 = vpop.f32.mrb[0].mxu0
      %v1262 = vadd.f32 %v816, %v1261
      %v1263 = vpop.f32.mrb[0].mxu0
      %v1264 = vadd.f32 %v820, %v1263
      %1265 = vmatprep.mubr.bf16.mxu0 0
      %1266 = vmatmul.mubr.bf16.gmra.mrb[0].mxu0 %v745
      %v1267 = vpop.f32.mrb[0].mxu0
      %v1268 = vadd.f32 %v816, %v1267
      %v1269 = vpop.f32.mrb[0].mxu0
      %v1270 = vadd.f32 %v820, %v1269
      %v1271 = vpop.f32.mrb[0].mxu0
      %v1272 = vadd.f32 %v816, %v1271
      %v1273 = vpop.f32.mrb[0].mxu0
      %v1274 = vadd.f32 %v820, %v1273
      %1275 = vmatprep.mubr.bf16.mxu0 0
      %1276 = vmatmul.mubr.bf16.gmra.mrb[0].mxu0 %v746
      %v1277 = vpop.f32.mrb[0].mxu0
      %v1278 = vadd.f32 %v816, %v1277
      %v1279 = vpop.f32.mrb[0].mxu0
      %v1280 = vadd.f32 %v820, %v1279
      %v1281 = vpop.f32.mrb[0].mxu0
      %v1282 = vadd.f32 %v816, %v1281
      %v1283 = vpop.f32.mrb[0].mxu0
      %v1284 = vadd.f32 %v820, %v1283
      %1285 = vdwg.mxu0
      %1286 = vmatprep.subr.bf16.mxu0 %v1048
      %1287 = vmatpush1.bf16.msra.mxu0 %v1047
      %1288 = vmatprep.subr.bf16.mxu0 %v1056
      %1289 = vmatpush1.bf16.msra.mxu0 %v1055
      %1290 = vmatprep.subr.bf16.mxu0 %v1064
      %1291 = vmatpush1.bf16.msra.mxu0 %v1063
      %1292 = vmatprep.subr.bf16.mxu0 %v1072
      %1293 = vmatpush1.bf16.msra.mxu0 %v1071
      %1294 = vmatprep.subr.bf16.mxu0 %v1080
      %1295 = vmatpush1.bf16.msra.mxu0 %v1079
      %1296 = vmatprep.subr.bf16.mxu0 %v1088
      %1297 = vmatpush1.bf16.msra.mxu0 %v1087
      %1298 = vmatprep.subr.bf16.mxu0 %v1096
      %1299 = vmatpush1.bf16.msra.mxu0 %v1095
      %1300 = vmatprep.subr.bf16.mxu0 %v1104
      %1301 = vmatpush1.bf16.msra.mxu0 %v1103
      %1302 = vmatprep.subr.bf16.mxu0 0
      %1303 = vmatpush1.bf16.msra.mxu0 0
      %1304 = vmatprep.subr.bf16.mxu0 0
      %1305 = vmatpush1.bf16.msra.mxu0 0
      %1306 = vmatprep.subr.bf16.mxu0 0
      %1307 = vmatpush1.bf16.msra.mxu0 0
      %1308 = vmatprep.subr.bf16.mxu0 0
      %1309 = vmatpush1.bf16.msra.mxu0 0
      %1310 = vmatprep.subr.bf16.mxu0 0
      %1311 = vmatpush1.bf16.msra.mxu0 0
      %1312 = vmatprep.subr.bf16.mxu0 0
      %1313 = vmatpush1.bf16.msra.mxu0 0
      %1314 = vmatprep.subr.bf16.mxu0 0
      %1315 = vmatpush1.bf16.msra.mxu0 0
      %1316 = vmatprep.subr.bf16.mxu0 0
      %1317 = vmatpush1.bf16.msra.mxu0 0
      %1318 = vmatprep.mubr.bf16.mxu0 0
      %1319 = vmatmul.mubr.bf16.gmra.mrb[0].mxu0 %v739
      %v1320 = vpop.f32.mrb[0].mxu0
      %v1321 = vadd.f32 %v824, %v1320
      %v1322 = vpop.f32.mrb[0].mxu0
      %v1323 = vadd.f32 %v828, %v1322
      %v1324 = vpop.f32.mrb[0].mxu0
      %v1325 = vadd.f32 %v824, %v1324
      %v1326 = vpop.f32.mrb[0].mxu0
      %v1327 = vadd.f32 %v828, %v1326
      %1328 = vmatprep.mubr.bf16.mxu0 0
      %1329 = vmatmul.mubr.bf16.gmra.mrb[0].mxu0 %v740
      %v1330 = vpop.f32.mrb[0].mxu0
      %v1331 = vadd.f32 %v824, %v1330
      %v1332 = vpop.f32.mrb[0].mxu0
      %v1333 = vadd.f32 %v828, %v1332
      %v1334 = vpop.f32.mrb[0].mxu0
      %v1335 = vadd.f32 %v824, %v1334
      %v1336 = vpop.f32.mrb[0].mxu0
      %v1337 = vadd.f32 %v828, %v1336
      %1338 = vmatprep.mubr.bf16.mxu0 0
      %1339 = vmatmul.mubr.bf16.gmra.mrb[0].mxu0 %v741
      %v1340 = vpop.f32.mrb[0].mxu0
      %v1341 = vadd.f32 %v824, %v1340
      %v1342 = vpop.f32.mrb[0].mxu0
      %v1343 = vadd.f32 %v828, %v1342
      %v1344 = vpop.f32.mrb[0].mxu0
      %v1345 = vadd.f32 %v824, %v1344
      %v1346 = vpop.f32.mrb[0].mxu0
      %v1347 = vadd.f32 %v828, %v1346
      %1348 = vmatprep.mubr.bf16.mxu0 0
      %1349 = vmatmul.mubr.bf16.gmra.mrb[0].mxu0 %v742
      %v1350 = vpop.f32.mrb[0].mxu0
      %v1351 = vadd.f32 %v824, %v1350
      %v1352 = vpop.f32.mrb[0].mxu0
      %v1353 = vadd.f32 %v828, %v1352
      %v1354 = vpop.f32.mrb[0].mxu0
      %v1355 = vadd.f32 %v824, %v1354
      %v1356 = vpop.f32.mrb[0].mxu0
      %v1357 = vadd.f32 %v828, %v1356
      %1358 = vmatprep.mubr.bf16.mxu0 0
      %1359 = vmatmul.mubr.bf16.gmra.mrb[0].mxu0 %v743
      %v1360 = vpop.f32.mrb[0].mxu0
      %v1361 = vadd.f32 %v824, %v1360
      %v1362 = vpop.f32.mrb[0].mxu0
      %v1363 = vadd.f32 %v828, %v1362
      %v1364 = vpop.f32.mrb[0].mxu0
      %v1365 = vadd.f32 %v824, %v1364
      %v1366 = vpop.f32.mrb[0].mxu0
      %v1367 = vadd.f32 %v828, %v1366
      %1368 = vmatprep.mubr.bf16.mxu0 0
      %1369 = vmatmul.mubr.bf16.gmra.mrb[0].mxu0 %v744
      %v1370 = vpop.f32.mrb[0].mxu0
      %v1371 = vadd.f32 %v824, %v1370
      %v1372 = vpop.f32.mrb[0].mxu0
      %v1373 = vadd.f32 %v828, %v1372
      %v1374 = vpop.f32.mrb[0].mxu0
      %v1375 = vadd.f32 %v824, %v1374
      %v1376 = vpop.f32.mrb[0].mxu0
      %v1377 = vadd.f32 %v828, %v1376
      %1378 = vmatprep.mubr.bf16.mxu0 0
      %1379 = vmatmul.mubr.bf16.gmra.mrb[0].mxu0 %v745
      %v1380 = vpop.f32.mrb[0].mxu0
      %v1381 = vadd.f32 %v824, %v1380
      %v1382 = vpop.f32.mrb[0].mxu0
      %v1383 = vadd.f32 %v828, %v1382
      %v1384 = vpop.f32.mrb[0].mxu0
      %v1385 = vadd.f32 %v824, %v1384
      %v1386 = vpop.f32.mrb[0].mxu0
      %v1387 = vadd.f32 %v828, %v1386
      %1388 = vmatprep.mubr.bf16.mxu0 0
      %1389 = vmatmul.mubr.bf16.gmra.mrb[0].mxu0 %v746
      %v1390 = vpop.f32.mrb[0].mxu0
      %v1391 = vadd.f32 %v824, %v1390
      %v1392 = vpop.f32.mrb[0].mxu0
      %v1393 = vadd.f32 %v828, %v1392
      %v1394 = vpop.f32.mrb[0].mxu0
      %v1395 = vadd.f32 %v824, %v1394
      %v1396 = vpop.f32.mrb[0].mxu0
      %v1397 = vadd.f32 %v828, %v1396
      %1398 = vdwg.mxu0
      %1399 = vmatprep.subr.bf16.mxu0 %v1050
      %1400 = vmatpush1.bf16.msra.mxu0 %v1049
      %1401 = vmatprep.subr.bf16.mxu0 %v1058
      %1402 = vmatpush1.bf16.msra.mxu0 %v1057
      %1403 = vmatprep.subr.bf16.mxu0 %v1066
      %1404 = vmatpush1.bf16.msra.mxu0 %v1065
      %1405 = vmatprep.subr.bf16.mxu0 %v1074
      %1406 = vmatpush1.bf16.msra.mxu0 %v1073
      %1407 = vmatprep.subr.bf16.mxu0 %v1082
      %1408 = vmatpush1.bf16.msra.mxu0 %v1081
      %1409 = vmatprep.subr.bf16.mxu0 %v1090
      %1410 = vmatpush1.bf16.msra.mxu0 %v1089
      %1411 = vmatprep.subr.bf16.mxu0 %v1098
      %1412 = vmatpush1.bf16.msra.mxu0 %v1097
      %1413 = vmatprep.subr.bf16.mxu0 %v1106
      %1414 = vmatpush1.bf16.msra.mxu0 %v1105
      %1415 = vmatprep.subr.bf16.mxu0 0
      %1416 = vmatpush1.bf16.msra.mxu0 0
      %1417 = vmatprep.subr.bf16.mxu0 0
      %1418 = vmatpush1.bf16.msra.mxu0 0
      %1419 = vmatprep.subr.bf16.mxu0 0
      %1420 = vmatpush1.bf16.msra.mxu0 0
      %1421 = vmatprep.subr.bf16.mxu0 0
      %1422 = vmatpush1.bf16.msra.mxu0 0
      %1423 = vmatprep.subr.bf16.mxu0 0
      %1424 = vmatpush1.bf16.msra.mxu0 0
      %1425 = vmatprep.subr.bf16.mxu0 0
      %1426 = vmatpush1.bf16.msra.mxu0 0
      %1427 = vmatprep.subr.bf16.mxu0 0
      %1428 = vmatpush1.bf16.msra.mxu0 0
      %1429 = vmatprep.subr.bf16.mxu0 0
      %1430 = vmatpush1.bf16.msra.mxu0 0
      %1431 = vmatprep.mubr.bf16.mxu0 0
      %1432 = vmatmul.mubr.bf16.gmra.mrb[0].mxu0 %v739
      %v1433 = vpop.f32.mrb[0].mxu0
      %v1434 = vadd.f32 %v832, %v1433
      %v1435 = vpop.f32.mrb[0].mxu0
      %v1436 = vadd.f32 %v836, %v1435
      %v1437 = vpop.f32.mrb[0].mxu0
      %v1438 = vadd.f32 %v832, %v1437
      %v1439 = vpop.f32.mrb[0].mxu0
      %v1440 = vadd.f32 %v836, %v1439
      %1441 = vmatprep.mubr.bf16.mxu0 0
      %1442 = vmatmul.mubr.bf16.gmra.mrb[0].mxu0 %v740
      %v1443 = vpop.f32.mrb[0].mxu0
      %v1444 = vadd.f32 %v832, %v1443
      %v1445 = vpop.f32.mrb[0].mxu0
      %v1446 = vadd.f32 %v836, %v1445
      %v1447 = vpop.f32.mrb[0].mxu0
      %v1448 = vadd.f32 %v832, %v1447
      %v1449 = vpop.f32.mrb[0].mxu0
      %v1450 = vadd.f32 %v836, %v1449
      %1451 = vmatprep.mubr.bf16.mxu0 0
      %1452 = vmatmul.mubr.bf16.gmra.mrb[0].mxu0 %v741
      %v1453 = vpop.f32.mrb[0].mxu0
      %v1454 = vadd.f32 %v832, %v1453
      %v1455 = vpop.f32.mrb[0].mxu0
      %v1456 = vadd.f32 %v836, %v1455
      %v1457 = vpop.f32.mrb[0].mxu0
      %v1458 = vadd.f32 %v832, %v1457
      %v1459 = vpop.f32.mrb[0].mxu0
      %v1460 = vadd.f32 %v836, %v1459
      %1461 = vmatprep.mubr.bf16.mxu0 0
      %1462 = vmatmul.mubr.bf16.gmra.mrb[0].mxu0 %v742
      %v1463 = vpop.f32.mrb[0].mxu0
      %v1464 = vadd.f32 %v832, %v1463
      %v1465 = vpop.f32.mrb[0].mxu0
      %v1466 = vadd.f32 %v836, %v1465
      %v1467 = vpop.f32.mrb[0].mxu0
      %v1468 = vadd.f32 %v832, %v1467
      %v1469 = vpop.f32.mrb[0].mxu0
      %v1470 = vadd.f32 %v836, %v1469
      %1471 = vmatprep.mubr.bf16.mxu0 0
      %1472 = vmatmul.mubr.bf16.gmra.mrb[0].mxu0 %v743
      %v1473 = vpop.f32.mrb[0].mxu0
      %v1474 = vadd.f32 %v832, %v1473
      %v1475 = vpop.f32.mrb[0].mxu0
      %v1476 = vadd.f32 %v836, %v1475
      %v1477 = vpop.f32.mrb[0].mxu0
      %v1478 = vadd.f32 %v832, %v1477
      %v1479 = vpop.f32.mrb[0].mxu0
      %v1480 = vadd.f32 %v836, %v1479
      %1481 = vmatprep.mubr.bf16.mxu0 0
      %1482 = vmatmul.mubr.bf16.gmra.mrb[0].mxu0 %v744
      %v1483 = vpop.f32.mrb[0].mxu0
      %v1484 = vadd.f32 %v832, %v1483
      %v1485 = vpop.f32.mrb[0].mxu0
      %v1486 = vadd.f32 %v836, %v1485
      %v1487 = vpop.f32.mrb[0].mxu0
      %v1488 = vadd.f32 %v832, %v1487
      %v1489 = vpop.f32.mrb[0].mxu0
      %v1490 = vadd.f32 %v836, %v1489
      %1491 = vmatprep.mubr.bf16.mxu0 0
      %1492 = vmatmul.mubr.bf16.gmra.mrb[0].mxu0 %v745
      %v1493 = vpop.f32.mrb[0].mxu0
      %v1494 = vadd.f32 %v832, %v1493
      %v1495 = vpop.f32.mrb[0].mxu0
      %v1496 = vadd.f32 %v836, %v1495
      %v1497 = vpop.f32.mrb[0].mxu0
      %v1498 = vadd.f32 %v832, %v1497
      %v1499 = vpop.f32.mrb[0].mxu0
      %v1500 = vadd.f32 %v836, %v1499
      %1501 = vmatprep.mubr.bf16.mxu0 0
      %1502 = vmatmul.mubr.bf16.gmra.mrb[0].mxu0 %v746
      %v1503 = vpop.f32.mrb[0].mxu0
      %v1504 = vadd.f32 %v832, %v1503
      %v1505 = vpop.f32.mrb[0].mxu0
      %v1506 = vadd.f32 %v836, %v1505
      %v1507 = vpop.f32.mrb[0].mxu0
      %v1508 = vadd.f32 %v832, %v1507
      %v1509 = vpop.f32.mrb[0].mxu0
      %v1510 = vadd.f32 %v836, %v1509
      %1511 = vdwg.mxu0
      %1512 = vmatprep.subr.bf16.mxu0 %v1052
      %1513 = vmatpush1.bf16.msra.mxu0 %v1051
      %1514 = vmatprep.subr.bf16.mxu0 %v1060
      %1515 = vmatpush1.bf16.msra.mxu0 %v1059
      %1516 = vmatprep.subr.bf16.mxu0 %v1068
      %1517 = vmatpush1.bf16.msra.mxu0 %v1067
      %1518 = vmatprep.subr.bf16.mxu0 %v1076
      %1519 = vmatpush1.bf16.msra.mxu0 %v1075
      %1520 = vmatprep.subr.bf16.mxu0 %v1084
      %1521 = vmatpush1.bf16.msra.mxu0 %v1083
      %1522 = vmatprep.subr.bf16.mxu0 %v1092
      %1523 = vmatpush1.bf16.msra.mxu0 %v1091
      %1524 = vmatprep.subr.bf16.mxu0 %v1100
      %1525 = vmatpush1.bf16.msra.mxu0 %v1099
      %1526 = vmatprep.subr.bf16.mxu0 %v1108
      %1527 = vmatpush1.bf16.msra.mxu0 %v1107
      %1528 = vmatprep.subr.bf16.mxu0 0
      %1529 = vmatpush1.bf16.msra.mxu0 0
      %1530 = vmatprep.subr.bf16.mxu0 0
      %1531 = vmatpush1.bf16.msra.mxu0 0
      %1532 = vmatprep.subr.bf16.mxu0 0
      %1533 = vmatpush1.bf16.msra.mxu0 0
      %1534 = vmatprep.subr.bf16.mxu0 0
      %1535 = vmatpush1.bf16.msra.mxu0 0
      %1536 = vmatprep.subr.bf16.mxu0 0
      %1537 = vmatpush1.bf16.msra.mxu0 0
      %1538 = vmatprep.subr.bf16.mxu0 0
      %1539 = vmatpush1.bf16.msra.mxu0 0
      %1540 = vmatprep.subr.bf16.mxu0 0
      %1541 = vmatpush1.bf16.msra.mxu0 0
      %1542 = vmatprep.subr.bf16.mxu0 0
      %1543 = vmatpush1.bf16.msra.mxu0 0
      %1544 = vmatprep.mubr.bf16.mxu0 0
      %1545 = vmatmul.mubr.bf16.gmra.mrb[0].mxu0 %v739
      %v1546 = vpop.f32.mrb[0].mxu0
      %v1547 = vadd.f32 %v840, %v1546
      %v1548 = vpop.f32.mrb[0].mxu0
      %v1549 = vadd.f32 %v844, %v1548
      %v1550 = vpop.f32.mrb[0].mxu0
      %v1551 = vadd.f32 %v840, %v1550
      %v1552 = vpop.f32.mrb[0].mxu0
      %v1553 = vadd.f32 %v844, %v1552
      %1554 = vmatprep.mubr.bf16.mxu0 0
      %1555 = vmatmul.mubr.bf16.gmra.mrb[0].mxu0 %v740
      %v1556 = vpop.f32.mrb[0].mxu0
      %v1557 = vadd.f32 %v840, %v1556
      %v1558 = vpop.f32.mrb[0].mxu0
      %v1559 = vadd.f32 %v844, %v1558
      %v1560 = vpop.f32.mrb[0].mxu0
      %v1561 = vadd.f32 %v840, %v1560
      %v1562 = vpop.f32.mrb[0].mxu0
      %v1563 = vadd.f32 %v844, %v1562
      %1564 = vmatprep.mubr.bf16.mxu0 0
      %1565 = vmatmul.mubr.bf16.gmra.mrb[0].mxu0 %v741
      %v1566 = vpop.f32.mrb[0].mxu0
      %v1567 = vadd.f32 %v840, %v1566
      %v1568 = vpop.f32.mrb[0].mxu0
      %v1569 = vadd.f32 %v844, %v1568
      %v1570 = vpop.f32.mrb[0].mxu0
      %v1571 = vadd.f32 %v840, %v1570
      %v1572 = vpop.f32.mrb[0].mxu0
      %v1573 = vadd.f32 %v844, %v1572
      %1574 = vmatprep.mubr.bf16.mxu0 0
      %1575 = vmatmul.mubr.bf16.gmra.mrb[0].mxu0 %v742
      %v1576 = vpop.f32.mrb[0].mxu0
      %v1577 = vadd.f32 %v840, %v1576
      %v1578 = vpop.f32.mrb[0].mxu0
      %v1579 = vadd.f32 %v844, %v1578
      %v1580 = vpop.f32.mrb[0].mxu0
      %v1581 = vadd.f32 %v840, %v1580
      %v1582 = vpop.f32.mrb[0].mxu0
      %v1583 = vadd.f32 %v844, %v1582
      %1584 = vmatprep.mubr.bf16.mxu0 0
      %1585 = vmatmul.mubr.bf16.gmra.mrb[0].mxu0 %v743
      %v1586 = vpop.f32.mrb[0].mxu0
      %v1587 = vadd.f32 %v840, %v1586
      %v1588 = vpop.f32.mrb[0].mxu0
      %v1589 = vadd.f32 %v844, %v1588
      %v1590 = vpop.f32.mrb[0].mxu0
      %v1591 = vadd.f32 %v840, %v1590
      %v1592 = vpop.f32.mrb[0].mxu0
      %v1593 = vadd.f32 %v844, %v1592
      %1594 = vmatprep.mubr.bf16.mxu0 0
      %1595 = vmatmul.mubr.bf16.gmra.mrb[0].mxu0 %v744
      %v1596 = vpop.f32.mrb[0].mxu0
      %v1597 = vadd.f32 %v840, %v1596
      %v1598 = vpop.f32.mrb[0].mxu0
      %v1599 = vadd.f32 %v844, %v1598
      %v1600 = vpop.f32.mrb[0].mxu0
      %v1601 = vadd.f32 %v840, %v1600
      %v1602 = vpop.f32.mrb[0].mxu0
      %v1603 = vadd.f32 %v844, %v1602
      %1604 = vmatprep.mubr.bf16.mxu0 0
      %1605 = vmatmul.mubr.bf16.gmra.mrb[0].mxu0 %v745
      %v1606 = vpop.f32.mrb[0].mxu0
      %v1607 = vadd.f32 %v840, %v1606
      %v1608 = vpop.f32.mrb[0].mxu0
      %v1609 = vadd.f32 %v844, %v1608
      %v1610 = vpop.f32.mrb[0].mxu0
      %v1611 = vadd.f32 %v840, %v1610
      %v1612 = vpop.f32.mrb[0].mxu0
      %v1613 = vadd.f32 %v844, %v1612
      %1614 = vmatprep.mubr.bf16.mxu0 0
      %1615 = vmatmul.mubr.bf16.gmra.mrb[0].mxu0 %v746
      %v1616 = vpop.f32.mrb[0].mxu0
      %v1617 = vadd.f32 %v840, %v1616
      %v1618 = vpop.f32.mrb[0].mxu0
      %v1619 = vadd.f32 %v844, %v1618
      %v1620 = vpop.f32.mrb[0].mxu0
      %v1621 = vadd.f32 %v840, %v1620
      %v1622 = vpop.f32.mrb[0].mxu0
      %v1623 = vadd.f32 %v844, %v1622
      %1624 = vdwg.mxu0
      %v1625 = vld [vmem:[#allocation2] sm:$0xff]
      %v1626 = vmax.f32 %v1208, %v1212
      %v1627 = vmax.f32 %v1626, %v1218
      %v1628 = vmax.f32 %v1627, %v1222
      %v1629 = vmax.f32 %v1628, %v1228
      %v1630 = vmax.f32 %v1629, %v1232
      %v1631 = vmax.f32 %v1630, %v1238
      %v1632 = vmax.f32 %v1631, %v1242
      %v1633 = vmax.f32 %v1632, %v1248
      %v1634 = vmax.f32 %v1633, %v1252
      %v1635 = vmax.f32 %v1634, %v1258
      %v1636 = vmax.f32 %v1635, %v1262
      %v1637 = vmax.f32 %v1636, %v1268
      %v1638 = vmax.f32 %v1637, %v1272
      %v1639 = vmax.f32 %v1638, %v1278
      %v1640 = vmax.f32 %v1639, %v1282
      %v1641 = vrot.slane %v1640, 4
      %v1642 = vmax.f32 %v1640, %v1641
      %v1643 = vrot.slane %v1642, 2
      %v1644 = vmax.f32 %v1642, %v1643
      %v1645 = vrot.slane %v1644, 1
      %v1646 = vmax.f32 %v1644, %v1645
      %v1647 = vmax.f32 %v1210, %v1214
      %v1648 = vmax.f32 %v1647, %v1220
      %v1649 = vmax.f32 %v1648, %v1224
      %v1650 = vmax.f32 %v1649, %v1230
      %v1651 = vmax.f32 %v1650, %v1234
      %v1652 = vmax.f32 %v1651, %v1240
      %v1653 = vmax.f32 %v1652, %v1244
      %v1654 = vmax.f32 %v1653, %v1250
      %v1655 = vmax.f32 %v1654, %v1254
      %v1656 = vmax.f32 %v1655, %v1260
      %v1657 = vmax.f32 %v1656, %v1264
      %v1658 = vmax.f32 %v1657, %v1270
      %v1659 = vmax.f32 %v1658, %v1274
      %v1660 = vmax.f32 %v1659, %v1280
      %v1661 = vmax.f32 %v1660, %v1284
      %v1662 = vrot.slane %v1661, 4
      %v1663 = vmax.f32 %v1661, %v1662
      %v1664 = vrot.slane %v1663, 2
      %v1665 = vmax.f32 %v1663, %v1664
      %v1666 = vrot.slane %v1665, 1
      %v1667 = vmax.f32 %v1665, %v1666
      %v1668 = vmax.f32 %v1321, %v1325
      %v1669 = vmax.f32 %v1668, %v1331
      %v1670 = vmax.f32 %v1669, %v1335
      %v1671 = vmax.f32 %v1670, %v1341
      %v1672 = vmax.f32 %v1671, %v1345
      %v1673 = vmax.f32 %v1672, %v1351
      %v1674 = vmax.f32 %v1673, %v1355
      %v1675 = vmax.f32 %v1674, %v1361
      %v1676 = vmax.f32 %v1675, %v1365
      %v1677 = vmax.f32 %v1676, %v1371
      %v1678 = vmax.f32 %v1677, %v1375
      %v1679 = vmax.f32 %v1678, %v1381
      %v1680 = vmax.f32 %v1679, %v1385
      %v1681 = vmax.f32 %v1680, %v1391
      %v1682 = vmax.f32 %v1681, %v1395
      %v1683 = vrot.slane %v1682, 4
      %v1684 = vmax.f32 %v1682, %v1683
      %v1685 = vrot.slane %v1684, 2
      %v1686 = vmax.f32 %v1684, %v1685
      %v1687 = vrot.slane %v1686, 1
      %v1688 = vmax.f32 %v1686, %v1687
      %v1689 = vmax.f32 %v1323, %v1327
      %v1690 = vmax.f32 %v1689, %v1333
      %v1691 = vmax.f32 %v1690, %v1337
      %v1692 = vmax.f32 %v1691, %v1343
      %v1693 = vmax.f32 %v1692, %v1347
      %v1694 = vmax.f32 %v1693, %v1353
      %v1695 = vmax.f32 %v1694, %v1357
      %v1696 = vmax.f32 %v1695, %v1363
      %v1697 = vmax.f32 %v1696, %v1367
      %v1698 = vmax.f32 %v1697, %v1373
      %v1699 = vmax.f32 %v1698, %v1377
      %v1700 = vmax.f32 %v1699, %v1383
      %v1701 = vmax.f32 %v1700, %v1387
      %v1702 = vmax.f32 %v1701, %v1393
      %v1703 = vmax.f32 %v1702, %v1397
      %v1704 = vrot.slane %v1703, 4
      %v1705 = vmax.f32 %v1703, %v1704
      %v1706 = vrot.slane %v1705, 2
      %v1707 = vmax.f32 %v1705, %v1706
      %v1708 = vrot.slane %v1707, 1
      %v1709 = vmax.f32 %v1707, %v1708
      %v1710 = vmax.f32 %v1434, %v1438
      %v1711 = vmax.f32 %v1710, %v1444
      %v1712 = vmax.f32 %v1711, %v1448
      %v1713 = vmax.f32 %v1712, %v1454
      %v1714 = vmax.f32 %v1713, %v1458
      %v1715 = vmax.f32 %v1714, %v1464
      %v1716 = vmax.f32 %v1715, %v1468
      %v1717 = vmax.f32 %v1716, %v1474
      %v1718 = vmax.f32 %v1717, %v1478
      %v1719 = vmax.f32 %v1718, %v1484
      %v1720 = vmax.f32 %v1719, %v1488
      %v1721 = vmax.f32 %v1720, %v1494
      %v1722 = vmax.f32 %v1721, %v1498
      %v1723 = vmax.f32 %v1722, %v1504
      %v1724 = vmax.f32 %v1723, %v1508
      %v1725 = vrot.slane %v1724, 4
      %v1726 = vmax.f32 %v1724, %v1725
      %v1727 = vrot.slane %v1726, 2
      %v1728 = vmax.f32 %v1726, %v1727
      %v1729 = vrot.slane %v1728, 1
      %v1730 = vmax.f32 %v1728, %v1729
      %v1731 = vmax.f32 %v1436, %v1440
      %v1732 = vmax.f32 %v1731, %v1446
      %v1733 = vmax.f32 %v1732, %v1450
      %v1734 = vmax.f32 %v1733, %v1456
      %v1735 = vmax.f32 %v1734, %v1460
      %v1736 = vmax.f32 %v1735, %v1466
      %v1737 = vmax.f32 %v1736, %v1470
      %v1738 = vmax.f32 %v1737, %v1476
      %v1739 = vmax.f32 %v1738, %v1480
      %v1740 = vmax.f32 %v1739, %v1486
      %v1741 = vmax.f32 %v1740, %v1490
      %v1742 = vmax.f32 %v1741, %v1496
      %v1743 = vmax.f32 %v1742, %v1500
      %v1744 = vmax.f32 %v1743, %v1506
      %v1745 = vmax.f32 %v1744, %v1510
      %v1746 = vrot.slane %v1745, 4
      %v1747 = vmax.f32 %v1745, %v1746
      %v1748 = vrot.slane %v1747, 2
      %v1749 = vmax.f32 %v1747, %v1748
      %v1750 = vrot.slane %v1749, 1
      %v1751 = vmax.f32 %v1749, %v1750
      %v1752 = vmax.f32 %v1547, %v1551
      %v1753 = vmax.f32 %v1752, %v1557
      %v1754 = vmax.f32 %v1753, %v1561
      %v1755 = vmax.f32 %v1754, %v1567
      %v1756 = vmax.f32 %v1755, %v1571
      %v1757 = vmax.f32 %v1756, %v1577
      %v1758 = vmax.f32 %v1757, %v1581
      %v1759 = vmax.f32 %v1758, %v1587
      %v1760 = vmax.f32 %v1759, %v1591
      %v1761 = vmax.f32 %v1760, %v1597
      %v1762 = vmax.f32 %v1761, %v1601
      %v1763 = vmax.f32 %v1762, %v1607
      %v1764 = vmax.f32 %v1763, %v1611
      %v1765 = vmax.f32 %v1764, %v1617
      %v1766 = vmax.f32 %v1765, %v1621
      %v1767 = vrot.slane %v1766, 4
      %v1768 = vmax.f32 %v1766, %v1767
      %v1769 = vrot.slane %v1768, 2
      %v1770 = vmax.f32 %v1768, %v1769
      %v1771 = vrot.slane %v1770, 1
      %v1772 = vmax.f32 %v1770, %v1771
      %v1773 = vmax.f32 %v1549, %v1553
      %v1774 = vmax.f32 %v1773, %v1559
      %v1775 = vmax.f32 %v1774, %v1563
      %v1776 = vmax.f32 %v1775, %v1569
      %v1777 = vmax.f32 %v1776, %v1573
      %v1778 = vmax.f32 %v1777, %v1579
      %v1779 = vmax.f32 %v1778, %v1583
      %v1780 = vmax.f32 %v1779, %v1589
      %v1781 = vmax.f32 %v1780, %v1593
      %v1782 = vmax.f32 %v1781, %v1599
      %v1783 = vmax.f32 %v1782, %v1603
      %v1784 = vmax.f32 %v1783, %v1609
      %v1785 = vmax.f32 %v1784, %v1613
      %v1786 = vmax.f32 %v1785, %v1619
      %v1787 = vmax.f32 %v1786, %v1623
      %v1788 = vrot.slane %v1787, 4
      %v1789 = vmax.f32 %v1787, %v1788
      %v1790 = vrot.slane %v1789, 2
      %v1791 = vmax.f32 %v1789, %v1790
      %v1792 = vrot.slane %v1791, 1
      %v1793 = vmax.f32 %v1791, %v1792
      %v1802 = vcombine.low %v1646, %v1667
      %v1803 = vcombine.low %v1688, %v1709
      %v1804 = vcombine.low %v1730, %v1751
      %v1805 = vcombine.low %v1772, %v1793
      %v1807 = vunpack.c.l.s4 1966171168
      %v1808 = vunpack.c.0.s8 %v1807
      %v1809 = vlaneseq
      %v1810 = vshrl.u32 %v1809, 7
      %v1811 = vsub.s32 %v1808, %v1810
      %v1812 = vrot.slane %v1802, %v1811
      %v1814 = vunpack.c.l.s4 1966171168
      %v1815 = vunpack.c.0.s8 %v1814
      %v1816 = vlaneseq
      %v1817 = vshrl.u32 %v1816, 7
      %v1818 = vsub.s32 %v1815, %v1817
      %v1819 = vrot.slane %v1803, %v1818
      %v1821 = vunpack.c.l.s4 1966171168
      %v1822 = vunpack.c.0.s8 %v1821
      %v1823 = vlaneseq
      %v1824 = vshrl.u32 %v1823, 7
      %v1825 = vsub.s32 %v1822, %v1824
      %v1826 = vrot.slane %v1804, %v1825
      %v1828 = vunpack.c.l.s4 1966171168
      %v1829 = vunpack.c.0.s8 %v1828
      %v1830 = vlaneseq
      %v1831 = vshrl.u32 %v1830, 7
      %v1832 = vsub.s32 %v1829, %v1831
      %v1833 = vrot.slane %v1805, %v1832
      %v1834 = vcombine.low %v1812, %v1819
      %v1835 = vcombine.low %v1826, %v1833
      %v1837 = vunpack.c.l.s4 1966171168
      %v1838 = vunpack.c.0.s8 %v1837
      %v1839 = vlaneseq
      %v1840 = vshrl.u32 %v1839, 7
      %v1841 = vsub.s32 %v1838, %v1840
      %v1842 = vrot.slane %v1834, %v1841
      %v1844 = vunpack.c.l.s4 1966171168
      %v1845 = vunpack.c.0.s8 %v1844
      %v1846 = vlaneseq
      %v1847 = vshrl.u32 %v1846, 7
      %v1848 = vsub.s32 %v1845, %v1847
      %v1849 = vrot.slane %v1835, %v1848
      %v1850 = vcombine.low %v1842, %v1849
      %v1852 = vmax.f32 %v1625, %v1850
      %1853 = vst [vmem:[#allocation2] sm:$0xff] %v1852
      // Predicated region
      $region53: #{pointnet_reg_forward_pallas.6} parent=47 // pred_check
        %p1854 = pneg %p343
      $region54: #{pointnet_reg_forward_pallas.6} parent=47 // pred_check_branch
        %1856 = sbr.rel (%p1854) target = $region56
      $region55: #{pointnet_reg_forward_pallas.6} parent=47 // pred_region
        %v1857 = vld [vmem:[#allocation2] sm:$0xff]
        %1858 = vst [vmem:[%s341] sm:$0xff] %v1857
      $region56: #{pointnet_reg_forward_pallas.6} parent=47 // pred_fallthru
        _
      %p1859 = scmp.lt.s32.totalorder %s22, 1
      %s1860 = scalar_select %p1859, %s22, 1
      %s1861 = smul.addr %s1860, 8
      %s1862 = scalar_lea.vmem %s7, %s1861
      // Predicated region
      $region57: #{pointnet_reg_forward_pallas.6} parent=47 // pred_check
        %p1863 = pneg %p212
      $region58: #{pointnet_reg_forward_pallas.6} parent=47 // pred_check_branch
        %1865 = sbr.rel (%p1863) target = $region60
      $region59: #{pointnet_reg_forward_pallas.6} parent=47 // pred_region
        _
      $region60: #{pointnet_reg_forward_pallas.6} parent=47 // pred_fallthru
        _
    $region48: #{pointnet_reg_forward_pallas.6} parent=5 // pred_fallthru
      _
    %p1866 = scmp.le.s32.totalorder 2, %s13
    // Predicated region
    $region61: #{pointnet_reg_forward_pallas.6} parent=5 // pred_check
      %p1867 = pneg %p1866
    $region62: #{pointnet_reg_forward_pallas.6} parent=5 // pred_check_branch
      %1869 = sbr.rel (%p1867) target = $region64
    $region63: #{pointnet_reg_forward_pallas.6} parent=5 // pred_region
      %s1870 = ssub.s32 %s13, 2
      // Predicated region
      $region65: #{pointnet_reg_forward_pallas.6} parent=63 // pred_check
        %p1871 = pneg %p218
      $region66: #{pointnet_reg_forward_pallas.6} parent=63 // pred_check_branch
        %1873 = sbr.rel (%p1871) target = $region68
      $region67: #{pointnet_reg_forward_pallas.6} parent=63 // pred_region
        %p1874 = scmp.lt.s32.totalorder %s24, 1
        %s1875 = scalar_select %p1874, %s24, 1
        %s1876 = smul.addr %s1875, 8
        %s1877 = scalar_lea.vmem %s7, %s1876
      $region68: #{pointnet_reg_forward_pallas.6} parent=63 // pred_fallthru
        _
    $region64: #{pointnet_reg_forward_pallas.6} parent=5 // pred_fallthru
      _
  $region6: #{pointnet_reg_forward_pallas.6} parent=0 // loop_footer
    %s17 = sadd.s32 1, %s13
  $region7: #{pointnet_reg_forward_pallas.6} parent=0 // loop_footer_branch
    %12 = sbr.rel target = $region3
  $region8: #{pointnet_reg_forward_pallas.6} parent=0 // loop_exit
    _

// kernel: pointnet_reg_forward_pallas.7
$region0: #{pointnet_reg_forward_pallas.7}
  #allocation0 [shape = 'u32[]', space=smem, size = 0x4, offset = 0x4, fixed_abs, tag = 'smem constant byte address 0x4 - core index']
  #allocation1 [shape = 'u32[144,128]{1,0:T(1,128)}', space=vmem, size = 0x12000, scoped, tag = 'internal scratch']
  %s0 = inlined_call_operand.vmem [shape: bf16[2,128,6], index: 0, kind: input, shape index: {}]
  %s1 = inlined_call_operand.vmem [shape: bf16[2,6,64], index: 1, kind: input, shape index: {}]
  %s2 = inlined_call_operand.vmem [shape: f32[1,64], index: 2, kind: input, shape index: {}]
  %s3 = inlined_call_operand.vmem [shape: bf16[2,64,512], index: 3, kind: input, shape index: {}]
  %s4 = inlined_call_operand.vmem [shape: f32[2,1,512], index: 4, kind: input, shape index: {}]
  %s5 = inlined_call_operand.vmem [shape: bf16[512,256], index: 5, kind: input, shape index: {}]
  %s6 = inlined_call_operand.vmem [shape: f32[1,256], index: 6, kind: input, shape index: {}]
  %s7 = inlined_call_operand.vmem [shape: bf16[256,128], index: 7, kind: input, shape index: {}]
  %s8 = inlined_call_operand.vmem [shape: f32[1,128], index: 8, kind: input, shape index: {}]
  %s9 = inlined_call_operand.vmem [shape: bf16[128,8], index: 9, kind: input, shape index: {}]
  %s10 = inlined_call_operand.vmem [shape: f32[1,8], index: 10, kind: input, shape index: {}]
  %s11 = inlined_call_operand.vmem [shape: f32[2,128,8], index: 11, kind: output, shape index: {}]
  %s12 = sld [smem:[#allocation0]]
  $region77: #{pointnet_reg_forward_pallas.7} parent=0
    _
  %s14 = ssub.s32 1, %s12
  %s15 = scalar_select 0, %s14, %s12
  loop: start=0, step=1, limit=4
  $region2: #{pointnet_reg_forward_pallas.7} parent=0 // loop_pre_header
    _
  $region3: #{pointnet_reg_forward_pallas.7} parent=0 // loop_header
    %s17 = sphi 0, %s21
    %p18 = scmp.ge.s32.totalorder %s17, 4
    %s24 = sphi 0, %s36
    %s25 = sphi 0, %s32
    %s26 = sphi 0, %s24
    %s27 = sphi 0, %s25
    %s28 = sphi 0, %s26
    %s29 = sphi 0, %s27
    %s41 = sphi 0, %s43
    %s44 = sphi 0, %s41
    %s45 = sphi 0, %s44
    %s61 = sphi 0, %s45
    %s67 = sphi 0, %s69
    %s70 = sphi 0, %s67
    %s71 = sphi 0, %s70
    %s87 = sphi 0, %s71
    %s91 = sphi 0, %s91
    %s93 = sphi 0, %s91
    %s94 = sphi 0, %s93
    %s108 = sphi 0, %s94
    %s114 = sphi 0, %s116
    %s117 = sphi 0, %s114
    %s118 = sphi 0, %s117
    %s134 = sphi 0, %s118
    %s140 = sphi 0, %s142
    %s143 = sphi 0, %s140
    %s144 = sphi 0, %s143
    %s160 = sphi 0, %s144
    %s164 = sphi 0, %s164
    %s166 = sphi 0, %s164
    %s167 = sphi 0, %s166
    %s181 = sphi 0, %s167
    %s185 = sphi 0, %s185
    %s187 = sphi 0, %s185
    %s188 = sphi 0, %s187
    %s202 = sphi 0, %s188
    %s206 = sphi 0, %s206
    %s208 = sphi 0, %s206
    %s209 = sphi 0, %s208
    %s223 = sphi 0, %s209
    %s227 = sphi 0, %s227
    %s229 = sphi 0, %s227
    %s230 = sphi 0, %s229
    %s244 = sphi 0, %s230
    %s248 = sphi 0, %s248
    %s250 = sphi 0, %s248
    %s251 = sphi 0, %s250
    %s265 = sphi 0, %s251
    %s269 = sphi 0, %s269
    %s271 = sphi 0, %s269
    %s272 = sphi 0, %s271
    %s286 = sphi 0, %s272
    %s294 = sphi 0, %s296
    %s297 = sphi 0, %s294
    %s298 = sphi 0, %s297
    %s314 = sphi 0, %s298
  $region4: #{pointnet_reg_forward_pallas.7} parent=0 // loop_header_branch
    %20 = sbr.rel (%p18) target = $region8
  $region5: #{pointnet_reg_forward_pallas.7} parent=0 // loop_body
    %s22 = ssub.s32 %s17, 1
    %s23 = ssub.s32 %s17, 2
    %s30 = sadd.s32 1, %s25
    %p31 = scmp.ge.s32.totalorder %s30, 1
    %s32 = scalar_select %p31, 0, %s30
    %s33 = sadd.s32 1, %s24
    %s34 = scalar_select %p31, %s33, %s24
    %p35 = scmp.ge.s32.totalorder %s34, 2
    %s36 = scalar_select %p35, 0, %s34
    %s37 = ssub.s32 %s24, %s36
    %s38 = ssub.s32 %s25, %s32
    %s39 = sor.u32 %s37, %s38
    %p40 = scmp.eq.s32.totalorder %s39, 0
    %s42 = sadd.s32 %s41, 1
    %s43 = scalar_select %p40, %s41, %s42
    %p46 = pneg %p40
    %p47 = scmp.eq.s32.totalorder %s17, 1
    %p48 = por %p46, %p47
    %p49 = scmp.ne.s32.totalorder %s41, %s44
    %p50 = scmp.eq.s32.totalorder %s17, 0
    %p51 = por %p49, %p50
    %p52 = scmp.ne.s32.totalorder %s41, %s44
    %p53 = scmp.eq.s32.totalorder %s22, 1
    %p54 = por %p52, %p53
    %p55 = scmp.ne.s32.totalorder %s44, %s45
    %p56 = scmp.eq.s32.totalorder %s22, 0
    %p57 = por %p55, %p56
    %p58 = scmp.ne.s32.totalorder %s44, %s45
    %p59 = scmp.eq.s32.totalorder %s23, 1
    %p60 = por %p58, %p59
    %p62 = scmp.ne.s32.totalorder %s45, %s61
    %p63 = scmp.eq.s32.totalorder %s23, 0
    %p64 = por %p62, %p63
    %s65 = ssub.s32 %s24, %s36
    %p66 = scmp.eq.s32.totalorder %s65, 0
    %s68 = sadd.s32 %s67, 1
    %s69 = scalar_select %p66, %s67, %s68
    %p72 = pneg %p66
    %p73 = scmp.eq.s32.totalorder %s17, 1
    %p74 = por %p72, %p73
    %p75 = scmp.ne.s32.totalorder %s67, %s70
    %p76 = scmp.eq.s32.totalorder %s17, 0
    %p77 = por %p75, %p76
    %p78 = scmp.ne.s32.totalorder %s67, %s70
    %p79 = scmp.eq.s32.totalorder %s22, 1
    %p80 = por %p78, %p79
    %p81 = scmp.ne.s32.totalorder %s70, %s71
    %p82 = scmp.eq.s32.totalorder %s22, 0
    %p83 = por %p81, %p82
    %p84 = scmp.ne.s32.totalorder %s70, %s71
    %p85 = scmp.eq.s32.totalorder %s23, 1
    %p86 = por %p84, %p85
    %p88 = scmp.ne.s32.totalorder %s71, %s87
    %p89 = scmp.eq.s32.totalorder %s23, 0
    %p90 = por %p88, %p89
    %s92 = sadd.s32 %s91, 1
    %p95 = scmp.eq.s32.totalorder %s17, 1
    %p96 = scmp.ne.s32.totalorder %s91, %s93
    %p97 = scmp.eq.s32.totalorder %s17, 0
    %p98 = por %p96, %p97
    %p99 = scmp.ne.s32.totalorder %s91, %s93
    %p100 = scmp.eq.s32.totalorder %s22, 1
    %p101 = por %p99, %p100
    %p102 = scmp.ne.s32.totalorder %s93, %s94
    %p103 = scmp.eq.s32.totalorder %s22, 0
    %p104 = por %p102, %p103
    %p105 = scmp.ne.s32.totalorder %s93, %s94
    %p106 = scmp.eq.s32.totalorder %s23, 1
    %p107 = por %p105, %p106
    %p109 = scmp.ne.s32.totalorder %s94, %s108
    %p110 = scmp.eq.s32.totalorder %s23, 0
    %p111 = por %p109, %p110
    %s112 = ssub.s32 %s24, %s36
    %p113 = scmp.eq.s32.totalorder %s112, 0
    %s115 = sadd.s32 %s114, 1
    %s116 = scalar_select %p113, %s114, %s115
    %p119 = pneg %p113
    %p120 = scmp.eq.s32.totalorder %s17, 1
    %p121 = por %p119, %p120
    %p122 = scmp.ne.s32.totalorder %s114, %s117
    %p123 = scmp.eq.s32.totalorder %s17, 0
    %p124 = por %p122, %p123
    %p125 = scmp.ne.s32.totalorder %s114, %s117
    %p126 = scmp.eq.s32.totalorder %s22, 1
    %p127 = por %p125, %p126
    %p128 = scmp.ne.s32.totalorder %s117, %s118
    %p129 = scmp.eq.s32.totalorder %s22, 0
    %p130 = por %p128, %p129
    %p131 = scmp.ne.s32.totalorder %s117, %s118
    %p132 = scmp.eq.s32.totalorder %s23, 1
    %p133 = por %p131, %p132
    %p135 = scmp.ne.s32.totalorder %s118, %s134
    %p136 = scmp.eq.s32.totalorder %s23, 0
    %p137 = por %p135, %p136
    %s138 = ssub.s32 %s24, %s36
    %p139 = scmp.eq.s32.totalorder %s138, 0
    %s141 = sadd.s32 %s140, 1
    %s142 = scalar_select %p139, %s140, %s141
    %p145 = pneg %p139
    %p146 = scmp.eq.s32.totalorder %s17, 1
    %p147 = por %p145, %p146
    %p148 = scmp.ne.s32.totalorder %s140, %s143
    %p149 = scmp.eq.s32.totalorder %s17, 0
    %p150 = por %p148, %p149
    %p151 = scmp.ne.s32.totalorder %s140, %s143
    %p152 = scmp.eq.s32.totalorder %s22, 1
    %p153 = por %p151, %p152
    %p154 = scmp.ne.s32.totalorder %s143, %s144
    %p155 = scmp.eq.s32.totalorder %s22, 0
    %p156 = por %p154, %p155
    %p157 = scmp.ne.s32.totalorder %s143, %s144
    %p158 = scmp.eq.s32.totalorder %s23, 1
    %p159 = por %p157, %p158
    %p161 = scmp.ne.s32.totalorder %s144, %s160
    %p162 = scmp.eq.s32.totalorder %s23, 0
    %p163 = por %p161, %p162
    %s165 = sadd.s32 %s164, 1
    %p168 = scmp.eq.s32.totalorder %s17, 1
    %p169 = scmp.ne.s32.totalorder %s164, %s166
    %p170 = scmp.eq.s32.totalorder %s17, 0
    %p171 = por %p169, %p170
    %p172 = scmp.ne.s32.totalorder %s164, %s166
    %p173 = scmp.eq.s32.totalorder %s22, 1
    %p174 = por %p172, %p173
    %p175 = scmp.ne.s32.totalorder %s166, %s167
    %p176 = scmp.eq.s32.totalorder %s22, 0
    %p177 = por %p175, %p176
    %p178 = scmp.ne.s32.totalorder %s166, %s167
    %p179 = scmp.eq.s32.totalorder %s23, 1
    %p180 = por %p178, %p179
    %p182 = scmp.ne.s32.totalorder %s167, %s181
    %p183 = scmp.eq.s32.totalorder %s23, 0
    %p184 = por %p182, %p183
    %s186 = sadd.s32 %s185, 1
    %p189 = scmp.eq.s32.totalorder %s17, 1
    %p190 = scmp.ne.s32.totalorder %s185, %s187
    %p191 = scmp.eq.s32.totalorder %s17, 0
    %p192 = por %p190, %p191
    %p193 = scmp.ne.s32.totalorder %s185, %s187
    %p194 = scmp.eq.s32.totalorder %s22, 1
    %p195 = por %p193, %p194
    %p196 = scmp.ne.s32.totalorder %s187, %s188
    %p197 = scmp.eq.s32.totalorder %s22, 0
    %p198 = por %p196, %p197
    %p199 = scmp.ne.s32.totalorder %s187, %s188
    %p200 = scmp.eq.s32.totalorder %s23, 1
    %p201 = por %p199, %p200
    %p203 = scmp.ne.s32.totalorder %s188, %s202
    %p204 = scmp.eq.s32.totalorder %s23, 0
    %p205 = por %p203, %p204
    %s207 = sadd.s32 %s206, 1
    %p210 = scmp.eq.s32.totalorder %s17, 1
    %p211 = scmp.ne.s32.totalorder %s206, %s208
    %p212 = scmp.eq.s32.totalorder %s17, 0
    %p213 = por %p211, %p212
    %p214 = scmp.ne.s32.totalorder %s206, %s208
    %p215 = scmp.eq.s32.totalorder %s22, 1
    %p216 = por %p214, %p215
    %p217 = scmp.ne.s32.totalorder %s208, %s209
    %p218 = scmp.eq.s32.totalorder %s22, 0
    %p219 = por %p217, %p218
    %p220 = scmp.ne.s32.totalorder %s208, %s209
    %p221 = scmp.eq.s32.totalorder %s23, 1
    %p222 = por %p220, %p221
    %p224 = scmp.ne.s32.totalorder %s209, %s223
    %p225 = scmp.eq.s32.totalorder %s23, 0
    %p226 = por %p224, %p225
    %s228 = sadd.s32 %s227, 1
    %p231 = scmp.eq.s32.totalorder %s17, 1
    %p232 = scmp.ne.s32.totalorder %s227, %s229
    %p233 = scmp.eq.s32.totalorder %s17, 0
    %p234 = por %p232, %p233
    %p235 = scmp.ne.s32.totalorder %s227, %s229
    %p236 = scmp.eq.s32.totalorder %s22, 1
    %p237 = por %p235, %p236
    %p238 = scmp.ne.s32.totalorder %s229, %s230
    %p239 = scmp.eq.s32.totalorder %s22, 0
    %p240 = por %p238, %p239
    %p241 = scmp.ne.s32.totalorder %s229, %s230
    %p242 = scmp.eq.s32.totalorder %s23, 1
    %p243 = por %p241, %p242
    %p245 = scmp.ne.s32.totalorder %s230, %s244
    %p246 = scmp.eq.s32.totalorder %s23, 0
    %p247 = por %p245, %p246
    %s249 = sadd.s32 %s248, 1
    %p252 = scmp.eq.s32.totalorder %s17, 1
    %p253 = scmp.ne.s32.totalorder %s248, %s250
    %p254 = scmp.eq.s32.totalorder %s17, 0
    %p255 = por %p253, %p254
    %p256 = scmp.ne.s32.totalorder %s248, %s250
    %p257 = scmp.eq.s32.totalorder %s22, 1
    %p258 = por %p256, %p257
    %p259 = scmp.ne.s32.totalorder %s250, %s251
    %p260 = scmp.eq.s32.totalorder %s22, 0
    %p261 = por %p259, %p260
    %p262 = scmp.ne.s32.totalorder %s250, %s251
    %p263 = scmp.eq.s32.totalorder %s23, 1
    %p264 = por %p262, %p263
    %p266 = scmp.ne.s32.totalorder %s251, %s265
    %p267 = scmp.eq.s32.totalorder %s23, 0
    %p268 = por %p266, %p267
    %s270 = sadd.s32 %s269, 1
    %p273 = scmp.eq.s32.totalorder %s17, 1
    %p274 = scmp.ne.s32.totalorder %s269, %s271
    %p275 = scmp.eq.s32.totalorder %s17, 0
    %p276 = por %p274, %p275
    %p277 = scmp.ne.s32.totalorder %s269, %s271
    %p278 = scmp.eq.s32.totalorder %s22, 1
    %p279 = por %p277, %p278
    %p280 = scmp.ne.s32.totalorder %s271, %s272
    %p281 = scmp.eq.s32.totalorder %s22, 0
    %p282 = por %p280, %p281
    %p283 = scmp.ne.s32.totalorder %s271, %s272
    %p284 = scmp.eq.s32.totalorder %s23, 1
    %p285 = por %p283, %p284
    %p287 = scmp.ne.s32.totalorder %s272, %s286
    %p288 = scmp.eq.s32.totalorder %s23, 0
    %p289 = por %p287, %p288
    %s290 = ssub.s32 %s24, %s36
    %s291 = ssub.s32 %s25, %s32
    %s292 = sor.u32 %s290, %s291
    %p293 = scmp.eq.s32.totalorder %s292, 0
    %s295 = sadd.s32 %s294, 1
    %s296 = scalar_select %p293, %s294, %s295
    %p299 = pneg %p293
    %p300 = scmp.eq.s32.totalorder %s17, 1
    %p301 = por %p299, %p300
    %p302 = scmp.ne.s32.totalorder %s294, %s297
    %p303 = scmp.eq.s32.totalorder %s17, 0
    %p304 = por %p302, %p303
    %p305 = scmp.ne.s32.totalorder %s294, %s297
    %p306 = scmp.eq.s32.totalorder %s22, 1
    %p307 = por %p305, %p306
    %p308 = scmp.ne.s32.totalorder %s297, %s298
    %p309 = scmp.eq.s32.totalorder %s22, 0
    %p310 = por %p308, %p309
    %p311 = scmp.ne.s32.totalorder %s297, %s298
    %p312 = scmp.eq.s32.totalorder %s23, 1
    %p313 = por %p311, %p312
    %p315 = scmp.ne.s32.totalorder %s298, %s314
    %p316 = scmp.eq.s32.totalorder %s23, 0
    %p317 = por %p315, %p316
    %p318 = scmp.le.s32.totalorder 1, %s17
    %p319 = scmp.lt.s32.totalorder %s17, 3
    %p320 = pnand %p318, %p319
    %p321 = pneg %p320
    // Predicated region
    $region9: #{pointnet_reg_forward_pallas.7} parent=5 // pred_check
      _
    $region10: #{pointnet_reg_forward_pallas.7} parent=5 // pred_check_branch
      %323 = sbr.rel (%p320) target = $region12
    $region11: #{pointnet_reg_forward_pallas.7} parent=5 // pred_region
      %s324 = ssub.s32 %s17, 1
      // Predicated region
      $region13: #{pointnet_reg_forward_pallas.7} parent=11 // pred_check
        %p325 = pneg %p104
      $region14: #{pointnet_reg_forward_pallas.7} parent=11 // pred_check_branch
        %327 = sbr.rel (%p325) target = $region16
      $region15: #{pointnet_reg_forward_pallas.7} parent=11 // pred_region
        _
      $region16: #{pointnet_reg_forward_pallas.7} parent=11 // pred_fallthru
        _
      // Predicated region
      $region17: #{pointnet_reg_forward_pallas.7} parent=11 // pred_check
        %p328 = pneg %p177
      $region18: #{pointnet_reg_forward_pallas.7} parent=11 // pred_check_branch
        %330 = sbr.rel (%p328) target = $region20
      $region19: #{pointnet_reg_forward_pallas.7} parent=11 // pred_region
        _
      $region20: #{pointnet_reg_forward_pallas.7} parent=11 // pred_fallthru
        _
      // Predicated region
      $region21: #{pointnet_reg_forward_pallas.7} parent=11 // pred_check
        %p331 = pneg %p198
      $region22: #{pointnet_reg_forward_pallas.7} parent=11 // pred_check_branch
        %333 = sbr.rel (%p331) target = $region24
      $region23: #{pointnet_reg_forward_pallas.7} parent=11 // pred_region
        _
      $region24: #{pointnet_reg_forward_pallas.7} parent=11 // pred_fallthru
        _
      // Predicated region
      $region25: #{pointnet_reg_forward_pallas.7} parent=11 // pred_check
        %p334 = pneg %p219
      $region26: #{pointnet_reg_forward_pallas.7} parent=11 // pred_check_branch
        %336 = sbr.rel (%p334) target = $region28
      $region27: #{pointnet_reg_forward_pallas.7} parent=11 // pred_region
        _
      $region28: #{pointnet_reg_forward_pallas.7} parent=11 // pred_fallthru
        _
      // Predicated region
      $region29: #{pointnet_reg_forward_pallas.7} parent=11 // pred_check
        %p337 = pneg %p240
      $region30: #{pointnet_reg_forward_pallas.7} parent=11 // pred_check_branch
        %339 = sbr.rel (%p337) target = $region32
      $region31: #{pointnet_reg_forward_pallas.7} parent=11 // pred_region
        _
      $region32: #{pointnet_reg_forward_pallas.7} parent=11 // pred_fallthru
        _
      // Predicated region
      $region33: #{pointnet_reg_forward_pallas.7} parent=11 // pred_check
        %p340 = pneg %p261
      $region34: #{pointnet_reg_forward_pallas.7} parent=11 // pred_check_branch
        %342 = sbr.rel (%p340) target = $region36
      $region35: #{pointnet_reg_forward_pallas.7} parent=11 // pred_region
        _
      $region36: #{pointnet_reg_forward_pallas.7} parent=11 // pred_fallthru
        _
      // Predicated region
      $region37: #{pointnet_reg_forward_pallas.7} parent=11 // pred_check
        %p343 = pneg %p282
      $region38: #{pointnet_reg_forward_pallas.7} parent=11 // pred_check_branch
        %345 = sbr.rel (%p343) target = $region40
      $region39: #{pointnet_reg_forward_pallas.7} parent=11 // pred_region
        _
      $region40: #{pointnet_reg_forward_pallas.7} parent=11 // pred_fallthru
        _
    $region12: #{pointnet_reg_forward_pallas.7} parent=5 // pred_fallthru
      _
    %p346 = scmp.lt.s32.totalorder %s17, 2
    // Predicated region
    $region41: #{pointnet_reg_forward_pallas.7} parent=5 // pred_check
      %p347 = pneg %p346
    $region42: #{pointnet_reg_forward_pallas.7} parent=5 // pred_check_branch
      %349 = sbr.rel (%p347) target = $region44
    $region43: #{pointnet_reg_forward_pallas.7} parent=5 // pred_region
      // Predicated region
      $region45: #{pointnet_reg_forward_pallas.7} parent=43 // pred_check
        %p350 = pneg %p51
      $region46: #{pointnet_reg_forward_pallas.7} parent=43 // pred_check_branch
        %352 = sbr.rel (%p350) target = $region48
      $region47: #{pointnet_reg_forward_pallas.7} parent=43 // pred_region
        %s353 = smul.u32 16, %s25
        %p354 = scmp.lt.s32.totalorder %s24, 1
        %s355 = scalar_select %p354, %s24, 1
        %p356 = scmp.lt.s32.totalorder %s353, 15
        %s357 = scalar_select %p356, %s353, 15
        %s358 = smul.addr %s355, 16
        %s359 = sadd.s32 %s357, %s358
        %s360 = smul.addr %s359, 4
        %s361 = scalar_lea.vmem %s0, %s360
        %s362 = smul.u32 16, %s25
      $region48: #{pointnet_reg_forward_pallas.7} parent=43 // pred_fallthru
        _
      // Predicated region
      $region49: #{pointnet_reg_forward_pallas.7} parent=43 // pred_check
        %p363 = pneg %p77
      $region50: #{pointnet_reg_forward_pallas.7} parent=43 // pred_check_branch
        %365 = sbr.rel (%p363) target = $region52
      $region51: #{pointnet_reg_forward_pallas.7} parent=43 // pred_region
        %p366 = scmp.lt.s32.totalorder %s24, 1
        %s367 = scalar_select %p366, %s24, 1
        %s368 = smul.addr %s367, 4
        %s369 = scalar_lea.vmem %s1, %s368
      $region52: #{pointnet_reg_forward_pallas.7} parent=43 // pred_fallthru
        _
      // Predicated region
      $region53: #{pointnet_reg_forward_pallas.7} parent=43 // pred_check
        %p370 = pneg %p124
      $region54: #{pointnet_reg_forward_pallas.7} parent=43 // pred_check_branch
        %372 = sbr.rel (%p370) target = $region56
      $region55: #{pointnet_reg_forward_pallas.7} parent=43 // pred_region
        %p373 = scmp.lt.s32.totalorder %s24, 1
        %s374 = scalar_select %p373, %s24, 1
        %s375 = smul.addr %s374, 32
        %s376 = smul.addr %s375, 4
        %s377 = scalar_lea.vmem %s3, %s376
      $region56: #{pointnet_reg_forward_pallas.7} parent=43 // pred_fallthru
        _
      // Predicated region
      $region57: #{pointnet_reg_forward_pallas.7} parent=43 // pred_check
        %p378 = pneg %p150
      $region58: #{pointnet_reg_forward_pallas.7} parent=43 // pred_check_branch
        %380 = sbr.rel (%p378) target = $region60
      $region59: #{pointnet_reg_forward_pallas.7} parent=43 // pred_region
        %p381 = scmp.lt.s32.totalorder %s24, 1
        %s382 = scalar_select %p381, %s24, 1
        %s383 = smul.addr %s382, 4
        %s384 = scalar_lea.vmem %s4, %s383
      $region60: #{pointnet_reg_forward_pallas.7} parent=43 // pred_fallthru
        _
    $region44: #{pointnet_reg_forward_pallas.7} parent=5 // pred_fallthru
      _
    %p385 = scmp.le.s32.totalorder 1, %s17
    %p386 = scmp.lt.s32.totalorder %s17, 3
    %p387 = pnand %p385, %p386
    %p388 = pneg %p387
    // Predicated region
    $region61: #{pointnet_reg_forward_pallas.7} parent=5 // pred_check
      _
    $region62: #{pointnet_reg_forward_pallas.7} parent=5 // pred_check_branch
      %390 = sbr.rel (%p387) target = $region64
    $region63: #{pointnet_reg_forward_pallas.7} parent=5 // pred_region
      %s391 = ssub.s32 %s17, 1
      %s392 = smul.u32 16, %s27
      %p393 = scmp.lt.s32.totalorder %s26, 1
      %s394 = scalar_select %p393, %s26, 1
      %p395 = scmp.lt.s32.totalorder %s392, 15
      %s396 = scalar_select %p395, %s392, 15
      %s397 = smul.addr %s394, 16
      %s398 = sadd.s32 %s396, %s397
      %s399 = smul.addr %s398, 4
      %s400 = scalar_lea.vmem %s0, %s399
      %p401 = pneg %p57
      %p402 = pneg %p54
      %p403 = scmp.lt.s32.totalorder %s26, 1
      %s404 = scalar_select %p403, %s26, 1
      %s405 = smul.addr %s404, 4
      %s406 = scalar_lea.vmem %s1, %s405
      %p407 = pneg %p83
      %p408 = pneg %p80
      %p409 = pneg %p104
      %p410 = pneg %p101
      %p411 = scmp.lt.s32.totalorder %s26, 1
      %s412 = scalar_select %p411, %s26, 1
      %s413 = smul.addr %s412, 32
      %s414 = smul.addr %s413, 4
      %s415 = scalar_lea.vmem %s3, %s414
      %p416 = pneg %p130
      %p417 = pneg %p127
      %p418 = scmp.lt.s32.totalorder %s26, 1
      %s419 = scalar_select %p418, %s26, 1
      %s420 = smul.addr %s419, 4
      %s421 = scalar_lea.vmem %s4, %s420
      %p422 = pneg %p156
      %p423 = pneg %p153
      %p424 = pneg %p177
      %p425 = pneg %p174
      %p426 = pneg %p198
      %p427 = pneg %p195
      %p428 = pneg %p219
      %p429 = pneg %p216
      %p430 = pneg %p240
      %p431 = pneg %p237
      %p432 = pneg %p261
      %p433 = pneg %p258
      %p434 = pneg %p282
      %p435 = pneg %p279
      %p436 = pneg %p310
      %p437 = pneg %p307
      %s438 = smul.u32 16, %s27
      %p439 = scmp.lt.s32.totalorder %s26, 1
      %s440 = scalar_select %p439, %s26, 1
      %p441 = scmp.lt.s32.totalorder %s438, 15
      %s442 = scalar_select %p441, %s438, 15
      %s443 = smul.addr %s440, 16
      %s444 = sadd.s32 %s442, %s443
      %s445 = smul.addr %s444, 8
      %s446 = scalar_lea.vmem %s11, %s445
      %s447 = smul.u32 16, %s27
      %p448 = scmp.lt.s32.totalorder %s26, 1
      %s449 = scalar_select %p448, %s26, 1
      %p450 = scmp.lt.s32.totalorder %s447, 15
      %s451 = scalar_select %p450, %s447, 15
      %s452 = smul.addr %s449, 16
      %s453 = sadd.s32 %s451, %s452
      %s454 = smul.addr %s453, 4
      %s455 = scalar_lea.vmem %s0, %s454
      %s456 = smul.u32 16, %s27
      %p457 = scmp.lt.s32.totalorder %s26, 1
      %s458 = scalar_select %p457, %s26, 1
      %s459 = smul.addr %s458, 4
      %s460 = scalar_lea.vmem %s1, %s459
      %p461 = scmp.lt.s32.totalorder %s26, 1
      %s462 = scalar_select %p461, %s26, 1
      %s463 = smul.addr %s462, 32
      %s464 = smul.addr %s463, 4
      %s465 = scalar_lea.vmem %s3, %s464
      %p466 = scmp.lt.s32.totalorder %s26, 1
      %s467 = scalar_select %p466, %s26, 1
      %s468 = smul.addr %s467, 4
      %s469 = scalar_lea.vmem %s4, %s468
      %s470 = smul.u32 16, %s27
      %p471 = scmp.lt.s32.totalorder %s26, 1
      %s472 = scalar_select %p471, %s26, 1
      %p473 = scmp.lt.s32.totalorder %s470, 15
      %s474 = scalar_select %p473, %s470, 15
      %s475 = smul.addr %s472, 16
      %s476 = sadd.s32 %s474, %s475
      %s477 = smul.addr %s476, 8
      %s478 = scalar_lea.vmem %s11, %s477
      %s479 = smul.u32 16, %s27
      %v481 = vld [vmem:[%s455] sm:$0xf]
      %v482 = vld [vmem:[%s455 + $0x4] sm:$0xf]
      %v483 = vld [vmem:[%s455 + $0x8] sm:$0xf]
      %v484 = vld [vmem:[%s455 + $0xc] sm:$0xf]
      %v485 = vld [vmem:[%s455 + $0x10] sm:$0xf]
      %v486 = vld [vmem:[%s455 + $0x14] sm:$0xf]
      %v487 = vld [vmem:[%s455 + $0x18] sm:$0xf]
      %v488 = vld [vmem:[%s455 + $0x1c] sm:$0xf]
      %v489 = vld [vmem:[%s455 + $0x20] sm:$0xf]
      %v490 = vld [vmem:[%s455 + $0x24] sm:$0xf]
      %v491 = vld [vmem:[%s455 + $0x28] sm:$0xf]
      %v492 = vld [vmem:[%s455 + $0x2c] sm:$0xf]
      %v493 = vld [vmem:[%s455 + $0x30] sm:$0xf]
      %v494 = vld [vmem:[%s455 + $0x34] sm:$0xf]
      %v495 = vld [vmem:[%s455 + $0x38] sm:$0xf]
      %v496 = vld [vmem:[%s455 + $0x3c] sm:$0xf]
      %v497 = vld [vmem:[%s460] sm:$0x7]
      %v498 = vld [vmem:[%s2] sm:$0x1]
      %v500 = vlaneseq
      %v501 = vshrl.u32 %v500, 7
      %v502 = vsub.s32 0, %v501
      %v503 = vrot.slane %v498, %v502
      %v521 = vunpack.c.l.b16 %v481
      %v522 = vunpack.c.l.b16 %v482
      %v523 = vunpack.c.l.b16 %v483
      %v524 = vunpack.c.l.b16 %v484
      %v525 = vunpack.c.l.b16 %v485
      %v526 = vunpack.c.l.b16 %v486
      %v527 = vunpack.c.l.b16 %v487
      %v528 = vunpack.c.l.b16 %v488
      %v529 = vunpack.c.l.b16 %v489
      %v530 = vunpack.c.l.b16 %v490
      %v531 = vunpack.c.l.b16 %v491
      %v532 = vunpack.c.l.b16 %v492
      %v533 = vunpack.c.l.b16 %v493
      %v534 = vunpack.c.l.b16 %v494
      %v535 = vunpack.c.l.b16 %v495
      %v536 = vunpack.c.l.b16 %v496
      %v537 = vpack.c.b16 %v522, %v521
      %v538 = vpack.c.b16 %v524, %v523
      %v539 = vpack.c.b16 %v526, %v525
      %v540 = vpack.c.b16 %v528, %v527
      %v541 = vpack.c.b16 %v530, %v529
      %v542 = vpack.c.b16 %v532, %v531
      %v543 = vpack.c.b16 %v534, %v533
      %v544 = vpack.c.b16 %v536, %v535
      %vm545 = vcmask 48128
      %v547 = vsel %vm545, %v537, 0
      %v550 = vsel %vm545, %v538, 0
      %v553 = vsel %vm545, %v539, 0
      %v556 = vsel %vm545, %v540, 0
      %v559 = vsel %vm545, %v541, 0
      %v562 = vsel %vm545, %v542, 0
      %v565 = vsel %vm545, %v543, 0
      %v568 = vsel %vm545, %v544, 0
      %vm570 = vcmask 1042432
      %v572 = vsel %vm570, %v497, 0
      %574 = vmatprep.subr.bf16.mxu0 0
      %575 = vmatpush1.bf16.msra.mxu0 %v572
      %576 = vmatprep.subr.bf16.mxu0 0
      %577 = vmatpush1.bf16.msra.mxu0 0
      %578 = vmatprep.subr.bf16.mxu0 0
      %579 = vmatpush1.bf16.msra.mxu0 0
      %580 = vmatprep.subr.bf16.mxu0 0
      %581 = vmatpush1.bf16.msra.mxu0 0
      %582 = vmatprep.subr.bf16.mxu0 0
      %583 = vmatpush1.bf16.msra.mxu0 0
      %584 = vmatprep.subr.bf16.mxu0 0
      %585 = vmatpush1.bf16.msra.mxu0 0
      %586 = vmatprep.subr.bf16.mxu0 0
      %587 = vmatpush1.bf16.msra.mxu0 0
      %588 = vmatprep.subr.bf16.mxu0 0
      %589 = vmatpush1.bf16.msra.mxu0 0
      %590 = vmatprep.subr.bf16.mxu0 0
      %591 = vmatpush1.bf16.msra.mxu0 0
      %592 = vmatprep.subr.bf16.mxu0 0
      %593 = vmatpush1.bf16.msra.mxu0 0
      %594 = vmatprep.subr.bf16.mxu0 0
      %595 = vmatpush1.bf16.msra.mxu0 0
      %596 = vmatprep.subr.bf16.mxu0 0
      %597 = vmatpush1.bf16.msra.mxu0 0
      %598 = vmatprep.subr.bf16.mxu0 0
      %599 = vmatpush1.bf16.msra.mxu0 0
      %600 = vmatprep.subr.bf16.mxu0 0
      %601 = vmatpush1.bf16.msra.mxu0 0
      %602 = vmatprep.subr.bf16.mxu0 0
      %603 = vmatpush1.bf16.msra.mxu0 0
      %604 = vmatprep.subr.bf16.mxu0 0
      %605 = vmatpush1.bf16.msra.mxu0 0
      %606 = vmatprep.mubr.bf16.mxu0 0
      %607 = vmatmul.mubr.bf16.gmra.mrb[0].mxu0 %v547
      %v608 = vpop.f32.mrb[0].mxu0
      %v609 = vadd.f32 %v503, %v608
      %v610 = vpop.f32.mrb[0].mxu0
      %v611 = vpop.f32.mrb[0].mxu0
      %v612 = vadd.f32 %v503, %v611
      %v613 = vpop.f32.mrb[0].mxu0
      %614 = vmatprep.mubr.bf16.mxu0 0
      %615 = vmatmul.mubr.bf16.gmra.mrb[0].mxu0 %v550
      %v616 = vpop.f32.mrb[0].mxu0
      %v617 = vadd.f32 %v503, %v616
      %v618 = vpop.f32.mrb[0].mxu0
      %v619 = vpop.f32.mrb[0].mxu0
      %v620 = vadd.f32 %v503, %v619
      %v621 = vpop.f32.mrb[0].mxu0
      %622 = vmatprep.mubr.bf16.mxu0 0
      %623 = vmatmul.mubr.bf16.gmra.mrb[0].mxu0 %v553
      %v624 = vpop.f32.mrb[0].mxu0
      %v625 = vadd.f32 %v503, %v624
      %v626 = vpop.f32.mrb[0].mxu0
      %v627 = vpop.f32.mrb[0].mxu0
      %v628 = vadd.f32 %v503, %v627
      %v629 = vpop.f32.mrb[0].mxu0
      %630 = vmatprep.mubr.bf16.mxu0 0
      %631 = vmatmul.mubr.bf16.gmra.mrb[0].mxu0 %v556
      %v632 = vpop.f32.mrb[0].mxu0
      %v633 = vadd.f32 %v503, %v632
      %v634 = vpop.f32.mrb[0].mxu0
      %v635 = vpop.f32.mrb[0].mxu0
      %v636 = vadd.f32 %v503, %v635
      %v637 = vpop.f32.mrb[0].mxu0
      %638 = vmatprep.mubr.bf16.mxu0 0
      %639 = vmatmul.mubr.bf16.gmra.mrb[0].mxu0 %v559
      %v640 = vpop.f32.mrb[0].mxu0
      %v641 = vadd.f32 %v503, %v640
      %v642 = vpop.f32.mrb[0].mxu0
      %v643 = vpop.f32.mrb[0].mxu0
      %v644 = vadd.f32 %v503, %v643
      %v645 = vpop.f32.mrb[0].mxu0
      %646 = vmatprep.mubr.bf16.mxu0 0
      %647 = vmatmul.mubr.bf16.gmra.mrb[0].mxu0 %v562
      %v648 = vpop.f32.mrb[0].mxu0
      %v649 = vadd.f32 %v503, %v648
      %v650 = vpop.f32.mrb[0].mxu0
      %v651 = vpop.f32.mrb[0].mxu0
      %v652 = vadd.f32 %v503, %v651
      %v653 = vpop.f32.mrb[0].mxu0
      %654 = vmatprep.mubr.bf16.mxu0 0
      %655 = vmatmul.mubr.bf16.gmra.mrb[0].mxu0 %v565
      %v656 = vpop.f32.mrb[0].mxu0
      %v657 = vadd.f32 %v503, %v656
      %v658 = vpop.f32.mrb[0].mxu0
      %v659 = vpop.f32.mrb[0].mxu0
      %v660 = vadd.f32 %v503, %v659
      %v661 = vpop.f32.mrb[0].mxu0
      %662 = vmatprep.mubr.bf16.mxu0 0
      %663 = vmatmul.mubr.bf16.gmra.mrb[0].mxu0 %v568
      %v664 = vpop.f32.mrb[0].mxu0
      %v665 = vadd.f32 %v503, %v664
      %v666 = vpop.f32.mrb[0].mxu0
      %v667 = vpop.f32.mrb[0].mxu0
      %v668 = vadd.f32 %v503, %v667
      %v669 = vpop.f32.mrb[0].mxu0
      %670 = vdwg.mxu0
      %v671 = vmax.f32 %v609, 0.0
      %v672 = vmax.f32 %v612, 0.0
      %v673 = vmax.f32 %v617, 0.0
      %v674 = vmax.f32 %v620, 0.0
      %v675 = vmax.f32 %v625, 0.0
      %v676 = vmax.f32 %v628, 0.0
      %v677 = vmax.f32 %v633, 0.0
      %v678 = vmax.f32 %v636, 0.0
      %v679 = vmax.f32 %v641, 0.0
      %v680 = vmax.f32 %v644, 0.0
      %v681 = vmax.f32 %v649, 0.0
      %v682 = vmax.f32 %v652, 0.0
      %v683 = vmax.f32 %v657, 0.0
      %v684 = vmax.f32 %v660, 0.0
      %v685 = vmax.f32 %v665, 0.0
      %v686 = vmax.f32 %v668, 0.0
      %v687 = vpack.c.bf16 %v672, %v671
      %v688 = vpack.c.bf16 %v674, %v673
      %v689 = vpack.c.bf16 %v676, %v675
      %v690 = vpack.c.bf16 %v678, %v677
      %v691 = vpack.c.bf16 %v680, %v679
      %v692 = vpack.c.bf16 %v682, %v681
      %v693 = vpack.c.bf16 %v684, %v683
      %v694 = vpack.c.bf16 %v686, %v685
      %v695 = vld [vmem:[%s465] sm:$0xff]
      %v696 = vld [vmem:[%s465 + $0x8] sm:$0xff]
      %v697 = vld [vmem:[%s465 + $0x10] sm:$0xff]
      %v698 = vld [vmem:[%s465 + $0x18] sm:$0xff]
      %v699 = vld [vmem:[%s465 + $0x20] sm:$0xff]
      %v700 = vld [vmem:[%s465 + $0x28] sm:$0xff]
      %v701 = vld [vmem:[%s465 + $0x30] sm:$0xff]
      %v702 = vld [vmem:[%s465 + $0x38] sm:$0xff]
      %v703 = vld [vmem:[%s465 + $0x40] sm:$0xff]
      %v704 = vld [vmem:[%s465 + $0x48] sm:$0xff]
      %v705 = vld [vmem:[%s465 + $0x50] sm:$0xff]
      %v706 = vld [vmem:[%s465 + $0x58] sm:$0xff]
      %v707 = vld [vmem:[%s465 + $0x60] sm:$0xff]
      %v708 = vld [vmem:[%s465 + $0x68] sm:$0xff]
      %v709 = vld [vmem:[%s465 + $0x70] sm:$0xff]
      %v710 = vld [vmem:[%s465 + $0x78] sm:$0xff]
      %v711 = vld [vmem:[%s469] sm:$0xf]
      %v713 = vlaneseq
      %v714 = vshrl.u32 %v713, 7
      %v715 = vsub.s32 0, %v714
      %v716 = vrot.slane %v711, %v715
      %v717 = vlaneseq
      %v718 = vshrl.u32 %v717, 7
      %v719 = vsub.s32 1, %v718
      %v720 = vrot.slane %v711, %v719
      %v721 = vlaneseq
      %v722 = vshrl.u32 %v721, 7
      %v723 = vsub.s32 2, %v722
      %v724 = vrot.slane %v711, %v723
      %v725 = vlaneseq
      %v726 = vshrl.u32 %v725, 7
      %v727 = vsub.s32 3, %v726
      %v728 = vrot.slane %v711, %v727
      %v749 = vunpack.c.l.b16 %v695
      %v750 = vunpack.c.h.b16 %v695
      %v751 = vunpack.c.l.b16 %v696
      %v752 = vunpack.c.h.b16 %v696
      %v753 = vunpack.c.l.b16 %v697
      %v754 = vunpack.c.h.b16 %v697
      %v755 = vunpack.c.l.b16 %v698
      %v756 = vunpack.c.h.b16 %v698
      %v757 = vunpack.c.l.b16 %v699
      %v758 = vunpack.c.h.b16 %v699
      %v759 = vunpack.c.l.b16 %v700
      %v760 = vunpack.c.h.b16 %v700
      %v761 = vunpack.c.l.b16 %v701
      %v762 = vunpack.c.h.b16 %v701
      %v763 = vunpack.c.l.b16 %v702
      %v764 = vunpack.c.h.b16 %v702
      %v765 = vunpack.c.l.b16 %v703
      %v766 = vunpack.c.h.b16 %v703
      %v767 = vunpack.c.l.b16 %v704
      %v768 = vunpack.c.h.b16 %v704
      %v769 = vunpack.c.l.b16 %v705
      %v770 = vunpack.c.h.b16 %v705
      %v771 = vunpack.c.l.b16 %v706
      %v772 = vunpack.c.h.b16 %v706
      %v773 = vunpack.c.l.b16 %v707
      %v774 = vunpack.c.h.b16 %v707
      %v775 = vunpack.c.l.b16 %v708
      %v776 = vunpack.c.h.b16 %v708
      %v777 = vunpack.c.l.b16 %v709
      %v778 = vunpack.c.h.b16 %v709
      %v779 = vunpack.c.l.b16 %v710
      %v780 = vunpack.c.h.b16 %v710
      %v781 = vpack.c.b16 %v753, %v749
      %v782 = vpack.c.b16 %v754, %v750
      %v783 = vpack.c.b16 %v755, %v751
      %v784 = vpack.c.b16 %v756, %v752
      %v785 = vpack.c.b16 %v761, %v757
      %v786 = vpack.c.b16 %v762, %v758
      %v787 = vpack.c.b16 %v763, %v759
      %v788 = vpack.c.b16 %v764, %v760
      %v789 = vpack.c.b16 %v769, %v765
      %v790 = vpack.c.b16 %v770, %v766
      %v791 = vpack.c.b16 %v771, %v767
      %v792 = vpack.c.b16 %v772, %v768
      %v793 = vpack.c.b16 %v777, %v773
      %v794 = vpack.c.b16 %v778, %v774
      %v795 = vpack.c.b16 %v779, %v775
      %v796 = vpack.c.b16 %v780, %v776
      %vm813 = vcmask 523264
      %v815 = vsel %vm813, %v687, 0
      %v818 = vsel %vm813, %v688, 0
      %v821 = vsel %vm813, %v689, 0
      %v824 = vsel %vm813, %v690, 0
      %v827 = vsel %vm813, %v691, 0
      %v830 = vsel %vm813, %v692, 0
      %v833 = vsel %vm813, %v693, 0
      %v836 = vsel %vm813, %v694, 0
      %838 = vmatprep.subr.bf16.mxu0 %v782
      %839 = vmatpush1.bf16.msra.mxu0 %v781
      %840 = vmatprep.subr.bf16.mxu0 %v786
      %841 = vmatpush1.bf16.msra.mxu0 %v785
      %842 = vmatprep.subr.bf16.mxu0 %v790
      %843 = vmatpush1.bf16.msra.mxu0 %v789
      %844 = vmatprep.subr.bf16.mxu0 %v794
      %845 = vmatpush1.bf16.msra.mxu0 %v793
      %846 = vmatprep.subr.bf16.mxu0 0
      %847 = vmatpush1.bf16.msra.mxu0 0
      %848 = vmatprep.subr.bf16.mxu0 0
      %849 = vmatpush1.bf16.msra.mxu0 0
      %850 = vmatprep.subr.bf16.mxu0 0
      %851 = vmatpush1.bf16.msra.mxu0 0
      %852 = vmatprep.subr.bf16.mxu0 0
      %853 = vmatpush1.bf16.msra.mxu0 0
      %854 = vmatprep.subr.bf16.mxu0 0
      %855 = vmatpush1.bf16.msra.mxu0 0
      %856 = vmatprep.subr.bf16.mxu0 0
      %857 = vmatpush1.bf16.msra.mxu0 0
      %858 = vmatprep.subr.bf16.mxu0 0
      %859 = vmatpush1.bf16.msra.mxu0 0
      %860 = vmatprep.subr.bf16.mxu0 0
      %861 = vmatpush1.bf16.msra.mxu0 0
      %862 = vmatprep.subr.bf16.mxu0 0
      %863 = vmatpush1.bf16.msra.mxu0 0
      %864 = vmatprep.subr.bf16.mxu0 0
      %865 = vmatpush1.bf16.msra.mxu0 0
      %866 = vmatprep.subr.bf16.mxu0 0
      %867 = vmatpush1.bf16.msra.mxu0 0
      %868 = vmatprep.subr.bf16.mxu0 0
      %869 = vmatpush1.bf16.msra.mxu0 0
      %870 = vmatprep.mubr.bf16.mxu0 0
      %871 = vmatmul.mubr.bf16.gmra.mrb[0].mxu0 %v815
      %v872 = vpop.f32.mrb[0].mxu0
      %v873 = vadd.f32 %v716, %v872
      %v874 = vpop.f32.mrb[0].mxu0
      %v875 = vadd.f32 %v720, %v874
      %v876 = vpop.f32.mrb[0].mxu0
      %v877 = vadd.f32 %v716, %v876
      %v878 = vpop.f32.mrb[0].mxu0
      %v879 = vadd.f32 %v720, %v878
      %880 = vmatprep.mubr.bf16.mxu0 0
      %881 = vmatmul.mubr.bf16.gmra.mrb[0].mxu0 %v818
      %v882 = vpop.f32.mrb[0].mxu0
      %v883 = vadd.f32 %v716, %v882
      %v884 = vpop.f32.mrb[0].mxu0
      %v885 = vadd.f32 %v720, %v884
      %v886 = vpop.f32.mrb[0].mxu0
      %v887 = vadd.f32 %v716, %v886
      %v888 = vpop.f32.mrb[0].mxu0
      %v889 = vadd.f32 %v720, %v888
      %890 = vmatprep.mubr.bf16.mxu0 0
      %891 = vmatmul.mubr.bf16.gmra.mrb[0].mxu0 %v821
      %v892 = vpop.f32.mrb[0].mxu0
      %v893 = vadd.f32 %v716, %v892
      %v894 = vpop.f32.mrb[0].mxu0
      %v895 = vadd.f32 %v720, %v894
      %v896 = vpop.f32.mrb[0].mxu0
      %v897 = vadd.f32 %v716, %v896
      %v898 = vpop.f32.mrb[0].mxu0
      %v899 = vadd.f32 %v720, %v898
      %900 = vmatprep.mubr.bf16.mxu0 0
      %901 = vmatmul.mubr.bf16.gmra.mrb[0].mxu0 %v824
      %v902 = vpop.f32.mrb[0].mxu0
      %v903 = vadd.f32 %v716, %v902
      %v904 = vpop.f32.mrb[0].mxu0
      %v905 = vadd.f32 %v720, %v904
      %v906 = vpop.f32.mrb[0].mxu0
      %v907 = vadd.f32 %v716, %v906
      %v908 = vpop.f32.mrb[0].mxu0
      %v909 = vadd.f32 %v720, %v908
      %910 = vmatprep.mubr.bf16.mxu0 0
      %911 = vmatmul.mubr.bf16.gmra.mrb[0].mxu0 %v827
      %v912 = vpop.f32.mrb[0].mxu0
      %v913 = vadd.f32 %v716, %v912
      %v914 = vpop.f32.mrb[0].mxu0
      %v915 = vadd.f32 %v720, %v914
      %v916 = vpop.f32.mrb[0].mxu0
      %v917 = vadd.f32 %v716, %v916
      %v918 = vpop.f32.mrb[0].mxu0
      %v919 = vadd.f32 %v720, %v918
      %920 = vmatprep.mubr.bf16.mxu0 0
      %921 = vmatmul.mubr.bf16.gmra.mrb[0].mxu0 %v830
      %v922 = vpop.f32.mrb[0].mxu0
      %v923 = vadd.f32 %v716, %v922
      %v924 = vpop.f32.mrb[0].mxu0
      %v925 = vadd.f32 %v720, %v924
      %v926 = vpop.f32.mrb[0].mxu0
      %v927 = vadd.f32 %v716, %v926
      %v928 = vpop.f32.mrb[0].mxu0
      %v929 = vadd.f32 %v720, %v928
      %930 = vmatprep.mubr.bf16.mxu0 0
      %931 = vmatmul.mubr.bf16.gmra.mrb[0].mxu0 %v833
      %v932 = vpop.f32.mrb[0].mxu0
      %v933 = vadd.f32 %v716, %v932
      %v934 = vpop.f32.mrb[0].mxu0
      %v935 = vadd.f32 %v720, %v934
      %v936 = vpop.f32.mrb[0].mxu0
      %v937 = vadd.f32 %v716, %v936
      %v938 = vpop.f32.mrb[0].mxu0
      %v939 = vadd.f32 %v720, %v938
      %940 = vmatprep.mubr.bf16.mxu0 0
      %941 = vmatmul.mubr.bf16.gmra.mrb[0].mxu0 %v836
      %v942 = vpop.f32.mrb[0].mxu0
      %v943 = vadd.f32 %v716, %v942
      %v944 = vpop.f32.mrb[0].mxu0
      %v945 = vadd.f32 %v720, %v944
      %v946 = vpop.f32.mrb[0].mxu0
      %v947 = vadd.f32 %v716, %v946
      %v948 = vpop.f32.mrb[0].mxu0
      %v949 = vadd.f32 %v720, %v948
      %950 = vdwg.mxu0
      %951 = vmatprep.subr.bf16.mxu0 %v784
      %952 = vmatpush1.bf16.msra.mxu0 %v783
      %953 = vmatprep.subr.bf16.mxu0 %v788
      %954 = vmatpush1.bf16.msra.mxu0 %v787
      %955 = vmatprep.subr.bf16.mxu0 %v792
      %956 = vmatpush1.bf16.msra.mxu0 %v791
      %957 = vmatprep.subr.bf16.mxu0 %v796
      %958 = vmatpush1.bf16.msra.mxu0 %v795
      %959 = vmatprep.subr.bf16.mxu0 0
      %960 = vmatpush1.bf16.msra.mxu0 0
      %961 = vmatprep.subr.bf16.mxu0 0
      %962 = vmatpush1.bf16.msra.mxu0 0
      %963 = vmatprep.subr.bf16.mxu0 0
      %964 = vmatpush1.bf16.msra.mxu0 0
      %965 = vmatprep.subr.bf16.mxu0 0
      %966 = vmatpush1.bf16.msra.mxu0 0
      %967 = vmatprep.subr.bf16.mxu0 0
      %968 = vmatpush1.bf16.msra.mxu0 0
      %969 = vmatprep.subr.bf16.mxu0 0
      %970 = vmatpush1.bf16.msra.mxu0 0
      %971 = vmatprep.subr.bf16.mxu0 0
      %972 = vmatpush1.bf16.msra.mxu0 0
      %973 = vmatprep.subr.bf16.mxu0 0
      %974 = vmatpush1.bf16.msra.mxu0 0
      %975 = vmatprep.subr.bf16.mxu0 0
      %976 = vmatpush1.bf16.msra.mxu0 0
      %977 = vmatprep.subr.bf16.mxu0 0
      %978 = vmatpush1.bf16.msra.mxu0 0
      %979 = vmatprep.subr.bf16.mxu0 0
      %980 = vmatpush1.bf16.msra.mxu0 0
      %981 = vmatprep.subr.bf16.mxu0 0
      %982 = vmatpush1.bf16.msra.mxu0 0
      %983 = vmatprep.mubr.bf16.mxu0 0
      %984 = vmatmul.mubr.bf16.gmra.mrb[0].mxu0 %v815
      %v985 = vpop.f32.mrb[0].mxu0
      %v986 = vadd.f32 %v724, %v985
      %v987 = vpop.f32.mrb[0].mxu0
      %v988 = vadd.f32 %v728, %v987
      %v989 = vpop.f32.mrb[0].mxu0
      %v990 = vadd.f32 %v724, %v989
      %v991 = vpop.f32.mrb[0].mxu0
      %v992 = vadd.f32 %v728, %v991
      %993 = vmatprep.mubr.bf16.mxu0 0
      %994 = vmatmul.mubr.bf16.gmra.mrb[0].mxu0 %v818
      %v995 = vpop.f32.mrb[0].mxu0
      %v996 = vadd.f32 %v724, %v995
      %v997 = vpop.f32.mrb[0].mxu0
      %v998 = vadd.f32 %v728, %v997
      %v999 = vpop.f32.mrb[0].mxu0
      %v1000 = vadd.f32 %v724, %v999
      %v1001 = vpop.f32.mrb[0].mxu0
      %v1002 = vadd.f32 %v728, %v1001
      %1003 = vmatprep.mubr.bf16.mxu0 0
      %1004 = vmatmul.mubr.bf16.gmra.mrb[0].mxu0 %v821
      %v1005 = vpop.f32.mrb[0].mxu0
      %v1006 = vadd.f32 %v724, %v1005
      %v1007 = vpop.f32.mrb[0].mxu0
      %v1008 = vadd.f32 %v728, %v1007
      %v1009 = vpop.f32.mrb[0].mxu0
      %v1010 = vadd.f32 %v724, %v1009
      %v1011 = vpop.f32.mrb[0].mxu0
      %v1012 = vadd.f32 %v728, %v1011
      %1013 = vmatprep.mubr.bf16.mxu0 0
      %1014 = vmatmul.mubr.bf16.gmra.mrb[0].mxu0 %v824
      %v1015 = vpop.f32.mrb[0].mxu0
      %v1016 = vadd.f32 %v724, %v1015
      %v1017 = vpop.f32.mrb[0].mxu0
      %v1018 = vadd.f32 %v728, %v1017
      %v1019 = vpop.f32.mrb[0].mxu0
      %v1020 = vadd.f32 %v724, %v1019
      %v1021 = vpop.f32.mrb[0].mxu0
      %v1022 = vadd.f32 %v728, %v1021
      %1023 = vmatprep.mubr.bf16.mxu0 0
      %1024 = vmatmul.mubr.bf16.gmra.mrb[0].mxu0 %v827
      %v1025 = vpop.f32.mrb[0].mxu0
      %v1026 = vadd.f32 %v724, %v1025
      %v1027 = vpop.f32.mrb[0].mxu0
      %v1028 = vadd.f32 %v728, %v1027
      %v1029 = vpop.f32.mrb[0].mxu0
      %v1030 = vadd.f32 %v724, %v1029
      %v1031 = vpop.f32.mrb[0].mxu0
      %v1032 = vadd.f32 %v728, %v1031
      %1033 = vmatprep.mubr.bf16.mxu0 0
      %1034 = vmatmul.mubr.bf16.gmra.mrb[0].mxu0 %v830
      %v1035 = vpop.f32.mrb[0].mxu0
      %v1036 = vadd.f32 %v724, %v1035
      %v1037 = vpop.f32.mrb[0].mxu0
      %v1038 = vadd.f32 %v728, %v1037
      %v1039 = vpop.f32.mrb[0].mxu0
      %v1040 = vadd.f32 %v724, %v1039
      %v1041 = vpop.f32.mrb[0].mxu0
      %v1042 = vadd.f32 %v728, %v1041
      %1043 = vmatprep.mubr.bf16.mxu0 0
      %1044 = vmatmul.mubr.bf16.gmra.mrb[0].mxu0 %v833
      %v1045 = vpop.f32.mrb[0].mxu0
      %v1046 = vadd.f32 %v724, %v1045
      %v1047 = vpop.f32.mrb[0].mxu0
      %v1048 = vadd.f32 %v728, %v1047
      %v1049 = vpop.f32.mrb[0].mxu0
      %v1050 = vadd.f32 %v724, %v1049
      %v1051 = vpop.f32.mrb[0].mxu0
      %v1052 = vadd.f32 %v728, %v1051
      %1053 = vmatprep.mubr.bf16.mxu0 0
      %1054 = vmatmul.mubr.bf16.gmra.mrb[0].mxu0 %v836
      %v1055 = vpop.f32.mrb[0].mxu0
      %v1056 = vadd.f32 %v724, %v1055
      %v1057 = vpop.f32.mrb[0].mxu0
      %v1058 = vadd.f32 %v728, %v1057
      %v1059 = vpop.f32.mrb[0].mxu0
      %v1060 = vadd.f32 %v724, %v1059
      %v1061 = vpop.f32.mrb[0].mxu0
      %v1062 = vadd.f32 %v728, %v1061
      %1063 = vdwg.mxu0
      %v1064 = vmax.f32 %v873, 0.0
      %v1065 = vmax.f32 %v875, 0.0
      %v1066 = vmax.f32 %v986, 0.0
      %v1067 = vmax.f32 %v988, 0.0
      %v1068 = vmax.f32 %v877, 0.0
      %v1069 = vmax.f32 %v879, 0.0
      %v1070 = vmax.f32 %v990, 0.0
      %v1071 = vmax.f32 %v992, 0.0
      %v1072 = vmax.f32 %v883, 0.0
      %v1073 = vmax.f32 %v885, 0.0
      %v1074 = vmax.f32 %v996, 0.0
      %v1075 = vmax.f32 %v998, 0.0
      %v1076 = vmax.f32 %v887, 0.0
      %v1077 = vmax.f32 %v889, 0.0
      %v1078 = vmax.f32 %v1000, 0.0
      %v1079 = vmax.f32 %v1002, 0.0
      %v1080 = vmax.f32 %v893, 0.0
      %v1081 = vmax.f32 %v895, 0.0
      %v1082 = vmax.f32 %v1006, 0.0
      %v1083 = vmax.f32 %v1008, 0.0
      %v1084 = vmax.f32 %v897, 0.0
      %v1085 = vmax.f32 %v899, 0.0
      %v1086 = vmax.f32 %v1010, 0.0
      %v1087 = vmax.f32 %v1012, 0.0
      %v1088 = vmax.f32 %v903, 0.0
      %v1089 = vmax.f32 %v905, 0.0
      %v1090 = vmax.f32 %v1016, 0.0
      %v1091 = vmax.f32 %v1018, 0.0
      %v1092 = vmax.f32 %v907, 0.0
      %v1093 = vmax.f32 %v909, 0.0
      %v1094 = vmax.f32 %v1020, 0.0
      %v1095 = vmax.f32 %v1022, 0.0
      %v1096 = vmax.f32 %v913, 0.0
      %v1097 = vmax.f32 %v915, 0.0
      %v1098 = vmax.f32 %v1026, 0.0
      %v1099 = vmax.f32 %v1028, 0.0
      %v1100 = vmax.f32 %v917, 0.0
      %v1101 = vmax.f32 %v919, 0.0
      %v1102 = vmax.f32 %v1030, 0.0
      %v1103 = vmax.f32 %v1032, 0.0
      %v1104 = vmax.f32 %v923, 0.0
      %v1105 = vmax.f32 %v925, 0.0
      %v1106 = vmax.f32 %v1036, 0.0
      %v1107 = vmax.f32 %v1038, 0.0
      %v1108 = vmax.f32 %v927, 0.0
      %v1109 = vmax.f32 %v929, 0.0
      %v1110 = vmax.f32 %v1040, 0.0
      %v1111 = vmax.f32 %v1042, 0.0
      %v1112 = vmax.f32 %v933, 0.0
      %v1113 = vmax.f32 %v935, 0.0
      %v1114 = vmax.f32 %v1046, 0.0
      %v1115 = vmax.f32 %v1048, 0.0
      %v1116 = vmax.f32 %v937, 0.0
      %v1117 = vmax.f32 %v939, 0.0
      %v1118 = vmax.f32 %v1050, 0.0
      %v1119 = vmax.f32 %v1052, 0.0
      %v1120 = vmax.f32 %v943, 0.0
      %v1121 = vmax.f32 %v945, 0.0
      %v1122 = vmax.f32 %v1056, 0.0
      %v1123 = vmax.f32 %v1058, 0.0
      %v1124 = vmax.f32 %v947, 0.0
      %v1125 = vmax.f32 %v949, 0.0
      %v1126 = vmax.f32 %v1060, 0.0
      %v1127 = vmax.f32 %v1062, 0.0
      %v1128 = vpack.c.bf16 %v1068, %v1064
      %v1129 = vpack.c.bf16 %v1069, %v1065
      %v1130 = vpack.c.bf16 %v1070, %v1066
      %v1131 = vpack.c.bf16 %v1071, %v1067
      %v1132 = vpack.c.bf16 %v1076, %v1072
      %v1133 = vpack.c.bf16 %v1077, %v1073
      %v1134 = vpack.c.bf16 %v1078, %v1074
      %v1135 = vpack.c.bf16 %v1079, %v1075
      %v1136 = vpack.c.bf16 %v1084, %v1080
      %v1137 = vpack.c.bf16 %v1085, %v1081
      %v1138 = vpack.c.bf16 %v1086, %v1082
      %v1139 = vpack.c.bf16 %v1087, %v1083
      %v1140 = vpack.c.bf16 %v1092, %v1088
      %v1141 = vpack.c.bf16 %v1093, %v1089
      %v1142 = vpack.c.bf16 %v1094, %v1090
      %v1143 = vpack.c.bf16 %v1095, %v1091
      %v1144 = vpack.c.bf16 %v1100, %v1096
      %v1145 = vpack.c.bf16 %v1101, %v1097
      %v1146 = vpack.c.bf16 %v1102, %v1098
      %v1147 = vpack.c.bf16 %v1103, %v1099
      %v1148 = vpack.c.bf16 %v1108, %v1104
      %v1149 = vpack.c.bf16 %v1109, %v1105
      %v1150 = vpack.c.bf16 %v1110, %v1106
      %v1151 = vpack.c.bf16 %v1111, %v1107
      %v1152 = vpack.c.bf16 %v1116, %v1112
      %v1153 = vpack.c.bf16 %v1117, %v1113
      %v1154 = vpack.c.bf16 %v1118, %v1114
      %v1155 = vpack.c.bf16 %v1119, %v1115
      %v1156 = vpack.c.bf16 %v1124, %v1120
      %v1157 = vpack.c.bf16 %v1125, %v1121
      %v1158 = vpack.c.bf16 %v1126, %v1122
      %v1159 = vpack.c.bf16 %v1127, %v1123
      %v1160 = vld [vmem:[%s5] sm:$0xff]
      %v1161 = vld [vmem:[%s5 + $0x8] sm:$0xff]
      %v1162 = vld [vmem:[%s5 + $0x10] sm:$0xff]
      %v1163 = vld [vmem:[%s5 + $0x18] sm:$0xff]
      %v1164 = vld [vmem:[%s5 + $0x20] sm:$0xff]
      %v1165 = vld [vmem:[%s5 + $0x28] sm:$0xff]
      %v1166 = vld [vmem:[%s5 + $0x30] sm:$0xff]
      %v1167 = vld [vmem:[%s5 + $0x38] sm:$0xff]
      %v1168 = vld [vmem:[%s5 + $0x40] sm:$0xff]
      %v1169 = vld [vmem:[%s5 + $0x48] sm:$0xff]
      %v1170 = vld [vmem:[%s5 + $0x50] sm:$0xff]
      %v1171 = vld [vmem:[%s5 + $0x58] sm:$0xff]
      %v1172 = vld [vmem:[%s5 + $0x60] sm:$0xff]
      %v1173 = vld [vmem:[%s5 + $0x68] sm:$0xff]
      %v1174 = vld [vmem:[%s5 + $0x70] sm:$0xff]
      %v1175 = vld [vmem:[%s5 + $0x78] sm:$0xff]
      %v1176 = vld [vmem:[%s5 + $0x80] sm:$0xff]
      %v1177 = vld [vmem:[%s5 + $0x88] sm:$0xff]
      %v1178 = vld [vmem:[%s5 + $0x90] sm:$0xff]
      %v1179 = vld [vmem:[%s5 + $0x98] sm:$0xff]
      %v1180 = vld [vmem:[%s5 + $0xa0] sm:$0xff]
      %v1181 = vld [vmem:[%s5 + $0xa8] sm:$0xff]
      %v1182 = vld [vmem:[%s5 + $0xb0] sm:$0xff]
      %v1183 = vld [vmem:[%s5 + $0xb8] sm:$0xff]
      %v1184 = vld [vmem:[%s5 + $0xc0] sm:$0xff]
      %v1185 = vld [vmem:[%s5 + $0xc8] sm:$0xff]
      %v1186 = vld [vmem:[%s5 + $0xd0] sm:$0xff]
      %v1187 = vld [vmem:[%s5 + $0xd8] sm:$0xff]
      %v1188 = vld [vmem:[%s5 + $0xe0] sm:$0xff]
      %v1189 = vld [vmem:[%s5 + $0xe8] sm:$0xff]
      %v1190 = vld [vmem:[%s5 + $0xf0] sm:$0xff]
      %v1191 = vld [vmem:[%s5 + $0xf8] sm:$0xff]
      %v1192 = vld [vmem:[%s5 + $0x100] sm:$0xff]
      %v1193 = vld [vmem:[%s5 + $0x108] sm:$0xff]
      %v1194 = vld [vmem:[%s5 + $0x110] sm:$0xff]
      %v1195 = vld [vmem:[%s5 + $0x118] sm:$0xff]
      %v1196 = vld [vmem:[%s5 + $0x120] sm:$0xff]
      %v1197 = vld [vmem:[%s5 + $0x128] sm:$0xff]
      %v1198 = vld [vmem:[%s5 + $0x130] sm:$0xff]
      %v1199 = vld [vmem:[%s5 + $0x138] sm:$0xff]
      %v1200 = vld [vmem:[%s5 + $0x140] sm:$0xff]
      %v1201 = vld [vmem:[%s5 + $0x148] sm:$0xff]
      %v1202 = vld [vmem:[%s5 + $0x150] sm:$0xff]
      %v1203 = vld [vmem:[%s5 + $0x158] sm:$0xff]
      %v1204 = vld [vmem:[%s5 + $0x160] sm:$0xff]
      %v1205 = vld [vmem:[%s5 + $0x168] sm:$0xff]
      %v1206 = vld [vmem:[%s5 + $0x170] sm:$0xff]
      %v1207 = vld [vmem:[%s5 + $0x178] sm:$0xff]
      %v1208 = vld [vmem:[%s5 + $0x180] sm:$0xff]
      %v1209 = vld [vmem:[%s5 + $0x188] sm:$0xff]
      %v1210 = vld [vmem:[%s5 + $0x190] sm:$0xff]
      %v1211 = vld [vmem:[%s5 + $0x198] sm:$0xff]
      %v1212 = vld [vmem:[%s5 + $0x1a0] sm:$0xff]
      %v1213 = vld [vmem:[%s5 + $0x1a8] sm:$0xff]
      %v1214 = vld [vmem:[%s5 + $0x1b0] sm:$0xff]
      %v1215 = vld [vmem:[%s5 + $0x1b8] sm:$0xff]
      %v1216 = vld [vmem:[%s5 + $0x1c0] sm:$0xff]
      %v1217 = vld [vmem:[%s5 + $0x1c8] sm:$0xff]
      %v1218 = vld [vmem:[%s5 + $0x1d0] sm:$0xff]
      %v1219 = vld [vmem:[%s5 + $0x1d8] sm:$0xff]
      %v1220 = vld [vmem:[%s5 + $0x1e0] sm:$0xff]
      %v1221 = vld [vmem:[%s5 + $0x1e8] sm:$0xff]
      %v1222 = vld [vmem:[%s5 + $0x1f0] sm:$0xff]
      %v1223 = vld [vmem:[%s5 + $0x1f8] sm:$0xff]
      %v1224 = vld [vmem:[%s6] sm:$0x3]
      %v1226 = vlaneseq
      %v1227 = vshrl.u32 %v1226, 7
      %v1228 = vsub.s32 0, %v1227
      %v1229 = vrot.slane %v1224, %v1228
      %v1230 = vlaneseq
      %v1231 = vshrl.u32 %v1230, 7
      %v1232 = vsub.s32 1, %v1231
      %v1233 = vrot.slane %v1224, %v1232
      %v1300 = vunpack.c.l.b16 %v1160
      %v1301 = vunpack.c.h.b16 %v1160
      %v1302 = vunpack.c.l.b16 %v1161
      %v1303 = vunpack.c.h.b16 %v1161
      %v1304 = vunpack.c.l.b16 %v1162
      %v1305 = vunpack.c.h.b16 %v1162
      %v1306 = vunpack.c.l.b16 %v1163
      %v1307 = vunpack.c.h.b16 %v1163
      %v1308 = vunpack.c.l.b16 %v1164
      %v1309 = vunpack.c.h.b16 %v1164
      %v1310 = vunpack.c.l.b16 %v1165
      %v1311 = vunpack.c.h.b16 %v1165
      %v1312 = vunpack.c.l.b16 %v1166
      %v1313 = vunpack.c.h.b16 %v1166
      %v1314 = vunpack.c.l.b16 %v1167
      %v1315 = vunpack.c.h.b16 %v1167
      %v1316 = vunpack.c.l.b16 %v1168
      %v1317 = vunpack.c.h.b16 %v1168
      %v1318 = vunpack.c.l.b16 %v1169
      %v1319 = vunpack.c.h.b16 %v1169
      %v1320 = vunpack.c.l.b16 %v1170
      %v1321 = vunpack.c.h.b16 %v1170
      %v1322 = vunpack.c.l.b16 %v1171
      %v1323 = vunpack.c.h.b16 %v1171
      %v1324 = vunpack.c.l.b16 %v1172
      %v1325 = vunpack.c.h.b16 %v1172
      %v1326 = vunpack.c.l.b16 %v1173
      %v1327 = vunpack.c.h.b16 %v1173
      %v1328 = vunpack.c.l.b16 %v1174
      %v1329 = vunpack.c.h.b16 %v1174
      %v1330 = vunpack.c.l.b16 %v1175
      %v1331 = vunpack.c.h.b16 %v1175
      %v1332 = vunpack.c.l.b16 %v1176
      %v1333 = vunpack.c.h.b16 %v1176
      %v1334 = vunpack.c.l.b16 %v1177
      %v1335 = vunpack.c.h.b16 %v1177
      %v1336 = vunpack.c.l.b16 %v1178
      %v1337 = vunpack.c.h.b16 %v1178
      %v1338 = vunpack.c.l.b16 %v1179
      %v1339 = vunpack.c.h.b16 %v1179
      %v1340 = vunpack.c.l.b16 %v1180
      %v1341 = vunpack.c.h.b16 %v1180
      %v1342 = vunpack.c.l.b16 %v1181
      %v1343 = vunpack.c.h.b16 %v1181
      %v1344 = vunpack.c.l.b16 %v1182
      %v1345 = vunpack.c.h.b16 %v1182
      %v1346 = vunpack.c.l.b16 %v1183
      %v1347 = vunpack.c.h.b16 %v1183
      %v1348 = vunpack.c.l.b16 %v1184
      %v1349 = vunpack.c.h.b16 %v1184
      %v1350 = vunpack.c.l.b16 %v1185
      %v1351 = vunpack.c.h.b16 %v1185
      %v1352 = vunpack.c.l.b16 %v1186
      %v1353 = vunpack.c.h.b16 %v1186
      %v1354 = vunpack.c.l.b16 %v1187
      %v1355 = vunpack.c.h.b16 %v1187
      %v1356 = vunpack.c.l.b16 %v1188
      %v1357 = vunpack.c.h.b16 %v1188
      %v1358 = vunpack.c.l.b16 %v1189
      %v1359 = vunpack.c.h.b16 %v1189
      %v1360 = vunpack.c.l.b16 %v1190
      %v1361 = vunpack.c.h.b16 %v1190
      %v1362 = vunpack.c.l.b16 %v1191
      %v1363 = vunpack.c.h.b16 %v1191
      %v1364 = vunpack.c.l.b16 %v1192
      %v1365 = vunpack.c.h.b16 %v1192
      %v1366 = vunpack.c.l.b16 %v1193
      %v1367 = vunpack.c.h.b16 %v1193
      %v1368 = vunpack.c.l.b16 %v1194
      %v1369 = vunpack.c.h.b16 %v1194
      %v1370 = vunpack.c.l.b16 %v1195
      %v1371 = vunpack.c.h.b16 %v1195
      %v1372 = vunpack.c.l.b16 %v1196
      %v1373 = vunpack.c.h.b16 %v1196
      %v1374 = vunpack.c.l.b16 %v1197
      %v1375 = vunpack.c.h.b16 %v1197
      %v1376 = vunpack.c.l.b16 %v1198
      %v1377 = vunpack.c.h.b16 %v1198
      %v1378 = vunpack.c.l.b16 %v1199
      %v1379 = vunpack.c.h.b16 %v1199
      %v1380 = vunpack.c.l.b16 %v1200
      %v1381 = vunpack.c.h.b16 %v1200
      %v1382 = vunpack.c.l.b16 %v1201
      %v1383 = vunpack.c.h.b16 %v1201
      %v1384 = vunpack.c.l.b16 %v1202
      %v1385 = vunpack.c.h.b16 %v1202
      %v1386 = vunpack.c.l.b16 %v1203
      %v1387 = vunpack.c.h.b16 %v1203
      %v1388 = vunpack.c.l.b16 %v1204
      %v1389 = vunpack.c.h.b16 %v1204
      %v1390 = vunpack.c.l.b16 %v1205
      %v1391 = vunpack.c.h.b16 %v1205
      %v1392 = vunpack.c.l.b16 %v1206
      %v1393 = vunpack.c.h.b16 %v1206
      %v1394 = vunpack.c.l.b16 %v1207
      %v1395 = vunpack.c.h.b16 %v1207
      %v1396 = vunpack.c.l.b16 %v1208
      %v1397 = vunpack.c.h.b16 %v1208
      %v1398 = vunpack.c.l.b16 %v1209
      %v1399 = vunpack.c.h.b16 %v1209
      %v1400 = vunpack.c.l.b16 %v1210
      %v1401 = vunpack.c.h.b16 %v1210
      %v1402 = vunpack.c.l.b16 %v1211
      %v1403 = vunpack.c.h.b16 %v1211
      %v1404 = vunpack.c.l.b16 %v1212
      %v1405 = vunpack.c.h.b16 %v1212
      %v1406 = vunpack.c.l.b16 %v1213
      %v1407 = vunpack.c.h.b16 %v1213
      %v1408 = vunpack.c.l.b16 %v1214
      %v1409 = vunpack.c.h.b16 %v1214
      %v1410 = vunpack.c.l.b16 %v1215
      %v1411 = vunpack.c.h.b16 %v1215
      %v1412 = vunpack.c.l.b16 %v1216
      %v1413 = vunpack.c.h.b16 %v1216
      %v1414 = vunpack.c.l.b16 %v1217
      %v1415 = vunpack.c.h.b16 %v1217
      %v1416 = vunpack.c.l.b16 %v1218
      %v1417 = vunpack.c.h.b16 %v1218
      %v1418 = vunpack.c.l.b16 %v1219
      %v1419 = vunpack.c.h.b16 %v1219
      %v1420 = vunpack.c.l.b16 %v1220
      %v1421 = vunpack.c.h.b16 %v1220
      %v1422 = vunpack.c.l.b16 %v1221
      %v1423 = vunpack.c.h.b16 %v1221
      %v1424 = vunpack.c.l.b16 %v1222
      %v1425 = vunpack.c.h.b16 %v1222
      %v1426 = vunpack.c.l.b16 %v1223
      %v1427 = vunpack.c.h.b16 %v1223
      %v1428 = vpack.c.b16 %v1302, %v1300
      %v1429 = vpack.c.b16 %v1303, %v1301
      %v1430 = vpack.c.b16 %v1306, %v1304
      %v1431 = vpack.c.b16 %v1307, %v1305
      %v1432 = vpack.c.b16 %v1310, %v1308
      %v1433 = vpack.c.b16 %v1311, %v1309
      %v1434 = vpack.c.b16 %v1314, %v1312
      %v1435 = vpack.c.b16 %v1315, %v1313
      %v1436 = vpack.c.b16 %v1318, %v1316
      %v1437 = vpack.c.b16 %v1319, %v1317
      %v1438 = vpack.c.b16 %v1322, %v1320
      %v1439 = vpack.c.b16 %v1323, %v1321
      %v1440 = vpack.c.b16 %v1326, %v1324
      %v1441 = vpack.c.b16 %v1327, %v1325
      %v1442 = vpack.c.b16 %v1330, %v1328
      %v1443 = vpack.c.b16 %v1331, %v1329
      %v1444 = vpack.c.b16 %v1334, %v1332
      %v1445 = vpack.c.b16 %v1335, %v1333
      %v1446 = vpack.c.b16 %v1338, %v1336
      %v1447 = vpack.c.b16 %v1339, %v1337
      %v1448 = vpack.c.b16 %v1342, %v1340
      %v1449 = vpack.c.b16 %v1343, %v1341
      %v1450 = vpack.c.b16 %v1346, %v1344
      %v1451 = vpack.c.b16 %v1347, %v1345
      %v1452 = vpack.c.b16 %v1350, %v1348
      %v1453 = vpack.c.b16 %v1351, %v1349
      %v1454 = vpack.c.b16 %v1354, %v1352
      %v1455 = vpack.c.b16 %v1355, %v1353
      %v1456 = vpack.c.b16 %v1358, %v1356
      %v1457 = vpack.c.b16 %v1359, %v1357
      %v1458 = vpack.c.b16 %v1362, %v1360
      %v1459 = vpack.c.b16 %v1363, %v1361
      %v1460 = vpack.c.b16 %v1366, %v1364
      %v1461 = vpack.c.b16 %v1367, %v1365
      %v1462 = vpack.c.b16 %v1370, %v1368
      %v1463 = vpack.c.b16 %v1371, %v1369
      %v1464 = vpack.c.b16 %v1374, %v1372
      %v1465 = vpack.c.b16 %v1375, %v1373
      %v1466 = vpack.c.b16 %v1378, %v1376
      %v1467 = vpack.c.b16 %v1379, %v1377
      %v1468 = vpack.c.b16 %v1382, %v1380
      %v1469 = vpack.c.b16 %v1383, %v1381
      %v1470 = vpack.c.b16 %v1386, %v1384
      %v1471 = vpack.c.b16 %v1387, %v1385
      %v1472 = vpack.c.b16 %v1390, %v1388
      %v1473 = vpack.c.b16 %v1391, %v1389
      %v1474 = vpack.c.b16 %v1394, %v1392
      %v1475 = vpack.c.b16 %v1395, %v1393
      %v1476 = vpack.c.b16 %v1398, %v1396
      %v1477 = vpack.c.b16 %v1399, %v1397
      %v1478 = vpack.c.b16 %v1402, %v1400
      %v1479 = vpack.c.b16 %v1403, %v1401
      %v1480 = vpack.c.b16 %v1406, %v1404
      %v1481 = vpack.c.b16 %v1407, %v1405
      %v1482 = vpack.c.b16 %v1410, %v1408
      %v1483 = vpack.c.b16 %v1411, %v1409
      %v1484 = vpack.c.b16 %v1414, %v1412
      %v1485 = vpack.c.b16 %v1415, %v1413
      %v1486 = vpack.c.b16 %v1418, %v1416
      %v1487 = vpack.c.b16 %v1419, %v1417
      %v1488 = vpack.c.b16 %v1422, %v1420
      %v1489 = vpack.c.b16 %v1423, %v1421
      %v1490 = vpack.c.b16 %v1426, %v1424
      %v1491 = vpack.c.b16 %v1427, %v1425
      %1556 = vmatprep.subr.bf16.mxu0 %v1429
      %1557 = vmatpush1.bf16.msra.mxu0 %v1428
      %1558 = vmatprep.subr.bf16.mxu0 %v1431
      %1559 = vmatpush1.bf16.msra.mxu0 %v1430
      %1560 = vmatprep.subr.bf16.mxu0 %v1433
      %1561 = vmatpush1.bf16.msra.mxu0 %v1432
      %1562 = vmatprep.subr.bf16.mxu0 %v1435
      %1563 = vmatpush1.bf16.msra.mxu0 %v1434
      %1564 = vmatprep.subr.bf16.mxu0 %v1437
      %1565 = vmatpush1.bf16.msra.mxu0 %v1436
      %1566 = vmatprep.subr.bf16.mxu0 %v1439
      %1567 = vmatpush1.bf16.msra.mxu0 %v1438
      %1568 = vmatprep.subr.bf16.mxu0 %v1441
      %1569 = vmatpush1.bf16.msra.mxu0 %v1440
      %1570 = vmatprep.subr.bf16.mxu0 %v1443
      %1571 = vmatpush1.bf16.msra.mxu0 %v1442
      %1572 = vmatprep.subr.bf16.mxu0 %v1445
      %1573 = vmatpush1.bf16.msra.mxu0 %v1444
      %1574 = vmatprep.subr.bf16.mxu0 %v1447
      %1575 = vmatpush1.bf16.msra.mxu0 %v1446
      %1576 = vmatprep.subr.bf16.mxu0 %v1449
      %1577 = vmatpush1.bf16.msra.mxu0 %v1448
      %1578 = vmatprep.subr.bf16.mxu0 %v1451
      %1579 = vmatpush1.bf16.msra.mxu0 %v1450
      %1580 = vmatprep.subr.bf16.mxu0 %v1453
      %1581 = vmatpush1.bf16.msra.mxu0 %v1452
      %1582 = vmatprep.subr.bf16.mxu0 %v1455
      %1583 = vmatpush1.bf16.msra.mxu0 %v1454
      %1584 = vmatprep.subr.bf16.mxu0 %v1457
      %1585 = vmatpush1.bf16.msra.mxu0 %v1456
      %1586 = vmatprep.subr.bf16.mxu0 %v1459
      %1587 = vmatpush1.bf16.msra.mxu0 %v1458
      %1588 = vmatprep.mubr.bf16.mxu0 %v1129
      %1589 = vmatmul.mubr.bf16.gmra.mrb[0].mxu0 %v1128
      %v1590 = vpop.f32.mrb[0].mxu0
      %v1591 = vadd.f32 %v1229, %v1590
      %v1592 = vpop.f32.mrb[0].mxu0
      %v1593 = vadd.f32 %v1233, %v1592
      %v1594 = vpop.f32.mrb[0].mxu0
      %v1595 = vadd.f32 %v1229, %v1594
      %v1596 = vpop.f32.mrb[0].mxu0
      %v1597 = vadd.f32 %v1233, %v1596
      %1598 = vmatprep.mubr.bf16.mxu0 %v1133
      %1599 = vmatmul.mubr.bf16.gmra.mrb[0].mxu0 %v1132
      %v1600 = vpop.f32.mrb[0].mxu0
      %v1601 = vadd.f32 %v1229, %v1600
      %v1602 = vpop.f32.mrb[0].mxu0
      %v1603 = vadd.f32 %v1233, %v1602
      %v1604 = vpop.f32.mrb[0].mxu0
      %v1605 = vadd.f32 %v1229, %v1604
      %v1606 = vpop.f32.mrb[0].mxu0
      %v1607 = vadd.f32 %v1233, %v1606
      %1608 = vmatprep.mubr.bf16.mxu0 %v1137
      %1609 = vmatmul.mubr.bf16.gmra.mrb[0].mxu0 %v1136
      %v1610 = vpop.f32.mrb[0].mxu0
      %v1611 = vadd.f32 %v1229, %v1610
      %v1612 = vpop.f32.mrb[0].mxu0
      %v1613 = vadd.f32 %v1233, %v1612
      %v1614 = vpop.f32.mrb[0].mxu0
      %v1615 = vadd.f32 %v1229, %v1614
      %v1616 = vpop.f32.mrb[0].mxu0
      %v1617 = vadd.f32 %v1233, %v1616
      %1618 = vmatprep.mubr.bf16.mxu0 %v1141
      %1619 = vmatmul.mubr.bf16.gmra.mrb[0].mxu0 %v1140
      %v1620 = vpop.f32.mrb[0].mxu0
      %v1621 = vadd.f32 %v1229, %v1620
      %v1622 = vpop.f32.mrb[0].mxu0
      %v1623 = vadd.f32 %v1233, %v1622
      %v1624 = vpop.f32.mrb[0].mxu0
      %v1625 = vadd.f32 %v1229, %v1624
      %v1626 = vpop.f32.mrb[0].mxu0
      %v1627 = vadd.f32 %v1233, %v1626
      %1628 = vmatprep.mubr.bf16.mxu0 %v1145
      %1629 = vmatmul.mubr.bf16.gmra.mrb[0].mxu0 %v1144
      %v1630 = vpop.f32.mrb[0].mxu0
      %v1631 = vadd.f32 %v1229, %v1630
      %v1632 = vpop.f32.mrb[0].mxu0
      %v1633 = vadd.f32 %v1233, %v1632
      %v1634 = vpop.f32.mrb[0].mxu0
      %v1635 = vadd.f32 %v1229, %v1634
      %v1636 = vpop.f32.mrb[0].mxu0
      %v1637 = vadd.f32 %v1233, %v1636
      %1638 = vmatprep.mubr.bf16.mxu0 %v1149
      %1639 = vmatmul.mubr.bf16.gmra.mrb[0].mxu0 %v1148
      %v1640 = vpop.f32.mrb[0].mxu0
      %v1641 = vadd.f32 %v1229, %v1640
      %v1642 = vpop.f32.mrb[0].mxu0
      %v1643 = vadd.f32 %v1233, %v1642
      %v1644 = vpop.f32.mrb[0].mxu0
      %v1645 = vadd.f32 %v1229, %v1644
      %v1646 = vpop.f32.mrb[0].mxu0
      %v1647 = vadd.f32 %v1233, %v1646
      %1648 = vmatprep.mubr.bf16.mxu0 %v1153
      %1649 = vmatmul.mubr.bf16.gmra.mrb[0].mxu0 %v1152
      %v1650 = vpop.f32.mrb[0].mxu0
      %v1651 = vadd.f32 %v1229, %v1650
      %v1652 = vpop.f32.mrb[0].mxu0
      %v1653 = vadd.f32 %v1233, %v1652
      %v1654 = vpop.f32.mrb[0].mxu0
      %v1655 = vadd.f32 %v1229, %v1654
      %v1656 = vpop.f32.mrb[0].mxu0
      %v1657 = vadd.f32 %v1233, %v1656
      %1658 = vmatprep.mubr.bf16.mxu0 %v1157
      %1659 = vmatmul.mubr.bf16.gmra.mrb[0].mxu0 %v1156
      %v1660 = vpop.f32.mrb[0].mxu0
      %v1661 = vadd.f32 %v1229, %v1660
      %v1662 = vpop.f32.mrb[0].mxu0
      %v1663 = vadd.f32 %v1233, %v1662
      %v1664 = vpop.f32.mrb[0].mxu0
      %v1665 = vadd.f32 %v1229, %v1664
      %v1666 = vpop.f32.mrb[0].mxu0
      %v1667 = vadd.f32 %v1233, %v1666
      %1668 = vdwg.mxu0
      %1669 = vmatprep.subr.bf16.mxu0 %v1461
      %1670 = vmatpush1.bf16.msra.mxu0 %v1460
      %1671 = vmatprep.subr.bf16.mxu0 %v1463
      %1672 = vmatpush1.bf16.msra.mxu0 %v1462
      %1673 = vmatprep.subr.bf16.mxu0 %v1465
      %1674 = vmatpush1.bf16.msra.mxu0 %v1464
      %1675 = vmatprep.subr.bf16.mxu0 %v1467
      %1676 = vmatpush1.bf16.msra.mxu0 %v1466
      %1677 = vmatprep.subr.bf16.mxu0 %v1469
      %1678 = vmatpush1.bf16.msra.mxu0 %v1468
      %1679 = vmatprep.subr.bf16.mxu0 %v1471
      %1680 = vmatpush1.bf16.msra.mxu0 %v1470
      %1681 = vmatprep.subr.bf16.mxu0 %v1473
      %1682 = vmatpush1.bf16.msra.mxu0 %v1472
      %1683 = vmatprep.subr.bf16.mxu0 %v1475
      %1684 = vmatpush1.bf16.msra.mxu0 %v1474
      %1685 = vmatprep.subr.bf16.mxu0 %v1477
      %1686 = vmatpush1.bf16.msra.mxu0 %v1476
      %1687 = vmatprep.subr.bf16.mxu0 %v1479
      %1688 = vmatpush1.bf16.msra.mxu0 %v1478
      %1689 = vmatprep.subr.bf16.mxu0 %v1481
      %1690 = vmatpush1.bf16.msra.mxu0 %v1480
      %1691 = vmatprep.subr.bf16.mxu0 %v1483
      %1692 = vmatpush1.bf16.msra.mxu0 %v1482
      %1693 = vmatprep.subr.bf16.mxu0 %v1485
      %1694 = vmatpush1.bf16.msra.mxu0 %v1484
      %1695 = vmatprep.subr.bf16.mxu0 %v1487
      %1696 = vmatpush1.bf16.msra.mxu0 %v1486
      %1697 = vmatprep.subr.bf16.mxu0 %v1489
      %1698 = vmatpush1.bf16.msra.mxu0 %v1488
      %1699 = vmatprep.subr.bf16.mxu0 %v1491
      %1700 = vmatpush1.bf16.msra.mxu0 %v1490
      %1701 = vmatprep.mubr.bf16.mxu0 %v1131
      %1702 = vmatmul.mubr.bf16.gmra.mrb[0].mxu0 %v1130
      %v1703 = vpop.f32.mrb[0].mxu0
      %v1704 = vadd.f32 %v1591, %v1703
      %v1705 = vpop.f32.mrb[0].mxu0
      %v1706 = vadd.f32 %v1593, %v1705
      %v1707 = vpop.f32.mrb[0].mxu0
      %v1708 = vadd.f32 %v1595, %v1707
      %v1709 = vpop.f32.mrb[0].mxu0
      %v1710 = vadd.f32 %v1597, %v1709
      %1711 = vmatprep.mubr.bf16.mxu0 %v1135
      %1712 = vmatmul.mubr.bf16.gmra.mrb[0].mxu0 %v1134
      %v1713 = vpop.f32.mrb[0].mxu0
      %v1714 = vadd.f32 %v1601, %v1713
      %v1715 = vpop.f32.mrb[0].mxu0
      %v1716 = vadd.f32 %v1603, %v1715
      %v1717 = vpop.f32.mrb[0].mxu0
      %v1718 = vadd.f32 %v1605, %v1717
      %v1719 = vpop.f32.mrb[0].mxu0
      %v1720 = vadd.f32 %v1607, %v1719
      %1721 = vmatprep.mubr.bf16.mxu0 %v1139
      %1722 = vmatmul.mubr.bf16.gmra.mrb[0].mxu0 %v1138
      %v1723 = vpop.f32.mrb[0].mxu0
      %v1724 = vadd.f32 %v1611, %v1723
      %v1725 = vpop.f32.mrb[0].mxu0
      %v1726 = vadd.f32 %v1613, %v1725
      %v1727 = vpop.f32.mrb[0].mxu0
      %v1728 = vadd.f32 %v1615, %v1727
      %v1729 = vpop.f32.mrb[0].mxu0
      %v1730 = vadd.f32 %v1617, %v1729
      %1731 = vmatprep.mubr.bf16.mxu0 %v1143
      %1732 = vmatmul.mubr.bf16.gmra.mrb[0].mxu0 %v1142
      %v1733 = vpop.f32.mrb[0].mxu0
      %v1734 = vadd.f32 %v1621, %v1733
      %v1735 = vpop.f32.mrb[0].mxu0
      %v1736 = vadd.f32 %v1623, %v1735
      %v1737 = vpop.f32.mrb[0].mxu0
      %v1738 = vadd.f32 %v1625, %v1737
      %v1739 = vpop.f32.mrb[0].mxu0
      %v1740 = vadd.f32 %v1627, %v1739
      %1741 = vmatprep.mubr.bf16.mxu0 %v1147
      %1742 = vmatmul.mubr.bf16.gmra.mrb[0].mxu0 %v1146
      %v1743 = vpop.f32.mrb[0].mxu0
      %v1744 = vadd.f32 %v1631, %v1743
      %v1745 = vpop.f32.mrb[0].mxu0
      %v1746 = vadd.f32 %v1633, %v1745
      %v1747 = vpop.f32.mrb[0].mxu0
      %v1748 = vadd.f32 %v1635, %v1747
      %v1749 = vpop.f32.mrb[0].mxu0
      %v1750 = vadd.f32 %v1637, %v1749
      %1751 = vmatprep.mubr.bf16.mxu0 %v1151
      %1752 = vmatmul.mubr.bf16.gmra.mrb[0].mxu0 %v1150
      %v1753 = vpop.f32.mrb[0].mxu0
      %v1754 = vadd.f32 %v1641, %v1753
      %v1755 = vpop.f32.mrb[0].mxu0
      %v1756 = vadd.f32 %v1643, %v1755
      %v1757 = vpop.f32.mrb[0].mxu0
      %v1758 = vadd.f32 %v1645, %v1757
      %v1759 = vpop.f32.mrb[0].mxu0
      %v1760 = vadd.f32 %v1647, %v1759
      %1761 = vmatprep.mubr.bf16.mxu0 %v1155
      %1762 = vmatmul.mubr.bf16.gmra.mrb[0].mxu0 %v1154
      %v1763 = vpop.f32.mrb[0].mxu0
      %v1764 = vadd.f32 %v1651, %v1763
      %v1765 = vpop.f32.mrb[0].mxu0
      %v1766 = vadd.f32 %v1653, %v1765
      %v1767 = vpop.f32.mrb[0].mxu0
      %v1768 = vadd.f32 %v1655, %v1767
      %v1769 = vpop.f32.mrb[0].mxu0
      %v1770 = vadd.f32 %v1657, %v1769
      %1771 = vmatprep.mubr.bf16.mxu0 %v1159
      %1772 = vmatmul.mubr.bf16.gmra.mrb[0].mxu0 %v1158
      %v1773 = vpop.f32.mrb[0].mxu0
      %v1774 = vadd.f32 %v1661, %v1773
      %v1775 = vpop.f32.mrb[0].mxu0
      %v1776 = vadd.f32 %v1663, %v1775
      %v1777 = vpop.f32.mrb[0].mxu0
      %v1778 = vadd.f32 %v1665, %v1777
      %v1779 = vpop.f32.mrb[0].mxu0
      %v1780 = vadd.f32 %v1667, %v1779
      %1781 = vdwg.mxu0
      %v1782 = vmax.f32 %v1704, 0.0
      %v1783 = vmax.f32 %v1706, 0.0
      %v1784 = vmax.f32 %v1708, 0.0
      %v1785 = vmax.f32 %v1710, 0.0
      %v1786 = vmax.f32 %v1714, 0.0
      %v1787 = vmax.f32 %v1716, 0.0
      %v1788 = vmax.f32 %v1718, 0.0
      %v1789 = vmax.f32 %v1720, 0.0
      %v1790 = vmax.f32 %v1724, 0.0
      %v1791 = vmax.f32 %v1726, 0.0
      %v1792 = vmax.f32 %v1728, 0.0
      %v1793 = vmax.f32 %v1730, 0.0
      %v1794 = vmax.f32 %v1734, 0.0
      %v1795 = vmax.f32 %v1736, 0.0
      %v1796 = vmax.f32 %v1738, 0.0
      %v1797 = vmax.f32 %v1740, 0.0
      %v1798 = vmax.f32 %v1744, 0.0
      %v1799 = vmax.f32 %v1746, 0.0
      %v1800 = vmax.f32 %v1748, 0.0
      %v1801 = vmax.f32 %v1750, 0.0
      %v1802 = vmax.f32 %v1754, 0.0
      %v1803 = vmax.f32 %v1756, 0.0
      %v1804 = vmax.f32 %v1758, 0.0
      %v1805 = vmax.f32 %v1760, 0.0
      %v1806 = vmax.f32 %v1764, 0.0
      %v1807 = vmax.f32 %v1766, 0.0
      %v1808 = vmax.f32 %v1768, 0.0
      %v1809 = vmax.f32 %v1770, 0.0
      %v1810 = vmax.f32 %v1774, 0.0
      %v1811 = vmax.f32 %v1776, 0.0
      %v1812 = vmax.f32 %v1778, 0.0
      %v1813 = vmax.f32 %v1780, 0.0
      %v1814 = vpack.c.bf16 %v1784, %v1782
      %v1815 = vpack.c.bf16 %v1785, %v1783
      %v1816 = vpack.c.bf16 %v1788, %v1786
      %v1817 = vpack.c.bf16 %v1789, %v1787
      %v1818 = vpack.c.bf16 %v1792, %v1790
      %v1819 = vpack.c.bf16 %v1793, %v1791
      %v1820 = vpack.c.bf16 %v1796, %v1794
      %v1821 = vpack.c.bf16 %v1797, %v1795
      %v1822 = vpack.c.bf16 %v1800, %v1798
      %v1823 = vpack.c.bf16 %v1801, %v1799
      %v1824 = vpack.c.bf16 %v1804, %v1802
      %v1825 = vpack.c.bf16 %v1805, %v1803
      %v1826 = vpack.c.bf16 %v1808, %v1806
      %v1827 = vpack.c.bf16 %v1809, %v1807
      %v1828 = vpack.c.bf16 %v1812, %v1810
      %v1829 = vpack.c.bf16 %v1813, %v1811
      %v1830 = vld [vmem:[%s7] sm:$0xf]
      %v1831 = vld [vmem:[%s7 + $0x4] sm:$0xf]
      %v1832 = vld [vmem:[%s7 + $0x8] sm:$0xf]
      %v1833 = vld [vmem:[%s7 + $0xc] sm:$0xf]
      %v1834 = vld [vmem:[%s7 + $0x10] sm:$0xf]
      %v1835 = vld [vmem:[%s7 + $0x14] sm:$0xf]
      %v1836 = vld [vmem:[%s7 + $0x18] sm:$0xf]
      %v1837 = vld [vmem:[%s7 + $0x1c] sm:$0xf]
      %v1838 = vld [vmem:[%s7 + $0x20] sm:$0xf]
      %v1839 = vld [vmem:[%s7 + $0x24] sm:$0xf]
      %v1840 = vld [vmem:[%s7 + $0x28] sm:$0xf]
      %v1841 = vld [vmem:[%s7 + $0x2c] sm:$0xf]
      %v1842 = vld [vmem:[%s7 + $0x30] sm:$0xf]
      %v1843 = vld [vmem:[%s7 + $0x34] sm:$0xf]
      %v1844 = vld [vmem:[%s7 + $0x38] sm:$0xf]
      %v1845 = vld [vmem:[%s7 + $0x3c] sm:$0xf]
      %v1846 = vld [vmem:[%s7 + $0x40] sm:$0xf]
      %v1847 = vld [vmem:[%s7 + $0x44] sm:$0xf]
      %v1848 = vld [vmem:[%s7 + $0x48] sm:$0xf]
      %v1849 = vld [vmem:[%s7 + $0x4c] sm:$0xf]
      %v1850 = vld [vmem:[%s7 + $0x50] sm:$0xf]
      %v1851 = vld [vmem:[%s7 + $0x54] sm:$0xf]
      %v1852 = vld [vmem:[%s7 + $0x58] sm:$0xf]
      %v1853 = vld [vmem:[%s7 + $0x5c] sm:$0xf]
      %v1854 = vld [vmem:[%s7 + $0x60] sm:$0xf]
      %v1855 = vld [vmem:[%s7 + $0x64] sm:$0xf]
      %v1856 = vld [vmem:[%s7 + $0x68] sm:$0xf]
      %v1857 = vld [vmem:[%s7 + $0x6c] sm:$0xf]
      %v1858 = vld [vmem:[%s7 + $0x70] sm:$0xf]
      %v1859 = vld [vmem:[%s7 + $0x74] sm:$0xf]
      %v1860 = vld [vmem:[%s7 + $0x78] sm:$0xf]
      %v1861 = vld [vmem:[%s7 + $0x7c] sm:$0xf]
      %v1862 = vld [vmem:[%s8] sm:$0x1]
      %v1864 = vlaneseq
      %v1865 = vshrl.u32 %v1864, 7
      %v1866 = vsub.s32 0, %v1865
      %v1867 = vrot.slane %v1862, %v1866
      %v1901 = vunpack.c.l.b16 %v1830
      %v1902 = vunpack.c.l.b16 %v1831
      %v1903 = vunpack.c.l.b16 %v1832
      %v1904 = vunpack.c.l.b16 %v1833
      %v1905 = vunpack.c.l.b16 %v1834
      %v1906 = vunpack.c.l.b16 %v1835
      %v1907 = vunpack.c.l.b16 %v1836
      %v1908 = vunpack.c.l.b16 %v1837
      %v1909 = vunpack.c.l.b16 %v1838
      %v1910 = vunpack.c.l.b16 %v1839
      %v1911 = vunpack.c.l.b16 %v1840
      %v1912 = vunpack.c.l.b16 %v1841
      %v1913 = vunpack.c.l.b16 %v1842
      %v1914 = vunpack.c.l.b16 %v1843
      %v1915 = vunpack.c.l.b16 %v1844
      %v1916 = vunpack.c.l.b16 %v1845
      %v1917 = vunpack.c.l.b16 %v1846
      %v1918 = vunpack.c.l.b16 %v1847
      %v1919 = vunpack.c.l.b16 %v1848
      %v1920 = vunpack.c.l.b16 %v1849
      %v1921 = vunpack.c.l.b16 %v1850
      %v1922 = vunpack.c.l.b16 %v1851
      %v1923 = vunpack.c.l.b16 %v1852
      %v1924 = vunpack.c.l.b16 %v1853
      %v1925 = vunpack.c.l.b16 %v1854
      %v1926 = vunpack.c.l.b16 %v1855
      %v1927 = vunpack.c.l.b16 %v1856
      %v1928 = vunpack.c.l.b16 %v1857
      %v1929 = vunpack.c.l.b16 %v1858
      %v1930 = vunpack.c.l.b16 %v1859
      %v1931 = vunpack.c.l.b16 %v1860
      %v1932 = vunpack.c.l.b16 %v1861
      %v1933 = vpack.c.b16 %v1902, %v1901
      %v1934 = vpack.c.b16 %v1904, %v1903
      %v1935 = vpack.c.b16 %v1906, %v1905
      %v1936 = vpack.c.b16 %v1908, %v1907
      %v1937 = vpack.c.b16 %v1910, %v1909
      %v1938 = vpack.c.b16 %v1912, %v1911
      %v1939 = vpack.c.b16 %v1914, %v1913
      %v1940 = vpack.c.b16 %v1916, %v1915
      %v1941 = vpack.c.b16 %v1918, %v1917
      %v1942 = vpack.c.b16 %v1920, %v1919
      %v1943 = vpack.c.b16 %v1922, %v1921
      %v1944 = vpack.c.b16 %v1924, %v1923
      %v1945 = vpack.c.b16 %v1926, %v1925
      %v1946 = vpack.c.b16 %v1928, %v1927
      %v1947 = vpack.c.b16 %v1930, %v1929
      %v1948 = vpack.c.b16 %v1932, %v1931
      %1965 = vmatprep.subr.bf16.mxu0 0
      %1966 = vmatpush1.bf16.msra.mxu0 %v1933
      %1967 = vmatprep.subr.bf16.mxu0 0
      %1968 = vmatpush1.bf16.msra.mxu0 %v1934
      %1969 = vmatprep.subr.bf16.mxu0 0
      %1970 = vmatpush1.bf16.msra.mxu0 %v1935
      %1971 = vmatprep.subr.bf16.mxu0 0
      %1972 = vmatpush1.bf16.msra.mxu0 %v1936
      %1973 = vmatprep.subr.bf16.mxu0 0
      %1974 = vmatpush1.bf16.msra.mxu0 %v1937
      %1975 = vmatprep.subr.bf16.mxu0 0
      %1976 = vmatpush1.bf16.msra.mxu0 %v1938
      %1977 = vmatprep.subr.bf16.mxu0 0
      %1978 = vmatpush1.bf16.msra.mxu0 %v1939
      %1979 = vmatprep.subr.bf16.mxu0 0
      %1980 = vmatpush1.bf16.msra.mxu0 %v1940
      %1981 = vmatprep.subr.bf16.mxu0 0
      %1982 = vmatpush1.bf16.msra.mxu0 %v1941
      %1983 = vmatprep.subr.bf16.mxu0 0
      %1984 = vmatpush1.bf16.msra.mxu0 %v1942
      %1985 = vmatprep.subr.bf16.mxu0 0
      %1986 = vmatpush1.bf16.msra.mxu0 %v1943
      %1987 = vmatprep.subr.bf16.mxu0 0
      %1988 = vmatpush1.bf16.msra.mxu0 %v1944
      %1989 = vmatprep.subr.bf16.mxu0 0
      %1990 = vmatpush1.bf16.msra.mxu0 %v1945
      %1991 = vmatprep.subr.bf16.mxu0 0
      %1992 = vmatpush1.bf16.msra.mxu0 %v1946
      %1993 = vmatprep.subr.bf16.mxu0 0
      %1994 = vmatpush1.bf16.msra.mxu0 %v1947
      %1995 = vmatprep.subr.bf16.mxu0 0
      %1996 = vmatpush1.bf16.msra.mxu0 %v1948
      %1997 = vmatprep.mubr.bf16.mxu0 %v1815
      %1998 = vmatmul.mubr.bf16.gmra.mrb[0].mxu0 %v1814
      %v1999 = vpop.f32.mrb[0].mxu0
      %v2000 = vadd.f32 %v1867, %v1999
      %v2001 = vpop.f32.mrb[0].mxu0
      %v2002 = vpop.f32.mrb[0].mxu0
      %v2003 = vadd.f32 %v1867, %v2002
      %v2004 = vpop.f32.mrb[0].mxu0
      %2005 = vmatprep.mubr.bf16.mxu0 %v1817
      %2006 = vmatmul.mubr.bf16.gmra.mrb[0].mxu0 %v1816
      %v2007 = vpop.f32.mrb[0].mxu0
      %v2008 = vadd.f32 %v1867, %v2007
      %v2009 = vpop.f32.mrb[0].mxu0
      %v2010 = vpop.f32.mrb[0].mxu0
      %v2011 = vadd.f32 %v1867, %v2010
      %v2012 = vpop.f32.mrb[0].mxu0
      %2013 = vmatprep.mubr.bf16.mxu0 %v1819
      %2014 = vmatmul.mubr.bf16.gmra.mrb[0].mxu0 %v1818
      %v2015 = vpop.f32.mrb[0].mxu0
      %v2016 = vadd.f32 %v1867, %v2015
      %v2017 = vpop.f32.mrb[0].mxu0
      %v2018 = vpop.f32.mrb[0].mxu0
      %v2019 = vadd.f32 %v1867, %v2018
      %v2020 = vpop.f32.mrb[0].mxu0
      %2021 = vmatprep.mubr.bf16.mxu0 %v1821
      %2022 = vmatmul.mubr.bf16.gmra.mrb[0].mxu0 %v1820
      %v2023 = vpop.f32.mrb[0].mxu0
      %v2024 = vadd.f32 %v1867, %v2023
      %v2025 = vpop.f32.mrb[0].mxu0
      %v2026 = vpop.f32.mrb[0].mxu0
      %v2027 = vadd.f32 %v1867, %v2026
      %v2028 = vpop.f32.mrb[0].mxu0
      %2029 = vmatprep.mubr.bf16.mxu0 %v1823
      %2030 = vmatmul.mubr.bf16.gmra.mrb[0].mxu0 %v1822
      %v2031 = vpop.f32.mrb[0].mxu0
      %v2032 = vadd.f32 %v1867, %v2031
      %v2033 = vpop.f32.mrb[0].mxu0
      %v2034 = vpop.f32.mrb[0].mxu0
      %v2035 = vadd.f32 %v1867, %v2034
      %v2036 = vpop.f32.mrb[0].mxu0
      %2037 = vmatprep.mubr.bf16.mxu0 %v1825
      %2038 = vmatmul.mubr.bf16.gmra.mrb[0].mxu0 %v1824
      %v2039 = vpop.f32.mrb[0].mxu0
      %v2040 = vadd.f32 %v1867, %v2039
      %v2041 = vpop.f32.mrb[0].mxu0
      %v2042 = vpop.f32.mrb[0].mxu0
      %v2043 = vadd.f32 %v1867, %v2042
      %v2044 = vpop.f32.mrb[0].mxu0
      %2045 = vmatprep.mubr.bf16.mxu0 %v1827
      %2046 = vmatmul.mubr.bf16.gmra.mrb[0].mxu0 %v1826
      %v2047 = vpop.f32.mrb[0].mxu0
      %v2048 = vadd.f32 %v1867, %v2047
      %v2049 = vpop.f32.mrb[0].mxu0
      %v2050 = vpop.f32.mrb[0].mxu0
      %v2051 = vadd.f32 %v1867, %v2050
      %v2052 = vpop.f32.mrb[0].mxu0
      %2053 = vmatprep.mubr.bf16.mxu0 %v1829
      %2054 = vmatmul.mubr.bf16.gmra.mrb[0].mxu0 %v1828
      %v2055 = vpop.f32.mrb[0].mxu0
      %v2056 = vadd.f32 %v1867, %v2055
      %v2057 = vpop.f32.mrb[0].mxu0
      %v2058 = vpop.f32.mrb[0].mxu0
      %v2059 = vadd.f32 %v1867, %v2058
      %v2060 = vpop.f32.mrb[0].mxu0
      %2061 = vdwg.mxu0
      %v2062 = vmax.f32 %v2000, 0.0
      %v2063 = vmax.f32 %v2003, 0.0
      %v2064 = vmax.f32 %v2008, 0.0
      %v2065 = vmax.f32 %v2011, 0.0
      %v2066 = vmax.f32 %v2016, 0.0
      %v2067 = vmax.f32 %v2019, 0.0
      %v2068 = vmax.f32 %v2024, 0.0
      %v2069 = vmax.f32 %v2027, 0.0
      %v2070 = vmax.f32 %v2032, 0.0
      %v2071 = vmax.f32 %v2035, 0.0
      %v2072 = vmax.f32 %v2040, 0.0
      %v2073 = vmax.f32 %v2043, 0.0
      %v2074 = vmax.f32 %v2048, 0.0
      %v2075 = vmax.f32 %v2051, 0.0
      %v2076 = vmax.f32 %v2056, 0.0
      %v2077 = vmax.f32 %v2059, 0.0
      %v2078 = vpack.c.bf16 %v2063, %v2062
      %v2079 = vpack.c.bf16 %v2065, %v2064
      %v2080 = vpack.c.bf16 %v2067, %v2066
      %v2081 = vpack.c.bf16 %v2069, %v2068
      %v2082 = vpack.c.bf16 %v2071, %v2070
      %v2083 = vpack.c.bf16 %v2073, %v2072
      %v2084 = vpack.c.bf16 %v2075, %v2074
      %v2085 = vpack.c.bf16 %v2077, %v2076
      %v2086 = vld [vmem:[%s9] sm:$0xf]
      %v2087 = vld [vmem:[%s9 + $0x4] sm:$0xf]
      %v2088 = vld [vmem:[%s9 + $0x8] sm:$0xf]
      %v2089 = vld [vmem:[%s9 + $0xc] sm:$0xf]
      %v2090 = vld [vmem:[%s9 + $0x10] sm:$0xf]
      %v2091 = vld [vmem:[%s9 + $0x14] sm:$0xf]
      %v2092 = vld [vmem:[%s9 + $0x18] sm:$0xf]
      %v2093 = vld [vmem:[%s9 + $0x1c] sm:$0xf]
      %v2094 = vld [vmem:[%s9 + $0x20] sm:$0xf]
      %v2095 = vld [vmem:[%s9 + $0x24] sm:$0xf]
      %v2096 = vld [vmem:[%s9 + $0x28] sm:$0xf]
      %v2097 = vld [vmem:[%s9 + $0x2c] sm:$0xf]
      %v2098 = vld [vmem:[%s9 + $0x30] sm:$0xf]
      %v2099 = vld [vmem:[%s9 + $0x34] sm:$0xf]
      %v2100 = vld [vmem:[%s9 + $0x38] sm:$0xf]
      %v2101 = vld [vmem:[%s9 + $0x3c] sm:$0xf]
      %v2102 = vld [vmem:[%s10] sm:$0x1]
      %v2104 = vlaneseq
      %v2105 = vshrl.u32 %v2104, 7
      %v2106 = vsub.s32 0, %v2105
      %v2107 = vrot.slane %v2102, %v2106
      %v2125 = vunpack.c.l.b16 %v2086
      %v2126 = vunpack.c.l.b16 %v2087
      %v2127 = vunpack.c.l.b16 %v2088
      %v2128 = vunpack.c.l.b16 %v2089
      %v2129 = vunpack.c.l.b16 %v2090
      %v2130 = vunpack.c.l.b16 %v2091
      %v2131 = vunpack.c.l.b16 %v2092
      %v2132 = vunpack.c.l.b16 %v2093
      %v2133 = vunpack.c.l.b16 %v2094
      %v2134 = vunpack.c.l.b16 %v2095
      %v2135 = vunpack.c.l.b16 %v2096
      %v2136 = vunpack.c.l.b16 %v2097
      %v2137 = vunpack.c.l.b16 %v2098
      %v2138 = vunpack.c.l.b16 %v2099
      %v2139 = vunpack.c.l.b16 %v2100
      %v2140 = vunpack.c.l.b16 %v2101
      %v2141 = vpack.c.b16 %v2126, %v2125
      %v2142 = vpack.c.b16 %v2128, %v2127
      %v2143 = vpack.c.b16 %v2130, %v2129
      %v2144 = vpack.c.b16 %v2132, %v2131
      %v2145 = vpack.c.b16 %v2134, %v2133
      %v2146 = vpack.c.b16 %v2136, %v2135
      %v2147 = vpack.c.b16 %v2138, %v2137
      %v2148 = vpack.c.b16 %v2140, %v2139
      %2157 = vmatprep.subr.bf16.mxu0 0
      %2158 = vmatpush1.bf16.msra.mxu0 %v2141
      %2159 = vmatprep.subr.bf16.mxu0 0
      %2160 = vmatpush1.bf16.msra.mxu0 %v2142
      %2161 = vmatprep.subr.bf16.mxu0 0
      %2162 = vmatpush1.bf16.msra.mxu0 %v2143
      %2163 = vmatprep.subr.bf16.mxu0 0
      %2164 = vmatpush1.bf16.msra.mxu0 %v2144
      %2165 = vmatprep.subr.bf16.mxu0 0
      %2166 = vmatpush1.bf16.msra.mxu0 %v2145
      %2167 = vmatprep.subr.bf16.mxu0 0
      %2168 = vmatpush1.bf16.msra.mxu0 %v2146
      %2169 = vmatprep.subr.bf16.mxu0 0
      %2170 = vmatpush1.bf16.msra.mxu0 %v2147
      %2171 = vmatprep.subr.bf16.mxu0 0
      %2172 = vmatpush1.bf16.msra.mxu0 %v2148
      %2173 = vmatprep.subr.bf16.mxu0 0
      %2174 = vmatpush1.bf16.msra.mxu0 0
      %2175 = vmatprep.subr.bf16.mxu0 0
      %2176 = vmatpush1.bf16.msra.mxu0 0
      %2177 = vmatprep.subr.bf16.mxu0 0
      %2178 = vmatpush1.bf16.msra.mxu0 0
      %2179 = vmatprep.subr.bf16.mxu0 0
      %2180 = vmatpush1.bf16.msra.mxu0 0
      %2181 = vmatprep.subr.bf16.mxu0 0
      %2182 = vmatpush1.bf16.msra.mxu0 0
      %2183 = vmatprep.subr.bf16.mxu0 0
      %2184 = vmatpush1.bf16.msra.mxu0 0
      %2185 = vmatprep.subr.bf16.mxu0 0
      %2186 = vmatpush1.bf16.msra.mxu0 0
      %2187 = vmatprep.subr.bf16.mxu0 0
      %2188 = vmatpush1.bf16.msra.mxu0 0
      %2189 = vmatprep.mubr.bf16.mxu0 0
      %2190 = vmatmul.mubr.bf16.gmra.mrb[0].mxu0 %v2078
      %v2191 = vpop.f32.mrb[0].mxu0
      %v2192 = vadd.f32 %v2107, %v2191
      %v2193 = vpop.f32.mrb[0].mxu0
      %v2194 = vpop.f32.mrb[0].mxu0
      %v2195 = vadd.f32 %v2107, %v2194
      %v2196 = vpop.f32.mrb[0].mxu0
      %2197 = vmatprep.mubr.bf16.mxu0 0
      %2198 = vmatmul.mubr.bf16.gmra.mrb[0].mxu0 %v2079
      %v2199 = vpop.f32.mrb[0].mxu0
      %v2200 = vadd.f32 %v2107, %v2199
      %v2201 = vpop.f32.mrb[0].mxu0
      %v2202 = vpop.f32.mrb[0].mxu0
      %v2203 = vadd.f32 %v2107, %v2202
      %v2204 = vpop.f32.mrb[0].mxu0
      %2205 = vmatprep.mubr.bf16.mxu0 0
      %2206 = vmatmul.mubr.bf16.gmra.mrb[0].mxu0 %v2080
      %v2207 = vpop.f32.mrb[0].mxu0
      %v2208 = vadd.f32 %v2107, %v2207
      %v2209 = vpop.f32.mrb[0].mxu0
      %v2210 = vpop.f32.mrb[0].mxu0
      %v2211 = vadd.f32 %v2107, %v2210
      %v2212 = vpop.f32.mrb[0].mxu0
      %2213 = vmatprep.mubr.bf16.mxu0 0
      %2214 = vmatmul.mubr.bf16.gmra.mrb[0].mxu0 %v2081
      %v2215 = vpop.f32.mrb[0].mxu0
      %v2216 = vadd.f32 %v2107, %v2215
      %v2217 = vpop.f32.mrb[0].mxu0
      %v2218 = vpop.f32.mrb[0].mxu0
      %v2219 = vadd.f32 %v2107, %v2218
      %v2220 = vpop.f32.mrb[0].mxu0
      %2221 = vmatprep.mubr.bf16.mxu0 0
      %2222 = vmatmul.mubr.bf16.gmra.mrb[0].mxu0 %v2082
      %v2223 = vpop.f32.mrb[0].mxu0
      %v2224 = vadd.f32 %v2107, %v2223
      %v2225 = vpop.f32.mrb[0].mxu0
      %v2226 = vpop.f32.mrb[0].mxu0
      %v2227 = vadd.f32 %v2107, %v2226
      %v2228 = vpop.f32.mrb[0].mxu0
      %2229 = vmatprep.mubr.bf16.mxu0 0
      %2230 = vmatmul.mubr.bf16.gmra.mrb[0].mxu0 %v2083
      %v2231 = vpop.f32.mrb[0].mxu0
      %v2232 = vadd.f32 %v2107, %v2231
      %v2233 = vpop.f32.mrb[0].mxu0
      %v2234 = vpop.f32.mrb[0].mxu0
      %v2235 = vadd.f32 %v2107, %v2234
      %v2236 = vpop.f32.mrb[0].mxu0
      %2237 = vmatprep.mubr.bf16.mxu0 0
      %2238 = vmatmul.mubr.bf16.gmra.mrb[0].mxu0 %v2084
      %v2239 = vpop.f32.mrb[0].mxu0
      %v2240 = vadd.f32 %v2107, %v2239
      %v2241 = vpop.f32.mrb[0].mxu0
      %v2242 = vpop.f32.mrb[0].mxu0
      %v2243 = vadd.f32 %v2107, %v2242
      %v2244 = vpop.f32.mrb[0].mxu0
      %2245 = vmatprep.mubr.bf16.mxu0 0
      %2246 = vmatmul.mubr.bf16.gmra.mrb[0].mxu0 %v2085
      %v2247 = vpop.f32.mrb[0].mxu0
      %v2248 = vadd.f32 %v2107, %v2247
      %v2249 = vpop.f32.mrb[0].mxu0
      %v2250 = vpop.f32.mrb[0].mxu0
      %v2251 = vadd.f32 %v2107, %v2250
      %v2252 = vpop.f32.mrb[0].mxu0
      %2253 = vdwg.mxu0
      %v2254 = vxor.u32 %v2192, 2147483648
      %v2255 = vxor.u32 %v2195, 2147483648
      %v2256 = vxor.u32 %v2200, 2147483648
      %v2257 = vxor.u32 %v2203, 2147483648
      %v2258 = vxor.u32 %v2208, 2147483648
      %v2259 = vxor.u32 %v2211, 2147483648
      %v2260 = vxor.u32 %v2216, 2147483648
      %v2261 = vxor.u32 %v2219, 2147483648
      %v2262 = vxor.u32 %v2224, 2147483648
      %v2263 = vxor.u32 %v2227, 2147483648
      %v2264 = vxor.u32 %v2232, 2147483648
      %v2265 = vxor.u32 %v2235, 2147483648
      %v2266 = vxor.u32 %v2240, 2147483648
      %v2267 = vxor.u32 %v2243, 2147483648
      %v2268 = vxor.u32 %v2248, 2147483648
      %v2269 = vxor.u32 %v2251, 2147483648
      %v2270 = vmul.f32 %v2254, 1.442695
      %v2271 = vpow.pop %v2270
      %v2272 = vmul.f32 %v2255, 1.442695
      %v2273 = vpow.pop %v2272
      %v2274 = vmul.f32 %v2256, 1.442695
      %v2275 = vpow.pop %v2274
      %v2276 = vmul.f32 %v2257, 1.442695
      %v2277 = vpow.pop %v2276
      %v2278 = vmul.f32 %v2258, 1.442695
      %v2279 = vpow.pop %v2278
      %v2280 = vmul.f32 %v2259, 1.442695
      %v2281 = vpow.pop %v2280
      %v2282 = vmul.f32 %v2260, 1.442695
      %v2283 = vpow.pop %v2282
      %v2284 = vmul.f32 %v2261, 1.442695
      %v2285 = vpow.pop %v2284
      %v2286 = vmul.f32 %v2262, 1.442695
      %v2287 = vpow.pop %v2286
      %v2288 = vmul.f32 %v2263, 1.442695
      %v2289 = vpow.pop %v2288
      %v2290 = vmul.f32 %v2264, 1.442695
      %v2291 = vpow.pop %v2290
      %v2292 = vmul.f32 %v2265, 1.442695
      %v2293 = vpow.pop %v2292
      %v2294 = vmul.f32 %v2266, 1.442695
      %v2295 = vpow.pop %v2294
      %v2296 = vmul.f32 %v2267, 1.442695
      %v2297 = vpow.pop %v2296
      %v2298 = vmul.f32 %v2268, 1.442695
      %v2299 = vpow.pop %v2298
      %v2300 = vmul.f32 %v2269, 1.442695
      %v2301 = vpow.pop %v2300
      %v2302 = vadd.f32 %v2271, 1.0
      %v2303 = vadd.f32 %v2273, 1.0
      %v2304 = vadd.f32 %v2275, 1.0
      %v2305 = vadd.f32 %v2277, 1.0
      %v2306 = vadd.f32 %v2279, 1.0
      %v2307 = vadd.f32 %v2281, 1.0
      %v2308 = vadd.f32 %v2283, 1.0
      %v2309 = vadd.f32 %v2285, 1.0
      %v2310 = vadd.f32 %v2287, 1.0
      %v2311 = vadd.f32 %v2289, 1.0
      %v2312 = vadd.f32 %v2291, 1.0
      %v2313 = vadd.f32 %v2293, 1.0
      %v2314 = vadd.f32 %v2295, 1.0
      %v2315 = vadd.f32 %v2297, 1.0
      %v2316 = vadd.f32 %v2299, 1.0
      %v2317 = vadd.f32 %v2301, 1.0
      %v2318 = vrcp.pop %v2302
      %v2319 = vmul.f32 1.0, %v2318
      %v2320 = vrcp.pop %v2303
      %v2321 = vmul.f32 1.0, %v2320
      %v2322 = vrcp.pop %v2304
      %v2323 = vmul.f32 1.0, %v2322
      %v2324 = vrcp.pop %v2305
      %v2325 = vmul.f32 1.0, %v2324
      %v2326 = vrcp.pop %v2306
      %v2327 = vmul.f32 1.0, %v2326
      %v2328 = vrcp.pop %v2307
      %v2329 = vmul.f32 1.0, %v2328
      %v2330 = vrcp.pop %v2308
      %v2331 = vmul.f32 1.0, %v2330
      %v2332 = vrcp.pop %v2309
      %v2333 = vmul.f32 1.0, %v2332
      %v2334 = vrcp.pop %v2310
      %v2335 = vmul.f32 1.0, %v2334
      %v2336 = vrcp.pop %v2311
      %v2337 = vmul.f32 1.0, %v2336
      %v2338 = vrcp.pop %v2312
      %v2339 = vmul.f32 1.0, %v2338
      %v2340 = vrcp.pop %v2313
      %v2341 = vmul.f32 1.0, %v2340
      %v2342 = vrcp.pop %v2314
      %v2343 = vmul.f32 1.0, %v2342
      %v2344 = vrcp.pop %v2315
      %v2345 = vmul.f32 1.0, %v2344
      %v2346 = vrcp.pop %v2316
      %v2347 = vmul.f32 1.0, %v2346
      %v2348 = vrcp.pop %v2317
      %v2349 = vmul.f32 1.0, %v2348
      %vm2350 = vcmask 64512
      %2351 = vst.msk [vmem:[%s478] sm:$0xff] %vm2350, %v2319
      %2352 = vst.msk [vmem:[%s478 + $0x8] sm:$0xff] %vm2350, %v2321
      %2353 = vst.msk [vmem:[%s478 + $0x10] sm:$0xff] %vm2350, %v2323
      %2354 = vst.msk [vmem:[%s478 + $0x18] sm:$0xff] %vm2350, %v2325
      %2355 = vst.msk [vmem:[%s478 + $0x20] sm:$0xff] %vm2350, %v2327
      %2356 = vst.msk [vmem:[%s478 + $0x28] sm:$0xff] %vm2350, %v2329
      %2357 = vst.msk [vmem:[%s478 + $0x30] sm:$0xff] %vm2350, %v2331
      %2358 = vst.msk [vmem:[%s478 + $0x38] sm:$0xff] %vm2350, %v2333
      %2359 = vst.msk [vmem:[%s478 + $0x40] sm:$0xff] %vm2350, %v2335
      %2360 = vst.msk [vmem:[%s478 + $0x48] sm:$0xff] %vm2350, %v2337
      %2361 = vst.msk [vmem:[%s478 + $0x50] sm:$0xff] %vm2350, %v2339
      %2362 = vst.msk [vmem:[%s478 + $0x58] sm:$0xff] %vm2350, %v2341
      %2363 = vst.msk [vmem:[%s478 + $0x60] sm:$0xff] %vm2350, %v2343
      %2364 = vst.msk [vmem:[%s478 + $0x68] sm:$0xff] %vm2350, %v2345
      %2365 = vst.msk [vmem:[%s478 + $0x70] sm:$0xff] %vm2350, %v2347
      %2366 = vst.msk [vmem:[%s478 + $0x78] sm:$0xff] %vm2350, %v2349
      %s2367 = smul.u32 16, %s27
      %p2368 = scmp.lt.s32.totalorder %s26, 1
      %s2369 = scalar_select %p2368, %s26, 1
      %p2370 = scmp.lt.s32.totalorder %s2367, 15
      %s2371 = scalar_select %p2370, %s2367, 15
      %s2372 = smul.addr %s2369, 16
      %s2373 = sadd.s32 %s2371, %s2372
      %s2374 = smul.addr %s2373, 8
      %s2375 = scalar_lea.vmem %s11, %s2374
      // Predicated region
      $region65: #{pointnet_reg_forward_pallas.7} parent=63 // pred_check
        %p2376 = pneg %p307
      $region66: #{pointnet_reg_forward_pallas.7} parent=63 // pred_check_branch
        %2378 = sbr.rel (%p2376) target = $region68
      $region67: #{pointnet_reg_forward_pallas.7} parent=63 // pred_region
        %s2379 = smul.u32 16, %s27
      $region68: #{pointnet_reg_forward_pallas.7} parent=63 // pred_fallthru
        _
    $region64: #{pointnet_reg_forward_pallas.7} parent=5 // pred_fallthru
      _
    %p2380 = scmp.le.s32.totalorder 2, %s17
    // Predicated region
    $region69: #{pointnet_reg_forward_pallas.7} parent=5 // pred_check
      %p2381 = pneg %p2380
    $region70: #{pointnet_reg_forward_pallas.7} parent=5 // pred_check_branch
      %2383 = sbr.rel (%p2381) target = $region72
    $region71: #{pointnet_reg_forward_pallas.7} parent=5 // pred_region
      %s2384 = ssub.s32 %s17, 2
      // Predicated region
      $region73: #{pointnet_reg_forward_pallas.7} parent=71 // pred_check
        %p2385 = pneg %p313
      $region74: #{pointnet_reg_forward_pallas.7} parent=71 // pred_check_branch
        %2387 = sbr.rel (%p2385) target = $region76
      $region75: #{pointnet_reg_forward_pallas.7} parent=71 // pred_region
        %s2388 = smul.u32 16, %s29
        %p2389 = scmp.lt.s32.totalorder %s28, 1
        %s2390 = scalar_select %p2389, %s28, 1
        %p2391 = scmp.lt.s32.totalorder %s2388, 15
        %s2392 = scalar_select %p2391, %s2388, 15
        %s2393 = smul.addr %s2390, 16
        %s2394 = sadd.s32 %s2392, %s2393
        %s2395 = smul.addr %s2394, 8
        %s2396 = scalar_lea.vmem %s11, %s2395
      $region76: #{pointnet_reg_forward_pallas.7} parent=71 // pred_fallthru
        _
    $region72: #{pointnet_reg_forward_pallas.7} parent=5 // pred_fallthru
      _
  $region6: #{pointnet_reg_forward_pallas.7} parent=0 // loop_footer
    %s21 = sadd.s32 1, %s17
  $region7: #{pointnet_reg_forward_pallas.7} parent=0 // loop_footer_branch
    %16 = sbr.rel target = $region3
  $region8: #{pointnet_reg_forward_pallas.7} parent=0 // loop_exit
    _

</llo_original>
